<compile_context>
chip_gen: v7x
topology: tpu7x:2x2x1
jax: 0.10.0
libtpu: 0.0.40
codegen_flags: <defaults>
</compile_context>

<pallas_src>
import functools

import jax
import jax.numpy as jnp
from jax import lax
from jax.experimental import pallas as pl
from jax.experimental.pallas import tpu as pltpu


# ------------------------------ fused kernel --------------------------------
def _mxnet_kernel(scal_ref, y_ref, dft_ref, srep_ref, tapm_ref,
                  cxw_ref, cmw_ref,
                  pxw1_ref, pxb1_ref, pxw2_ref, pxb2_ref,
                  pmw1_ref, pmb1_ref, pmw2_ref, pmb2_ref,
                  xs_ref, zs_ref, mask_ref, *, H, W, S, T):
    HW = H * W
    sig_last = scal_ref[0]
    sig0 = scal_ref[1]
    fai = scal_ref[2]

    # ---- precomputed boundary masks for the 9 conv taps (hoisted to setup) --
    tapm = tapm_ref[...]                                          # (9, HW)
    taps = [(dh, dw) for dh in (-1, 0, 1) for dw in (-1, 0, 1)]
    tap_masks = [tapm[k:k + 1] for k in range(9)]                 # (1, HW) each

    def conv3x3(x, wmat, bias=None):
        """x: (cin, HW) lane-major planes; wmat: (cout, 9*cin) -> (cout, HW)."""
        cols = []
        for k, (dh, dw) in enumerate(taps):
            off = dh * W + dw
            if off == 0:
                cols.append(x)
            else:
                xk = pltpu.roll(x, shift=(-off) % HW, axis=1)
                cols.append(xk * tap_masks[k])
        patch = jnp.concatenate(cols, axis=0)                     # (9*cin, HW)
        out = jnp.dot(wmat, patch, preferred_element_type=jnp.float32)
        if bias is not None:
            out = out + bias                                      # (cout,1) bc
        return out

    def resblocks(x, w1_ref, b1_ref, w2_ref, b2_ref):
        for t in range(T):
            h = conv3x3(x, w1_ref[t], b1_ref[t])
            h = jnp.maximum(h, 0.0)
            h = conv3x3(h, w2_ref[t], b2_ref[t])
            x = x + h
        return x

    # Centered ortho 2-D DFT operators, packed as (HW, 2*HW) = [Re | Im].
    fft_m = dft_ref[0]
    ifft_m = dft_ref[1]

    def cdft(xr, xi, m):
        """One complex transform as a single MXU matmul.
        out_r = xr@Mr - xi@Mi ; out_i = xr@Mi + xi@Mr."""
        x2 = jnp.concatenate([xr, xi], axis=0)                    # (2, HW)
        t = jnp.dot(x2, m, preferred_element_type=jnp.float32)    # (2, 2*HW)
        return t[0:1, :HW] - t[1:2, HW:], t[0:1, HW:] + t[1:2, :HW]

    srep = srep_ref[...]

    y2 = y_ref[0]                                                 # (2, HW)
    yr, yi = y2[0:1], y2[1:2]

    # ------------- initial stage: X0 = proxX(cat(ifft(Y), CX*ifft(Y))) ------
    ir, ii = cdft(yr, yi, ifft_m)
    img = jnp.concatenate([ir, ii], axis=0)                       # (2, HW)
    cat0 = jnp.concatenate([img, conv3x3(img, cxw_ref[...])], axis=0)
    x_all = resblocks(cat0, pxw1_ref, pxb1_ref, pxw2_ref, pxb2_ref)
    xr, xi = x_all[0:1], x_all[1:2]
    xz = x_all[2:]
    zr, zi = cdft(xr, xi, fft_m)

    # loop-invariant hoists
    sy2 = sig_last * (yr * yr + yi * yi)                          # sigma*|Y|^2
    fyr = fai * yr
    fyi = fai * yi

    mask = None
    for s in range(S):
        # mask init: sum over H + repeat over H  ==  one matmul with srep
        n_mask = sy2 + 2.0 * (yr * zr + yi * zi)
        d_mask = (zr * zr + zi * zi) + sy2
        nd = jnp.concatenate([n_mask, d_mask], axis=0)            # (2, HW)
        sums = jnp.dot(nd, srep, preferred_element_type=jnp.float32)
        rep = (sums[0:1] + sig0) / (sums[1:2] + sig0)             # (1, HW)
        mcat = jnp.concatenate([rep, conv3x3(rep, cmw_ref[...])], axis=0)
        pm = resblocks(mcat, pmw1_ref, pmb1_ref, pmw2_ref, pmb2_ref)
        mask = pm[0:1]                                            # (1, HW)

        # X update
        izr, izi = cdft(zr, zi, ifft_m)
        cat = jnp.concatenate([izr, izi, xz], axis=0)
        ox = resblocks(cat, pxw1_ref, pxb1_ref, pxw2_ref, pxb2_ref)
        xr, xi = ox[0:1], ox[1:2]
        xz = ox[2:]

        # Z update
        fxr, fxi = cdft(xr, xi, fft_m)
        denom = 1.0 + 2.0 * mask * mask
        zr = (fxr + mask * fyr) / denom
        zi = (fxi + mask * fyi) / denom

        xs_ref[s, 0] = jnp.concatenate([xr, xi], axis=0)
        zs_ref[s, 0] = jnp.concatenate([zr, zi], axis=0)

    mask_ref[0] = mask


# --------------------------- hoisted constants -------------------------------
def make_constants(H, W):
    """Precomputed (once, outside the kernel):
      * centered 2-D ortho DFT operators acting on row-major flattened row
        vectors, packed as (HW, 2*HW) = [Re | Im] -> one matmul per transform;
      * the sum-over-H + repeat matrix;
      * the 9 tap boundary masks for the in-register im2col."""
    HW = H * W
    basis = jnp.eye(HW, dtype=jnp.complex64).reshape(HW, H, W)

    def centered(x, inverse):
        x = jnp.fft.ifftshift(x, axes=(-2, -1))
        x = (jnp.fft.ifft2(x, norm="ortho") if inverse
             else jnp.fft.fft2(x, norm="ortho"))
        return jnp.fft.fftshift(x, axes=(-2, -1))

    fwd = centered(basis, False).reshape(HW, HW)
    inv = centered(basis, True).reshape(HW, HW)
    dft = jnp.stack([
        jnp.concatenate([jnp.real(fwd), jnp.imag(fwd)], axis=1),
        jnp.concatenate([jnp.real(inv), jnp.imag(inv)], axis=1),
    ]).astype(jnp.float32)                                        # (2, HW, 2HW)

    idx = jnp.arange(HW)
    srep = (idx[:, None] % W == idx[None, :] % W).astype(jnp.float32)

    hh = jnp.repeat(jnp.arange(H), W)
    ww = jnp.tile(jnp.arange(W), H)
    masks = []
    for dh in (-1, 0, 1):
        for dw in (-1, 0, 1):
            mh = jnp.ones((HW,), bool) if dh == 0 else \
                (hh >= 1 if dh == -1 else hh <= H - 2)
            mw = jnp.ones((HW,), bool) if dw == 0 else \
                (ww >= 1 if dw == -1 else ww <= W - 2)
            masks.append((mh & mw).astype(jnp.float32))
    tapm = jnp.stack(masks, axis=0)                               # (9, HW)
    return dict(dft=dft, srep=srep, tapm=tapm)


# ----------------------------- weight packing --------------------------------
def _pack_w(w):
    # OIHW (cout, cin, 3, 3) -> (cout, 9*cin), tap-major (kh*3+kw) then cin.
    cout, cin = w.shape[0], w.shape[1]
    return jnp.transpose(w, (0, 2, 3, 1)).reshape(cout, 9 * cin)


def _pack_w_stack(w):
    # (T, cout, cin, 3, 3) -> (T, cout, 9*cin)
    t, cout, cin = w.shape[0], w.shape[1], w.shape[2]
    return jnp.transpose(w, (0, 1, 3, 4, 2)).reshape(t, cout, 9 * cin)


# ------------------------------- parameters ----------------------------------
def init_params(key, S, T, fai, num_channel, num_mask_channel):
    base = jnp.array([[0.0, 1.0, 0.0],
                      [1.0, -4.0, 1.0],
                      [0.0, 1.0, 0.0]], jnp.float32) * 0.25
    cx = jnp.broadcast_to(base, (num_channel, 2, 3, 3))           # OIHW
    cm = jnp.broadcast_to(base, (num_mask_channel, 1, 3, 3))

    def resblocks(key, ch, scale=0.1):
        w1, b1, w2, b2 = [], [], [], []
        for _ in range(T):
            key, k1, k2 = jax.random.split(key, 3)
            w1.append(scale * jax.random.normal(k1, (ch, ch, 3, 3), jnp.float32))
            b1.append(jnp.zeros((ch,), jnp.float32))
            w2.append(scale * jax.random.normal(k2, (ch, ch, 3, 3), jnp.float32))
            b2.append(jnp.zeros((ch,), jnp.float32))
        return key, (jnp.stack(w1), jnp.stack(b1), jnp.stack(w2), jnp.stack(b2))

    key, prox_x = resblocks(key, num_channel + 2)
    key, prox_m = resblocks(key, num_mask_channel + 1)
    return dict(CX=cx, CM=cm, proxX=prox_x, proxM=prox_m,
                sigma=jnp.ones((S,), jnp.float32) * 0.1,
                fai2=jnp.ones((S,), jnp.float32) * fai)


# ------------------------------ forward pass ---------------------------------
def mxnet_forward(Y, params, consts):
    """Y: (B, 1, H, W, 2) k-space.  Returns (ListX, ListZ, mask) like mxnet."""
    B, _, H, W, _ = Y.shape
    HW = H * W
    S = params["sigma"].shape[0]
    T = params["proxX"][0].shape[0]

    cxw = _pack_w(params["CX"])
    cmw = _pack_w(params["CM"])
    pxw1 = _pack_w_stack(params["proxX"][0]); pxb1 = params["proxX"][1][..., None]
    pxw2 = _pack_w_stack(params["proxX"][2]); pxb2 = params["proxX"][3][..., None]
    pmw1 = _pack_w_stack(params["proxM"][0]); pmb1 = params["proxM"][1][..., None]
    pmw2 = _pack_w_stack(params["proxM"][2]); pmb2 = params["proxM"][3][..., None]
    scal = jnp.stack([params["sigma"][-1], params["sigma"][0],
                      params["fai2"][-1]]).astype(jnp.float32)
    ybatch = jnp.transpose(Y[:, 0], (0, 3, 1, 2)).reshape(B, 2, HW)

    def rep_spec(a):
        return pl.BlockSpec(a.shape, lambda b, nd=a.ndim: (0,) * nd)

    kern = functools.partial(_mxnet_kernel, H=H, W=W, S=S, T=T)
    xs, zs, mk = pl.pallas_call(
        kern,
        grid=(B,),
        in_specs=[
            pl.BlockSpec(memory_space=pltpu.MemorySpace.SMEM),    # sigma/fai
            pl.BlockSpec((1, 2, HW), lambda b: (b, 0, 0)),        # Y planes
            rep_spec(consts["dft"]), rep_spec(consts["srep"]),
            rep_spec(consts["tapm"]),
            rep_spec(cxw), rep_spec(cmw),
            rep_spec(pxw1), rep_spec(pxb1), rep_spec(pxw2), rep_spec(pxb2),
            rep_spec(pmw1), rep_spec(pmb1), rep_spec(pmw2), rep_spec(pmb2),
        ],
        out_specs=[
            pl.BlockSpec((S, 1, 2, HW), lambda b: (0, b, 0, 0)),
            pl.BlockSpec((S, 1, 2, HW), lambda b: (0, b, 0, 0)),
            pl.BlockSpec((1, 1, HW), lambda b: (b, 0, 0)),
        ],
        out_shape=[
            jax.ShapeDtypeStruct((S, B, 2, HW), jnp.float32),
            jax.ShapeDtypeStruct((S, B, 2, HW), jnp.float32),
            jax.ShapeDtypeStruct((B, 1, HW), jnp.float32),
        ],
        compiler_params=pltpu.CompilerParams(
            dimension_semantics=("parallel",)),
    )(scal, ybatch, consts["dft"], consts["srep"], consts["tapm"], cxw, cmw,
      pxw1, pxb1, pxw2, pxb2, pmw1, pmb1, pmw2, pmb2)

    def to_img(a):                       # (B, 2, HW) -> (B, 1, H, W, 2)
        return jnp.transpose(a.reshape(B, 2, H, W), (0, 2, 3, 1))[:, None]

    listX = [to_img(xs[s]) for s in range(S)]
    listZ = [to_img(zs[s]) for s in range(S)]
    return listX, listZ, mk.reshape(B, 1, H, W)


# ---------------------------------- main --------------------------------------
if __name__ == "__main__":
    # args: S=2, T=1, fai=0.5, num_channel=4, num_mask_channel=4, batchSize=2
    B, H, W = 2, 16, 16
    S, T, fai = 2, 1, 0.5
    num_channel, num_mask_channel = 4, 4

    params = init_params(jax.random.PRNGKey(42), S, T, fai,
                         num_channel, num_mask_channel)
    consts = make_constants(H, W)
    Y = jax.random.normal(jax.random.PRNGKey(0), (B, 1, H, W, 2), jnp.float32)

    fwd = jax.jit(mxnet_forward)
    listX, listZ, mask = fwd(Y, params, consts)
    jax.block_until_ready((listX, listZ, mask))
    assert len(listX) == S and len(listZ) == S
    assert listX[0].shape == (B, 1, H, W, 2)
    assert listZ[0].shape == (B, 1, H, W, 2)
    assert mask.shape == (B, 1, H, W)
    print("KERNEL_OK")
</pallas_src>

<mosaic_0001>
module attributes {stable_mosaic.version = 11 : i64} {
  func.func @_mxnet_kernel(%arg0: i32, %arg1: memref<3xf32, #tpu.memory_space<smem>>, %arg2: memref<1x2x256xf32, #tpu.memory_space<vmem>>, %arg3: memref<2x256x512xf32, #tpu.memory_space<vmem>>, %arg4: memref<256x256xf32, #tpu.memory_space<vmem>>, %arg5: memref<9x256xf32, #tpu.memory_space<vmem>>, %arg6: memref<4x18xf32, #tpu.memory_space<vmem>>, %arg7: memref<4x9xf32, #tpu.memory_space<vmem>>, %arg8: memref<1x6x54xf32, #tpu.memory_space<vmem>>, %arg9: memref<1x6x1xf32, #tpu.memory_space<vmem>>, %arg10: memref<1x6x54xf32, #tpu.memory_space<vmem>>, %arg11: memref<1x6x1xf32, #tpu.memory_space<vmem>>, %arg12: memref<1x5x45xf32, #tpu.memory_space<vmem>>, %arg13: memref<1x5x1xf32, #tpu.memory_space<vmem>>, %arg14: memref<1x5x45xf32, #tpu.memory_space<vmem>>, %arg15: memref<1x5x1xf32, #tpu.memory_space<vmem>>, %arg16: memref<2x1x2x256xf32, #tpu.memory_space<vmem>>, %arg17: memref<2x1x2x256xf32, #tpu.memory_space<vmem>>, %arg18: memref<1x1x256xf32, #tpu.memory_space<vmem>>) attributes {dimension_semantics = [#tpu.dimension_semantics<parallel>], iteration_bounds = array<i64: 2>, scalar_prefetch = 0 : i64, scratch_operands = 0 : i64, tpu.core_type = #tpu.core_type<tc>, window_params = [{transform_indices = @transform_0, window_bounds = array<i64: 3>}, {transform_indices = @transform_1, window_bounds = array<i64: 1, 2, 256>}, {pipeline_mode = #tpu.pipeline_mode<synchronous>, transform_indices = @transform_2, window_bounds = array<i64: 2, 256, 512>}, {pipeline_mode = #tpu.pipeline_mode<synchronous>, transform_indices = @transform_3, window_bounds = array<i64: 256, 256>}, {pipeline_mode = #tpu.pipeline_mode<synchronous>, transform_indices = @transform_4, window_bounds = array<i64: 9, 256>}, {pipeline_mode = #tpu.pipeline_mode<synchronous>, transform_indices = @transform_5, window_bounds = array<i64: 4, 18>}, {pipeline_mode = #tpu.pipeline_mode<synchronous>, transform_indices = @transform_6, window_bounds = array<i64: 4, 9>}, {pipeline_mode = #tpu.pipeline_mode<synchronous>, transform_indices = @transform_7, window_bounds = array<i64: 1, 6, 54>}, {pipeline_mode = #tpu.pipeline_mode<synchronous>, transform_indices = @transform_8, window_bounds = array<i64: 1, 6, 1>}, {pipeline_mode = #tpu.pipeline_mode<synchronous>, transform_indices = @transform_9, window_bounds = array<i64: 1, 6, 54>}, {pipeline_mode = #tpu.pipeline_mode<synchronous>, transform_indices = @transform_10, window_bounds = array<i64: 1, 6, 1>}, {pipeline_mode = #tpu.pipeline_mode<synchronous>, transform_indices = @transform_11, window_bounds = array<i64: 1, 5, 45>}, {pipeline_mode = #tpu.pipeline_mode<synchronous>, transform_indices = @transform_12, window_bounds = array<i64: 1, 5, 1>}, {pipeline_mode = #tpu.pipeline_mode<synchronous>, transform_indices = @transform_13, window_bounds = array<i64: 1, 5, 45>}, {pipeline_mode = #tpu.pipeline_mode<synchronous>, transform_indices = @transform_14, window_bounds = array<i64: 1, 5, 1>}, {transform_indices = @transform_15, window_bounds = array<i64: 2, 1, 2, 256>}, {transform_indices = @transform_16, window_bounds = array<i64: 2, 1, 2, 256>}, {transform_indices = @transform_17, window_bounds = array<i64: 1, 1, 256>}]} {
    %c0 = arith.constant 0 : index
    %0 = memref.load %arg1[%c0] : memref<3xf32, #tpu.memory_space<smem>>
    %c1 = arith.constant 1 : index
    %1 = memref.load %arg1[%c1] : memref<3xf32, #tpu.memory_space<smem>>
    %c2 = arith.constant 2 : index
    %2 = memref.load %arg1[%c2] : memref<3xf32, #tpu.memory_space<smem>>
    %c0_0 = arith.constant 0 : index
    %c0_1 = arith.constant 0 : index
    %3 = vector.load %arg5[%c0_0, %c0_1] : memref<9x256xf32, #tpu.memory_space<vmem>>, vector<9x256xf32>
    %4 = vector.extract_strided_slice %3 {offsets = [0, 0], sizes = [1, 256], strides = [1, 1]} : vector<9x256xf32> to vector<1x256xf32>
    %5 = vector.extract_strided_slice %3 {offsets = [1, 0], sizes = [1, 256], strides = [1, 1]} : vector<9x256xf32> to vector<1x256xf32>
    %6 = vector.extract_strided_slice %3 {offsets = [2, 0], sizes = [1, 256], strides = [1, 1]} : vector<9x256xf32> to vector<1x256xf32>
    %7 = vector.extract_strided_slice %3 {offsets = [3, 0], sizes = [1, 256], strides = [1, 1]} : vector<9x256xf32> to vector<1x256xf32>
    %8 = vector.extract_strided_slice %3 {offsets = [5, 0], sizes = [1, 256], strides = [1, 1]} : vector<9x256xf32> to vector<1x256xf32>
    %9 = vector.extract_strided_slice %3 {offsets = [6, 0], sizes = [1, 256], strides = [1, 1]} : vector<9x256xf32> to vector<1x256xf32>
    %10 = vector.extract_strided_slice %3 {offsets = [7, 0], sizes = [1, 256], strides = [1, 1]} : vector<9x256xf32> to vector<1x256xf32>
    %11 = vector.extract_strided_slice %3 {offsets = [8, 0], sizes = [1, 256], strides = [1, 1]} : vector<9x256xf32> to vector<1x256xf32>
    %c0_2 = arith.constant 0 : index
    %c0_3 = arith.constant 0 : index
    %c0_4 = arith.constant 0 : index
    %12 = vector.load %arg3[%c0_2, %c0_3, %c0_4] : memref<2x256x512xf32, #tpu.memory_space<vmem>>, vector<1x256x512xf32>
    %13 = vector.shape_cast %12 : vector<1x256x512xf32> to vector<256x512xf32>
    %c1_5 = arith.constant 1 : index
    %c0_6 = arith.constant 0 : index
    %c0_7 = arith.constant 0 : index
    %14 = vector.load %arg3[%c1_5, %c0_6, %c0_7] : memref<2x256x512xf32, #tpu.memory_space<vmem>>, vector<1x256x512xf32>
    %15 = vector.shape_cast %14 : vector<1x256x512xf32> to vector<256x512xf32>
    %c0_8 = arith.constant 0 : index
    %c0_9 = arith.constant 0 : index
    %16 = vector.load %arg4[%c0_8, %c0_9] : memref<256x256xf32, #tpu.memory_space<vmem>>, vector<256x256xf32>
    %c0_10 = arith.constant 0 : index
    %c0_11 = arith.constant 0 : index
    %c0_12 = arith.constant 0 : index
    %17 = vector.load %arg2[%c0_10, %c0_11, %c0_12] : memref<1x2x256xf32, #tpu.memory_space<vmem>>, vector<1x2x256xf32>
    %18 = vector.shape_cast %17 : vector<1x2x256xf32> to vector<2x256xf32>
    %19 = vector.extract_strided_slice %18 {offsets = [0, 0], sizes = [1, 256], strides = [1, 1]} : vector<2x256xf32> to vector<1x256xf32>
    %20 = vector.extract_strided_slice %18 {offsets = [1, 0], sizes = [1, 256], strides = [1, 1]} : vector<2x256xf32> to vector<1x256xf32>
    %21 = tpu.concatenate %19, %20 in 0 : vector<1x256xf32>, vector<1x256xf32> -> vector<2x256xf32>
    %cst = arith.constant dense<0.000000e+00> : vector<2x512xf32>
    %22 = tpu.matmul %21, %15, %cst {dimension_numbers = #tpu.dot_dimension_numbers<[1], [0], [0], [1], [0, 0, 1, 1], [], []>} : vector<2x256xf32>, vector<256x512xf32>, vector<2x512xf32> -> vector<2x512xf32>
    %23 = vector.extract_strided_slice %22 {offsets = [0, 0], sizes = [1, 256], strides = [1, 1]} : vector<2x512xf32> to vector<1x256xf32>
    %24 = vector.extract_strided_slice %22 {offsets = [1, 256], sizes = [1, 256], strides = [1, 1]} : vector<2x512xf32> to vector<1x256xf32>
    %25 = arith.subf %23, %24 : vector<1x256xf32>
    %26 = vector.extract_strided_slice %22 {offsets = [0, 256], sizes = [1, 256], strides = [1, 1]} : vector<2x512xf32> to vector<1x256xf32>
    %27 = vector.extract_strided_slice %22 {offsets = [1, 0], sizes = [1, 256], strides = [1, 1]} : vector<2x512xf32> to vector<1x256xf32>
    %28 = arith.addf %26, %27 : vector<1x256xf32>
    %29 = tpu.concatenate %25, %28 in 0 : vector<1x256xf32>, vector<1x256xf32> -> vector<2x256xf32>
    %c0_13 = arith.constant 0 : index
    %c0_14 = arith.constant 0 : index
    %30 = vector.load %arg6[%c0_13, %c0_14] : memref<4x18xf32, #tpu.memory_space<vmem>>, vector<4x18xf32>
    %c17_i32 = arith.constant 17 : i32
    %31 = tpu.dynamic_rotate %29 by %c17_i32 dim 1 : vector<2x256xf32>, i32 -> vector<2x256xf32>
    %32 = vector.broadcast %4 : vector<1x256xf32> to vector<2x256xf32>
    %33 = arith.mulf %31, %32 : vector<2x256xf32>
    %c16_i32 = arith.constant 16 : i32
    %34 = tpu.dynamic_rotate %29 by %c16_i32 dim 1 : vector<2x256xf32>, i32 -> vector<2x256xf32>
    %35 = vector.broadcast %5 : vector<1x256xf32> to vector<2x256xf32>
    %36 = arith.mulf %34, %35 : vector<2x256xf32>
    %c15_i32 = arith.constant 15 : i32
    %37 = tpu.dynamic_rotate %29 by %c15_i32 dim 1 : vector<2x256xf32>, i32 -> vector<2x256xf32>
    %38 = vector.broadcast %6 : vector<1x256xf32> to vector<2x256xf32>
    %39 = arith.mulf %37, %38 : vector<2x256xf32>
    %c1_i32 = arith.constant 1 : i32
    %40 = tpu.dynamic_rotate %29 by %c1_i32 dim 1 : vector<2x256xf32>, i32 -> vector<2x256xf32>
    %41 = vector.broadcast %7 : vector<1x256xf32> to vector<2x256xf32>
    %42 = arith.mulf %40, %41 : vector<2x256xf32>
    %c255_i32 = arith.constant 255 : i32
    %43 = tpu.dynamic_rotate %29 by %c255_i32 dim 1 : vector<2x256xf32>, i32 -> vector<2x256xf32>
    %44 = vector.broadcast %8 : vector<1x256xf32> to vector<2x256xf32>
    %45 = arith.mulf %43, %44 : vector<2x256xf32>
    %c241_i32 = arith.constant 241 : i32
    %46 = tpu.dynamic_rotate %29 by %c241_i32 dim 1 : vector<2x256xf32>, i32 -> vector<2x256xf32>
    %47 = vector.broadcast %9 : vector<1x256xf32> to vector<2x256xf32>
    %48 = arith.mulf %46, %47 : vector<2x256xf32>
    %c240_i32 = arith.constant 240 : i32
    %49 = tpu.dynamic_rotate %29 by %c240_i32 dim 1 : vector<2x256xf32>, i32 -> vector<2x256xf32>
    %50 = vector.broadcast %10 : vector<1x256xf32> to vector<2x256xf32>
    %51 = arith.mulf %49, %50 : vector<2x256xf32>
    %c239_i32 = arith.constant 239 : i32
    %52 = tpu.dynamic_rotate %29 by %c239_i32 dim 1 : vector<2x256xf32>, i32 -> vector<2x256xf32>
    %53 = vector.broadcast %11 : vector<1x256xf32> to vector<2x256xf32>
    %54 = arith.mulf %52, %53 : vector<2x256xf32>
    %55 = tpu.concatenate %33, %36, %39, %42, %29, %45, %48, %51, %54 in 0 : vector<2x256xf32>, vector<2x256xf32>, vector<2x256xf32>, vector<2x256xf32>, vector<2x256xf32>, vector<2x256xf32>, vector<2x256xf32>, vector<2x256xf32>, vector<2x256xf32> -> vector<18x256xf32>
    %cst_15 = arith.constant dense<0.000000e+00> : vector<4x256xf32>
    %56 = tpu.matmul %30, %55, %cst_15 {dimension_numbers = #tpu.dot_dimension_numbers<[1], [0], [0], [1], [0, 0, 1, 1], [], []>} : vector<4x18xf32>, vector<18x256xf32>, vector<4x256xf32> -> vector<4x256xf32>
    %57 = tpu.concatenate %29, %56 in 0 : vector<2x256xf32>, vector<4x256xf32> -> vector<6x256xf32>
    %c0_16 = arith.constant 0 : index
    %c0_17 = arith.constant 0 : index
    %c0_18 = arith.constant 0 : index
    %58 = vector.load %arg8[%c0_16, %c0_17, %c0_18] : memref<1x6x54xf32, #tpu.memory_space<vmem>>, vector<1x6x54xf32>
    %59 = vector.shape_cast %58 : vector<1x6x54xf32> to vector<6x54xf32>
    %c0_19 = arith.constant 0 : index
    %c0_20 = arith.constant 0 : index
    %c0_21 = arith.constant 0 : index
    %60 = vector.load %arg9[%c0_19, %c0_20, %c0_21] : memref<1x6x1xf32, #tpu.memory_space<vmem>>, vector<1x6x1xf32>
    %61 = vector.shape_cast %60 : vector<1x6x1xf32> to vector<6x1xf32>
    %c17_i32_22 = arith.constant 17 : i32
    %62 = tpu.dynamic_rotate %57 by %c17_i32_22 dim 1 : vector<6x256xf32>, i32 -> vector<6x256xf32>
    %63 = vector.broadcast %4 : vector<1x256xf32> to vector<6x256xf32>
    %64 = arith.mulf %62, %63 : vector<6x256xf32>
    %c16_i32_23 = arith.constant 16 : i32
    %65 = tpu.dynamic_rotate %57 by %c16_i32_23 dim 1 : vector<6x256xf32>, i32 -> vector<6x256xf32>
    %66 = vector.broadcast %5 : vector<1x256xf32> to vector<6x256xf32>
    %67 = arith.mulf %65, %66 : vector<6x256xf32>
    %c15_i32_24 = arith.constant 15 : i32
    %68 = tpu.dynamic_rotate %57 by %c15_i32_24 dim 1 : vector<6x256xf32>, i32 -> vector<6x256xf32>
    %69 = vector.broadcast %6 : vector<1x256xf32> to vector<6x256xf32>
    %70 = arith.mulf %68, %69 : vector<6x256xf32>
    %c1_i32_25 = arith.constant 1 : i32
    %71 = tpu.dynamic_rotate %57 by %c1_i32_25 dim 1 : vector<6x256xf32>, i32 -> vector<6x256xf32>
    %72 = vector.broadcast %7 : vector<1x256xf32> to vector<6x256xf32>
    %73 = arith.mulf %71, %72 : vector<6x256xf32>
    %c255_i32_26 = arith.constant 255 : i32
    %74 = tpu.dynamic_rotate %57 by %c255_i32_26 dim 1 : vector<6x256xf32>, i32 -> vector<6x256xf32>
    %75 = vector.broadcast %8 : vector<1x256xf32> to vector<6x256xf32>
    %76 = arith.mulf %74, %75 : vector<6x256xf32>
    %c241_i32_27 = arith.constant 241 : i32
    %77 = tpu.dynamic_rotate %57 by %c241_i32_27 dim 1 : vector<6x256xf32>, i32 -> vector<6x256xf32>
    %78 = vector.broadcast %9 : vector<1x256xf32> to vector<6x256xf32>
    %79 = arith.mulf %77, %78 : vector<6x256xf32>
    %c240_i32_28 = arith.constant 240 : i32
    %80 = tpu.dynamic_rotate %57 by %c240_i32_28 dim 1 : vector<6x256xf32>, i32 -> vector<6x256xf32>
    %81 = vector.broadcast %10 : vector<1x256xf32> to vector<6x256xf32>
    %82 = arith.mulf %80, %81 : vector<6x256xf32>
    %c239_i32_29 = arith.constant 239 : i32
    %83 = tpu.dynamic_rotate %57 by %c239_i32_29 dim 1 : vector<6x256xf32>, i32 -> vector<6x256xf32>
    %84 = vector.broadcast %11 : vector<1x256xf32> to vector<6x256xf32>
    %85 = arith.mulf %83, %84 : vector<6x256xf32>
    %86 = tpu.concatenate %64, %67, %70, %73, %57, %76, %79, %82, %85 in 0 : vector<6x256xf32>, vector<6x256xf32>, vector<6x256xf32>, vector<6x256xf32>, vector<6x256xf32>, vector<6x256xf32>, vector<6x256xf32>, vector<6x256xf32>, vector<6x256xf32> -> vector<54x256xf32>
    %cst_30 = arith.constant dense<0.000000e+00> : vector<6x256xf32>
    %87 = tpu.matmul %59, %86, %cst_30 {dimension_numbers = #tpu.dot_dimension_numbers<[1], [0], [0], [1], [0, 0, 1, 1], [], []>} : vector<6x54xf32>, vector<54x256xf32>, vector<6x256xf32> -> vector<6x256xf32>
    %88 = vector.broadcast %61 : vector<6x1xf32> to vector<6x256xf32>
    %89 = arith.addf %87, %88 : vector<6x256xf32>
    %cst_31 = arith.constant 0.000000e+00 : f32
    %90 = vector.broadcast %cst_31 : f32 to vector<6x256xf32>
    %91 = arith.maximumf %89, %90 : vector<6x256xf32>
    %c0_32 = arith.constant 0 : index
    %c0_33 = arith.constant 0 : index
    %c0_34 = arith.constant 0 : index
    %92 = vector.load %arg10[%c0_32, %c0_33, %c0_34] : memref<1x6x54xf32, #tpu.memory_space<vmem>>, vector<1x6x54xf32>
    %93 = vector.shape_cast %92 : vector<1x6x54xf32> to vector<6x54xf32>
    %c0_35 = arith.constant 0 : index
    %c0_36 = arith.constant 0 : index
    %c0_37 = arith.constant 0 : index
    %94 = vector.load %arg11[%c0_35, %c0_36, %c0_37] : memref<1x6x1xf32, #tpu.memory_space<vmem>>, vector<1x6x1xf32>
    %95 = vector.shape_cast %94 : vector<1x6x1xf32> to vector<6x1xf32>
    %c17_i32_38 = arith.constant 17 : i32
    %96 = tpu.dynamic_rotate %91 by %c17_i32_38 dim 1 : vector<6x256xf32>, i32 -> vector<6x256xf32>
    %97 = vector.broadcast %4 : vector<1x256xf32> to vector<6x256xf32>
    %98 = arith.mulf %96, %97 : vector<6x256xf32>
    %c16_i32_39 = arith.constant 16 : i32
    %99 = tpu.dynamic_rotate %91 by %c16_i32_39 dim 1 : vector<6x256xf32>, i32 -> vector<6x256xf32>
    %100 = vector.broadcast %5 : vector<1x256xf32> to vector<6x256xf32>
    %101 = arith.mulf %99, %100 : vector<6x256xf32>
    %c15_i32_40 = arith.constant 15 : i32
    %102 = tpu.dynamic_rotate %91 by %c15_i32_40 dim 1 : vector<6x256xf32>, i32 -> vector<6x256xf32>
    %103 = vector.broadcast %6 : vector<1x256xf32> to vector<6x256xf32>
    %104 = arith.mulf %102, %103 : vector<6x256xf32>
    %c1_i32_41 = arith.constant 1 : i32
    %105 = tpu.dynamic_rotate %91 by %c1_i32_41 dim 1 : vector<6x256xf32>, i32 -> vector<6x256xf32>
    %106 = vector.broadcast %7 : vector<1x256xf32> to vector<6x256xf32>
    %107 = arith.mulf %105, %106 : vector<6x256xf32>
    %c255_i32_42 = arith.constant 255 : i32
    %108 = tpu.dynamic_rotate %91 by %c255_i32_42 dim 1 : vector<6x256xf32>, i32 -> vector<6x256xf32>
    %109 = vector.broadcast %8 : vector<1x256xf32> to vector<6x256xf32>
    %110 = arith.mulf %108, %109 : vector<6x256xf32>
    %c241_i32_43 = arith.constant 241 : i32
    %111 = tpu.dynamic_rotate %91 by %c241_i32_43 dim 1 : vector<6x256xf32>, i32 -> vector<6x256xf32>
    %112 = vector.broadcast %9 : vector<1x256xf32> to vector<6x256xf32>
    %113 = arith.mulf %111, %112 : vector<6x256xf32>
    %c240_i32_44 = arith.constant 240 : i32
    %114 = tpu.dynamic_rotate %91 by %c240_i32_44 dim 1 : vector<6x256xf32>, i32 -> vector<6x256xf32>
    %115 = vector.broadcast %10 : vector<1x256xf32> to vector<6x256xf32>
    %116 = arith.mulf %114, %115 : vector<6x256xf32>
    %c239_i32_45 = arith.constant 239 : i32
    %117 = tpu.dynamic_rotate %91 by %c239_i32_45 dim 1 : vector<6x256xf32>, i32 -> vector<6x256xf32>
    %118 = vector.broadcast %11 : vector<1x256xf32> to vector<6x256xf32>
    %119 = arith.mulf %117, %118 : vector<6x256xf32>
    %120 = tpu.concatenate %98, %101, %104, %107, %91, %110, %113, %116, %119 in 0 : vector<6x256xf32>, vector<6x256xf32>, vector<6x256xf32>, vector<6x256xf32>, vector<6x256xf32>, vector<6x256xf32>, vector<6x256xf32>, vector<6x256xf32>, vector<6x256xf32> -> vector<54x256xf32>
    %cst_46 = arith.constant dense<0.000000e+00> : vector<6x256xf32>
    %121 = tpu.matmul %93, %120, %cst_46 {dimension_numbers = #tpu.dot_dimension_numbers<[1], [0], [0], [1], [0, 0, 1, 1], [], []>} : vector<6x54xf32>, vector<54x256xf32>, vector<6x256xf32> -> vector<6x256xf32>
    %122 = vector.broadcast %95 : vector<6x1xf32> to vector<6x256xf32>
    %123 = arith.addf %121, %122 : vector<6x256xf32>
    %124 = arith.addf %57, %123 : vector<6x256xf32>
    %125 = vector.extract_strided_slice %124 {offsets = [0, 0], sizes = [1, 256], strides = [1, 1]} : vector<6x256xf32> to vector<1x256xf32>
    %126 = vector.extract_strided_slice %124 {offsets = [1, 0], sizes = [1, 256], strides = [1, 1]} : vector<6x256xf32> to vector<1x256xf32>
    %127 = vector.extract_strided_slice %124 {offsets = [2, 0], sizes = [4, 256], strides = [1, 1]} : vector<6x256xf32> to vector<4x256xf32>
    %128 = tpu.concatenate %125, %126 in 0 : vector<1x256xf32>, vector<1x256xf32> -> vector<2x256xf32>
    %cst_47 = arith.constant dense<0.000000e+00> : vector<2x512xf32>
    %129 = tpu.matmul %128, %13, %cst_47 {dimension_numbers = #tpu.dot_dimension_numbers<[1], [0], [0], [1], [0, 0, 1, 1], [], []>} : vector<2x256xf32>, vector<256x512xf32>, vector<2x512xf32> -> vector<2x512xf32>
    %130 = vector.extract_strided_slice %129 {offsets = [0, 0], sizes = [1, 256], strides = [1, 1]} : vector<2x512xf32> to vector<1x256xf32>
    %131 = vector.extract_strided_slice %129 {offsets = [1, 256], sizes = [1, 256], strides = [1, 1]} : vector<2x512xf32> to vector<1x256xf32>
    %132 = arith.subf %130, %131 : vector<1x256xf32>
    %133 = vector.extract_strided_slice %129 {offsets = [0, 256], sizes = [1, 256], strides = [1, 1]} : vector<2x512xf32> to vector<1x256xf32>
    %134 = vector.extract_strided_slice %129 {offsets = [1, 0], sizes = [1, 256], strides = [1, 1]} : vector<2x512xf32> to vector<1x256xf32>
    %135 = arith.addf %133, %134 : vector<1x256xf32>
    %136 = arith.mulf %19, %19 : vector<1x256xf32>
    %137 = arith.mulf %20, %20 : vector<1x256xf32>
    %138 = arith.addf %136, %137 : vector<1x256xf32>
    %139 = vector.broadcast %0 : f32 to vector<1x256xf32>
    %140 = arith.mulf %139, %138 : vector<1x256xf32>
    %141 = vector.broadcast %2 : f32 to vector<1x256xf32>
    %142 = arith.mulf %141, %19 : vector<1x256xf32>
    %143 = vector.broadcast %2 : f32 to vector<1x256xf32>
    %144 = arith.mulf %143, %20 : vector<1x256xf32>
    %145 = arith.mulf %19, %132 : vector<1x256xf32>
    %146 = arith.mulf %20, %135 : vector<1x256xf32>
    %147 = arith.addf %145, %146 : vector<1x256xf32>
    %cst_48 = arith.constant 2.000000e+00 : f32
    %148 = vector.broadcast %cst_48 : f32 to vector<1x256xf32>
    %149 = arith.mulf %148, %147 : vector<1x256xf32>
    %150 = arith.addf %140, %149 : vector<1x256xf32>
    %151 = arith.mulf %132, %132 : vector<1x256xf32>
    %152 = arith.mulf %135, %135 : vector<1x256xf32>
    %153 = arith.addf %151, %152 : vector<1x256xf32>
    %154 = arith.addf %153, %140 : vector<1x256xf32>
    %155 = tpu.concatenate %150, %154 in 0 : vector<1x256xf32>, vector<1x256xf32> -> vector<2x256xf32>
    %cst_49 = arith.constant dense<0.000000e+00> : vector<2x256xf32>
    %156 = tpu.matmul %155, %16, %cst_49 {dimension_numbers = #tpu.dot_dimension_numbers<[1], [0], [0], [1], [0, 0, 1, 1], [], []>} : vector<2x256xf32>, vector<256x256xf32>, vector<2x256xf32> -> vector<2x256xf32>
    %157 = vector.extract_strided_slice %156 {offsets = [0, 0], sizes = [1, 256], strides = [1, 1]} : vector<2x256xf32> to vector<1x256xf32>
    %158 = vector.broadcast %1 : f32 to vector<1x256xf32>
    %159 = arith.addf %157, %158 : vector<1x256xf32>
    %160 = vector.extract_strided_slice %156 {offsets = [1, 0], sizes = [1, 256], strides = [1, 1]} : vector<2x256xf32> to vector<1x256xf32>
    %161 = vector.broadcast %1 : f32 to vector<1x256xf32>
    %162 = arith.addf %160, %161 : vector<1x256xf32>
    %163 = arith.divf %159, %162 : vector<1x256xf32>
    %c0_50 = arith.constant 0 : index
    %c0_51 = arith.constant 0 : index
    %164 = vector.load %arg7[%c0_50, %c0_51] : memref<4x9xf32, #tpu.memory_space<vmem>>, vector<4x9xf32>
    %c17_i32_52 = arith.constant 17 : i32
    %165 = tpu.dynamic_rotate %163 by %c17_i32_52 dim 1 : vector<1x256xf32>, i32 -> vector<1x256xf32>
    %166 = arith.mulf %165, %4 : vector<1x256xf32>
    %c16_i32_53 = arith.constant 16 : i32
    %167 = tpu.dynamic_rotate %163 by %c16_i32_53 dim 1 : vector<1x256xf32>, i32 -> vector<1x256xf32>
    %168 = arith.mulf %167, %5 : vector<1x256xf32>
    %c15_i32_54 = arith.constant 15 : i32
    %169 = tpu.dynamic_rotate %163 by %c15_i32_54 dim 1 : vector<1x256xf32>, i32 -> vector<1x256xf32>
    %170 = arith.mulf %169, %6 : vector<1x256xf32>
    %c1_i32_55 = arith.constant 1 : i32
    %171 = tpu.dynamic_rotate %163 by %c1_i32_55 dim 1 : vector<1x256xf32>, i32 -> vector<1x256xf32>
    %172 = arith.mulf %171, %7 : vector<1x256xf32>
    %c255_i32_56 = arith.constant 255 : i32
    %173 = tpu.dynamic_rotate %163 by %c255_i32_56 dim 1 : vector<1x256xf32>, i32 -> vector<1x256xf32>
    %174 = arith.mulf %173, %8 : vector<1x256xf32>
    %c241_i32_57 = arith.constant 241 : i32
    %175 = tpu.dynamic_rotate %163 by %c241_i32_57 dim 1 : vector<1x256xf32>, i32 -> vector<1x256xf32>
    %176 = arith.mulf %175, %9 : vector<1x256xf32>
    %c240_i32_58 = arith.constant 240 : i32
    %177 = tpu.dynamic_rotate %163 by %c240_i32_58 dim 1 : vector<1x256xf32>, i32 -> vector<1x256xf32>
    %178 = arith.mulf %177, %10 : vector<1x256xf32>
    %c239_i32_59 = arith.constant 239 : i32
    %179 = tpu.dynamic_rotate %163 by %c239_i32_59 dim 1 : vector<1x256xf32>, i32 -> vector<1x256xf32>
    %180 = arith.mulf %179, %11 : vector<1x256xf32>
    %181 = tpu.concatenate %166, %168, %170, %172, %163, %174, %176, %178, %180 in 0 : vector<1x256xf32>, vector<1x256xf32>, vector<1x256xf32>, vector<1x256xf32>, vector<1x256xf32>, vector<1x256xf32>, vector<1x256xf32>, vector<1x256xf32>, vector<1x256xf32> -> vector<9x256xf32>
    %cst_60 = arith.constant dense<0.000000e+00> : vector<4x256xf32>
    %182 = tpu.matmul %164, %181, %cst_60 {dimension_numbers = #tpu.dot_dimension_numbers<[1], [0], [0], [1], [0, 0, 1, 1], [], []>} : vector<4x9xf32>, vector<9x256xf32>, vector<4x256xf32> -> vector<4x256xf32>
    %183 = tpu.concatenate %163, %182 in 0 : vector<1x256xf32>, vector<4x256xf32> -> vector<5x256xf32>
    %c0_61 = arith.constant 0 : index
    %c0_62 = arith.constant 0 : index
    %c0_63 = arith.constant 0 : index
    %184 = vector.load %arg12[%c0_61, %c0_62, %c0_63] : memref<1x5x45xf32, #tpu.memory_space<vmem>>, vector<1x5x45xf32>
    %185 = vector.shape_cast %184 : vector<1x5x45xf32> to vector<5x45xf32>
    %c0_64 = arith.constant 0 : index
    %c0_65 = arith.constant 0 : index
    %c0_66 = arith.constant 0 : index
    %186 = vector.load %arg13[%c0_64, %c0_65, %c0_66] : memref<1x5x1xf32, #tpu.memory_space<vmem>>, vector<1x5x1xf32>
    %187 = vector.shape_cast %186 : vector<1x5x1xf32> to vector<5x1xf32>
    %c17_i32_67 = arith.constant 17 : i32
    %188 = tpu.dynamic_rotate %183 by %c17_i32_67 dim 1 : vector<5x256xf32>, i32 -> vector<5x256xf32>
    %189 = vector.broadcast %4 : vector<1x256xf32> to vector<5x256xf32>
    %190 = arith.mulf %188, %189 : vector<5x256xf32>
    %c16_i32_68 = arith.constant 16 : i32
    %191 = tpu.dynamic_rotate %183 by %c16_i32_68 dim 1 : vector<5x256xf32>, i32 -> vector<5x256xf32>
    %192 = vector.broadcast %5 : vector<1x256xf32> to vector<5x256xf32>
    %193 = arith.mulf %191, %192 : vector<5x256xf32>
    %c15_i32_69 = arith.constant 15 : i32
    %194 = tpu.dynamic_rotate %183 by %c15_i32_69 dim 1 : vector<5x256xf32>, i32 -> vector<5x256xf32>
    %195 = vector.broadcast %6 : vector<1x256xf32> to vector<5x256xf32>
    %196 = arith.mulf %194, %195 : vector<5x256xf32>
    %c1_i32_70 = arith.constant 1 : i32
    %197 = tpu.dynamic_rotate %183 by %c1_i32_70 dim 1 : vector<5x256xf32>, i32 -> vector<5x256xf32>
    %198 = vector.broadcast %7 : vector<1x256xf32> to vector<5x256xf32>
    %199 = arith.mulf %197, %198 : vector<5x256xf32>
    %c255_i32_71 = arith.constant 255 : i32
    %200 = tpu.dynamic_rotate %183 by %c255_i32_71 dim 1 : vector<5x256xf32>, i32 -> vector<5x256xf32>
    %201 = vector.broadcast %8 : vector<1x256xf32> to vector<5x256xf32>
    %202 = arith.mulf %200, %201 : vector<5x256xf32>
    %c241_i32_72 = arith.constant 241 : i32
    %203 = tpu.dynamic_rotate %183 by %c241_i32_72 dim 1 : vector<5x256xf32>, i32 -> vector<5x256xf32>
    %204 = vector.broadcast %9 : vector<1x256xf32> to vector<5x256xf32>
    %205 = arith.mulf %203, %204 : vector<5x256xf32>
    %c240_i32_73 = arith.constant 240 : i32
    %206 = tpu.dynamic_rotate %183 by %c240_i32_73 dim 1 : vector<5x256xf32>, i32 -> vector<5x256xf32>
    %207 = vector.broadcast %10 : vector<1x256xf32> to vector<5x256xf32>
    %208 = arith.mulf %206, %207 : vector<5x256xf32>
    %c239_i32_74 = arith.constant 239 : i32
    %209 = tpu.dynamic_rotate %183 by %c239_i32_74 dim 1 : vector<5x256xf32>, i32 -> vector<5x256xf32>
    %210 = vector.broadcast %11 : vector<1x256xf32> to vector<5x256xf32>
    %211 = arith.mulf %209, %210 : vector<5x256xf32>
    %212 = tpu.concatenate %190, %193, %196, %199, %183, %202, %205, %208, %211 in 0 : vector<5x256xf32>, vector<5x256xf32>, vector<5x256xf32>, vector<5x256xf32>, vector<5x256xf32>, vector<5x256xf32>, vector<5x256xf32>, vector<5x256xf32>, vector<5x256xf32> -> vector<45x256xf32>
    %cst_75 = arith.constant dense<0.000000e+00> : vector<5x256xf32>
    %213 = tpu.matmul %185, %212, %cst_75 {dimension_numbers = #tpu.dot_dimension_numbers<[1], [0], [0], [1], [0, 0, 1, 1], [], []>} : vector<5x45xf32>, vector<45x256xf32>, vector<5x256xf32> -> vector<5x256xf32>
    %214 = vector.broadcast %187 : vector<5x1xf32> to vector<5x256xf32>
    %215 = arith.addf %213, %214 : vector<5x256xf32>
    %cst_76 = arith.constant 0.000000e+00 : f32
    %216 = vector.broadcast %cst_76 : f32 to vector<5x256xf32>
    %217 = arith.maximumf %215, %216 : vector<5x256xf32>
    %c0_77 = arith.constant 0 : index
    %c0_78 = arith.constant 0 : index
    %c0_79 = arith.constant 0 : index
    %218 = vector.load %arg14[%c0_77, %c0_78, %c0_79] : memref<1x5x45xf32, #tpu.memory_space<vmem>>, vector<1x5x45xf32>
    %219 = vector.shape_cast %218 : vector<1x5x45xf32> to vector<5x45xf32>
    %c0_80 = arith.constant 0 : index
    %c0_81 = arith.constant 0 : index
    %c0_82 = arith.constant 0 : index
    %220 = vector.load %arg15[%c0_80, %c0_81, %c0_82] : memref<1x5x1xf32, #tpu.memory_space<vmem>>, vector<1x5x1xf32>
    %221 = vector.shape_cast %220 : vector<1x5x1xf32> to vector<5x1xf32>
    %c17_i32_83 = arith.constant 17 : i32
    %222 = tpu.dynamic_rotate %217 by %c17_i32_83 dim 1 : vector<5x256xf32>, i32 -> vector<5x256xf32>
    %223 = vector.broadcast %4 : vector<1x256xf32> to vector<5x256xf32>
    %224 = arith.mulf %222, %223 : vector<5x256xf32>
    %c16_i32_84 = arith.constant 16 : i32
    %225 = tpu.dynamic_rotate %217 by %c16_i32_84 dim 1 : vector<5x256xf32>, i32 -> vector<5x256xf32>
    %226 = vector.broadcast %5 : vector<1x256xf32> to vector<5x256xf32>
    %227 = arith.mulf %225, %226 : vector<5x256xf32>
    %c15_i32_85 = arith.constant 15 : i32
    %228 = tpu.dynamic_rotate %217 by %c15_i32_85 dim 1 : vector<5x256xf32>, i32 -> vector<5x256xf32>
    %229 = vector.broadcast %6 : vector<1x256xf32> to vector<5x256xf32>
    %230 = arith.mulf %228, %229 : vector<5x256xf32>
    %c1_i32_86 = arith.constant 1 : i32
    %231 = tpu.dynamic_rotate %217 by %c1_i32_86 dim 1 : vector<5x256xf32>, i32 -> vector<5x256xf32>
    %232 = vector.broadcast %7 : vector<1x256xf32> to vector<5x256xf32>
    %233 = arith.mulf %231, %232 : vector<5x256xf32>
    %c255_i32_87 = arith.constant 255 : i32
    %234 = tpu.dynamic_rotate %217 by %c255_i32_87 dim 1 : vector<5x256xf32>, i32 -> vector<5x256xf32>
    %235 = vector.broadcast %8 : vector<1x256xf32> to vector<5x256xf32>
    %236 = arith.mulf %234, %235 : vector<5x256xf32>
    %c241_i32_88 = arith.constant 241 : i32
    %237 = tpu.dynamic_rotate %217 by %c241_i32_88 dim 1 : vector<5x256xf32>, i32 -> vector<5x256xf32>
    %238 = vector.broadcast %9 : vector<1x256xf32> to vector<5x256xf32>
    %239 = arith.mulf %237, %238 : vector<5x256xf32>
    %c240_i32_89 = arith.constant 240 : i32
    %240 = tpu.dynamic_rotate %217 by %c240_i32_89 dim 1 : vector<5x256xf32>, i32 -> vector<5x256xf32>
    %241 = vector.broadcast %10 : vector<1x256xf32> to vector<5x256xf32>
    %242 = arith.mulf %240, %241 : vector<5x256xf32>
    %c239_i32_90 = arith.constant 239 : i32
    %243 = tpu.dynamic_rotate %217 by %c239_i32_90 dim 1 : vector<5x256xf32>, i32 -> vector<5x256xf32>
    %244 = vector.broadcast %11 : vector<1x256xf32> to vector<5x256xf32>
    %245 = arith.mulf %243, %244 : vector<5x256xf32>
    %246 = tpu.concatenate %224, %227, %230, %233, %217, %236, %239, %242, %245 in 0 : vector<5x256xf32>, vector<5x256xf32>, vector<5x256xf32>, vector<5x256xf32>, vector<5x256xf32>, vector<5x256xf32>, vector<5x256xf32>, vector<5x256xf32>, vector<5x256xf32> -> vector<45x256xf32>
    %cst_91 = arith.constant dense<0.000000e+00> : vector<5x256xf32>
    %247 = tpu.matmul %219, %246, %cst_91 {dimension_numbers = #tpu.dot_dimension_numbers<[1], [0], [0], [1], [0, 0, 1, 1], [], []>} : vector<5x45xf32>, vector<45x256xf32>, vector<5x256xf32> -> vector<5x256xf32>
    %248 = vector.broadcast %221 : vector<5x1xf32> to vector<5x256xf32>
    %249 = arith.addf %247, %248 : vector<5x256xf32>
    %250 = arith.addf %183, %249 : vector<5x256xf32>
    %251 = vector.extract_strided_slice %250 {offsets = [0, 0], sizes = [1, 256], strides = [1, 1]} : vector<5x256xf32> to vector<1x256xf32>
    %252 = tpu.concatenate %132, %135 in 0 : vector<1x256xf32>, vector<1x256xf32> -> vector<2x256xf32>
    %cst_92 = arith.constant dense<0.000000e+00> : vector<2x512xf32>
    %253 = tpu.matmul %252, %15, %cst_92 {dimension_numbers = #tpu.dot_dimension_numbers<[1], [0], [0], [1], [0, 0, 1, 1], [], []>} : vector<2x256xf32>, vector<256x512xf32>, vector<2x512xf32> -> vector<2x512xf32>
    %254 = vector.extract_strided_slice %253 {offsets = [0, 0], sizes = [1, 256], strides = [1, 1]} : vector<2x512xf32> to vector<1x256xf32>
    %255 = vector.extract_strided_slice %253 {offsets = [1, 256], sizes = [1, 256], strides = [1, 1]} : vector<2x512xf32> to vector<1x256xf32>
    %256 = arith.subf %254, %255 : vector<1x256xf32>
    %257 = vector.extract_strided_slice %253 {offsets = [0, 256], sizes = [1, 256], strides = [1, 1]} : vector<2x512xf32> to vector<1x256xf32>
    %258 = vector.extract_strided_slice %253 {offsets = [1, 0], sizes = [1, 256], strides = [1, 1]} : vector<2x512xf32> to vector<1x256xf32>
    %259 = arith.addf %257, %258 : vector<1x256xf32>
    %260 = tpu.concatenate %256, %259, %127 in 0 : vector<1x256xf32>, vector<1x256xf32>, vector<4x256xf32> -> vector<6x256xf32>
    %c0_93 = arith.constant 0 : index
    %c0_94 = arith.constant 0 : index
    %c0_95 = arith.constant 0 : index
    %261 = vector.load %arg8[%c0_93, %c0_94, %c0_95] : memref<1x6x54xf32, #tpu.memory_space<vmem>>, vector<1x6x54xf32>
    %262 = vector.shape_cast %261 : vector<1x6x54xf32> to vector<6x54xf32>
    %c0_96 = arith.constant 0 : index
    %c0_97 = arith.constant 0 : index
    %c0_98 = arith.constant 0 : index
    %263 = vector.load %arg9[%c0_96, %c0_97, %c0_98] : memref<1x6x1xf32, #tpu.memory_space<vmem>>, vector<1x6x1xf32>
    %264 = vector.shape_cast %263 : vector<1x6x1xf32> to vector<6x1xf32>
    %c17_i32_99 = arith.constant 17 : i32
    %265 = tpu.dynamic_rotate %260 by %c17_i32_99 dim 1 : vector<6x256xf32>, i32 -> vector<6x256xf32>
    %266 = vector.broadcast %4 : vector<1x256xf32> to vector<6x256xf32>
    %267 = arith.mulf %265, %266 : vector<6x256xf32>
    %c16_i32_100 = arith.constant 16 : i32
    %268 = tpu.dynamic_rotate %260 by %c16_i32_100 dim 1 : vector<6x256xf32>, i32 -> vector<6x256xf32>
    %269 = vector.broadcast %5 : vector<1x256xf32> to vector<6x256xf32>
    %270 = arith.mulf %268, %269 : vector<6x256xf32>
    %c15_i32_101 = arith.constant 15 : i32
    %271 = tpu.dynamic_rotate %260 by %c15_i32_101 dim 1 : vector<6x256xf32>, i32 -> vector<6x256xf32>
    %272 = vector.broadcast %6 : vector<1x256xf32> to vector<6x256xf32>
    %273 = arith.mulf %271, %272 : vector<6x256xf32>
    %c1_i32_102 = arith.constant 1 : i32
    %274 = tpu.dynamic_rotate %260 by %c1_i32_102 dim 1 : vector<6x256xf32>, i32 -> vector<6x256xf32>
    %275 = vector.broadcast %7 : vector<1x256xf32> to vector<6x256xf32>
    %276 = arith.mulf %274, %275 : vector<6x256xf32>
    %c255_i32_103 = arith.constant 255 : i32
    %277 = tpu.dynamic_rotate %260 by %c255_i32_103 dim 1 : vector<6x256xf32>, i32 -> vector<6x256xf32>
    %278 = vector.broadcast %8 : vector<1x256xf32> to vector<6x256xf32>
    %279 = arith.mulf %277, %278 : vector<6x256xf32>
    %c241_i32_104 = arith.constant 241 : i32
    %280 = tpu.dynamic_rotate %260 by %c241_i32_104 dim 1 : vector<6x256xf32>, i32 -> vector<6x256xf32>
    %281 = vector.broadcast %9 : vector<1x256xf32> to vector<6x256xf32>
    %282 = arith.mulf %280, %281 : vector<6x256xf32>
    %c240_i32_105 = arith.constant 240 : i32
    %283 = tpu.dynamic_rotate %260 by %c240_i32_105 dim 1 : vector<6x256xf32>, i32 -> vector<6x256xf32>
    %284 = vector.broadcast %10 : vector<1x256xf32> to vector<6x256xf32>
    %285 = arith.mulf %283, %284 : vector<6x256xf32>
    %c239_i32_106 = arith.constant 239 : i32
    %286 = tpu.dynamic_rotate %260 by %c239_i32_106 dim 1 : vector<6x256xf32>, i32 -> vector<6x256xf32>
    %287 = vector.broadcast %11 : vector<1x256xf32> to vector<6x256xf32>
    %288 = arith.mulf %286, %287 : vector<6x256xf32>
    %289 = tpu.concatenate %267, %270, %273, %276, %260, %279, %282, %285, %288 in 0 : vector<6x256xf32>, vector<6x256xf32>, vector<6x256xf32>, vector<6x256xf32>, vector<6x256xf32>, vector<6x256xf32>, vector<6x256xf32>, vector<6x256xf32>, vector<6x256xf32> -> vector<54x256xf32>
    %cst_107 = arith.constant dense<0.000000e+00> : vector<6x256xf32>
    %290 = tpu.matmul %262, %289, %cst_107 {dimension_numbers = #tpu.dot_dimension_numbers<[1], [0], [0], [1], [0, 0, 1, 1], [], []>} : vector<6x54xf32>, vector<54x256xf32>, vector<6x256xf32> -> vector<6x256xf32>
    %291 = vector.broadcast %264 : vector<6x1xf32> to vector<6x256xf32>
    %292 = arith.addf %290, %291 : vector<6x256xf32>
    %cst_108 = arith.constant 0.000000e+00 : f32
    %293 = vector.broadcast %cst_108 : f32 to vector<6x256xf32>
    %294 = arith.maximumf %292, %293 : vector<6x256xf32>
    %c0_109 = arith.constant 0 : index
    %c0_110 = arith.constant 0 : index
    %c0_111 = arith.constant 0 : index
    %295 = vector.load %arg10[%c0_109, %c0_110, %c0_111] : memref<1x6x54xf32, #tpu.memory_space<vmem>>, vector<1x6x54xf32>
    %296 = vector.shape_cast %295 : vector<1x6x54xf32> to vector<6x54xf32>
    %c0_112 = arith.constant 0 : index
    %c0_113 = arith.constant 0 : index
    %c0_114 = arith.constant 0 : index
    %297 = vector.load %arg11[%c0_112, %c0_113, %c0_114] : memref<1x6x1xf32, #tpu.memory_space<vmem>>, vector<1x6x1xf32>
    %298 = vector.shape_cast %297 : vector<1x6x1xf32> to vector<6x1xf32>
    %c17_i32_115 = arith.constant 17 : i32
    %299 = tpu.dynamic_rotate %294 by %c17_i32_115 dim 1 : vector<6x256xf32>, i32 -> vector<6x256xf32>
    %300 = vector.broadcast %4 : vector<1x256xf32> to vector<6x256xf32>
    %301 = arith.mulf %299, %300 : vector<6x256xf32>
    %c16_i32_116 = arith.constant 16 : i32
    %302 = tpu.dynamic_rotate %294 by %c16_i32_116 dim 1 : vector<6x256xf32>, i32 -> vector<6x256xf32>
    %303 = vector.broadcast %5 : vector<1x256xf32> to vector<6x256xf32>
    %304 = arith.mulf %302, %303 : vector<6x256xf32>
    %c15_i32_117 = arith.constant 15 : i32
    %305 = tpu.dynamic_rotate %294 by %c15_i32_117 dim 1 : vector<6x256xf32>, i32 -> vector<6x256xf32>
    %306 = vector.broadcast %6 : vector<1x256xf32> to vector<6x256xf32>
    %307 = arith.mulf %305, %306 : vector<6x256xf32>
    %c1_i32_118 = arith.constant 1 : i32
    %308 = tpu.dynamic_rotate %294 by %c1_i32_118 dim 1 : vector<6x256xf32>, i32 -> vector<6x256xf32>
    %309 = vector.broadcast %7 : vector<1x256xf32> to vector<6x256xf32>
    %310 = arith.mulf %308, %309 : vector<6x256xf32>
    %c255_i32_119 = arith.constant 255 : i32
    %311 = tpu.dynamic_rotate %294 by %c255_i32_119 dim 1 : vector<6x256xf32>, i32 -> vector<6x256xf32>
    %312 = vector.broadcast %8 : vector<1x256xf32> to vector<6x256xf32>
    %313 = arith.mulf %311, %312 : vector<6x256xf32>
    %c241_i32_120 = arith.constant 241 : i32
    %314 = tpu.dynamic_rotate %294 by %c241_i32_120 dim 1 : vector<6x256xf32>, i32 -> vector<6x256xf32>
    %315 = vector.broadcast %9 : vector<1x256xf32> to vector<6x256xf32>
    %316 = arith.mulf %314, %315 : vector<6x256xf32>
    %c240_i32_121 = arith.constant 240 : i32
    %317 = tpu.dynamic_rotate %294 by %c240_i32_121 dim 1 : vector<6x256xf32>, i32 -> vector<6x256xf32>
    %318 = vector.broadcast %10 : vector<1x256xf32> to vector<6x256xf32>
    %319 = arith.mulf %317, %318 : vector<6x256xf32>
    %c239_i32_122 = arith.constant 239 : i32
    %320 = tpu.dynamic_rotate %294 by %c239_i32_122 dim 1 : vector<6x256xf32>, i32 -> vector<6x256xf32>
    %321 = vector.broadcast %11 : vector<1x256xf32> to vector<6x256xf32>
    %322 = arith.mulf %320, %321 : vector<6x256xf32>
    %323 = tpu.concatenate %301, %304, %307, %310, %294, %313, %316, %319, %322 in 0 : vector<6x256xf32>, vector<6x256xf32>, vector<6x256xf32>, vector<6x256xf32>, vector<6x256xf32>, vector<6x256xf32>, vector<6x256xf32>, vector<6x256xf32>, vector<6x256xf32> -> vector<54x256xf32>
    %cst_123 = arith.constant dense<0.000000e+00> : vector<6x256xf32>
    %324 = tpu.matmul %296, %323, %cst_123 {dimension_numbers = #tpu.dot_dimension_numbers<[1], [0], [0], [1], [0, 0, 1, 1], [], []>} : vector<6x54xf32>, vector<54x256xf32>, vector<6x256xf32> -> vector<6x256xf32>
    %325 = vector.broadcast %298 : vector<6x1xf32> to vector<6x256xf32>
    %326 = arith.addf %324, %325 : vector<6x256xf32>
    %327 = arith.addf %260, %326 : vector<6x256xf32>
    %328 = vector.extract_strided_slice %327 {offsets = [0, 0], sizes = [1, 256], strides = [1, 1]} : vector<6x256xf32> to vector<1x256xf32>
    %329 = vector.extract_strided_slice %327 {offsets = [1, 0], sizes = [1, 256], strides = [1, 1]} : vector<6x256xf32> to vector<1x256xf32>
    %330 = vector.extract_strided_slice %327 {offsets = [2, 0], sizes = [4, 256], strides = [1, 1]} : vector<6x256xf32> to vector<4x256xf32>
    %331 = tpu.concatenate %328, %329 in 0 : vector<1x256xf32>, vector<1x256xf32> -> vector<2x256xf32>
    %cst_124 = arith.constant dense<0.000000e+00> : vector<2x512xf32>
    %332 = tpu.matmul %331, %13, %cst_124 {dimension_numbers = #tpu.dot_dimension_numbers<[1], [0], [0], [1], [0, 0, 1, 1], [], []>} : vector<2x256xf32>, vector<256x512xf32>, vector<2x512xf32> -> vector<2x512xf32>
    %333 = vector.extract_strided_slice %332 {offsets = [0, 0], sizes = [1, 256], strides = [1, 1]} : vector<2x512xf32> to vector<1x256xf32>
    %334 = vector.extract_strided_slice %332 {offsets = [1, 256], sizes = [1, 256], strides = [1, 1]} : vector<2x512xf32> to vector<1x256xf32>
    %335 = arith.subf %333, %334 : vector<1x256xf32>
    %336 = vector.extract_strided_slice %332 {offsets = [0, 256], sizes = [1, 256], strides = [1, 1]} : vector<2x512xf32> to vector<1x256xf32>
    %337 = vector.extract_strided_slice %332 {offsets = [1, 0], sizes = [1, 256], strides = [1, 1]} : vector<2x512xf32> to vector<1x256xf32>
    %338 = arith.addf %336, %337 : vector<1x256xf32>
    %cst_125 = arith.constant 2.000000e+00 : f32
    %339 = vector.broadcast %cst_125 : f32 to vector<1x256xf32>
    %340 = arith.mulf %339, %251 : vector<1x256xf32>
    %341 = arith.mulf %340, %251 : vector<1x256xf32>
    %cst_126 = arith.constant 1.000000e+00 : f32
    %342 = vector.broadcast %cst_126 : f32 to vector<1x256xf32>
    %343 = arith.addf %342, %341 : vector<1x256xf32>
    %344 = arith.mulf %251, %142 : vector<1x256xf32>
    %345 = arith.addf %335, %344 : vector<1x256xf32>
    %346 = arith.divf %345, %343 : vector<1x256xf32>
    %347 = arith.mulf %251, %144 : vector<1x256xf32>
    %348 = arith.addf %338, %347 : vector<1x256xf32>
    %349 = arith.divf %348, %343 : vector<1x256xf32>
    %350 = tpu.concatenate %328, %329 in 0 : vector<1x256xf32>, vector<1x256xf32> -> vector<2x256xf32>
    %c0_127 = arith.constant 0 : index
    %c0_128 = arith.constant 0 : index
    %c0_129 = arith.constant 0 : index
    %c0_130 = arith.constant 0 : index
    %351 = vector.load %arg16[%c0_127, %c0_128, %c0_129, %c0_130] : memref<2x1x2x256xf32, #tpu.memory_space<vmem>>, vector<1x1x2x256xf32>
    %352 = vector.shape_cast %351 : vector<1x1x2x256xf32> to vector<2x256xf32>
    %353 = vector.shape_cast %350 : vector<2x256xf32> to vector<1x1x2x256xf32>
    tpu.vector_store %arg16[%c0_127, %c0_128, %c0_129, %c0_130], %353 {strides = array<i32>} : memref<2x1x2x256xf32, #tpu.memory_space<vmem>>, vector<1x1x2x256xf32>,
    %354 = tpu.concatenate %346, %349 in 0 : vector<1x256xf32>, vector<1x256xf32> -> vector<2x256xf32>
    %c0_131 = arith.constant 0 : index
    %c0_132 = arith.constant 0 : index
    %c0_133 = arith.constant 0 : index
    %c0_134 = arith.constant 0 : index
    %355 = vector.load %arg17[%c0_131, %c0_132, %c0_133, %c0_134] : memref<2x1x2x256xf32, #tpu.memory_space<vmem>>, vector<1x1x2x256xf32>
    %356 = vector.shape_cast %355 : vector<1x1x2x256xf32> to vector<2x256xf32>
    %357 = vector.shape_cast %354 : vector<2x256xf32> to vector<1x1x2x256xf32>
    tpu.vector_store %arg17[%c0_131, %c0_132, %c0_133, %c0_134], %357 {strides = array<i32>} : memref<2x1x2x256xf32, #tpu.memory_space<vmem>>, vector<1x1x2x256xf32>,
    %358 = arith.mulf %19, %346 : vector<1x256xf32>
    %359 = arith.mulf %20, %349 : vector<1x256xf32>
    %360 = arith.addf %358, %359 : vector<1x256xf32>
    %cst_135 = arith.constant 2.000000e+00 : f32
    %361 = vector.broadcast %cst_135 : f32 to vector<1x256xf32>
    %362 = arith.mulf %361, %360 : vector<1x256xf32>
    %363 = arith.addf %140, %362 : vector<1x256xf32>
    %364 = arith.mulf %346, %346 : vector<1x256xf32>
    %365 = arith.mulf %349, %349 : vector<1x256xf32>
    %366 = arith.addf %364, %365 : vector<1x256xf32>
    %367 = arith.addf %366, %140 : vector<1x256xf32>
    %368 = tpu.concatenate %363, %367 in 0 : vector<1x256xf32>, vector<1x256xf32> -> vector<2x256xf32>
    %cst_136 = arith.constant dense<0.000000e+00> : vector<2x256xf32>
    %369 = tpu.matmul %368, %16, %cst_136 {dimension_numbers = #tpu.dot_dimension_numbers<[1], [0], [0], [1], [0, 0, 1, 1], [], []>} : vector<2x256xf32>, vector<256x256xf32>, vector<2x256xf32> -> vector<2x256xf32>
    %370 = vector.extract_strided_slice %369 {offsets = [0, 0], sizes = [1, 256], strides = [1, 1]} : vector<2x256xf32> to vector<1x256xf32>
    %371 = vector.broadcast %1 : f32 to vector<1x256xf32>
    %372 = arith.addf %370, %371 : vector<1x256xf32>
    %373 = vector.extract_strided_slice %369 {offsets = [1, 0], sizes = [1, 256], strides = [1, 1]} : vector<2x256xf32> to vector<1x256xf32>
    %374 = vector.broadcast %1 : f32 to vector<1x256xf32>
    %375 = arith.addf %373, %374 : vector<1x256xf32>
    %376 = arith.divf %372, %375 : vector<1x256xf32>
    %c0_137 = arith.constant 0 : index
    %c0_138 = arith.constant 0 : index
    %377 = vector.load %arg7[%c0_137, %c0_138] : memref<4x9xf32, #tpu.memory_space<vmem>>, vector<4x9xf32>
    %c17_i32_139 = arith.constant 17 : i32
    %378 = tpu.dynamic_rotate %376 by %c17_i32_139 dim 1 : vector<1x256xf32>, i32 -> vector<1x256xf32>
    %379 = arith.mulf %378, %4 : vector<1x256xf32>
    %c16_i32_140 = arith.constant 16 : i32
    %380 = tpu.dynamic_rotate %376 by %c16_i32_140 dim 1 : vector<1x256xf32>, i32 -> vector<1x256xf32>
    %381 = arith.mulf %380, %5 : vector<1x256xf32>
    %c15_i32_141 = arith.constant 15 : i32
    %382 = tpu.dynamic_rotate %376 by %c15_i32_141 dim 1 : vector<1x256xf32>, i32 -> vector<1x256xf32>
    %383 = arith.mulf %382, %6 : vector<1x256xf32>
    %c1_i32_142 = arith.constant 1 : i32
    %384 = tpu.dynamic_rotate %376 by %c1_i32_142 dim 1 : vector<1x256xf32>, i32 -> vector<1x256xf32>
    %385 = arith.mulf %384, %7 : vector<1x256xf32>
    %c255_i32_143 = arith.constant 255 : i32
    %386 = tpu.dynamic_rotate %376 by %c255_i32_143 dim 1 : vector<1x256xf32>, i32 -> vector<1x256xf32>
    %387 = arith.mulf %386, %8 : vector<1x256xf32>
    %c241_i32_144 = arith.constant 241 : i32
    %388 = tpu.dynamic_rotate %376 by %c241_i32_144 dim 1 : vector<1x256xf32>, i32 -> vector<1x256xf32>
    %389 = arith.mulf %388, %9 : vector<1x256xf32>
    %c240_i32_145 = arith.constant 240 : i32
    %390 = tpu.dynamic_rotate %376 by %c240_i32_145 dim 1 : vector<1x256xf32>, i32 -> vector<1x256xf32>
    %391 = arith.mulf %390, %10 : vector<1x256xf32>
    %c239_i32_146 = arith.constant 239 : i32
    %392 = tpu.dynamic_rotate %376 by %c239_i32_146 dim 1 : vector<1x256xf32>, i32 -> vector<1x256xf32>
    %393 = arith.mulf %392, %11 : vector<1x256xf32>
    %394 = tpu.concatenate %379, %381, %383, %385, %376, %387, %389, %391, %393 in 0 : vector<1x256xf32>, vector<1x256xf32>, vector<1x256xf32>, vector<1x256xf32>, vector<1x256xf32>, vector<1x256xf32>, vector<1x256xf32>, vector<1x256xf32>, vector<1x256xf32> -> vector<9x256xf32>
    %cst_147 = arith.constant dense<0.000000e+00> : vector<4x256xf32>
    %395 = tpu.matmul %377, %394, %cst_147 {dimension_numbers = #tpu.dot_dimension_numbers<[1], [0], [0], [1], [0, 0, 1, 1], [], []>} : vector<4x9xf32>, vector<9x256xf32>, vector<4x256xf32> -> vector<4x256xf32>
    %396 = tpu.concatenate %376, %395 in 0 : vector<1x256xf32>, vector<4x256xf32> -> vector<5x256xf32>
    %c0_148 = arith.constant 0 : index
    %c0_149 = arith.constant 0 : index
    %c0_150 = arith.constant 0 : index
    %397 = vector.load %arg12[%c0_148, %c0_149, %c0_150] : memref<1x5x45xf32, #tpu.memory_space<vmem>>, vector<1x5x45xf32>
    %398 = vector.shape_cast %397 : vector<1x5x45xf32> to vector<5x45xf32>
    %c0_151 = arith.constant 0 : index
    %c0_152 = arith.constant 0 : index
    %c0_153 = arith.constant 0 : index
    %399 = vector.load %arg13[%c0_151, %c0_152, %c0_153] : memref<1x5x1xf32, #tpu.memory_space<vmem>>, vector<1x5x1xf32>
    %400 = vector.shape_cast %399 : vector<1x5x1xf32> to vector<5x1xf32>
    %c17_i32_154 = arith.constant 17 : i32
    %401 = tpu.dynamic_rotate %396 by %c17_i32_154 dim 1 : vector<5x256xf32>, i32 -> vector<5x256xf32>
    %402 = vector.broadcast %4 : vector<1x256xf32> to vector<5x256xf32>
    %403 = arith.mulf %401, %402 : vector<5x256xf32>
    %c16_i32_155 = arith.constant 16 : i32
    %404 = tpu.dynamic_rotate %396 by %c16_i32_155 dim 1 : vector<5x256xf32>, i32 -> vector<5x256xf32>
    %405 = vector.broadcast %5 : vector<1x256xf32> to vector<5x256xf32>
    %406 = arith.mulf %404, %405 : vector<5x256xf32>
    %c15_i32_156 = arith.constant 15 : i32
    %407 = tpu.dynamic_rotate %396 by %c15_i32_156 dim 1 : vector<5x256xf32>, i32 -> vector<5x256xf32>
    %408 = vector.broadcast %6 : vector<1x256xf32> to vector<5x256xf32>
    %409 = arith.mulf %407, %408 : vector<5x256xf32>
    %c1_i32_157 = arith.constant 1 : i32
    %410 = tpu.dynamic_rotate %396 by %c1_i32_157 dim 1 : vector<5x256xf32>, i32 -> vector<5x256xf32>
    %411 = vector.broadcast %7 : vector<1x256xf32> to vector<5x256xf32>
    %412 = arith.mulf %410, %411 : vector<5x256xf32>
    %c255_i32_158 = arith.constant 255 : i32
    %413 = tpu.dynamic_rotate %396 by %c255_i32_158 dim 1 : vector<5x256xf32>, i32 -> vector<5x256xf32>
    %414 = vector.broadcast %8 : vector<1x256xf32> to vector<5x256xf32>
    %415 = arith.mulf %413, %414 : vector<5x256xf32>
    %c241_i32_159 = arith.constant 241 : i32
    %416 = tpu.dynamic_rotate %396 by %c241_i32_159 dim 1 : vector<5x256xf32>, i32 -> vector<5x256xf32>
    %417 = vector.broadcast %9 : vector<1x256xf32> to vector<5x256xf32>
    %418 = arith.mulf %416, %417 : vector<5x256xf32>
    %c240_i32_160 = arith.constant 240 : i32
    %419 = tpu.dynamic_rotate %396 by %c240_i32_160 dim 1 : vector<5x256xf32>, i32 -> vector<5x256xf32>
    %420 = vector.broadcast %10 : vector<1x256xf32> to vector<5x256xf32>
    %421 = arith.mulf %419, %420 : vector<5x256xf32>
    %c239_i32_161 = arith.constant 239 : i32
    %422 = tpu.dynamic_rotate %396 by %c239_i32_161 dim 1 : vector<5x256xf32>, i32 -> vector<5x256xf32>
    %423 = vector.broadcast %11 : vector<1x256xf32> to vector<5x256xf32>
    %424 = arith.mulf %422, %423 : vector<5x256xf32>
    %425 = tpu.concatenate %403, %406, %409, %412, %396, %415, %418, %421, %424 in 0 : vector<5x256xf32>, vector<5x256xf32>, vector<5x256xf32>, vector<5x256xf32>, vector<5x256xf32>, vector<5x256xf32>, vector<5x256xf32>, vector<5x256xf32>, vector<5x256xf32> -> vector<45x256xf32>
    %cst_162 = arith.constant dense<0.000000e+00> : vector<5x256xf32>
    %426 = tpu.matmul %398, %425, %cst_162 {dimension_numbers = #tpu.dot_dimension_numbers<[1], [0], [0], [1], [0, 0, 1, 1], [], []>} : vector<5x45xf32>, vector<45x256xf32>, vector<5x256xf32> -> vector<5x256xf32>
    %427 = vector.broadcast %400 : vector<5x1xf32> to vector<5x256xf32>
    %428 = arith.addf %426, %427 : vector<5x256xf32>
    %cst_163 = arith.constant 0.000000e+00 : f32
    %429 = vector.broadcast %cst_163 : f32 to vector<5x256xf32>
    %430 = arith.maximumf %428, %429 : vector<5x256xf32>
    %c0_164 = arith.constant 0 : index
    %c0_165 = arith.constant 0 : index
    %c0_166 = arith.constant 0 : index
    %431 = vector.load %arg14[%c0_164, %c0_165, %c0_166] : memref<1x5x45xf32, #tpu.memory_space<vmem>>, vector<1x5x45xf32>
    %432 = vector.shape_cast %431 : vector<1x5x45xf32> to vector<5x45xf32>
    %c0_167 = arith.constant 0 : index
    %c0_168 = arith.constant 0 : index
    %c0_169 = arith.constant 0 : index
    %433 = vector.load %arg15[%c0_167, %c0_168, %c0_169] : memref<1x5x1xf32, #tpu.memory_space<vmem>>, vector<1x5x1xf32>
    %434 = vector.shape_cast %433 : vector<1x5x1xf32> to vector<5x1xf32>
    %c17_i32_170 = arith.constant 17 : i32
    %435 = tpu.dynamic_rotate %430 by %c17_i32_170 dim 1 : vector<5x256xf32>, i32 -> vector<5x256xf32>
    %436 = vector.broadcast %4 : vector<1x256xf32> to vector<5x256xf32>
    %437 = arith.mulf %435, %436 : vector<5x256xf32>
    %c16_i32_171 = arith.constant 16 : i32
    %438 = tpu.dynamic_rotate %430 by %c16_i32_171 dim 1 : vector<5x256xf32>, i32 -> vector<5x256xf32>
    %439 = vector.broadcast %5 : vector<1x256xf32> to vector<5x256xf32>
    %440 = arith.mulf %438, %439 : vector<5x256xf32>
    %c15_i32_172 = arith.constant 15 : i32
    %441 = tpu.dynamic_rotate %430 by %c15_i32_172 dim 1 : vector<5x256xf32>, i32 -> vector<5x256xf32>
    %442 = vector.broadcast %6 : vector<1x256xf32> to vector<5x256xf32>
    %443 = arith.mulf %441, %442 : vector<5x256xf32>
    %c1_i32_173 = arith.constant 1 : i32
    %444 = tpu.dynamic_rotate %430 by %c1_i32_173 dim 1 : vector<5x256xf32>, i32 -> vector<5x256xf32>
    %445 = vector.broadcast %7 : vector<1x256xf32> to vector<5x256xf32>
    %446 = arith.mulf %444, %445 : vector<5x256xf32>
    %c255_i32_174 = arith.constant 255 : i32
    %447 = tpu.dynamic_rotate %430 by %c255_i32_174 dim 1 : vector<5x256xf32>, i32 -> vector<5x256xf32>
    %448 = vector.broadcast %8 : vector<1x256xf32> to vector<5x256xf32>
    %449 = arith.mulf %447, %448 : vector<5x256xf32>
    %c241_i32_175 = arith.constant 241 : i32
    %450 = tpu.dynamic_rotate %430 by %c241_i32_175 dim 1 : vector<5x256xf32>, i32 -> vector<5x256xf32>
    %451 = vector.broadcast %9 : vector<1x256xf32> to vector<5x256xf32>
    %452 = arith.mulf %450, %451 : vector<5x256xf32>
    %c240_i32_176 = arith.constant 240 : i32
    %453 = tpu.dynamic_rotate %430 by %c240_i32_176 dim 1 : vector<5x256xf32>, i32 -> vector<5x256xf32>
    %454 = vector.broadcast %10 : vector<1x256xf32> to vector<5x256xf32>
    %455 = arith.mulf %453, %454 : vector<5x256xf32>
    %c239_i32_177 = arith.constant 239 : i32
    %456 = tpu.dynamic_rotate %430 by %c239_i32_177 dim 1 : vector<5x256xf32>, i32 -> vector<5x256xf32>
    %457 = vector.broadcast %11 : vector<1x256xf32> to vector<5x256xf32>
    %458 = arith.mulf %456, %457 : vector<5x256xf32>
    %459 = tpu.concatenate %437, %440, %443, %446, %430, %449, %452, %455, %458 in 0 : vector<5x256xf32>, vector<5x256xf32>, vector<5x256xf32>, vector<5x256xf32>, vector<5x256xf32>, vector<5x256xf32>, vector<5x256xf32>, vector<5x256xf32>, vector<5x256xf32> -> vector<45x256xf32>
    %cst_178 = arith.constant dense<0.000000e+00> : vector<5x256xf32>
    %460 = tpu.matmul %432, %459, %cst_178 {dimension_numbers = #tpu.dot_dimension_numbers<[1], [0], [0], [1], [0, 0, 1, 1], [], []>} : vector<5x45xf32>, vector<45x256xf32>, vector<5x256xf32> -> vector<5x256xf32>
    %461 = vector.broadcast %434 : vector<5x1xf32> to vector<5x256xf32>
    %462 = arith.addf %460, %461 : vector<5x256xf32>
    %463 = arith.addf %396, %462 : vector<5x256xf32>
    %464 = vector.extract_strided_slice %463 {offsets = [0, 0], sizes = [1, 256], strides = [1, 1]} : vector<5x256xf32> to vector<1x256xf32>
    %465 = tpu.concatenate %346, %349 in 0 : vector<1x256xf32>, vector<1x256xf32> -> vector<2x256xf32>
    %cst_179 = arith.constant dense<0.000000e+00> : vector<2x512xf32>
    %466 = tpu.matmul %465, %15, %cst_179 {dimension_numbers = #tpu.dot_dimension_numbers<[1], [0], [0], [1], [0, 0, 1, 1], [], []>} : vector<2x256xf32>, vector<256x512xf32>, vector<2x512xf32> -> vector<2x512xf32>
    %467 = vector.extract_strided_slice %466 {offsets = [0, 0], sizes = [1, 256], strides = [1, 1]} : vector<2x512xf32> to vector<1x256xf32>
    %468 = vector.extract_strided_slice %466 {offsets = [1, 256], sizes = [1, 256], strides = [1, 1]} : vector<2x512xf32> to vector<1x256xf32>
    %469 = arith.subf %467, %468 : vector<1x256xf32>
    %470 = vector.extract_strided_slice %466 {offsets = [0, 256], sizes = [1, 256], strides = [1, 1]} : vector<2x512xf32> to vector<1x256xf32>
    %471 = vector.extract_strided_slice %466 {offsets = [1, 0], sizes = [1, 256], strides = [1, 1]} : vector<2x512xf32> to vector<1x256xf32>
    %472 = arith.addf %470, %471 : vector<1x256xf32>
    %473 = tpu.concatenate %469, %472, %330 in 0 : vector<1x256xf32>, vector<1x256xf32>, vector<4x256xf32> -> vector<6x256xf32>
    %c0_180 = arith.constant 0 : index
    %c0_181 = arith.constant 0 : index
    %c0_182 = arith.constant 0 : index
    %474 = vector.load %arg8[%c0_180, %c0_181, %c0_182] : memref<1x6x54xf32, #tpu.memory_space<vmem>>, vector<1x6x54xf32>
    %475 = vector.shape_cast %474 : vector<1x6x54xf32> to vector<6x54xf32>
    %c0_183 = arith.constant 0 : index
    %c0_184 = arith.constant 0 : index
    %c0_185 = arith.constant 0 : index
    %476 = vector.load %arg9[%c0_183, %c0_184, %c0_185] : memref<1x6x1xf32, #tpu.memory_space<vmem>>, vector<1x6x1xf32>
    %477 = vector.shape_cast %476 : vector<1x6x1xf32> to vector<6x1xf32>
    %c17_i32_186 = arith.constant 17 : i32
    %478 = tpu.dynamic_rotate %473 by %c17_i32_186 dim 1 : vector<6x256xf32>, i32 -> vector<6x256xf32>
    %479 = vector.broadcast %4 : vector<1x256xf32> to vector<6x256xf32>
    %480 = arith.mulf %478, %479 : vector<6x256xf32>
    %c16_i32_187 = arith.constant 16 : i32
    %481 = tpu.dynamic_rotate %473 by %c16_i32_187 dim 1 : vector<6x256xf32>, i32 -> vector<6x256xf32>
    %482 = vector.broadcast %5 : vector<1x256xf32> to vector<6x256xf32>
    %483 = arith.mulf %481, %482 : vector<6x256xf32>
    %c15_i32_188 = arith.constant 15 : i32
    %484 = tpu.dynamic_rotate %473 by %c15_i32_188 dim 1 : vector<6x256xf32>, i32 -> vector<6x256xf32>
    %485 = vector.broadcast %6 : vector<1x256xf32> to vector<6x256xf32>
    %486 = arith.mulf %484, %485 : vector<6x256xf32>
    %c1_i32_189 = arith.constant 1 : i32
    %487 = tpu.dynamic_rotate %473 by %c1_i32_189 dim 1 : vector<6x256xf32>, i32 -> vector<6x256xf32>
    %488 = vector.broadcast %7 : vector<1x256xf32> to vector<6x256xf32>
    %489 = arith.mulf %487, %488 : vector<6x256xf32>
    %c255_i32_190 = arith.constant 255 : i32
    %490 = tpu.dynamic_rotate %473 by %c255_i32_190 dim 1 : vector<6x256xf32>, i32 -> vector<6x256xf32>
    %491 = vector.broadcast %8 : vector<1x256xf32> to vector<6x256xf32>
    %492 = arith.mulf %490, %491 : vector<6x256xf32>
    %c241_i32_191 = arith.constant 241 : i32
    %493 = tpu.dynamic_rotate %473 by %c241_i32_191 dim 1 : vector<6x256xf32>, i32 -> vector<6x256xf32>
    %494 = vector.broadcast %9 : vector<1x256xf32> to vector<6x256xf32>
    %495 = arith.mulf %493, %494 : vector<6x256xf32>
    %c240_i32_192 = arith.constant 240 : i32
    %496 = tpu.dynamic_rotate %473 by %c240_i32_192 dim 1 : vector<6x256xf32>, i32 -> vector<6x256xf32>
    %497 = vector.broadcast %10 : vector<1x256xf32> to vector<6x256xf32>
    %498 = arith.mulf %496, %497 : vector<6x256xf32>
    %c239_i32_193 = arith.constant 239 : i32
    %499 = tpu.dynamic_rotate %473 by %c239_i32_193 dim 1 : vector<6x256xf32>, i32 -> vector<6x256xf32>
    %500 = vector.broadcast %11 : vector<1x256xf32> to vector<6x256xf32>
    %501 = arith.mulf %499, %500 : vector<6x256xf32>
    %502 = tpu.concatenate %480, %483, %486, %489, %473, %492, %495, %498, %501 in 0 : vector<6x256xf32>, vector<6x256xf32>, vector<6x256xf32>, vector<6x256xf32>, vector<6x256xf32>, vector<6x256xf32>, vector<6x256xf32>, vector<6x256xf32>, vector<6x256xf32> -> vector<54x256xf32>
    %cst_194 = arith.constant dense<0.000000e+00> : vector<6x256xf32>
    %503 = tpu.matmul %475, %502, %cst_194 {dimension_numbers = #tpu.dot_dimension_numbers<[1], [0], [0], [1], [0, 0, 1, 1], [], []>} : vector<6x54xf32>, vector<54x256xf32>, vector<6x256xf32> -> vector<6x256xf32>
    %504 = vector.broadcast %477 : vector<6x1xf32> to vector<6x256xf32>
    %505 = arith.addf %503, %504 : vector<6x256xf32>
    %cst_195 = arith.constant 0.000000e+00 : f32
    %506 = vector.broadcast %cst_195 : f32 to vector<6x256xf32>
    %507 = arith.maximumf %505, %506 : vector<6x256xf32>
    %c0_196 = arith.constant 0 : index
    %c0_197 = arith.constant 0 : index
    %c0_198 = arith.constant 0 : index
    %508 = vector.load %arg10[%c0_196, %c0_197, %c0_198] : memref<1x6x54xf32, #tpu.memory_space<vmem>>, vector<1x6x54xf32>
    %509 = vector.shape_cast %508 : vector<1x6x54xf32> to vector<6x54xf32>
    %c0_199 = arith.constant 0 : index
    %c0_200 = arith.constant 0 : index
    %c0_201 = arith.constant 0 : index
    %510 = vector.load %arg11[%c0_199, %c0_200, %c0_201] : memref<1x6x1xf32, #tpu.memory_space<vmem>>, vector<1x6x1xf32>
    %511 = vector.shape_cast %510 : vector<1x6x1xf32> to vector<6x1xf32>
    %c17_i32_202 = arith.constant 17 : i32
    %512 = tpu.dynamic_rotate %507 by %c17_i32_202 dim 1 : vector<6x256xf32>, i32 -> vector<6x256xf32>
    %513 = vector.broadcast %4 : vector<1x256xf32> to vector<6x256xf32>
    %514 = arith.mulf %512, %513 : vector<6x256xf32>
    %c16_i32_203 = arith.constant 16 : i32
    %515 = tpu.dynamic_rotate %507 by %c16_i32_203 dim 1 : vector<6x256xf32>, i32 -> vector<6x256xf32>
    %516 = vector.broadcast %5 : vector<1x256xf32> to vector<6x256xf32>
    %517 = arith.mulf %515, %516 : vector<6x256xf32>
    %c15_i32_204 = arith.constant 15 : i32
    %518 = tpu.dynamic_rotate %507 by %c15_i32_204 dim 1 : vector<6x256xf32>, i32 -> vector<6x256xf32>
    %519 = vector.broadcast %6 : vector<1x256xf32> to vector<6x256xf32>
    %520 = arith.mulf %518, %519 : vector<6x256xf32>
    %c1_i32_205 = arith.constant 1 : i32
    %521 = tpu.dynamic_rotate %507 by %c1_i32_205 dim 1 : vector<6x256xf32>, i32 -> vector<6x256xf32>
    %522 = vector.broadcast %7 : vector<1x256xf32> to vector<6x256xf32>
    %523 = arith.mulf %521, %522 : vector<6x256xf32>
    %c255_i32_206 = arith.constant 255 : i32
    %524 = tpu.dynamic_rotate %507 by %c255_i32_206 dim 1 : vector<6x256xf32>, i32 -> vector<6x256xf32>
    %525 = vector.broadcast %8 : vector<1x256xf32> to vector<6x256xf32>
    %526 = arith.mulf %524, %525 : vector<6x256xf32>
    %c241_i32_207 = arith.constant 241 : i32
    %527 = tpu.dynamic_rotate %507 by %c241_i32_207 dim 1 : vector<6x256xf32>, i32 -> vector<6x256xf32>
    %528 = vector.broadcast %9 : vector<1x256xf32> to vector<6x256xf32>
    %529 = arith.mulf %527, %528 : vector<6x256xf32>
    %c240_i32_208 = arith.constant 240 : i32
    %530 = tpu.dynamic_rotate %507 by %c240_i32_208 dim 1 : vector<6x256xf32>, i32 -> vector<6x256xf32>
    %531 = vector.broadcast %10 : vector<1x256xf32> to vector<6x256xf32>
    %532 = arith.mulf %530, %531 : vector<6x256xf32>
    %c239_i32_209 = arith.constant 239 : i32
    %533 = tpu.dynamic_rotate %507 by %c239_i32_209 dim 1 : vector<6x256xf32>, i32 -> vector<6x256xf32>
    %534 = vector.broadcast %11 : vector<1x256xf32> to vector<6x256xf32>
    %535 = arith.mulf %533, %534 : vector<6x256xf32>
    %536 = tpu.concatenate %514, %517, %520, %523, %507, %526, %529, %532, %535 in 0 : vector<6x256xf32>, vector<6x256xf32>, vector<6x256xf32>, vector<6x256xf32>, vector<6x256xf32>, vector<6x256xf32>, vector<6x256xf32>, vector<6x256xf32>, vector<6x256xf32> -> vector<54x256xf32>
    %cst_210 = arith.constant dense<0.000000e+00> : vector<6x256xf32>
    %537 = tpu.matmul %509, %536, %cst_210 {dimension_numbers = #tpu.dot_dimension_numbers<[1], [0], [0], [1], [0, 0, 1, 1], [], []>} : vector<6x54xf32>, vector<54x256xf32>, vector<6x256xf32> -> vector<6x256xf32>
    %538 = vector.broadcast %511 : vector<6x1xf32> to vector<6x256xf32>
    %539 = arith.addf %537, %538 : vector<6x256xf32>
    %540 = arith.addf %473, %539 : vector<6x256xf32>
    %541 = vector.extract_strided_slice %540 {offsets = [0, 0], sizes = [1, 256], strides = [1, 1]} : vector<6x256xf32> to vector<1x256xf32>
    %542 = vector.extract_strided_slice %540 {offsets = [1, 0], sizes = [1, 256], strides = [1, 1]} : vector<6x256xf32> to vector<1x256xf32>
    %543 = tpu.concatenate %541, %542 in 0 : vector<1x256xf32>, vector<1x256xf32> -> vector<2x256xf32>
    %cst_211 = arith.constant dense<0.000000e+00> : vector<2x512xf32>
    %544 = tpu.matmul %543, %13, %cst_211 {dimension_numbers = #tpu.dot_dimension_numbers<[1], [0], [0], [1], [0, 0, 1, 1], [], []>} : vector<2x256xf32>, vector<256x512xf32>, vector<2x512xf32> -> vector<2x512xf32>
    %545 = vector.extract_strided_slice %544 {offsets = [0, 0], sizes = [1, 256], strides = [1, 1]} : vector<2x512xf32> to vector<1x256xf32>
    %546 = vector.extract_strided_slice %544 {offsets = [1, 256], sizes = [1, 256], strides = [1, 1]} : vector<2x512xf32> to vector<1x256xf32>
    %547 = arith.subf %545, %546 : vector<1x256xf32>
    %548 = vector.extract_strided_slice %544 {offsets = [0, 256], sizes = [1, 256], strides = [1, 1]} : vector<2x512xf32> to vector<1x256xf32>
    %549 = vector.extract_strided_slice %544 {offsets = [1, 0], sizes = [1, 256], strides = [1, 1]} : vector<2x512xf32> to vector<1x256xf32>
    %550 = arith.addf %548, %549 : vector<1x256xf32>
    %cst_212 = arith.constant 2.000000e+00 : f32
    %551 = vector.broadcast %cst_212 : f32 to vector<1x256xf32>
    %552 = arith.mulf %551, %464 : vector<1x256xf32>
    %553 = arith.mulf %552, %464 : vector<1x256xf32>
    %cst_213 = arith.constant 1.000000e+00 : f32
    %554 = vector.broadcast %cst_213 : f32 to vector<1x256xf32>
    %555 = arith.addf %554, %553 : vector<1x256xf32>
    %556 = arith.mulf %464, %142 : vector<1x256xf32>
    %557 = arith.addf %547, %556 : vector<1x256xf32>
    %558 = arith.divf %557, %555 : vector<1x256xf32>
    %559 = arith.mulf %464, %144 : vector<1x256xf32>
    %560 = arith.addf %550, %559 : vector<1x256xf32>
    %561 = arith.divf %560, %555 : vector<1x256xf32>
    %562 = tpu.concatenate %541, %542 in 0 : vector<1x256xf32>, vector<1x256xf32> -> vector<2x256xf32>
    %c1_214 = arith.constant 1 : index
    %c0_215 = arith.constant 0 : index
    %c0_216 = arith.constant 0 : index
    %c0_217 = arith.constant 0 : index
    %563 = vector.load %arg16[%c1_214, %c0_215, %c0_216, %c0_217] : memref<2x1x2x256xf32, #tpu.memory_space<vmem>>, vector<1x1x2x256xf32>
    %564 = vector.shape_cast %563 : vector<1x1x2x256xf32> to vector<2x256xf32>
    %565 = vector.shape_cast %562 : vector<2x256xf32> to vector<1x1x2x256xf32>
    tpu.vector_store %arg16[%c1_214, %c0_215, %c0_216, %c0_217], %565 {strides = array<i32>} : memref<2x1x2x256xf32, #tpu.memory_space<vmem>>, vector<1x1x2x256xf32>,
    %566 = tpu.concatenate %558, %561 in 0 : vector<1x256xf32>, vector<1x256xf32> -> vector<2x256xf32>
    %c1_218 = arith.constant 1 : index
    %c0_219 = arith.constant 0 : index
    %c0_220 = arith.constant 0 : index
    %c0_221 = arith.constant 0 : index
    %567 = vector.load %arg17[%c1_218, %c0_219, %c0_220, %c0_221] : memref<2x1x2x256xf32, #tpu.memory_space<vmem>>, vector<1x1x2x256xf32>
    %568 = vector.shape_cast %567 : vector<1x1x2x256xf32> to vector<2x256xf32>
    %569 = vector.shape_cast %566 : vector<2x256xf32> to vector<1x1x2x256xf32>
    tpu.vector_store %arg17[%c1_218, %c0_219, %c0_220, %c0_221], %569 {strides = array<i32>} : memref<2x1x2x256xf32, #tpu.memory_space<vmem>>, vector<1x1x2x256xf32>,
    %c0_222 = arith.constant 0 : index
    %c0_223 = arith.constant 0 : index
    %c0_224 = arith.constant 0 : index
    %570 = vector.load %arg18[%c0_222, %c0_223, %c0_224] : memref<1x1x256xf32, #tpu.memory_space<vmem>>, vector<1x1x256xf32>
    %571 = vector.shape_cast %570 : vector<1x1x256xf32> to vector<1x256xf32>
    %572 = vector.shape_cast %464 : vector<1x256xf32> to vector<1x1x256xf32>
    tpu.vector_store %arg18[%c0_222, %c0_223, %c0_224], %572 {strides = array<i32>} : memref<1x1x256xf32, #tpu.memory_space<vmem>>, vector<1x1x256xf32>,
    return
  }
  func.func @transform_0(%arg0: i32) -> i32 {
    %c0_i32 = arith.constant 0 : i32
    %c0_i32_0 = arith.constant 0 : i32
    return %c0_i32 : i32
  }
  func.func @transform_1(%arg0: i32) -> (i32, i32, i32) {
    %c0_i32 = arith.constant 0 : i32
    %c0_i32_0 = arith.constant 0 : i32
    %c0_i32_1 = arith.constant 0 : i32
    return %arg0, %c0_i32, %c0_i32_0 : i32, i32, i32
  }
  func.func @transform_2(%arg0: i32) -> (i32, i32, i32) {
    %c0_i32 = arith.constant 0 : i32
    %c0_i32_0 = arith.constant 0 : i32
    %c0_i32_1 = arith.constant 0 : i32
    %c0_i32_2 = arith.constant 0 : i32
    return %c0_i32, %c0_i32_0, %c0_i32_1 : i32, i32, i32
  }
  func.func @transform_3(%arg0: i32) -> (i32, i32) {
    %c0_i32 = arith.constant 0 : i32
    %c0_i32_0 = arith.constant 0 : i32
    %c0_i32_1 = arith.constant 0 : i32
    return %c0_i32, %c0_i32_0 : i32, i32
  }
  func.func @transform_4(%arg0: i32) -> (i32, i32) {
    %c0_i32 = arith.constant 0 : i32
    %c0_i32_0 = arith.constant 0 : i32
    %c0_i32_1 = arith.constant 0 : i32
    return %c0_i32, %c0_i32_0 : i32, i32
  }
  func.func @transform_5(%arg0: i32) -> (i32, i32) {
    %c0_i32 = arith.constant 0 : i32
    %c0_i32_0 = arith.constant 0 : i32
    %c0_i32_1 = arith.constant 0 : i32
    return %c0_i32, %c0_i32_0 : i32, i32
  }
  func.func @transform_6(%arg0: i32) -> (i32, i32) {
    %c0_i32 = arith.constant 0 : i32
    %c0_i32_0 = arith.constant 0 : i32
    %c0_i32_1 = arith.constant 0 : i32
    return %c0_i32, %c0_i32_0 : i32, i32
  }
  func.func @transform_7(%arg0: i32) -> (i32, i32, i32) {
    %c0_i32 = arith.constant 0 : i32
    %c0_i32_0 = arith.constant 0 : i32
    %c0_i32_1 = arith.constant 0 : i32
    %c0_i32_2 = arith.constant 0 : i32
    return %c0_i32, %c0_i32_0, %c0_i32_1 : i32, i32, i32
  }
  func.func @transform_8(%arg0: i32) -> (i32, i32, i32) {
    %c0_i32 = arith.constant 0 : i32
    %c0_i32_0 = arith.constant 0 : i32
    %c0_i32_1 = arith.constant 0 : i32
    %c0_i32_2 = arith.constant 0 : i32
    return %c0_i32, %c0_i32_0, %c0_i32_1 : i32, i32, i32
  }
  func.func @transform_9(%arg0: i32) -> (i32, i32, i32) {
    %c0_i32 = arith.constant 0 : i32
    %c0_i32_0 = arith.constant 0 : i32
    %c0_i32_1 = arith.constant 0 : i32
    %c0_i32_2 = arith.constant 0 : i32
    return %c0_i32, %c0_i32_0, %c0_i32_1 : i32, i32, i32
  }
  func.func @transform_10(%arg0: i32) -> (i32, i32, i32) {
    %c0_i32 = arith.constant 0 : i32
    %c0_i32_0 = arith.constant 0 : i32
    %c0_i32_1 = arith.constant 0 : i32
    %c0_i32_2 = arith.constant 0 : i32
    return %c0_i32, %c0_i32_0, %c0_i32_1 : i32, i32, i32
  }
  func.func @transform_11(%arg0: i32) -> (i32, i32, i32) {
    %c0_i32 = arith.constant 0 : i32
    %c0_i32_0 = arith.constant 0 : i32
    %c0_i32_1 = arith.constant 0 : i32
    %c0_i32_2 = arith.constant 0 : i32
    return %c0_i32, %c0_i32_0, %c0_i32_1 : i32, i32, i32
  }
  func.func @transform_12(%arg0: i32) -> (i32, i32, i32) {
    %c0_i32 = arith.constant 0 : i32
    %c0_i32_0 = arith.constant 0 : i32
    %c0_i32_1 = arith.constant 0 : i32
    %c0_i32_2 = arith.constant 0 : i32
    return %c0_i32, %c0_i32_0, %c0_i32_1 : i32, i32, i32
  }
  func.func @transform_13(%arg0: i32) -> (i32, i32, i32) {
    %c0_i32 = arith.constant 0 : i32
    %c0_i32_0 = arith.constant 0 : i32
    %c0_i32_1 = arith.constant 0 : i32
    %c0_i32_2 = arith.constant 0 : i32
    return %c0_i32, %c0_i32_0, %c0_i32_1 : i32, i32, i32
  }
  func.func @transform_14(%arg0: i32) -> (i32, i32, i32) {
    %c0_i32 = arith.constant 0 : i32
    %c0_i32_0 = arith.constant 0 : i32
    %c0_i32_1 = arith.constant 0 : i32
    %c0_i32_2 = arith.constant 0 : i32
    return %c0_i32, %c0_i32_0, %c0_i32_1 : i32, i32, i32
  }
  func.func @transform_15(%arg0: i32) -> (i32, i32, i32, i32) {
    %c0_i32 = arith.constant 0 : i32
    %c0_i32_0 = arith.constant 0 : i32
    %c0_i32_1 = arith.constant 0 : i32
    %c0_i32_2 = arith.constant 0 : i32
    return %c0_i32, %arg0, %c0_i32_0, %c0_i32_1 : i32, i32, i32, i32
  }
  func.func @transform_16(%arg0: i32) -> (i32, i32, i32, i32) {
    %c0_i32 = arith.constant 0 : i32
    %c0_i32_0 = arith.constant 0 : i32
    %c0_i32_1 = arith.constant 0 : i32
    %c0_i32_2 = arith.constant 0 : i32
    return %c0_i32, %arg0, %c0_i32_0, %c0_i32_1 : i32, i32, i32, i32
  }
  func.func @transform_17(%arg0: i32) -> (i32, i32, i32) {
    %c0_i32 = arith.constant 0 : i32
    %c0_i32_0 = arith.constant 0 : i32
    %c0_i32_1 = arith.constant 0 : i32
    return %arg0, %c0_i32, %c0_i32_0 : i32, i32, i32
  }
}

</mosaic_0001>

<llo_original>
// kernel: squeeze.9
$region0: #{squeeze.9}
  %s0 = inlined_call_operand.vmem [shape: f32[1,2,2,256], index: 0, kind: input, shape index: {}]
  %s1 = inlined_call_operand.vmem [shape: f32[2,2,16,16], index: 1, kind: output, shape index: {}]
  $region1: #{squeeze.9} parent=0
    #allocation0 [shape = 'u8[16384]{0}', space=vmem, size = 0x4000, scoped, tag = 'scoped mem for input reshape']
    %s3 = sshllo.u32 0, 2
    %s4 = smul.addr 2, 3
    %s5 = scalar_lea.vmem %s0, %s4
    %v6 = vld [vmem:[%s5] sm:%s3]
    %s7 = scalar_lea.vmem [#allocation0], 24
    %8 = vst [vmem:[%s7] sm:%s3] %v6
    %s9 = smul.addr 2, 2
    %s10 = scalar_lea.vmem %s0, %s9
    %v11 = vld [vmem:[%s10] sm:%s3]
    %s12 = scalar_lea.vmem [#allocation0], 16
    %13 = vst [vmem:[%s12] sm:%s3] %v11
    %s14 = scalar_lea.vmem %s0, 2
    %v15 = vld [vmem:[%s14] sm:%s3]
    %s16 = scalar_lea.vmem [#allocation0], 8
    %17 = vst [vmem:[%s16] sm:%s3] %v15
    %v18 = vld [vmem:[%s0] sm:%s3]
    %19 = vst [vmem:[#allocation0] sm:%s3] %v18
    %v20 = vld [vmem:[#allocation0] sm:$0x3]
    %vm21 = vcmask 130048
    %22 = vst.msk [vmem:[%s1] ss:$16 sm:$0x3] %vm21, %v20
    %s23 = scalar_lea.vmem [#allocation0], 8
    %v24 = vld [vmem:[%s23] sm:$0x3]
    %vm25 = vcmask 130048
    %s26 = scalar_lea.vmem %s1, 8
    %27 = vst.msk [vmem:[%s26] ss:$16 sm:$0x3] %vm25, %v24
    %s28 = scalar_lea.vmem [#allocation0], 16
    %v29 = vld [vmem:[%s28] sm:$0x3]
    %vm30 = vcmask 130048
    %s31 = scalar_lea.vmem %s1, 32
    %32 = vst.msk [vmem:[%s31] ss:$16 sm:$0x3] %vm30, %v29
    %s33 = scalar_lea.vmem [#allocation0], 24
    %v34 = vld [vmem:[%s33] sm:$0x3]
    %vm35 = vcmask 130048
    %s36 = scalar_lea.vmem %s1, 40
    %37 = vst.msk [vmem:[%s36] ss:$16 sm:$0x3] %vm35, %v34
    %v38 = vld.sshfl [vmem:[#allocation0] sm:$0xff pattern:$0x99999180]
    %s39 = scalar_lea.vmem [#allocation0], 16
    %v40 = vld.sshfl [vmem:[%s39] sm:$0xff pattern:$0x91800000]
    %vm41 = vcmask 1047556
    %v42 = vsel %vm41, %v40, %v38
    %43 = vrot.lane.b32.xlu0 %v42, 112
    %v44 = vpop.permute.xlu0 %43
    %vm45 = vcmask 130048
    %s46 = scalar_lea.vmem %s1, 1
    %47 = vst.msk [vmem:[%s46] ss:$8 sm:$0xf] %vm45, %v44
    %s48 = scalar_lea.vmem %s1, 1
    %49 = vst.msk [vmem:[%s48] ss:$8 sm:$0xf0] %vm45, %v44
    %v50 = vld.sshfl [vmem:[#allocation0] sm:$0xff pattern:$0x99999180]
    %s51 = scalar_lea.vmem [#allocation0], 16
    %v52 = vld.sshfl [vmem:[%s51] sm:$0xff pattern:$0x91800000]
    %vm53 = vcmask 1047556
    %v54 = vsel %vm53, %v52, %v50
    %55 = vrot.lane.b32.xlu0 %v54, 96
    %v56 = vpop.permute.xlu0 %55
    %vm57 = vcmask 130048
    %s58 = scalar_lea.vmem %s1, 2
    %59 = vst.msk [vmem:[%s58] ss:$8 sm:$0xf] %vm57, %v56
    %s60 = scalar_lea.vmem %s1, 2
    %61 = vst.msk [vmem:[%s60] ss:$8 sm:$0xf0] %vm57, %v56
    %v62 = vld.sshfl [vmem:[#allocation0] sm:$0xff pattern:$0x99999180]
    %s63 = scalar_lea.vmem [#allocation0], 16
    %v64 = vld.sshfl [vmem:[%s63] sm:$0xff pattern:$0x91800000]
    %vm65 = vcmask 1047556
    %v66 = vsel %vm65, %v64, %v62
    %67 = vrot.lane.b32.xlu0 %v66, 80
    %v68 = vpop.permute.xlu0 %67
    %vm69 = vcmask 130048
    %s70 = scalar_lea.vmem %s1, 3
    %71 = vst.msk [vmem:[%s70] ss:$8 sm:$0xf] %vm69, %v68
    %s72 = scalar_lea.vmem %s1, 3
    %73 = vst.msk [vmem:[%s72] ss:$8 sm:$0xf0] %vm69, %v68
    %v74 = vld.sshfl [vmem:[#allocation0] sm:$0xff pattern:$0x99999180]
    %s75 = scalar_lea.vmem [#allocation0], 16
    %v76 = vld.sshfl [vmem:[%s75] sm:$0xff pattern:$0x91800000]
    %vm77 = vcmask 1047556
    %v78 = vsel %vm77, %v76, %v74
    %79 = vrot.lane.b32.xlu0 %v78, 64
    %v80 = vpop.permute.xlu0 %79
    %vm81 = vcmask 130048
    %s82 = scalar_lea.vmem %s1, 4
    %83 = vst.msk [vmem:[%s82] ss:$8 sm:$0xf] %vm81, %v80
    %s84 = scalar_lea.vmem %s1, 4
    %85 = vst.msk [vmem:[%s84] ss:$8 sm:$0xf0] %vm81, %v80
    %v86 = vld.sshfl [vmem:[#allocation0] sm:$0xff pattern:$0x99999180]
    %s87 = scalar_lea.vmem [#allocation0], 16
    %v88 = vld.sshfl [vmem:[%s87] sm:$0xff pattern:$0x91800000]
    %vm89 = vcmask 1047556
    %v90 = vsel %vm89, %v88, %v86
    %91 = vrot.lane.b32.xlu0 %v90, 48
    %v92 = vpop.permute.xlu0 %91
    %vm93 = vcmask 130048
    %s94 = scalar_lea.vmem %s1, 5
    %95 = vst.msk [vmem:[%s94] ss:$8 sm:$0xf] %vm93, %v92
    %s96 = scalar_lea.vmem %s1, 5
    %97 = vst.msk [vmem:[%s96] ss:$8 sm:$0xf0] %vm93, %v92
    %v98 = vld.sshfl [vmem:[#allocation0] sm:$0xff pattern:$0x99999180]
    %s99 = scalar_lea.vmem [#allocation0], 16
    %v100 = vld.sshfl [vmem:[%s99] sm:$0xff pattern:$0x91800000]
    %vm101 = vcmask 1047556
    %v102 = vsel %vm101, %v100, %v98
    %103 = vrot.lane.b32.xlu0 %v102, 32
    %v104 = vpop.permute.xlu0 %103
    %vm105 = vcmask 130048
    %s106 = scalar_lea.vmem %s1, 6
    %107 = vst.msk [vmem:[%s106] ss:$8 sm:$0xf] %vm105, %v104
    %s108 = scalar_lea.vmem %s1, 6
    %109 = vst.msk [vmem:[%s108] ss:$8 sm:$0xf0] %vm105, %v104
    %v110 = vld.sshfl [vmem:[#allocation0] sm:$0xff pattern:$0x99999180]
    %s111 = scalar_lea.vmem [#allocation0], 16
    %v112 = vld.sshfl [vmem:[%s111] sm:$0xff pattern:$0x91800000]
    %vm113 = vcmask 1047556
    %v114 = vsel %vm113, %v112, %v110
    %115 = vrot.lane.b32.xlu0 %v114, 16
    %v116 = vpop.permute.xlu0 %115
    %vm117 = vcmask 130048
    %s118 = scalar_lea.vmem %s1, 7
    %119 = vst.msk [vmem:[%s118] ss:$8 sm:$0xf] %vm117, %v116
    %s120 = scalar_lea.vmem %s1, 7
    %121 = vst.msk [vmem:[%s120] ss:$8 sm:$0xf0] %vm117, %v116

// kernel: mxnet_forward.1
$region0: #{mxnet_forward.1}
  #allocation0 [shape = 'u32[]', space=smem, size = 0x4, offset = 0x4, fixed_abs, tag = 'smem constant byte address 0x4 - core index']
  #allocation1 [shape = 'u32[144,128]{1,0:T(1,128)}', space=vmem, size = 0x12000, scoped, tag = 'internal scratch']
  %s0 = inlined_call_operand.vmem [shape: f32[3], index: 0, kind: input, shape index: {}]
  %s1 = inlined_call_operand.vmem [shape: f32[2,2,256], index: 1, kind: input, shape index: {}]
  %s2 = inlined_call_operand.hbm [shape: f32[2,256,512], index: 2, kind: input, shape index: {}]
  %s3 = inlined_call_operand.vmem [shape: f32[256,256], index: 3, kind: input, shape index: {}]
  %s4 = inlined_call_operand.vmem [shape: f32[9,256], index: 4, kind: input, shape index: {}]
  %s5 = inlined_call_operand.vmem [shape: f32[4,18], index: 5, kind: input, shape index: {}]
  %s6 = inlined_call_operand.vmem [shape: f32[4,9], index: 6, kind: input, shape index: {}]
  %s7 = inlined_call_operand.vmem [shape: f32[1,6,54], index: 7, kind: input, shape index: {}]
  %s8 = inlined_call_operand.vmem [shape: f32[1,6,1], index: 8, kind: input, shape index: {}]
  %s9 = inlined_call_operand.vmem [shape: f32[1,6,54], index: 9, kind: input, shape index: {}]
  %s10 = inlined_call_operand.vmem [shape: f32[1,6,1], index: 10, kind: input, shape index: {}]
  %s11 = inlined_call_operand.vmem [shape: f32[1,5,45], index: 11, kind: input, shape index: {}]
  %s12 = inlined_call_operand.vmem [shape: f32[1,5,1], index: 12, kind: input, shape index: {}]
  %s13 = inlined_call_operand.vmem [shape: f32[1,5,45], index: 13, kind: input, shape index: {}]
  %s14 = inlined_call_operand.vmem [shape: f32[1,5,1], index: 14, kind: input, shape index: {}]
  %s15 = inlined_call_operand.vmem [shape: f32[2,2,2,256], index: 15, kind: output, shape index: {0}]
  %s16 = inlined_call_operand.vmem [shape: f32[2,2,2,256], index: 16, kind: output, shape index: {1}]
  %s17 = inlined_call_operand.vmem [shape: f32[2,1,256], index: 17, kind: output, shape index: {2}]
  %18 = xla_tuple %s15, %s16, %s17
  %s19 = sld [smem:[#allocation0]]
  $region191: #{mxnet_forward.1} parent=0
    _
  %s21 = ssub.s32 1, %s19
  %s22 = scalar_select 0, %s21, %s19
  $region1: #{mxnet_forward.1} parent=0
    #allocation2 [shape = 'u8[512]{0}', space=smem, size = 0x200, scoped, tag = 'input window, operand 0, single buffered']
    #allocation3 [shape = 's32[2]{0}', space=sflag, size = 0x8, scoped, tag = 'scoped memory for mxnet_forward.1']
    #allocation4 [shape = 's32[2]{0}', space=sflag, size = 0x8, scoped, tag = 'scoped memory for mxnet_forward.1']
    #allocation5 [shape = 'u8[1048576]{0}', space=vmem, size = 0x100000, scoped, tag = 'input window, operand 2, single buffered']
    #allocation6 [shape = 'u8[8192]{0}', space=vmem, size = 0x2000, scoped, tag = 'output window, operand 0']
    #allocation7 [shape = 'u8[8192]{0}', space=vmem, size = 0x2000, scoped, tag = 'output window, operand 1']
    %23 = vsyncpa [#allocation4], 0
    %24 = vsyncpa [#allocation3], 0
    loop: start=0, step=1, limit=4
    $region2: #{mxnet_forward.1} parent=1 // loop_pre_header
      _
    $region3: #{mxnet_forward.1} parent=1 // loop_header
      %s26 = sphi 0, %s30
      %p27 = scmp.ge.s32.totalorder %s26, 4
      %s34 = sphi 0, %s34
      %s36 = sphi 0, %s34
      %s37 = sphi 0, %s36
      %s51 = sphi 0, %s37
      %s57 = sphi 0, %s59
      %s60 = sphi 0, %s57
      %s61 = sphi 0, %s60
      %s77 = sphi 0, %s61
      %s81 = sphi 0, %s81
      %s83 = sphi 0, %s81
      %s84 = sphi 0, %s83
      %s98 = sphi 0, %s84
      %s102 = sphi 0, %s102
      %s104 = sphi 0, %s102
      %s105 = sphi 0, %s104
      %s119 = sphi 0, %s105
      %s123 = sphi 0, %s123
      %s125 = sphi 0, %s123
      %s126 = sphi 0, %s125
      %s140 = sphi 0, %s126
      %s144 = sphi 0, %s144
      %s146 = sphi 0, %s144
      %s147 = sphi 0, %s146
      %s161 = sphi 0, %s147
      %s165 = sphi 0, %s165
      %s167 = sphi 0, %s165
      %s168 = sphi 0, %s167
      %s182 = sphi 0, %s168
      %s186 = sphi 0, %s186
      %s188 = sphi 0, %s186
      %s189 = sphi 0, %s188
      %s203 = sphi 0, %s189
      %s207 = sphi 0, %s207
      %s209 = sphi 0, %s207
      %s210 = sphi 0, %s209
      %s224 = sphi 0, %s210
      %s228 = sphi 0, %s228
      %s230 = sphi 0, %s228
      %s231 = sphi 0, %s230
      %s245 = sphi 0, %s231
      %s249 = sphi 0, %s249
      %s251 = sphi 0, %s249
      %s252 = sphi 0, %s251
      %s266 = sphi 0, %s252
      %s270 = sphi 0, %s270
      %s272 = sphi 0, %s270
      %s273 = sphi 0, %s272
      %s287 = sphi 0, %s273
      %s291 = sphi 0, %s291
      %s293 = sphi 0, %s291
      %s294 = sphi 0, %s293
      %s308 = sphi 0, %s294
      %s312 = sphi 0, %s312
      %s314 = sphi 0, %s312
      %s315 = sphi 0, %s314
      %s329 = sphi 0, %s315
      %s333 = sphi 0, %s333
      %s335 = sphi 0, %s333
      %s336 = sphi 0, %s335
      %s350 = sphi 0, %s336
      %s356 = sphi 0, %s358
      %s359 = sphi 0, %s356
      %s360 = sphi 0, %s359
      %s376 = sphi 0, %s360
      %s382 = sphi 0, %s384
      %s385 = sphi 0, %s382
      %s386 = sphi 0, %s385
      %s402 = sphi 0, %s386
      %s408 = sphi 0, %s410
      %s411 = sphi 0, %s408
      %s412 = sphi 0, %s411
      %s428 = sphi 0, %s412
    $region4: #{mxnet_forward.1} parent=1 // loop_header_branch
      %29 = sbr.rel (%p27) target = $region8
    $region5: #{mxnet_forward.1} parent=1 // loop_body
      %s31 = ssub.s32 %s26, 1
      %s32 = ssub.s32 %s26, 2
      %s33 = sadd.s32 %s26, 1
      %s35 = sadd.s32 %s34, 1
      %p38 = scmp.eq.s32.totalorder %s26, 1
      %p39 = scmp.ne.s32.totalorder %s34, %s36
      %p40 = scmp.eq.s32.totalorder %s26, 0
      %p41 = por %p39, %p40
      %p42 = scmp.ne.s32.totalorder %s34, %s36
      %p43 = scmp.eq.s32.totalorder %s31, 1
      %p44 = por %p42, %p43
      %p45 = scmp.ne.s32.totalorder %s36, %s37
      %p46 = scmp.eq.s32.totalorder %s31, 0
      %p47 = por %p45, %p46
      %p48 = scmp.ne.s32.totalorder %s36, %s37
      %p49 = scmp.eq.s32.totalorder %s32, 1
      %p50 = por %p48, %p49
      %p52 = scmp.ne.s32.totalorder %s37, %s51
      %p53 = scmp.eq.s32.totalorder %s32, 0
      %p54 = por %p52, %p53
      %s55 = ssub.s32 %s26, %s33
      %p56 = scmp.eq.s32.totalorder %s55, 0
      %s58 = sadd.s32 %s57, 1
      %s59 = scalar_select %p56, %s57, %s58
      %p62 = pneg %p56
      %p63 = scmp.eq.s32.totalorder %s26, 1
      %p64 = por %p62, %p63
      %p65 = scmp.ne.s32.totalorder %s57, %s60
      %p66 = scmp.eq.s32.totalorder %s26, 0
      %p67 = por %p65, %p66
      %p68 = scmp.ne.s32.totalorder %s57, %s60
      %p69 = scmp.eq.s32.totalorder %s31, 1
      %p70 = por %p68, %p69
      %p71 = scmp.ne.s32.totalorder %s60, %s61
      %p72 = scmp.eq.s32.totalorder %s31, 0
      %p73 = por %p71, %p72
      %p74 = scmp.ne.s32.totalorder %s60, %s61
      %p75 = scmp.eq.s32.totalorder %s32, 1
      %p76 = por %p74, %p75
      %p78 = scmp.ne.s32.totalorder %s61, %s77
      %p79 = scmp.eq.s32.totalorder %s32, 0
      %p80 = por %p78, %p79
      %s82 = sadd.s32 %s81, 1
      %p85 = scmp.eq.s32.totalorder %s26, 1
      %p86 = scmp.ne.s32.totalorder %s81, %s83
      %p87 = scmp.eq.s32.totalorder %s26, 0
      %p88 = por %p86, %p87
      %p89 = scmp.ne.s32.totalorder %s81, %s83
      %p90 = scmp.eq.s32.totalorder %s31, 1
      %p91 = por %p89, %p90
      %p92 = scmp.ne.s32.totalorder %s83, %s84
      %p93 = scmp.eq.s32.totalorder %s31, 0
      %p94 = por %p92, %p93
      %p95 = scmp.ne.s32.totalorder %s83, %s84
      %p96 = scmp.eq.s32.totalorder %s32, 1
      %p97 = por %p95, %p96
      %p99 = scmp.ne.s32.totalorder %s84, %s98
      %p100 = scmp.eq.s32.totalorder %s32, 0
      %p101 = por %p99, %p100
      %s103 = sadd.s32 %s102, 1
      %p106 = scmp.eq.s32.totalorder %s26, 1
      %p107 = scmp.ne.s32.totalorder %s102, %s104
      %p108 = scmp.eq.s32.totalorder %s26, 0
      %p109 = por %p107, %p108
      %p110 = scmp.ne.s32.totalorder %s102, %s104
      %p111 = scmp.eq.s32.totalorder %s31, 1
      %p112 = por %p110, %p111
      %p113 = scmp.ne.s32.totalorder %s104, %s105
      %p114 = scmp.eq.s32.totalorder %s31, 0
      %p115 = por %p113, %p114
      %p116 = scmp.ne.s32.totalorder %s104, %s105
      %p117 = scmp.eq.s32.totalorder %s32, 1
      %p118 = por %p116, %p117
      %p120 = scmp.ne.s32.totalorder %s105, %s119
      %p121 = scmp.eq.s32.totalorder %s32, 0
      %p122 = por %p120, %p121
      %s124 = sadd.s32 %s123, 1
      %p127 = scmp.eq.s32.totalorder %s26, 1
      %p128 = scmp.ne.s32.totalorder %s123, %s125
      %p129 = scmp.eq.s32.totalorder %s26, 0
      %p130 = por %p128, %p129
      %p131 = scmp.ne.s32.totalorder %s123, %s125
      %p132 = scmp.eq.s32.totalorder %s31, 1
      %p133 = por %p131, %p132
      %p134 = scmp.ne.s32.totalorder %s125, %s126
      %p135 = scmp.eq.s32.totalorder %s31, 0
      %p136 = por %p134, %p135
      %p137 = scmp.ne.s32.totalorder %s125, %s126
      %p138 = scmp.eq.s32.totalorder %s32, 1
      %p139 = por %p137, %p138
      %p141 = scmp.ne.s32.totalorder %s126, %s140
      %p142 = scmp.eq.s32.totalorder %s32, 0
      %p143 = por %p141, %p142
      %s145 = sadd.s32 %s144, 1
      %p148 = scmp.eq.s32.totalorder %s26, 1
      %p149 = scmp.ne.s32.totalorder %s144, %s146
      %p150 = scmp.eq.s32.totalorder %s26, 0
      %p151 = por %p149, %p150
      %p152 = scmp.ne.s32.totalorder %s144, %s146
      %p153 = scmp.eq.s32.totalorder %s31, 1
      %p154 = por %p152, %p153
      %p155 = scmp.ne.s32.totalorder %s146, %s147
      %p156 = scmp.eq.s32.totalorder %s31, 0
      %p157 = por %p155, %p156
      %p158 = scmp.ne.s32.totalorder %s146, %s147
      %p159 = scmp.eq.s32.totalorder %s32, 1
      %p160 = por %p158, %p159
      %p162 = scmp.ne.s32.totalorder %s147, %s161
      %p163 = scmp.eq.s32.totalorder %s32, 0
      %p164 = por %p162, %p163
      %s166 = sadd.s32 %s165, 1
      %p169 = scmp.eq.s32.totalorder %s26, 1
      %p170 = scmp.ne.s32.totalorder %s165, %s167
      %p171 = scmp.eq.s32.totalorder %s26, 0
      %p172 = por %p170, %p171
      %p173 = scmp.ne.s32.totalorder %s165, %s167
      %p174 = scmp.eq.s32.totalorder %s31, 1
      %p175 = por %p173, %p174
      %p176 = scmp.ne.s32.totalorder %s167, %s168
      %p177 = scmp.eq.s32.totalorder %s31, 0
      %p178 = por %p176, %p177
      %p179 = scmp.ne.s32.totalorder %s167, %s168
      %p180 = scmp.eq.s32.totalorder %s32, 1
      %p181 = por %p179, %p180
      %p183 = scmp.ne.s32.totalorder %s168, %s182
      %p184 = scmp.eq.s32.totalorder %s32, 0
      %p185 = por %p183, %p184
      %s187 = sadd.s32 %s186, 1
      %p190 = scmp.eq.s32.totalorder %s26, 1
      %p191 = scmp.ne.s32.totalorder %s186, %s188
      %p192 = scmp.eq.s32.totalorder %s26, 0
      %p193 = por %p191, %p192
      %p194 = scmp.ne.s32.totalorder %s186, %s188
      %p195 = scmp.eq.s32.totalorder %s31, 1
      %p196 = por %p194, %p195
      %p197 = scmp.ne.s32.totalorder %s188, %s189
      %p198 = scmp.eq.s32.totalorder %s31, 0
      %p199 = por %p197, %p198
      %p200 = scmp.ne.s32.totalorder %s188, %s189
      %p201 = scmp.eq.s32.totalorder %s32, 1
      %p202 = por %p200, %p201
      %p204 = scmp.ne.s32.totalorder %s189, %s203
      %p205 = scmp.eq.s32.totalorder %s32, 0
      %p206 = por %p204, %p205
      %s208 = sadd.s32 %s207, 1
      %p211 = scmp.eq.s32.totalorder %s26, 1
      %p212 = scmp.ne.s32.totalorder %s207, %s209
      %p213 = scmp.eq.s32.totalorder %s26, 0
      %p214 = por %p212, %p213
      %p215 = scmp.ne.s32.totalorder %s207, %s209
      %p216 = scmp.eq.s32.totalorder %s31, 1
      %p217 = por %p215, %p216
      %p218 = scmp.ne.s32.totalorder %s209, %s210
      %p219 = scmp.eq.s32.totalorder %s31, 0
      %p220 = por %p218, %p219
      %p221 = scmp.ne.s32.totalorder %s209, %s210
      %p222 = scmp.eq.s32.totalorder %s32, 1
      %p223 = por %p221, %p222
      %p225 = scmp.ne.s32.totalorder %s210, %s224
      %p226 = scmp.eq.s32.totalorder %s32, 0
      %p227 = por %p225, %p226
      %s229 = sadd.s32 %s228, 1
      %p232 = scmp.eq.s32.totalorder %s26, 1
      %p233 = scmp.ne.s32.totalorder %s228, %s230
      %p234 = scmp.eq.s32.totalorder %s26, 0
      %p235 = por %p233, %p234
      %p236 = scmp.ne.s32.totalorder %s228, %s230
      %p237 = scmp.eq.s32.totalorder %s31, 1
      %p238 = por %p236, %p237
      %p239 = scmp.ne.s32.totalorder %s230, %s231
      %p240 = scmp.eq.s32.totalorder %s31, 0
      %p241 = por %p239, %p240
      %p242 = scmp.ne.s32.totalorder %s230, %s231
      %p243 = scmp.eq.s32.totalorder %s32, 1
      %p244 = por %p242, %p243
      %p246 = scmp.ne.s32.totalorder %s231, %s245
      %p247 = scmp.eq.s32.totalorder %s32, 0
      %p248 = por %p246, %p247
      %s250 = sadd.s32 %s249, 1
      %p253 = scmp.eq.s32.totalorder %s26, 1
      %p254 = scmp.ne.s32.totalorder %s249, %s251
      %p255 = scmp.eq.s32.totalorder %s26, 0
      %p256 = por %p254, %p255
      %p257 = scmp.ne.s32.totalorder %s249, %s251
      %p258 = scmp.eq.s32.totalorder %s31, 1
      %p259 = por %p257, %p258
      %p260 = scmp.ne.s32.totalorder %s251, %s252
      %p261 = scmp.eq.s32.totalorder %s31, 0
      %p262 = por %p260, %p261
      %p263 = scmp.ne.s32.totalorder %s251, %s252
      %p264 = scmp.eq.s32.totalorder %s32, 1
      %p265 = por %p263, %p264
      %p267 = scmp.ne.s32.totalorder %s252, %s266
      %p268 = scmp.eq.s32.totalorder %s32, 0
      %p269 = por %p267, %p268
      %s271 = sadd.s32 %s270, 1
      %p274 = scmp.eq.s32.totalorder %s26, 1
      %p275 = scmp.ne.s32.totalorder %s270, %s272
      %p276 = scmp.eq.s32.totalorder %s26, 0
      %p277 = por %p275, %p276
      %p278 = scmp.ne.s32.totalorder %s270, %s272
      %p279 = scmp.eq.s32.totalorder %s31, 1
      %p280 = por %p278, %p279
      %p281 = scmp.ne.s32.totalorder %s272, %s273
      %p282 = scmp.eq.s32.totalorder %s31, 0
      %p283 = por %p281, %p282
      %p284 = scmp.ne.s32.totalorder %s272, %s273
      %p285 = scmp.eq.s32.totalorder %s32, 1
      %p286 = por %p284, %p285
      %p288 = scmp.ne.s32.totalorder %s273, %s287
      %p289 = scmp.eq.s32.totalorder %s32, 0
      %p290 = por %p288, %p289
      %s292 = sadd.s32 %s291, 1
      %p295 = scmp.eq.s32.totalorder %s26, 1
      %p296 = scmp.ne.s32.totalorder %s291, %s293
      %p297 = scmp.eq.s32.totalorder %s26, 0
      %p298 = por %p296, %p297
      %p299 = scmp.ne.s32.totalorder %s291, %s293
      %p300 = scmp.eq.s32.totalorder %s31, 1
      %p301 = por %p299, %p300
      %p302 = scmp.ne.s32.totalorder %s293, %s294
      %p303 = scmp.eq.s32.totalorder %s31, 0
      %p304 = por %p302, %p303
      %p305 = scmp.ne.s32.totalorder %s293, %s294
      %p306 = scmp.eq.s32.totalorder %s32, 1
      %p307 = por %p305, %p306
      %p309 = scmp.ne.s32.totalorder %s294, %s308
      %p310 = scmp.eq.s32.totalorder %s32, 0
      %p311 = por %p309, %p310
      %s313 = sadd.s32 %s312, 1
      %p316 = scmp.eq.s32.totalorder %s26, 1
      %p317 = scmp.ne.s32.totalorder %s312, %s314
      %p318 = scmp.eq.s32.totalorder %s26, 0
      %p319 = por %p317, %p318
      %p320 = scmp.ne.s32.totalorder %s312, %s314
      %p321 = scmp.eq.s32.totalorder %s31, 1
      %p322 = por %p320, %p321
      %p323 = scmp.ne.s32.totalorder %s314, %s315
      %p324 = scmp.eq.s32.totalorder %s31, 0
      %p325 = por %p323, %p324
      %p326 = scmp.ne.s32.totalorder %s314, %s315
      %p327 = scmp.eq.s32.totalorder %s32, 1
      %p328 = por %p326, %p327
      %p330 = scmp.ne.s32.totalorder %s315, %s329
      %p331 = scmp.eq.s32.totalorder %s32, 0
      %p332 = por %p330, %p331
      %s334 = sadd.s32 %s333, 1
      %p337 = scmp.eq.s32.totalorder %s26, 1
      %p338 = scmp.ne.s32.totalorder %s333, %s335
      %p339 = scmp.eq.s32.totalorder %s26, 0
      %p340 = por %p338, %p339
      %p341 = scmp.ne.s32.totalorder %s333, %s335
      %p342 = scmp.eq.s32.totalorder %s31, 1
      %p343 = por %p341, %p342
      %p344 = scmp.ne.s32.totalorder %s335, %s336
      %p345 = scmp.eq.s32.totalorder %s31, 0
      %p346 = por %p344, %p345
      %p347 = scmp.ne.s32.totalorder %s335, %s336
      %p348 = scmp.eq.s32.totalorder %s32, 1
      %p349 = por %p347, %p348
      %p351 = scmp.ne.s32.totalorder %s336, %s350
      %p352 = scmp.eq.s32.totalorder %s32, 0
      %p353 = por %p351, %p352
      %s354 = ssub.s32 %s26, %s33
      %p355 = scmp.eq.s32.totalorder %s354, 0
      %s357 = sadd.s32 %s356, 1
      %s358 = scalar_select %p355, %s356, %s357
      %p361 = pneg %p355
      %p362 = scmp.eq.s32.totalorder %s26, 1
      %p363 = por %p361, %p362
      %p364 = scmp.ne.s32.totalorder %s356, %s359
      %p365 = scmp.eq.s32.totalorder %s26, 0
      %p366 = por %p364, %p365
      %p367 = scmp.ne.s32.totalorder %s356, %s359
      %p368 = scmp.eq.s32.totalorder %s31, 1
      %p369 = por %p367, %p368
      %p370 = scmp.ne.s32.totalorder %s359, %s360
      %p371 = scmp.eq.s32.totalorder %s31, 0
      %p372 = por %p370, %p371
      %p373 = scmp.ne.s32.totalorder %s359, %s360
      %p374 = scmp.eq.s32.totalorder %s32, 1
      %p375 = por %p373, %p374
      %p377 = scmp.ne.s32.totalorder %s360, %s376
      %p378 = scmp.eq.s32.totalorder %s32, 0
      %p379 = por %p377, %p378
      %s380 = ssub.s32 %s26, %s33
      %p381 = scmp.eq.s32.totalorder %s380, 0
      %s383 = sadd.s32 %s382, 1
      %s384 = scalar_select %p381, %s382, %s383
      %p387 = pneg %p381
      %p388 = scmp.eq.s32.totalorder %s26, 1
      %p389 = por %p387, %p388
      %p390 = scmp.ne.s32.totalorder %s382, %s385
      %p391 = scmp.eq.s32.totalorder %s26, 0
      %p392 = por %p390, %p391
      %p393 = scmp.ne.s32.totalorder %s382, %s385
      %p394 = scmp.eq.s32.totalorder %s31, 1
      %p395 = por %p393, %p394
      %p396 = scmp.ne.s32.totalorder %s385, %s386
      %p397 = scmp.eq.s32.totalorder %s31, 0
      %p398 = por %p396, %p397
      %p399 = scmp.ne.s32.totalorder %s385, %s386
      %p400 = scmp.eq.s32.totalorder %s32, 1
      %p401 = por %p399, %p400
      %p403 = scmp.ne.s32.totalorder %s386, %s402
      %p404 = scmp.eq.s32.totalorder %s32, 0
      %p405 = por %p403, %p404
      %s406 = ssub.s32 %s26, %s33
      %p407 = scmp.eq.s32.totalorder %s406, 0
      %s409 = sadd.s32 %s408, 1
      %s410 = scalar_select %p407, %s408, %s409
      %p413 = pneg %p407
      %p414 = scmp.eq.s32.totalorder %s26, 1
      %p415 = por %p413, %p414
      %p416 = scmp.ne.s32.totalorder %s408, %s411
      %p417 = scmp.eq.s32.totalorder %s26, 0
      %p418 = por %p416, %p417
      %p419 = scmp.ne.s32.totalorder %s408, %s411
      %p420 = scmp.eq.s32.totalorder %s31, 1
      %p421 = por %p419, %p420
      %p422 = scmp.ne.s32.totalorder %s411, %s412
      %p423 = scmp.eq.s32.totalorder %s31, 0
      %p424 = por %p422, %p423
      %p425 = scmp.ne.s32.totalorder %s411, %s412
      %p426 = scmp.eq.s32.totalorder %s32, 1
      %p427 = por %p425, %p426
      %p429 = scmp.ne.s32.totalorder %s412, %s428
      %p430 = scmp.eq.s32.totalorder %s32, 0
      %p431 = por %p429, %p430
      %p432 = scmp.le.s32.totalorder 1, %s26
      %p433 = scmp.lt.s32.totalorder %s26, 3
      %p434 = pnand %p432, %p433
      %p435 = pneg %p434
      // Predicated region
      $region9: #{mxnet_forward.1} parent=5 // pred_check
        _
      $region10: #{mxnet_forward.1} parent=5 // pred_check_branch
        %437 = sbr.rel (%p434) target = $region12
      $region11: #{mxnet_forward.1} parent=5 // pred_region
        %s438 = ssub.s32 %s26, 1
        // Predicated region
        $region13: #{mxnet_forward.1} parent=11 // pred_check
          %p439 = pneg %p47
        $region14: #{mxnet_forward.1} parent=11 // pred_check_branch
          %441 = sbr.rel (%p439) target = $region16
        $region15: #{mxnet_forward.1} parent=11 // pred_region
          %s443 = ssub.s32 16, 16
          %444 = vsyncadd [#allocation4], %s443
          %s446 = sshll.u32 %s0, 4
          %s447 = int_to_ptr.vmem [resolvable:$true] %s446
          %449 = dma.vmem_to_smem %s447, 16, [#allocation2], [#allocation4]
        $region16: #{mxnet_forward.1} parent=11 // pred_fallthru
          _
        // Predicated region
        $region17: #{mxnet_forward.1} parent=11 // pred_check
          %p450 = pneg %p94
        $region18: #{mxnet_forward.1} parent=11 // pred_check_branch
          %452 = sbr.rel (%p450) target = $region20
        $region19: #{mxnet_forward.1} parent=11 // pred_region
          %s454 = ssub.s32 32768, 32768
          %455 = vsyncadd [#allocation3], %s454
          %s456 = sshll.u32 [#allocation5], 4
          %s457 = int_to_ptr.vmem [resolvable:$true] %s456
          %462 = dma.hbm_to_vmem [thread:$0]  %s2, 32768, %s457, [#allocation3], 512, 512, 32
        $region20: #{mxnet_forward.1} parent=11 // pred_fallthru
          _
        // Predicated region
        $region21: #{mxnet_forward.1} parent=11 // pred_check
          %p463 = pneg %p115
        $region22: #{mxnet_forward.1} parent=11 // pred_check_branch
          %465 = sbr.rel (%p463) target = $region24
        $region23: #{mxnet_forward.1} parent=11 // pred_region
          _
        $region24: #{mxnet_forward.1} parent=11 // pred_fallthru
          _
        // Predicated region
        $region25: #{mxnet_forward.1} parent=11 // pred_check
          %p466 = pneg %p136
        $region26: #{mxnet_forward.1} parent=11 // pred_check_branch
          %468 = sbr.rel (%p466) target = $region28
        $region27: #{mxnet_forward.1} parent=11 // pred_region
          _
        $region28: #{mxnet_forward.1} parent=11 // pred_fallthru
          _
        // Predicated region
        $region29: #{mxnet_forward.1} parent=11 // pred_check
          %p469 = pneg %p157
        $region30: #{mxnet_forward.1} parent=11 // pred_check_branch
          %471 = sbr.rel (%p469) target = $region32
        $region31: #{mxnet_forward.1} parent=11 // pred_region
          _
        $region32: #{mxnet_forward.1} parent=11 // pred_fallthru
          _
        // Predicated region
        $region33: #{mxnet_forward.1} parent=11 // pred_check
          %p472 = pneg %p178
        $region34: #{mxnet_forward.1} parent=11 // pred_check_branch
          %474 = sbr.rel (%p472) target = $region36
        $region35: #{mxnet_forward.1} parent=11 // pred_region
          _
        $region36: #{mxnet_forward.1} parent=11 // pred_fallthru
          _
        // Predicated region
        $region37: #{mxnet_forward.1} parent=11 // pred_check
          %p475 = pneg %p199
        $region38: #{mxnet_forward.1} parent=11 // pred_check_branch
          %477 = sbr.rel (%p475) target = $region40
        $region39: #{mxnet_forward.1} parent=11 // pred_region
          _
        $region40: #{mxnet_forward.1} parent=11 // pred_fallthru
          _
        // Predicated region
        $region41: #{mxnet_forward.1} parent=11 // pred_check
          %p478 = pneg %p220
        $region42: #{mxnet_forward.1} parent=11 // pred_check_branch
          %480 = sbr.rel (%p478) target = $region44
        $region43: #{mxnet_forward.1} parent=11 // pred_region
          _
        $region44: #{mxnet_forward.1} parent=11 // pred_fallthru
          _
        // Predicated region
        $region45: #{mxnet_forward.1} parent=11 // pred_check
          %p481 = pneg %p241
        $region46: #{mxnet_forward.1} parent=11 // pred_check_branch
          %483 = sbr.rel (%p481) target = $region48
        $region47: #{mxnet_forward.1} parent=11 // pred_region
          _
        $region48: #{mxnet_forward.1} parent=11 // pred_fallthru
          _
        // Predicated region
        $region49: #{mxnet_forward.1} parent=11 // pred_check
          %p484 = pneg %p262
        $region50: #{mxnet_forward.1} parent=11 // pred_check_branch
          %486 = sbr.rel (%p484) target = $region52
        $region51: #{mxnet_forward.1} parent=11 // pred_region
          _
        $region52: #{mxnet_forward.1} parent=11 // pred_fallthru
          _
        // Predicated region
        $region53: #{mxnet_forward.1} parent=11 // pred_check
          %p487 = pneg %p283
        $region54: #{mxnet_forward.1} parent=11 // pred_check_branch
          %489 = sbr.rel (%p487) target = $region56
        $region55: #{mxnet_forward.1} parent=11 // pred_region
          _
        $region56: #{mxnet_forward.1} parent=11 // pred_fallthru
          _
        // Predicated region
        $region57: #{mxnet_forward.1} parent=11 // pred_check
          %p490 = pneg %p304
        $region58: #{mxnet_forward.1} parent=11 // pred_check_branch
          %492 = sbr.rel (%p490) target = $region60
        $region59: #{mxnet_forward.1} parent=11 // pred_region
          _
        $region60: #{mxnet_forward.1} parent=11 // pred_fallthru
          _
        // Predicated region
        $region61: #{mxnet_forward.1} parent=11 // pred_check
          %p493 = pneg %p325
        $region62: #{mxnet_forward.1} parent=11 // pred_check_branch
          %495 = sbr.rel (%p493) target = $region64
        $region63: #{mxnet_forward.1} parent=11 // pred_region
          _
        $region64: #{mxnet_forward.1} parent=11 // pred_fallthru
          _
        // Predicated region
        $region65: #{mxnet_forward.1} parent=11 // pred_check
          %p496 = pneg %p346
        $region66: #{mxnet_forward.1} parent=11 // pred_check_branch
          %498 = sbr.rel (%p496) target = $region68
        $region67: #{mxnet_forward.1} parent=11 // pred_region
          _
        $region68: #{mxnet_forward.1} parent=11 // pred_fallthru
          _
      $region12: #{mxnet_forward.1} parent=5 // pred_fallthru
        _
      %p499 = scmp.lt.s32.totalorder %s26, 2
      // Predicated region
      $region69: #{mxnet_forward.1} parent=5 // pred_check
        %p500 = pneg %p499
      $region70: #{mxnet_forward.1} parent=5 // pred_check_branch
        %502 = sbr.rel (%p500) target = $region72
      $region71: #{mxnet_forward.1} parent=5 // pred_region
        // Predicated region
        $region73: #{mxnet_forward.1} parent=71 // pred_check
          %p503 = pneg %p67
        $region74: #{mxnet_forward.1} parent=71 // pred_check_branch
          %505 = sbr.rel (%p503) target = $region76
        $region75: #{mxnet_forward.1} parent=71 // pred_region
          %p506 = scmp.lt.s32.totalorder %s26, 1
          %s507 = scalar_select %p506, %s26, 1
          %s508 = smul.addr %s507, 2
          %s509 = smul.addr %s508, 2
          %s510 = scalar_lea.vmem %s1, %s509
        $region76: #{mxnet_forward.1} parent=71 // pred_fallthru
          _
      $region72: #{mxnet_forward.1} parent=5 // pred_fallthru
        _
      %p511 = scmp.le.s32.totalorder 1, %s26
      %p512 = scmp.lt.s32.totalorder %s26, 3
      %p513 = pnand %p511, %p512
      %p514 = pneg %p513
      // Predicated region
      $region77: #{mxnet_forward.1} parent=5 // pred_check
        _
      $region78: #{mxnet_forward.1} parent=5 // pred_check_branch
        %516 = sbr.rel (%p513) target = $region80
      $region79: #{mxnet_forward.1} parent=5 // pred_region
        %s517 = ssub.s32 %s26, 1
        // Predicated region
        $region81: #{mxnet_forward.1} parent=79 // pred_check
          %p518 = pneg %p47
        $region82: #{mxnet_forward.1} parent=79 // pred_check_branch
          %520 = sbr.rel (%p518) target = $region84
        $region83: #{mxnet_forward.1} parent=79 // pred_region
          %521 = dma.done [#allocation4], 16
        $region84: #{mxnet_forward.1} parent=79 // pred_fallthru
          _
        // Predicated region
        $region85: #{mxnet_forward.1} parent=79 // pred_check
          %p522 = pneg %p94
        $region86: #{mxnet_forward.1} parent=79 // pred_check_branch
          %524 = sbr.rel (%p522) target = $region88
        $region87: #{mxnet_forward.1} parent=79 // pred_region
          %525 = dma.done [#allocation3], 32768
        $region88: #{mxnet_forward.1} parent=79 // pred_fallthru
          _
        %526 = sfence
        %p527 = pneg %p47
        %p528 = pneg %p44
        %p529 = scmp.lt.s32.totalorder %s31, 1
        %s530 = scalar_select %p529, %s31, 1
        %s531 = smul.addr %s530, 2
        %s532 = smul.addr %s531, 2
        %s533 = scalar_lea.vmem %s1, %s532
        %p534 = pneg %p73
        %p535 = pneg %p70
        %p536 = pneg %p94
        %p537 = pneg %p91
        %p538 = pneg %p115
        %p539 = pneg %p112
        %p540 = pneg %p136
        %p541 = pneg %p133
        %p542 = pneg %p157
        %p543 = pneg %p154
        %p544 = pneg %p178
        %p545 = pneg %p175
        %p546 = pneg %p199
        %p547 = pneg %p196
        %p548 = pneg %p220
        %p549 = pneg %p217
        %p550 = pneg %p241
        %p551 = pneg %p238
        %p552 = pneg %p262
        %p553 = pneg %p259
        %p554 = pneg %p283
        %p555 = pneg %p280
        %p556 = pneg %p304
        %p557 = pneg %p301
        %p558 = pneg %p325
        %p559 = pneg %p322
        %p560 = pneg %p346
        %p561 = pneg %p343
        %p562 = pneg %p372
        %p563 = pneg %p369
        %s564 = sand.u32 %s359, 1
        %s565 = sand.u32 %s359, 1
        %s566 = smul.addr %s565, 8
        %s567 = scalar_lea.vmem [#allocation6], %s566
        %p568 = pneg %p398
        %p569 = pneg %p395
        %s570 = sand.u32 %s385, 1
        %s571 = sand.u32 %s385, 1
        %s572 = smul.addr %s571, 8
        %s573 = scalar_lea.vmem [#allocation7], %s572
        %p574 = pneg %p424
        %p575 = pneg %p421
        %p576 = scmp.lt.s32.totalorder %s31, 1
        %s577 = scalar_select %p576, %s31, 1
        %s578 = smul.addr %s577, 2
        %s579 = scalar_lea.vmem %s17, %s578
        %p580 = scmp.lt.s32.totalorder %s31, 1
        %s581 = scalar_select %p580, %s31, 1
        %s582 = smul.addr %s581, 2
        %s583 = smul.addr %s582, 2
        %s584 = scalar_lea.vmem %s1, %s583
        %p585 = scmp.lt.s32.totalorder %s31, 1
        %s586 = scalar_select %p585, %s31, 1
        %s587 = smul.addr %s586, 2
        %s588 = scalar_lea.vmem %s17, %s587
        %s589 = sld [smem:[#allocation2]]
        %s590 = sld [smem:[#allocation2 + $0x1]]
        %s591 = sld [smem:[#allocation2 + $0x2]]
        %v592 = vld [vmem:[%s4] sm:$0xff]
        %v593 = vld [vmem:[%s4 + $0x8] sm:$0xff]
        %v594 = vld [vmem:[%s4 + $0x10] sm:$0x1]
        %v595 = vld [vmem:[%s4 + $0x18] sm:$0x1]
        %v596 = vld [vmem:[#allocation5] sm:$0xff]
        %v597 = vld [vmem:[#allocation5 + $0x8] sm:$0xff]
        %v598 = vld [vmem:[#allocation5 + $0x10] sm:$0xff]
        %v599 = vld [vmem:[#allocation5 + $0x18] sm:$0xff]
        %v600 = vld [vmem:[#allocation5 + $0x20] sm:$0xff]
        %v601 = vld [vmem:[#allocation5 + $0x28] sm:$0xff]
        %v602 = vld [vmem:[#allocation5 + $0x30] sm:$0xff]
        %v603 = vld [vmem:[#allocation5 + $0x38] sm:$0xff]
        %v604 = vld [vmem:[#allocation5 + $0x40] sm:$0xff]
        %v605 = vld [vmem:[#allocation5 + $0x48] sm:$0xff]
        %v606 = vld [vmem:[#allocation5 + $0x50] sm:$0xff]
        %v607 = vld [vmem:[#allocation5 + $0x58] sm:$0xff]
        %v608 = vld [vmem:[#allocation5 + $0x60] sm:$0xff]
        %v609 = vld [vmem:[#allocation5 + $0x68] sm:$0xff]
        %v610 = vld [vmem:[#allocation5 + $0x70] sm:$0xff]
        %v611 = vld [vmem:[#allocation5 + $0x78] sm:$0xff]
        %v612 = vld [vmem:[#allocation5 + $0x80] sm:$0xff]
        %v613 = vld [vmem:[#allocation5 + $0x88] sm:$0xff]
        %v614 = vld [vmem:[#allocation5 + $0x90] sm:$0xff]
        %v615 = vld [vmem:[#allocation5 + $0x98] sm:$0xff]
        %v616 = vld [vmem:[#allocation5 + $0xa0] sm:$0xff]
        %v617 = vld [vmem:[#allocation5 + $0xa8] sm:$0xff]
        %v618 = vld [vmem:[#allocation5 + $0xb0] sm:$0xff]
        %v619 = vld [vmem:[#allocation5 + $0xb8] sm:$0xff]
        %v620 = vld [vmem:[#allocation5 + $0xc0] sm:$0xff]
        %v621 = vld [vmem:[#allocation5 + $0xc8] sm:$0xff]
        %v622 = vld [vmem:[#allocation5 + $0xd0] sm:$0xff]
        %v623 = vld [vmem:[#allocation5 + $0xd8] sm:$0xff]
        %v624 = vld [vmem:[#allocation5 + $0xe0] sm:$0xff]
        %v625 = vld [vmem:[#allocation5 + $0xe8] sm:$0xff]
        %v626 = vld [vmem:[#allocation5 + $0xf0] sm:$0xff]
        %v627 = vld [vmem:[#allocation5 + $0xf8] sm:$0xff]
        %v628 = vld [vmem:[#allocation5 + $0x100] sm:$0xff]
        %v629 = vld [vmem:[#allocation5 + $0x108] sm:$0xff]
        %v630 = vld [vmem:[#allocation5 + $0x110] sm:$0xff]
        %v631 = vld [vmem:[#allocation5 + $0x118] sm:$0xff]
        %v632 = vld [vmem:[#allocation5 + $0x120] sm:$0xff]
        %v633 = vld [vmem:[#allocation5 + $0x128] sm:$0xff]
        %v634 = vld [vmem:[#allocation5 + $0x130] sm:$0xff]
        %v635 = vld [vmem:[#allocation5 + $0x138] sm:$0xff]
        %v636 = vld [vmem:[#allocation5 + $0x140] sm:$0xff]
        %v637 = vld [vmem:[#allocation5 + $0x148] sm:$0xff]
        %v638 = vld [vmem:[#allocation5 + $0x150] sm:$0xff]
        %v639 = vld [vmem:[#allocation5 + $0x158] sm:$0xff]
        %v640 = vld [vmem:[#allocation5 + $0x160] sm:$0xff]
        %v641 = vld [vmem:[#allocation5 + $0x168] sm:$0xff]
        %v642 = vld [vmem:[#allocation5 + $0x170] sm:$0xff]
        %v643 = vld [vmem:[#allocation5 + $0x178] sm:$0xff]
        %v644 = vld [vmem:[#allocation5 + $0x180] sm:$0xff]
        %v645 = vld [vmem:[#allocation5 + $0x188] sm:$0xff]
        %v646 = vld [vmem:[#allocation5 + $0x190] sm:$0xff]
        %v647 = vld [vmem:[#allocation5 + $0x198] sm:$0xff]
        %v648 = vld [vmem:[#allocation5 + $0x1a0] sm:$0xff]
        %v649 = vld [vmem:[#allocation5 + $0x1a8] sm:$0xff]
        %v650 = vld [vmem:[#allocation5 + $0x1b0] sm:$0xff]
        %v651 = vld [vmem:[#allocation5 + $0x1b8] sm:$0xff]
        %v652 = vld [vmem:[#allocation5 + $0x1c0] sm:$0xff]
        %v653 = vld [vmem:[#allocation5 + $0x1c8] sm:$0xff]
        %v654 = vld [vmem:[#allocation5 + $0x1d0] sm:$0xff]
        %v655 = vld [vmem:[#allocation5 + $0x1d8] sm:$0xff]
        %v656 = vld [vmem:[#allocation5 + $0x1e0] sm:$0xff]
        %v657 = vld [vmem:[#allocation5 + $0x1e8] sm:$0xff]
        %v658 = vld [vmem:[#allocation5 + $0x1f0] sm:$0xff]
        %v659 = vld [vmem:[#allocation5 + $0x1f8] sm:$0xff]
        %v660 = vld [vmem:[#allocation5 + $0x200] sm:$0xff]
        %v661 = vld [vmem:[#allocation5 + $0x208] sm:$0xff]
        %v662 = vld [vmem:[#allocation5 + $0x210] sm:$0xff]
        %v663 = vld [vmem:[#allocation5 + $0x218] sm:$0xff]
        %v664 = vld [vmem:[#allocation5 + $0x220] sm:$0xff]
        %v665 = vld [vmem:[#allocation5 + $0x228] sm:$0xff]
        %v666 = vld [vmem:[#allocation5 + $0x230] sm:$0xff]
        %v667 = vld [vmem:[#allocation5 + $0x238] sm:$0xff]
        %v668 = vld [vmem:[#allocation5 + $0x240] sm:$0xff]
        %v669 = vld [vmem:[#allocation5 + $0x248] sm:$0xff]
        %v670 = vld [vmem:[#allocation5 + $0x250] sm:$0xff]
        %v671 = vld [vmem:[#allocation5 + $0x258] sm:$0xff]
        %v672 = vld [vmem:[#allocation5 + $0x260] sm:$0xff]
        %v673 = vld [vmem:[#allocation5 + $0x268] sm:$0xff]
        %v674 = vld [vmem:[#allocation5 + $0x270] sm:$0xff]
        %v675 = vld [vmem:[#allocation5 + $0x278] sm:$0xff]
        %v676 = vld [vmem:[#allocation5 + $0x280] sm:$0xff]
        %v677 = vld [vmem:[#allocation5 + $0x288] sm:$0xff]
        %v678 = vld [vmem:[#allocation5 + $0x290] sm:$0xff]
        %v679 = vld [vmem:[#allocation5 + $0x298] sm:$0xff]
        %v680 = vld [vmem:[#allocation5 + $0x2a0] sm:$0xff]
        %v681 = vld [vmem:[#allocation5 + $0x2a8] sm:$0xff]
        %v682 = vld [vmem:[#allocation5 + $0x2b0] sm:$0xff]
        %v683 = vld [vmem:[#allocation5 + $0x2b8] sm:$0xff]
        %v684 = vld [vmem:[#allocation5 + $0x2c0] sm:$0xff]
        %v685 = vld [vmem:[#allocation5 + $0x2c8] sm:$0xff]
        %v686 = vld [vmem:[#allocation5 + $0x2d0] sm:$0xff]
        %v687 = vld [vmem:[#allocation5 + $0x2d8] sm:$0xff]
        %v688 = vld [vmem:[#allocation5 + $0x2e0] sm:$0xff]
        %v689 = vld [vmem:[#allocation5 + $0x2e8] sm:$0xff]
        %v690 = vld [vmem:[#allocation5 + $0x2f0] sm:$0xff]
        %v691 = vld [vmem:[#allocation5 + $0x2f8] sm:$0xff]
        %v692 = vld [vmem:[#allocation5 + $0x300] sm:$0xff]
        %v693 = vld [vmem:[#allocation5 + $0x308] sm:$0xff]
        %v694 = vld [vmem:[#allocation5 + $0x310] sm:$0xff]
        %v695 = vld [vmem:[#allocation5 + $0x318] sm:$0xff]
        %v696 = vld [vmem:[#allocation5 + $0x320] sm:$0xff]
        %v697 = vld [vmem:[#allocation5 + $0x328] sm:$0xff]
        %v698 = vld [vmem:[#allocation5 + $0x330] sm:$0xff]
        %v699 = vld [vmem:[#allocation5 + $0x338] sm:$0xff]
        %v700 = vld [vmem:[#allocation5 + $0x340] sm:$0xff]
        %v701 = vld [vmem:[#allocation5 + $0x348] sm:$0xff]
        %v702 = vld [vmem:[#allocation5 + $0x350] sm:$0xff]
        %v703 = vld [vmem:[#allocation5 + $0x358] sm:$0xff]
        %v704 = vld [vmem:[#allocation5 + $0x360] sm:$0xff]
        %v705 = vld [vmem:[#allocation5 + $0x368] sm:$0xff]
        %v706 = vld [vmem:[#allocation5 + $0x370] sm:$0xff]
        %v707 = vld [vmem:[#allocation5 + $0x378] sm:$0xff]
        %v708 = vld [vmem:[#allocation5 + $0x380] sm:$0xff]
        %v709 = vld [vmem:[#allocation5 + $0x388] sm:$0xff]
        %v710 = vld [vmem:[#allocation5 + $0x390] sm:$0xff]
        %v711 = vld [vmem:[#allocation5 + $0x398] sm:$0xff]
        %v712 = vld [vmem:[#allocation5 + $0x3a0] sm:$0xff]
        %v713 = vld [vmem:[#allocation5 + $0x3a8] sm:$0xff]
        %v714 = vld [vmem:[#allocation5 + $0x3b0] sm:$0xff]
        %v715 = vld [vmem:[#allocation5 + $0x3b8] sm:$0xff]
        %v716 = vld [vmem:[#allocation5 + $0x3c0] sm:$0xff]
        %v717 = vld [vmem:[#allocation5 + $0x3c8] sm:$0xff]
        %v718 = vld [vmem:[#allocation5 + $0x3d0] sm:$0xff]
        %v719 = vld [vmem:[#allocation5 + $0x3d8] sm:$0xff]
        %v720 = vld [vmem:[#allocation5 + $0x3e0] sm:$0xff]
        %v721 = vld [vmem:[#allocation5 + $0x3e8] sm:$0xff]
        %v722 = vld [vmem:[#allocation5 + $0x3f0] sm:$0xff]
        %v723 = vld [vmem:[#allocation5 + $0x3f8] sm:$0xff]
        %s724 = scalar_lea.vmem [#allocation5], 1024
        %v725 = vld [vmem:[%s724] sm:$0xff]
        %v726 = vld [vmem:[%s724 + $0x8] sm:$0xff]
        %v727 = vld [vmem:[%s724 + $0x10] sm:$0xff]
        %v728 = vld [vmem:[%s724 + $0x18] sm:$0xff]
        %v729 = vld [vmem:[%s724 + $0x20] sm:$0xff]
        %v730 = vld [vmem:[%s724 + $0x28] sm:$0xff]
        %v731 = vld [vmem:[%s724 + $0x30] sm:$0xff]
        %v732 = vld [vmem:[%s724 + $0x38] sm:$0xff]
        %v733 = vld [vmem:[%s724 + $0x40] sm:$0xff]
        %v734 = vld [vmem:[%s724 + $0x48] sm:$0xff]
        %v735 = vld [vmem:[%s724 + $0x50] sm:$0xff]
        %v736 = vld [vmem:[%s724 + $0x58] sm:$0xff]
        %v737 = vld [vmem:[%s724 + $0x60] sm:$0xff]
        %v738 = vld [vmem:[%s724 + $0x68] sm:$0xff]
        %v739 = vld [vmem:[%s724 + $0x70] sm:$0xff]
        %v740 = vld [vmem:[%s724 + $0x78] sm:$0xff]
        %v741 = vld [vmem:[%s724 + $0x80] sm:$0xff]
        %v742 = vld [vmem:[%s724 + $0x88] sm:$0xff]
        %v743 = vld [vmem:[%s724 + $0x90] sm:$0xff]
        %v744 = vld [vmem:[%s724 + $0x98] sm:$0xff]
        %v745 = vld [vmem:[%s724 + $0xa0] sm:$0xff]
        %v746 = vld [vmem:[%s724 + $0xa8] sm:$0xff]
        %v747 = vld [vmem:[%s724 + $0xb0] sm:$0xff]
        %v748 = vld [vmem:[%s724 + $0xb8] sm:$0xff]
        %v749 = vld [vmem:[%s724 + $0xc0] sm:$0xff]
        %v750 = vld [vmem:[%s724 + $0xc8] sm:$0xff]
        %v751 = vld [vmem:[%s724 + $0xd0] sm:$0xff]
        %v752 = vld [vmem:[%s724 + $0xd8] sm:$0xff]
        %v753 = vld [vmem:[%s724 + $0xe0] sm:$0xff]
        %v754 = vld [vmem:[%s724 + $0xe8] sm:$0xff]
        %v755 = vld [vmem:[%s724 + $0xf0] sm:$0xff]
        %v756 = vld [vmem:[%s724 + $0xf8] sm:$0xff]
        %v757 = vld [vmem:[%s724 + $0x100] sm:$0xff]
        %v758 = vld [vmem:[%s724 + $0x108] sm:$0xff]
        %v759 = vld [vmem:[%s724 + $0x110] sm:$0xff]
        %v760 = vld [vmem:[%s724 + $0x118] sm:$0xff]
        %v761 = vld [vmem:[%s724 + $0x120] sm:$0xff]
        %v762 = vld [vmem:[%s724 + $0x128] sm:$0xff]
        %v763 = vld [vmem:[%s724 + $0x130] sm:$0xff]
        %v764 = vld [vmem:[%s724 + $0x138] sm:$0xff]
        %v765 = vld [vmem:[%s724 + $0x140] sm:$0xff]
        %v766 = vld [vmem:[%s724 + $0x148] sm:$0xff]
        %v767 = vld [vmem:[%s724 + $0x150] sm:$0xff]
        %v768 = vld [vmem:[%s724 + $0x158] sm:$0xff]
        %v769 = vld [vmem:[%s724 + $0x160] sm:$0xff]
        %v770 = vld [vmem:[%s724 + $0x168] sm:$0xff]
        %v771 = vld [vmem:[%s724 + $0x170] sm:$0xff]
        %v772 = vld [vmem:[%s724 + $0x178] sm:$0xff]
        %v773 = vld [vmem:[%s724 + $0x180] sm:$0xff]
        %v774 = vld [vmem:[%s724 + $0x188] sm:$0xff]
        %v775 = vld [vmem:[%s724 + $0x190] sm:$0xff]
        %v776 = vld [vmem:[%s724 + $0x198] sm:$0xff]
        %v777 = vld [vmem:[%s724 + $0x1a0] sm:$0xff]
        %v778 = vld [vmem:[%s724 + $0x1a8] sm:$0xff]
        %v779 = vld [vmem:[%s724 + $0x1b0] sm:$0xff]
        %v780 = vld [vmem:[%s724 + $0x1b8] sm:$0xff]
        %v781 = vld [vmem:[%s724 + $0x1c0] sm:$0xff]
        %v782 = vld [vmem:[%s724 + $0x1c8] sm:$0xff]
        %v783 = vld [vmem:[%s724 + $0x1d0] sm:$0xff]
        %v784 = vld [vmem:[%s724 + $0x1d8] sm:$0xff]
        %v785 = vld [vmem:[%s724 + $0x1e0] sm:$0xff]
        %v786 = vld [vmem:[%s724 + $0x1e8] sm:$0xff]
        %v787 = vld [vmem:[%s724 + $0x1f0] sm:$0xff]
        %v788 = vld [vmem:[%s724 + $0x1f8] sm:$0xff]
        %v789 = vld [vmem:[%s724 + $0x200] sm:$0xff]
        %v790 = vld [vmem:[%s724 + $0x208] sm:$0xff]
        %v791 = vld [vmem:[%s724 + $0x210] sm:$0xff]
        %v792 = vld [vmem:[%s724 + $0x218] sm:$0xff]
        %v793 = vld [vmem:[%s724 + $0x220] sm:$0xff]
        %v794 = vld [vmem:[%s724 + $0x228] sm:$0xff]
        %v795 = vld [vmem:[%s724 + $0x230] sm:$0xff]
        %v796 = vld [vmem:[%s724 + $0x238] sm:$0xff]
        %v797 = vld [vmem:[%s724 + $0x240] sm:$0xff]
        %v798 = vld [vmem:[%s724 + $0x248] sm:$0xff]
        %v799 = vld [vmem:[%s724 + $0x250] sm:$0xff]
        %v800 = vld [vmem:[%s724 + $0x258] sm:$0xff]
        %v801 = vld [vmem:[%s724 + $0x260] sm:$0xff]
        %v802 = vld [vmem:[%s724 + $0x268] sm:$0xff]
        %v803 = vld [vmem:[%s724 + $0x270] sm:$0xff]
        %v804 = vld [vmem:[%s724 + $0x278] sm:$0xff]
        %v805 = vld [vmem:[%s724 + $0x280] sm:$0xff]
        %v806 = vld [vmem:[%s724 + $0x288] sm:$0xff]
        %v807 = vld [vmem:[%s724 + $0x290] sm:$0xff]
        %v808 = vld [vmem:[%s724 + $0x298] sm:$0xff]
        %v809 = vld [vmem:[%s724 + $0x2a0] sm:$0xff]
        %v810 = vld [vmem:[%s724 + $0x2a8] sm:$0xff]
        %v811 = vld [vmem:[%s724 + $0x2b0] sm:$0xff]
        %v812 = vld [vmem:[%s724 + $0x2b8] sm:$0xff]
        %v813 = vld [vmem:[%s724 + $0x2c0] sm:$0xff]
        %v814 = vld [vmem:[%s724 + $0x2c8] sm:$0xff]
        %v815 = vld [vmem:[%s724 + $0x2d0] sm:$0xff]
        %v816 = vld [vmem:[%s724 + $0x2d8] sm:$0xff]
        %v817 = vld [vmem:[%s724 + $0x2e0] sm:$0xff]
        %v818 = vld [vmem:[%s724 + $0x2e8] sm:$0xff]
        %v819 = vld [vmem:[%s724 + $0x2f0] sm:$0xff]
        %v820 = vld [vmem:[%s724 + $0x2f8] sm:$0xff]
        %v821 = vld [vmem:[%s724 + $0x300] sm:$0xff]
        %v822 = vld [vmem:[%s724 + $0x308] sm:$0xff]
        %v823 = vld [vmem:[%s724 + $0x310] sm:$0xff]
        %v824 = vld [vmem:[%s724 + $0x318] sm:$0xff]
        %v825 = vld [vmem:[%s724 + $0x320] sm:$0xff]
        %v826 = vld [vmem:[%s724 + $0x328] sm:$0xff]
        %v827 = vld [vmem:[%s724 + $0x330] sm:$0xff]
        %v828 = vld [vmem:[%s724 + $0x338] sm:$0xff]
        %v829 = vld [vmem:[%s724 + $0x340] sm:$0xff]
        %v830 = vld [vmem:[%s724 + $0x348] sm:$0xff]
        %v831 = vld [vmem:[%s724 + $0x350] sm:$0xff]
        %v832 = vld [vmem:[%s724 + $0x358] sm:$0xff]
        %v833 = vld [vmem:[%s724 + $0x360] sm:$0xff]
        %v834 = vld [vmem:[%s724 + $0x368] sm:$0xff]
        %v835 = vld [vmem:[%s724 + $0x370] sm:$0xff]
        %v836 = vld [vmem:[%s724 + $0x378] sm:$0xff]
        %v837 = vld [vmem:[%s724 + $0x380] sm:$0xff]
        %v838 = vld [vmem:[%s724 + $0x388] sm:$0xff]
        %v839 = vld [vmem:[%s724 + $0x390] sm:$0xff]
        %v840 = vld [vmem:[%s724 + $0x398] sm:$0xff]
        %v841 = vld [vmem:[%s724 + $0x3a0] sm:$0xff]
        %v842 = vld [vmem:[%s724 + $0x3a8] sm:$0xff]
        %v843 = vld [vmem:[%s724 + $0x3b0] sm:$0xff]
        %v844 = vld [vmem:[%s724 + $0x3b8] sm:$0xff]
        %v845 = vld [vmem:[%s724 + $0x3c0] sm:$0xff]
        %v846 = vld [vmem:[%s724 + $0x3c8] sm:$0xff]
        %v847 = vld [vmem:[%s724 + $0x3d0] sm:$0xff]
        %v848 = vld [vmem:[%s724 + $0x3d8] sm:$0xff]
        %v849 = vld [vmem:[%s724 + $0x3e0] sm:$0xff]
        %v850 = vld [vmem:[%s724 + $0x3e8] sm:$0xff]
        %v851 = vld [vmem:[%s724 + $0x3f0] sm:$0xff]
        %v852 = vld [vmem:[%s724 + $0x3f8] sm:$0xff]
        %v853 = vld [vmem:[%s3] sm:$0xff]
        %v854 = vld [vmem:[%s3 + $0x8] sm:$0xff]
        %v855 = vld [vmem:[%s3 + $0x10] sm:$0xff]
        %v856 = vld [vmem:[%s3 + $0x18] sm:$0xff]
        %v857 = vld [vmem:[%s3 + $0x20] sm:$0xff]
        %v858 = vld [vmem:[%s3 + $0x28] sm:$0xff]
        %v859 = vld [vmem:[%s3 + $0x30] sm:$0xff]
        %v860 = vld [vmem:[%s3 + $0x38] sm:$0xff]
        %v861 = vld [vmem:[%s3 + $0x40] sm:$0xff]
        %v862 = vld [vmem:[%s3 + $0x48] sm:$0xff]
        %v863 = vld [vmem:[%s3 + $0x50] sm:$0xff]
        %v864 = vld [vmem:[%s3 + $0x58] sm:$0xff]
        %v865 = vld [vmem:[%s3 + $0x60] sm:$0xff]
        %v866 = vld [vmem:[%s3 + $0x68] sm:$0xff]
        %v867 = vld [vmem:[%s3 + $0x70] sm:$0xff]
        %v868 = vld [vmem:[%s3 + $0x78] sm:$0xff]
        %v869 = vld [vmem:[%s3 + $0x80] sm:$0xff]
        %v870 = vld [vmem:[%s3 + $0x88] sm:$0xff]
        %v871 = vld [vmem:[%s3 + $0x90] sm:$0xff]
        %v872 = vld [vmem:[%s3 + $0x98] sm:$0xff]
        %v873 = vld [vmem:[%s3 + $0xa0] sm:$0xff]
        %v874 = vld [vmem:[%s3 + $0xa8] sm:$0xff]
        %v875 = vld [vmem:[%s3 + $0xb0] sm:$0xff]
        %v876 = vld [vmem:[%s3 + $0xb8] sm:$0xff]
        %v877 = vld [vmem:[%s3 + $0xc0] sm:$0xff]
        %v878 = vld [vmem:[%s3 + $0xc8] sm:$0xff]
        %v879 = vld [vmem:[%s3 + $0xd0] sm:$0xff]
        %v880 = vld [vmem:[%s3 + $0xd8] sm:$0xff]
        %v881 = vld [vmem:[%s3 + $0xe0] sm:$0xff]
        %v882 = vld [vmem:[%s3 + $0xe8] sm:$0xff]
        %v883 = vld [vmem:[%s3 + $0xf0] sm:$0xff]
        %v884 = vld [vmem:[%s3 + $0xf8] sm:$0xff]
        %v885 = vld [vmem:[%s3 + $0x100] sm:$0xff]
        %v886 = vld [vmem:[%s3 + $0x108] sm:$0xff]
        %v887 = vld [vmem:[%s3 + $0x110] sm:$0xff]
        %v888 = vld [vmem:[%s3 + $0x118] sm:$0xff]
        %v889 = vld [vmem:[%s3 + $0x120] sm:$0xff]
        %v890 = vld [vmem:[%s3 + $0x128] sm:$0xff]
        %v891 = vld [vmem:[%s3 + $0x130] sm:$0xff]
        %v892 = vld [vmem:[%s3 + $0x138] sm:$0xff]
        %v893 = vld [vmem:[%s3 + $0x140] sm:$0xff]
        %v894 = vld [vmem:[%s3 + $0x148] sm:$0xff]
        %v895 = vld [vmem:[%s3 + $0x150] sm:$0xff]
        %v896 = vld [vmem:[%s3 + $0x158] sm:$0xff]
        %v897 = vld [vmem:[%s3 + $0x160] sm:$0xff]
        %v898 = vld [vmem:[%s3 + $0x168] sm:$0xff]
        %v899 = vld [vmem:[%s3 + $0x170] sm:$0xff]
        %v900 = vld [vmem:[%s3 + $0x178] sm:$0xff]
        %v901 = vld [vmem:[%s3 + $0x180] sm:$0xff]
        %v902 = vld [vmem:[%s3 + $0x188] sm:$0xff]
        %v903 = vld [vmem:[%s3 + $0x190] sm:$0xff]
        %v904 = vld [vmem:[%s3 + $0x198] sm:$0xff]
        %v905 = vld [vmem:[%s3 + $0x1a0] sm:$0xff]
        %v906 = vld [vmem:[%s3 + $0x1a8] sm:$0xff]
        %v907 = vld [vmem:[%s3 + $0x1b0] sm:$0xff]
        %v908 = vld [vmem:[%s3 + $0x1b8] sm:$0xff]
        %v909 = vld [vmem:[%s3 + $0x1c0] sm:$0xff]
        %v910 = vld [vmem:[%s3 + $0x1c8] sm:$0xff]
        %v911 = vld [vmem:[%s3 + $0x1d0] sm:$0xff]
        %v912 = vld [vmem:[%s3 + $0x1d8] sm:$0xff]
        %v913 = vld [vmem:[%s3 + $0x1e0] sm:$0xff]
        %v914 = vld [vmem:[%s3 + $0x1e8] sm:$0xff]
        %v915 = vld [vmem:[%s3 + $0x1f0] sm:$0xff]
        %v916 = vld [vmem:[%s3 + $0x1f8] sm:$0xff]
        %v917 = vld [vmem:[%s584] sm:$0xf]
        %v919 = vlaneseq
        %v920 = vshrl.u32 %v919, 7
        %v921 = vsub.s32 0, %v920
        %v922 = vrot.slane %v917, %v921
        %v923 = vlaneseq
        %v924 = vshrl.u32 %v923, 7
        %v925 = vsub.s32 2, %v924
        %v926 = vrot.slane %v917, %v925
        %v929 = vlaneseq
        %v930 = vshrl.u32 %v929, 7
        %v931 = vsub.s32 1, %v930
        %v932 = vrot.slane %v917, %v931
        %v933 = vlaneseq
        %v934 = vshrl.u32 %v933, 7
        %v935 = vsub.s32 3, %v934
        %v936 = vrot.slane %v917, %v935
        %vm939 = vcmask 1040384
        %v940 = vsel %vm939, %v922, %v932
        %v941 = vsel %vm939, %v926, %v936
        %942 = vmatprep.subr.mxu0 %v726
        %943 = vmatpush1.msra.mxu0 %v725
        %944 = vmatprep.subr.mxu0 %v730
        %945 = vmatpush1.msra.mxu0 %v729
        %946 = vmatprep.subr.mxu0 %v734
        %947 = vmatpush1.msra.mxu0 %v733
        %948 = vmatprep.subr.mxu0 %v738
        %949 = vmatpush1.msra.mxu0 %v737
        %950 = vmatprep.subr.mxu0 %v742
        %951 = vmatpush1.msra.mxu0 %v741
        %952 = vmatprep.subr.mxu0 %v746
        %953 = vmatpush1.msra.mxu0 %v745
        %954 = vmatprep.subr.mxu0 %v750
        %955 = vmatpush1.msra.mxu0 %v749
        %956 = vmatprep.subr.mxu0 %v754
        %957 = vmatpush1.msra.mxu0 %v753
        %958 = vmatprep.subr.mxu0 %v758
        %959 = vmatpush1.msra.mxu0 %v757
        %960 = vmatprep.subr.mxu0 %v762
        %961 = vmatpush1.msra.mxu0 %v761
        %962 = vmatprep.subr.mxu0 %v766
        %963 = vmatpush1.msra.mxu0 %v765
        %964 = vmatprep.subr.mxu0 %v770
        %965 = vmatpush1.msra.mxu0 %v769
        %966 = vmatprep.subr.mxu0 %v774
        %967 = vmatpush1.msra.mxu0 %v773
        %968 = vmatprep.subr.mxu0 %v778
        %969 = vmatpush1.msra.mxu0 %v777
        %970 = vmatprep.subr.mxu0 %v782
        %971 = vmatpush1.msra.mxu0 %v781
        %972 = vmatprep.subr.mxu0 %v786
        %973 = vmatpush1.msra.mxu0 %v785
        %974 = vmatprep.subr.mxu0 %v790
        %975 = vmatpush1.msra.mxu0 %v789
        %976 = vmatprep.subr.mxu0 %v794
        %977 = vmatpush1.msra.mxu0 %v793
        %978 = vmatprep.subr.mxu0 %v798
        %979 = vmatpush1.msra.mxu0 %v797
        %980 = vmatprep.subr.mxu0 %v802
        %981 = vmatpush1.msra.mxu0 %v801
        %982 = vmatprep.subr.mxu0 %v806
        %983 = vmatpush1.msra.mxu0 %v805
        %984 = vmatprep.subr.mxu0 %v810
        %985 = vmatpush1.msra.mxu0 %v809
        %986 = vmatprep.subr.mxu0 %v814
        %987 = vmatpush1.msra.mxu0 %v813
        %988 = vmatprep.subr.mxu0 %v818
        %989 = vmatpush1.msra.mxu0 %v817
        %990 = vmatprep.subr.mxu0 %v822
        %991 = vmatpush1.msra.mxu0 %v821
        %992 = vmatprep.subr.mxu0 %v826
        %993 = vmatpush1.msra.mxu0 %v825
        %994 = vmatprep.subr.mxu0 %v830
        %995 = vmatpush1.msra.mxu0 %v829
        %996 = vmatprep.subr.mxu0 %v834
        %997 = vmatpush1.msra.mxu0 %v833
        %998 = vmatprep.subr.mxu0 %v838
        %999 = vmatpush1.msra.mxu0 %v837
        %1000 = vmatprep.subr.mxu0 %v842
        %1001 = vmatpush1.msra.mxu0 %v841
        %1002 = vmatprep.subr.mxu0 %v846
        %1003 = vmatpush1.msra.mxu0 %v845
        %1004 = vmatprep.subr.mxu0 %v850
        %1005 = vmatpush1.msra.mxu0 %v849
        %1006 = vmatprep.mubr.f32.mxu0 %v941
        %1007 = vmatmul.mubr.f32.gmra.mrb[0].mxu0 %v940
        %v1008 = vpop.f32.mrb[0].mxu0
        %v1009 = vadd.f32 0.0, %v1008
        %v1010 = vpop.f32.mrb[0].mxu0
        %v1011 = vadd.f32 0.0, %v1010
        %1012 = vdwg.mxu0
        %1013 = vmatprep.subr.mxu0 %v728
        %1014 = vmatpush1.msra.mxu0 %v727
        %1015 = vmatprep.subr.mxu0 %v732
        %1016 = vmatpush1.msra.mxu0 %v731
        %1017 = vmatprep.subr.mxu0 %v736
        %1018 = vmatpush1.msra.mxu0 %v735
        %1019 = vmatprep.subr.mxu0 %v740
        %1020 = vmatpush1.msra.mxu0 %v739
        %1021 = vmatprep.subr.mxu0 %v744
        %1022 = vmatpush1.msra.mxu0 %v743
        %1023 = vmatprep.subr.mxu0 %v748
        %1024 = vmatpush1.msra.mxu0 %v747
        %1025 = vmatprep.subr.mxu0 %v752
        %1026 = vmatpush1.msra.mxu0 %v751
        %1027 = vmatprep.subr.mxu0 %v756
        %1028 = vmatpush1.msra.mxu0 %v755
        %1029 = vmatprep.subr.mxu0 %v760
        %1030 = vmatpush1.msra.mxu0 %v759
        %1031 = vmatprep.subr.mxu0 %v764
        %1032 = vmatpush1.msra.mxu0 %v763
        %1033 = vmatprep.subr.mxu0 %v768
        %1034 = vmatpush1.msra.mxu0 %v767
        %1035 = vmatprep.subr.mxu0 %v772
        %1036 = vmatpush1.msra.mxu0 %v771
        %1037 = vmatprep.subr.mxu0 %v776
        %1038 = vmatpush1.msra.mxu0 %v775
        %1039 = vmatprep.subr.mxu0 %v780
        %1040 = vmatpush1.msra.mxu0 %v779
        %1041 = vmatprep.subr.mxu0 %v784
        %1042 = vmatpush1.msra.mxu0 %v783
        %1043 = vmatprep.subr.mxu0 %v788
        %1044 = vmatpush1.msra.mxu0 %v787
        %1045 = vmatprep.subr.mxu0 %v792
        %1046 = vmatpush1.msra.mxu0 %v791
        %1047 = vmatprep.subr.mxu0 %v796
        %1048 = vmatpush1.msra.mxu0 %v795
        %1049 = vmatprep.subr.mxu0 %v800
        %1050 = vmatpush1.msra.mxu0 %v799
        %1051 = vmatprep.subr.mxu0 %v804
        %1052 = vmatpush1.msra.mxu0 %v803
        %1053 = vmatprep.subr.mxu0 %v808
        %1054 = vmatpush1.msra.mxu0 %v807
        %1055 = vmatprep.subr.mxu0 %v812
        %1056 = vmatpush1.msra.mxu0 %v811
        %1057 = vmatprep.subr.mxu0 %v816
        %1058 = vmatpush1.msra.mxu0 %v815
        %1059 = vmatprep.subr.mxu0 %v820
        %1060 = vmatpush1.msra.mxu0 %v819
        %1061 = vmatprep.subr.mxu0 %v824
        %1062 = vmatpush1.msra.mxu0 %v823
        %1063 = vmatprep.subr.mxu0 %v828
        %1064 = vmatpush1.msra.mxu0 %v827
        %1065 = vmatprep.subr.mxu0 %v832
        %1066 = vmatpush1.msra.mxu0 %v831
        %1067 = vmatprep.subr.mxu0 %v836
        %1068 = vmatpush1.msra.mxu0 %v835
        %1069 = vmatprep.subr.mxu0 %v840
        %1070 = vmatpush1.msra.mxu0 %v839
        %1071 = vmatprep.subr.mxu0 %v844
        %1072 = vmatpush1.msra.mxu0 %v843
        %1073 = vmatprep.subr.mxu0 %v848
        %1074 = vmatpush1.msra.mxu0 %v847
        %1075 = vmatprep.subr.mxu0 %v852
        %1076 = vmatpush1.msra.mxu0 %v851
        %1077 = vmatprep.mubr.f32.mxu0 %v941
        %1078 = vmatmul.mubr.f32.gmra.mrb[0].mxu0 %v940
        %v1079 = vpop.f32.mrb[0].mxu0
        %v1080 = vadd.f32 0.0, %v1079
        %v1081 = vpop.f32.mrb[0].mxu0
        %v1082 = vadd.f32 0.0, %v1081
        %1083 = vdwg.mxu0
        %v1086 = vrot.slane %v1080, 1
        %v1087 = vrot.slane %v1082, 1
        %v1090 = vsub.f32 %v1009, %v1086
        %v1091 = vsub.f32 %v1011, %v1087
        %v1094 = vrot.slane %v1009, 1
        %v1095 = vrot.slane %v1011, 1
        %v1098 = vadd.f32 %v1080, %v1094
        %v1099 = vadd.f32 %v1082, %v1095
        %v1102 = vrot.slane %v1098, 7
        %v1103 = vrot.slane %v1099, 7
        %v1106 = vsel %vm939, %v1090, %v1102
        %v1107 = vsel %vm939, %v1091, %v1103
        %v1108 = vld [vmem:[%s5] sm:$0xf]
        %1109 = vrot.lane.b32.xlu0 %v1106, 17
        %v1110 = vpop.permute.xlu0 %1109
        %1111 = vrot.lane.b32.xlu0 %v1107, 17
        %v1112 = vpop.permute.xlu0 %1111
        %v1113 = vlaneseq
        %v1114 = vand.u32 %v1113, 127
        %vm1115 = vcmp.lt.s32.totalorder %v1114, 17
        %v1116 = vsel %vm1115, %v1110, %v1112
        %v1117 = vsel %vm1115, %v1112, %v1110
        %v1118 = vlaneseq
        %v1119 = vshrl.u32 %v1118, 7
        %v1120 = vsub.s32 0, %v1119
        %v1121 = vrot.slane %v592, %v1120
        %v1122 = vlaneseq
        %v1123 = vshrl.u32 %v1122, 7
        %v1124 = vsub.s32 0, %v1123
        %v1125 = vrot.slane %v593, %v1124
        %v1126 = vmul.f32 %v1117, %v1121
        %v1127 = vmul.f32 %v1116, %v1125
        %1128 = vrot.lane.b32.xlu0 %v1106, 16
        %v1129 = vpop.permute.xlu0 %1128
        %1130 = vrot.lane.b32.xlu0 %v1107, 16
        %v1131 = vpop.permute.xlu0 %1130
        %vm1132 = vcmp.lt.s32.totalorder %v1114, 16
        %v1133 = vsel %vm1132, %v1129, %v1131
        %v1134 = vsel %vm1132, %v1131, %v1129
        %v1135 = vlaneseq
        %v1136 = vshrl.u32 %v1135, 7
        %v1137 = vsub.s32 1, %v1136
        %v1138 = vrot.slane %v592, %v1137
        %v1139 = vlaneseq
        %v1140 = vshrl.u32 %v1139, 7
        %v1141 = vsub.s32 1, %v1140
        %v1142 = vrot.slane %v593, %v1141
        %v1143 = vmul.f32 %v1134, %v1138
        %v1144 = vmul.f32 %v1133, %v1142
        %1145 = vrot.lane.b32.xlu0 %v1106, 15
        %v1146 = vpop.permute.xlu0 %1145
        %1147 = vrot.lane.b32.xlu0 %v1107, 15
        %v1148 = vpop.permute.xlu0 %1147
        %vm1149 = vcmp.lt.s32.totalorder %v1114, 15
        %v1150 = vsel %vm1149, %v1146, %v1148
        %v1151 = vsel %vm1149, %v1148, %v1146
        %v1152 = vlaneseq
        %v1153 = vshrl.u32 %v1152, 7
        %v1154 = vsub.s32 2, %v1153
        %v1155 = vrot.slane %v592, %v1154
        %v1156 = vlaneseq
        %v1157 = vshrl.u32 %v1156, 7
        %v1158 = vsub.s32 2, %v1157
        %v1159 = vrot.slane %v593, %v1158
        %v1160 = vmul.f32 %v1151, %v1155
        %v1161 = vmul.f32 %v1150, %v1159
        %1162 = vrot.lane.b32.xlu0 %v1106, 1
        %v1163 = vpop.permute.xlu0 %1162
        %1164 = vrot.lane.b32.xlu0 %v1107, 1
        %v1165 = vpop.permute.xlu0 %1164
        %vm1166 = vcmp.lt.s32.totalorder %v1114, 1
        %v1167 = vsel %vm1166, %v1163, %v1165
        %v1168 = vsel %vm1166, %v1165, %v1163
        %v1169 = vlaneseq
        %v1170 = vshrl.u32 %v1169, 7
        %v1171 = vsub.s32 3, %v1170
        %v1172 = vrot.slane %v592, %v1171
        %v1173 = vlaneseq
        %v1174 = vshrl.u32 %v1173, 7
        %v1175 = vsub.s32 3, %v1174
        %v1176 = vrot.slane %v593, %v1175
        %v1177 = vmul.f32 %v1168, %v1172
        %v1178 = vmul.f32 %v1167, %v1176
        %1179 = vrot.lane.b32.xlu0 %v1106, 127
        %v1180 = vpop.permute.xlu0 %1179
        %1181 = vrot.lane.b32.xlu0 %v1107, 127
        %v1182 = vpop.permute.xlu0 %1181
        %vm1183 = vcmp.lt.s32.totalorder %v1114, 127
        %v1184 = vsel %vm1183, %v1180, %v1182
        %v1185 = vsel %vm1183, %v1182, %v1180
        %v1186 = vlaneseq
        %v1187 = vshrl.u32 %v1186, 7
        %v1188 = vsub.s32 5, %v1187
        %v1189 = vrot.slane %v592, %v1188
        %v1190 = vlaneseq
        %v1191 = vshrl.u32 %v1190, 7
        %v1192 = vsub.s32 5, %v1191
        %v1193 = vrot.slane %v593, %v1192
        %v1194 = vmul.f32 %v1184, %v1189
        %v1195 = vmul.f32 %v1185, %v1193
        %1196 = vrot.lane.b32.xlu0 %v1106, 113
        %v1197 = vpop.permute.xlu0 %1196
        %1198 = vrot.lane.b32.xlu0 %v1107, 113
        %v1199 = vpop.permute.xlu0 %1198
        %vm1200 = vcmp.lt.s32.totalorder %v1114, 113
        %v1201 = vsel %vm1200, %v1197, %v1199
        %v1202 = vsel %vm1200, %v1199, %v1197
        %v1203 = vlaneseq
        %v1204 = vshrl.u32 %v1203, 7
        %v1205 = vsub.s32 6, %v1204
        %v1206 = vrot.slane %v592, %v1205
        %v1207 = vlaneseq
        %v1208 = vshrl.u32 %v1207, 7
        %v1209 = vsub.s32 6, %v1208
        %v1210 = vrot.slane %v593, %v1209
        %v1211 = vmul.f32 %v1201, %v1206
        %v1212 = vmul.f32 %v1202, %v1210
        %1213 = vrot.lane.b32.xlu0 %v1106, 112
        %v1214 = vpop.permute.xlu0 %1213
        %1215 = vrot.lane.b32.xlu0 %v1107, 112
        %v1216 = vpop.permute.xlu0 %1215
        %vm1217 = vcmp.lt.s32.totalorder %v1114, 112
        %v1218 = vsel %vm1217, %v1214, %v1216
        %v1219 = vsel %vm1217, %v1216, %v1214
        %v1220 = vlaneseq
        %v1221 = vshrl.u32 %v1220, 7
        %v1222 = vsub.s32 7, %v1221
        %v1223 = vrot.slane %v592, %v1222
        %v1224 = vlaneseq
        %v1225 = vshrl.u32 %v1224, 7
        %v1226 = vsub.s32 7, %v1225
        %v1227 = vrot.slane %v593, %v1226
        %v1228 = vmul.f32 %v1218, %v1223
        %v1229 = vmul.f32 %v1219, %v1227
        %1230 = vrot.lane.b32.xlu0 %v1106, 111
        %v1231 = vpop.permute.xlu0 %1230
        %1232 = vrot.lane.b32.xlu0 %v1107, 111
        %v1233 = vpop.permute.xlu0 %1232
        %vm1234 = vcmp.lt.s32.totalorder %v1114, 111
        %v1235 = vsel %vm1234, %v1231, %v1233
        %v1236 = vsel %vm1234, %v1233, %v1231
        %v1237 = vlaneseq
        %v1238 = vshrl.u32 %v1237, 7
        %v1239 = vsub.s32 0, %v1238
        %v1240 = vrot.slane %v594, %v1239
        %v1241 = vlaneseq
        %v1242 = vshrl.u32 %v1241, 7
        %v1243 = vsub.s32 0, %v1242
        %v1244 = vrot.slane %v595, %v1243
        %v1245 = vmul.f32 %v1235, %v1240
        %v1246 = vmul.f32 %v1236, %v1244
        %v1249 = vrot.slane %v1143, 6
        %v1250 = vrot.slane %v1144, 6
        %v1255 = vrot.slane %v1160, 4
        %v1256 = vrot.slane %v1161, 4
        %v1261 = vrot.slane %v1177, 2
        %v1262 = vrot.slane %v1178, 2
        %v1267 = vrot.slane %v1194, 6
        %v1268 = vrot.slane %v1195, 6
        %v1273 = vrot.slane %v1211, 4
        %v1274 = vrot.slane %v1212, 4
        %v1279 = vrot.slane %v1228, 2
        %v1280 = vrot.slane %v1229, 2
        %vm1283 = vcmask 1041408
        %v1284 = vsel %vm1283, %v1126, %v1249
        %v1285 = vsel %vm1283, %v1127, %v1250
        %vm1286 = vcmask 1043456
        %v1287 = vsel %vm1286, %v1284, %v1255
        %v1288 = vsel %vm1286, %v1285, %v1256
        %vm1289 = vcmask 1045504
        %v1290 = vsel %vm1289, %v1287, %v1261
        %v1291 = vsel %vm1289, %v1288, %v1262
        %v1292 = vsel %vm1283, %v1106, %v1267
        %v1293 = vsel %vm1283, %v1107, %v1268
        %v1294 = vsel %vm1286, %v1292, %v1273
        %v1295 = vsel %vm1286, %v1293, %v1274
        %v1296 = vsel %vm1289, %v1294, %v1279
        %v1297 = vsel %vm1289, %v1295, %v1280
        %vm1298 = vcmask 146432
        %v1300 = vsel %vm1298, %v1108, 0
        %v1303 = vsel %vm1283, %v1245, 0
        %v1306 = vsel %vm1283, %v1246, 0
        %1308 = vmatprep.subr.mxu0 %v1291
        %1309 = vmatpush1.msra.mxu0 %v1290
        %1310 = vmatprep.subr.mxu0 %v1297
        %1311 = vmatpush1.msra.mxu0 %v1296
        %1312 = vmatprep.subr.mxu0 %v1306
        %1313 = vmatpush1.msra.mxu0 %v1303
        %1314 = vmatprep.subr.mxu0 0.0
        %1315 = vmatpush1.msra.mxu0 0.0
        %1316 = vmatprep.subr.mxu0 0.0
        %1317 = vmatpush1.msra.mxu0 0.0
        %1318 = vmatprep.subr.mxu0 0.0
        %1319 = vmatpush1.msra.mxu0 0.0
        %1320 = vmatprep.subr.mxu0 0.0
        %1321 = vmatpush1.msra.mxu0 0.0
        %1322 = vmatprep.subr.mxu0 0.0
        %1323 = vmatpush1.msra.mxu0 0.0
        %1324 = vmatprep.subr.mxu0 0.0
        %1325 = vmatpush1.msra.mxu0 0.0
        %1326 = vmatprep.subr.mxu0 0.0
        %1327 = vmatpush1.msra.mxu0 0.0
        %1328 = vmatprep.subr.mxu0 0.0
        %1329 = vmatpush1.msra.mxu0 0.0
        %1330 = vmatprep.subr.mxu0 0.0
        %1331 = vmatpush1.msra.mxu0 0.0
        %1332 = vmatprep.subr.mxu0 0.0
        %1333 = vmatpush1.msra.mxu0 0.0
        %1334 = vmatprep.subr.mxu0 0.0
        %1335 = vmatpush1.msra.mxu0 0.0
        %1336 = vmatprep.subr.mxu0 0.0
        %1337 = vmatpush1.msra.mxu0 0.0
        %1338 = vmatprep.subr.mxu0 0.0
        %1339 = vmatpush1.msra.mxu0 0.0
        %1340 = vmatprep.subr.mxu0 0.0
        %1341 = vmatpush1.msra.mxu0 0.0
        %1342 = vmatprep.subr.mxu0 0.0
        %1343 = vmatpush1.msra.mxu0 0.0
        %1344 = vmatprep.subr.mxu0 0.0
        %1345 = vmatpush1.msra.mxu0 0.0
        %1346 = vmatprep.subr.mxu0 0.0
        %1347 = vmatpush1.msra.mxu0 0.0
        %1348 = vmatprep.subr.mxu0 0.0
        %1349 = vmatpush1.msra.mxu0 0.0
        %1350 = vmatprep.subr.mxu0 0.0
        %1351 = vmatpush1.msra.mxu0 0.0
        %1352 = vmatprep.subr.mxu0 0.0
        %1353 = vmatpush1.msra.mxu0 0.0
        %1354 = vmatprep.subr.mxu0 0.0
        %1355 = vmatpush1.msra.mxu0 0.0
        %1356 = vmatprep.subr.mxu0 0.0
        %1357 = vmatpush1.msra.mxu0 0.0
        %1358 = vmatprep.subr.mxu0 0.0
        %1359 = vmatpush1.msra.mxu0 0.0
        %1360 = vmatprep.subr.mxu0 0.0
        %1361 = vmatpush1.msra.mxu0 0.0
        %1362 = vmatprep.subr.mxu0 0.0
        %1363 = vmatpush1.msra.mxu0 0.0
        %1364 = vmatprep.subr.mxu0 0.0
        %1365 = vmatpush1.msra.mxu0 0.0
        %1366 = vmatprep.subr.mxu0 0.0
        %1367 = vmatpush1.msra.mxu0 0.0
        %1368 = vmatprep.subr.mxu0 0.0
        %1369 = vmatpush1.msra.mxu0 0.0
        %1370 = vmatprep.subr.mxu0 0.0
        %1371 = vmatpush1.msra.mxu0 0.0
        %1372 = vmatprep.mubr.f32.mxu0 0.0
        %1373 = vmatmul.mubr.f32.gmra.mrb[0].mxu0 %v1300
        %v1374 = vpop.f32.mrb[0].mxu0
        %v1375 = vadd.f32 0.0, %v1374
        %v1376 = vpop.f32.mrb[0].mxu0
        %v1377 = vadd.f32 0.0, %v1376
        %1378 = vdwg.mxu0
        %v1381 = vrot.slane %v1375, 6
        %v1382 = vrot.slane %v1377, 6
        %v1385 = vsel %vm1283, %v1106, %v1381
        %v1386 = vsel %vm1283, %v1107, %v1382
        %v1387 = vld [vmem:[%s7] sm:$0x3f]
        %v1388 = vld [vmem:[%s8] sm:$0x3f]
        %1389 = vrot.lane.b32.xlu0 %v1385, 17
        %v1390 = vpop.permute.xlu0 %1389
        %1391 = vrot.lane.b32.xlu0 %v1386, 17
        %v1392 = vpop.permute.xlu0 %1391
        %v1393 = vsel %vm1115, %v1390, %v1392
        %v1394 = vsel %vm1115, %v1392, %v1390
        %v1395 = vmul.f32 %v1394, %v1121
        %v1396 = vmul.f32 %v1393, %v1125
        %1397 = vrot.lane.b32.xlu0 %v1385, 16
        %v1398 = vpop.permute.xlu0 %1397
        %1399 = vrot.lane.b32.xlu0 %v1386, 16
        %v1400 = vpop.permute.xlu0 %1399
        %v1401 = vsel %vm1132, %v1398, %v1400
        %v1402 = vsel %vm1132, %v1400, %v1398
        %v1403 = vmul.f32 %v1402, %v1138
        %v1404 = vmul.f32 %v1401, %v1142
        %1405 = vrot.lane.b32.xlu0 %v1385, 15
        %v1406 = vpop.permute.xlu0 %1405
        %1407 = vrot.lane.b32.xlu0 %v1386, 15
        %v1408 = vpop.permute.xlu0 %1407
        %v1409 = vsel %vm1149, %v1406, %v1408
        %v1410 = vsel %vm1149, %v1408, %v1406
        %v1411 = vmul.f32 %v1410, %v1155
        %v1412 = vmul.f32 %v1409, %v1159
        %1413 = vrot.lane.b32.xlu0 %v1385, 1
        %v1414 = vpop.permute.xlu0 %1413
        %1415 = vrot.lane.b32.xlu0 %v1386, 1
        %v1416 = vpop.permute.xlu0 %1415
        %v1417 = vsel %vm1166, %v1414, %v1416
        %v1418 = vsel %vm1166, %v1416, %v1414
        %v1419 = vmul.f32 %v1418, %v1172
        %v1420 = vmul.f32 %v1417, %v1176
        %1421 = vrot.lane.b32.xlu0 %v1385, 127
        %v1422 = vpop.permute.xlu0 %1421
        %1423 = vrot.lane.b32.xlu0 %v1386, 127
        %v1424 = vpop.permute.xlu0 %1423
        %v1425 = vsel %vm1183, %v1422, %v1424
        %v1426 = vsel %vm1183, %v1424, %v1422
        %v1427 = vmul.f32 %v1425, %v1189
        %v1428 = vmul.f32 %v1426, %v1193
        %1429 = vrot.lane.b32.xlu0 %v1385, 113
        %v1430 = vpop.permute.xlu0 %1429
        %1431 = vrot.lane.b32.xlu0 %v1386, 113
        %v1432 = vpop.permute.xlu0 %1431
        %v1433 = vsel %vm1200, %v1430, %v1432
        %v1434 = vsel %vm1200, %v1432, %v1430
        %v1435 = vmul.f32 %v1433, %v1206
        %v1436 = vmul.f32 %v1434, %v1210
        %1437 = vrot.lane.b32.xlu0 %v1385, 112
        %v1438 = vpop.permute.xlu0 %1437
        %1439 = vrot.lane.b32.xlu0 %v1386, 112
        %v1440 = vpop.permute.xlu0 %1439
        %v1441 = vsel %vm1217, %v1438, %v1440
        %v1442 = vsel %vm1217, %v1440, %v1438
        %v1443 = vmul.f32 %v1441, %v1223
        %v1444 = vmul.f32 %v1442, %v1227
        %1445 = vrot.lane.b32.xlu0 %v1385, 111
        %v1446 = vpop.permute.xlu0 %1445
        %1447 = vrot.lane.b32.xlu0 %v1386, 111
        %v1448 = vpop.permute.xlu0 %1447
        %v1449 = vsel %vm1234, %v1446, %v1448
        %v1450 = vsel %vm1234, %v1448, %v1446
        %v1451 = vmul.f32 %v1449, %v1240
        %v1452 = vmul.f32 %v1450, %v1244
        %v1455 = vrot.slane %v1403, 2
        %v1456 = vrot.slane %v1404, 2
        %v1461 = vrot.slane %v1411, 4
        %v1462 = vrot.slane %v1412, 4
        %v1467 = vrot.slane %v1419, 6
        %v1468 = vrot.slane %v1420, 6
        %v1473 = vrot.slane %v1427, 2
        %v1474 = vrot.slane %v1428, 2
        %v1479 = vrot.slane %v1435, 4
        %v1480 = vrot.slane %v1436, 4
        %v1485 = vrot.slane %v1443, 6
        %v1486 = vrot.slane %v1444, 6
        %v1489 = vsel %vm1289, %v1395, %v1455
        %v1490 = vsel %vm1289, %v1396, %v1456
        %v1491 = vsel %vm1286, %v1455, %v1461
        %v1492 = vsel %vm1286, %v1456, %v1462
        %v1493 = vsel %vm1283, %v1461, %v1467
        %v1494 = vsel %vm1283, %v1462, %v1468
        %v1495 = vsel %vm1289, %v1385, %v1473
        %v1496 = vsel %vm1289, %v1386, %v1474
        %v1497 = vsel %vm1286, %v1473, %v1479
        %v1498 = vsel %vm1286, %v1474, %v1480
        %v1499 = vsel %vm1283, %v1479, %v1485
        %v1500 = vsel %vm1283, %v1480, %v1486
        %1502 = vset.pattern.permute.xlu0 0
        %1503 = vperm.xlu0 %1502, %v1388
        %v1504 = vpop.permute.xlu0 %1503
        %vm1506 = vcmask 441344
        %v1508 = vsel %vm1506, %v1387, 0
        %v1511 = vsel %vm1289, %v1451, 0
        %v1514 = vsel %vm1289, %v1452, 0
        %1516 = vmatprep.subr.mxu0 %v1490
        %1517 = vmatpush1.msra.mxu0 %v1489
        %1518 = vmatprep.subr.mxu0 %v1492
        %1519 = vmatpush1.msra.mxu0 %v1491
        %1520 = vmatprep.subr.mxu0 %v1494
        %1521 = vmatpush1.msra.mxu0 %v1493
        %1522 = vmatprep.subr.mxu0 %v1496
        %1523 = vmatpush1.msra.mxu0 %v1495
        %1524 = vmatprep.subr.mxu0 %v1498
        %1525 = vmatpush1.msra.mxu0 %v1497
        %1526 = vmatprep.subr.mxu0 %v1500
        %1527 = vmatpush1.msra.mxu0 %v1499
        %1528 = vmatprep.subr.mxu0 %v1514
        %1529 = vmatpush1.msra.mxu0 %v1511
        %1530 = vmatprep.subr.mxu0 0.0
        %1531 = vmatpush1.msra.mxu0 0.0
        %1532 = vmatprep.subr.mxu0 0.0
        %1533 = vmatpush1.msra.mxu0 0.0
        %1534 = vmatprep.subr.mxu0 0.0
        %1535 = vmatpush1.msra.mxu0 0.0
        %1536 = vmatprep.subr.mxu0 0.0
        %1537 = vmatpush1.msra.mxu0 0.0
        %1538 = vmatprep.subr.mxu0 0.0
        %1539 = vmatpush1.msra.mxu0 0.0
        %1540 = vmatprep.subr.mxu0 0.0
        %1541 = vmatpush1.msra.mxu0 0.0
        %1542 = vmatprep.subr.mxu0 0.0
        %1543 = vmatpush1.msra.mxu0 0.0
        %1544 = vmatprep.subr.mxu0 0.0
        %1545 = vmatpush1.msra.mxu0 0.0
        %1546 = vmatprep.subr.mxu0 0.0
        %1547 = vmatpush1.msra.mxu0 0.0
        %1548 = vmatprep.subr.mxu0 0.0
        %1549 = vmatpush1.msra.mxu0 0.0
        %1550 = vmatprep.subr.mxu0 0.0
        %1551 = vmatpush1.msra.mxu0 0.0
        %1552 = vmatprep.subr.mxu0 0.0
        %1553 = vmatpush1.msra.mxu0 0.0
        %1554 = vmatprep.subr.mxu0 0.0
        %1555 = vmatpush1.msra.mxu0 0.0
        %1556 = vmatprep.subr.mxu0 0.0
        %1557 = vmatpush1.msra.mxu0 0.0
        %1558 = vmatprep.subr.mxu0 0.0
        %1559 = vmatpush1.msra.mxu0 0.0
        %1560 = vmatprep.subr.mxu0 0.0
        %1561 = vmatpush1.msra.mxu0 0.0
        %1562 = vmatprep.subr.mxu0 0.0
        %1563 = vmatpush1.msra.mxu0 0.0
        %1564 = vmatprep.subr.mxu0 0.0
        %1565 = vmatpush1.msra.mxu0 0.0
        %1566 = vmatprep.subr.mxu0 0.0
        %1567 = vmatpush1.msra.mxu0 0.0
        %1568 = vmatprep.subr.mxu0 0.0
        %1569 = vmatpush1.msra.mxu0 0.0
        %1570 = vmatprep.subr.mxu0 0.0
        %1571 = vmatpush1.msra.mxu0 0.0
        %1572 = vmatprep.subr.mxu0 0.0
        %1573 = vmatpush1.msra.mxu0 0.0
        %1574 = vmatprep.subr.mxu0 0.0
        %1575 = vmatpush1.msra.mxu0 0.0
        %1576 = vmatprep.subr.mxu0 0.0
        %1577 = vmatpush1.msra.mxu0 0.0
        %1578 = vmatprep.subr.mxu0 0.0
        %1579 = vmatpush1.msra.mxu0 0.0
        %1580 = vmatprep.mubr.f32.mxu0 0.0
        %1581 = vmatmul.mubr.f32.gmra.mrb[0].mxu0 %v1508
        %v1582 = vpop.f32.mrb[0].mxu0
        %v1583 = vadd.f32 %v1504, %v1582
        %v1584 = vpop.f32.mrb[0].mxu0
        %v1585 = vadd.f32 %v1504, %v1584
        %1586 = vdwg.mxu0
        %v1587 = vmax.f32 %v1583, 0.0
        %v1588 = vmax.f32 %v1585, 0.0
        %v1589 = vld [vmem:[%s9] sm:$0x3f]
        %v1590 = vld [vmem:[%s10] sm:$0x3f]
        %1591 = vrot.lane.b32.xlu0 %v1587, 17
        %v1592 = vpop.permute.xlu0 %1591
        %1593 = vrot.lane.b32.xlu0 %v1588, 17
        %v1594 = vpop.permute.xlu0 %1593
        %v1595 = vsel %vm1115, %v1592, %v1594
        %v1596 = vsel %vm1115, %v1594, %v1592
        %v1597 = vmul.f32 %v1596, %v1121
        %v1598 = vmul.f32 %v1595, %v1125
        %1599 = vrot.lane.b32.xlu0 %v1587, 16
        %v1600 = vpop.permute.xlu0 %1599
        %1601 = vrot.lane.b32.xlu0 %v1588, 16
        %v1602 = vpop.permute.xlu0 %1601
        %v1603 = vsel %vm1132, %v1600, %v1602
        %v1604 = vsel %vm1132, %v1602, %v1600
        %v1605 = vmul.f32 %v1604, %v1138
        %v1606 = vmul.f32 %v1603, %v1142
        %1607 = vrot.lane.b32.xlu0 %v1587, 15
        %v1608 = vpop.permute.xlu0 %1607
        %1609 = vrot.lane.b32.xlu0 %v1588, 15
        %v1610 = vpop.permute.xlu0 %1609
        %v1611 = vsel %vm1149, %v1608, %v1610
        %v1612 = vsel %vm1149, %v1610, %v1608
        %v1613 = vmul.f32 %v1612, %v1155
        %v1614 = vmul.f32 %v1611, %v1159
        %1615 = vrot.lane.b32.xlu0 %v1587, 1
        %v1616 = vpop.permute.xlu0 %1615
        %1617 = vrot.lane.b32.xlu0 %v1588, 1
        %v1618 = vpop.permute.xlu0 %1617
        %v1619 = vsel %vm1166, %v1616, %v1618
        %v1620 = vsel %vm1166, %v1618, %v1616
        %v1621 = vmul.f32 %v1620, %v1172
        %v1622 = vmul.f32 %v1619, %v1176
        %1623 = vrot.lane.b32.xlu0 %v1587, 127
        %v1624 = vpop.permute.xlu0 %1623
        %1625 = vrot.lane.b32.xlu0 %v1588, 127
        %v1626 = vpop.permute.xlu0 %1625
        %v1627 = vsel %vm1183, %v1624, %v1626
        %v1628 = vsel %vm1183, %v1626, %v1624
        %v1629 = vmul.f32 %v1627, %v1189
        %v1630 = vmul.f32 %v1628, %v1193
        %1631 = vrot.lane.b32.xlu0 %v1587, 113
        %v1632 = vpop.permute.xlu0 %1631
        %1633 = vrot.lane.b32.xlu0 %v1588, 113
        %v1634 = vpop.permute.xlu0 %1633
        %v1635 = vsel %vm1200, %v1632, %v1634
        %v1636 = vsel %vm1200, %v1634, %v1632
        %v1637 = vmul.f32 %v1635, %v1206
        %v1638 = vmul.f32 %v1636, %v1210
        %1639 = vrot.lane.b32.xlu0 %v1587, 112
        %v1640 = vpop.permute.xlu0 %1639
        %1641 = vrot.lane.b32.xlu0 %v1588, 112
        %v1642 = vpop.permute.xlu0 %1641
        %v1643 = vsel %vm1217, %v1640, %v1642
        %v1644 = vsel %vm1217, %v1642, %v1640
        %v1645 = vmul.f32 %v1643, %v1223
        %v1646 = vmul.f32 %v1644, %v1227
        %1647 = vrot.lane.b32.xlu0 %v1587, 111
        %v1648 = vpop.permute.xlu0 %1647
        %1649 = vrot.lane.b32.xlu0 %v1588, 111
        %v1650 = vpop.permute.xlu0 %1649
        %v1651 = vsel %vm1234, %v1648, %v1650
        %v1652 = vsel %vm1234, %v1650, %v1648
        %v1653 = vmul.f32 %v1651, %v1240
        %v1654 = vmul.f32 %v1652, %v1244
        %v1657 = vrot.slane %v1605, 2
        %v1658 = vrot.slane %v1606, 2
        %v1663 = vrot.slane %v1613, 4
        %v1664 = vrot.slane %v1614, 4
        %v1669 = vrot.slane %v1621, 6
        %v1670 = vrot.slane %v1622, 6
        %v1675 = vrot.slane %v1629, 2
        %v1676 = vrot.slane %v1630, 2
        %v1681 = vrot.slane %v1637, 4
        %v1682 = vrot.slane %v1638, 4
        %v1687 = vrot.slane %v1645, 6
        %v1688 = vrot.slane %v1646, 6
        %v1691 = vsel %vm1289, %v1597, %v1657
        %v1692 = vsel %vm1289, %v1598, %v1658
        %v1693 = vsel %vm1286, %v1657, %v1663
        %v1694 = vsel %vm1286, %v1658, %v1664
        %v1695 = vsel %vm1283, %v1663, %v1669
        %v1696 = vsel %vm1283, %v1664, %v1670
        %v1697 = vsel %vm1289, %v1587, %v1675
        %v1698 = vsel %vm1289, %v1588, %v1676
        %v1699 = vsel %vm1286, %v1675, %v1681
        %v1700 = vsel %vm1286, %v1676, %v1682
        %v1701 = vsel %vm1283, %v1681, %v1687
        %v1702 = vsel %vm1283, %v1682, %v1688
        %1704 = vset.pattern.permute.xlu0 0
        %1705 = vperm.xlu0 %1704, %v1590
        %v1706 = vpop.permute.xlu0 %1705
        %v1709 = vsel %vm1506, %v1589, 0
        %v1712 = vsel %vm1289, %v1653, 0
        %v1715 = vsel %vm1289, %v1654, 0
        %1717 = vmatprep.subr.mxu0 %v1692
        %1718 = vmatpush1.msra.mxu0 %v1691
        %1719 = vmatprep.subr.mxu0 %v1694
        %1720 = vmatpush1.msra.mxu0 %v1693
        %1721 = vmatprep.subr.mxu0 %v1696
        %1722 = vmatpush1.msra.mxu0 %v1695
        %1723 = vmatprep.subr.mxu0 %v1698
        %1724 = vmatpush1.msra.mxu0 %v1697
        %1725 = vmatprep.subr.mxu0 %v1700
        %1726 = vmatpush1.msra.mxu0 %v1699
        %1727 = vmatprep.subr.mxu0 %v1702
        %1728 = vmatpush1.msra.mxu0 %v1701
        %1729 = vmatprep.subr.mxu0 %v1715
        %1730 = vmatpush1.msra.mxu0 %v1712
        %1731 = vmatprep.subr.mxu0 0.0
        %1732 = vmatpush1.msra.mxu0 0.0
        %1733 = vmatprep.subr.mxu0 0.0
        %1734 = vmatpush1.msra.mxu0 0.0
        %1735 = vmatprep.subr.mxu0 0.0
        %1736 = vmatpush1.msra.mxu0 0.0
        %1737 = vmatprep.subr.mxu0 0.0
        %1738 = vmatpush1.msra.mxu0 0.0
        %1739 = vmatprep.subr.mxu0 0.0
        %1740 = vmatpush1.msra.mxu0 0.0
        %1741 = vmatprep.subr.mxu0 0.0
        %1742 = vmatpush1.msra.mxu0 0.0
        %1743 = vmatprep.subr.mxu0 0.0
        %1744 = vmatpush1.msra.mxu0 0.0
        %1745 = vmatprep.subr.mxu0 0.0
        %1746 = vmatpush1.msra.mxu0 0.0
        %1747 = vmatprep.subr.mxu0 0.0
        %1748 = vmatpush1.msra.mxu0 0.0
        %1749 = vmatprep.subr.mxu0 0.0
        %1750 = vmatpush1.msra.mxu0 0.0
        %1751 = vmatprep.subr.mxu0 0.0
        %1752 = vmatpush1.msra.mxu0 0.0
        %1753 = vmatprep.subr.mxu0 0.0
        %1754 = vmatpush1.msra.mxu0 0.0
        %1755 = vmatprep.subr.mxu0 0.0
        %1756 = vmatpush1.msra.mxu0 0.0
        %1757 = vmatprep.subr.mxu0 0.0
        %1758 = vmatpush1.msra.mxu0 0.0
        %1759 = vmatprep.subr.mxu0 0.0
        %1760 = vmatpush1.msra.mxu0 0.0
        %1761 = vmatprep.subr.mxu0 0.0
        %1762 = vmatpush1.msra.mxu0 0.0
        %1763 = vmatprep.subr.mxu0 0.0
        %1764 = vmatpush1.msra.mxu0 0.0
        %1765 = vmatprep.subr.mxu0 0.0
        %1766 = vmatpush1.msra.mxu0 0.0
        %1767 = vmatprep.subr.mxu0 0.0
        %1768 = vmatpush1.msra.mxu0 0.0
        %1769 = vmatprep.subr.mxu0 0.0
        %1770 = vmatpush1.msra.mxu0 0.0
        %1771 = vmatprep.subr.mxu0 0.0
        %1772 = vmatpush1.msra.mxu0 0.0
        %1773 = vmatprep.subr.mxu0 0.0
        %1774 = vmatpush1.msra.mxu0 0.0
        %1775 = vmatprep.subr.mxu0 0.0
        %1776 = vmatpush1.msra.mxu0 0.0
        %1777 = vmatprep.subr.mxu0 0.0
        %1778 = vmatpush1.msra.mxu0 0.0
        %1779 = vmatprep.subr.mxu0 0.0
        %1780 = vmatpush1.msra.mxu0 0.0
        %1781 = vmatprep.mubr.f32.mxu0 0.0
        %1782 = vmatmul.mubr.f32.gmra.mrb[0].mxu0 %v1709
        %v1783 = vpop.f32.mrb[0].mxu0
        %v1784 = vadd.f32 %v1706, %v1783
        %v1785 = vpop.f32.mrb[0].mxu0
        %v1786 = vadd.f32 %v1706, %v1785
        %1787 = vdwg.mxu0
        %v1788 = vadd.f32 %v1385, %v1784
        %v1789 = vadd.f32 %v1386, %v1786
        %1790 = vmatprep.subr.mxu0 %v597
        %1791 = vmatpush1.msra.mxu0 %v596
        %1792 = vmatprep.subr.mxu0 %v601
        %1793 = vmatpush1.msra.mxu0 %v600
        %1794 = vmatprep.subr.mxu0 %v605
        %1795 = vmatpush1.msra.mxu0 %v604
        %1796 = vmatprep.subr.mxu0 %v609
        %1797 = vmatpush1.msra.mxu0 %v608
        %1798 = vmatprep.subr.mxu0 %v613
        %1799 = vmatpush1.msra.mxu0 %v612
        %1800 = vmatprep.subr.mxu0 %v617
        %1801 = vmatpush1.msra.mxu0 %v616
        %1802 = vmatprep.subr.mxu0 %v621
        %1803 = vmatpush1.msra.mxu0 %v620
        %1804 = vmatprep.subr.mxu0 %v625
        %1805 = vmatpush1.msra.mxu0 %v624
        %1806 = vmatprep.subr.mxu0 %v629
        %1807 = vmatpush1.msra.mxu0 %v628
        %1808 = vmatprep.subr.mxu0 %v633
        %1809 = vmatpush1.msra.mxu0 %v632
        %1810 = vmatprep.subr.mxu0 %v637
        %1811 = vmatpush1.msra.mxu0 %v636
        %1812 = vmatprep.subr.mxu0 %v641
        %1813 = vmatpush1.msra.mxu0 %v640
        %1814 = vmatprep.subr.mxu0 %v645
        %1815 = vmatpush1.msra.mxu0 %v644
        %1816 = vmatprep.subr.mxu0 %v649
        %1817 = vmatpush1.msra.mxu0 %v648
        %1818 = vmatprep.subr.mxu0 %v653
        %1819 = vmatpush1.msra.mxu0 %v652
        %1820 = vmatprep.subr.mxu0 %v657
        %1821 = vmatpush1.msra.mxu0 %v656
        %1822 = vmatprep.subr.mxu0 %v661
        %1823 = vmatpush1.msra.mxu0 %v660
        %1824 = vmatprep.subr.mxu0 %v665
        %1825 = vmatpush1.msra.mxu0 %v664
        %1826 = vmatprep.subr.mxu0 %v669
        %1827 = vmatpush1.msra.mxu0 %v668
        %1828 = vmatprep.subr.mxu0 %v673
        %1829 = vmatpush1.msra.mxu0 %v672
        %1830 = vmatprep.subr.mxu0 %v677
        %1831 = vmatpush1.msra.mxu0 %v676
        %1832 = vmatprep.subr.mxu0 %v681
        %1833 = vmatpush1.msra.mxu0 %v680
        %1834 = vmatprep.subr.mxu0 %v685
        %1835 = vmatpush1.msra.mxu0 %v684
        %1836 = vmatprep.subr.mxu0 %v689
        %1837 = vmatpush1.msra.mxu0 %v688
        %1838 = vmatprep.subr.mxu0 %v693
        %1839 = vmatpush1.msra.mxu0 %v692
        %1840 = vmatprep.subr.mxu0 %v697
        %1841 = vmatpush1.msra.mxu0 %v696
        %1842 = vmatprep.subr.mxu0 %v701
        %1843 = vmatpush1.msra.mxu0 %v700
        %1844 = vmatprep.subr.mxu0 %v705
        %1845 = vmatpush1.msra.mxu0 %v704
        %1846 = vmatprep.subr.mxu0 %v709
        %1847 = vmatpush1.msra.mxu0 %v708
        %1848 = vmatprep.subr.mxu0 %v713
        %1849 = vmatpush1.msra.mxu0 %v712
        %1850 = vmatprep.subr.mxu0 %v717
        %1851 = vmatpush1.msra.mxu0 %v716
        %1852 = vmatprep.subr.mxu0 %v721
        %1853 = vmatpush1.msra.mxu0 %v720
        %1854 = vmatprep.mubr.f32.mxu0 %v1789
        %1855 = vmatmul.mubr.f32.gmra.mrb[0].mxu0 %v1788
        %v1856 = vpop.f32.mrb[0].mxu0
        %v1857 = vadd.f32 0.0, %v1856
        %v1858 = vpop.f32.mrb[0].mxu0
        %v1859 = vadd.f32 0.0, %v1858
        %1860 = vdwg.mxu0
        %1861 = vmatprep.subr.mxu0 %v599
        %1862 = vmatpush1.msra.mxu0 %v598
        %1863 = vmatprep.subr.mxu0 %v603
        %1864 = vmatpush1.msra.mxu0 %v602
        %1865 = vmatprep.subr.mxu0 %v607
        %1866 = vmatpush1.msra.mxu0 %v606
        %1867 = vmatprep.subr.mxu0 %v611
        %1868 = vmatpush1.msra.mxu0 %v610
        %1869 = vmatprep.subr.mxu0 %v615
        %1870 = vmatpush1.msra.mxu0 %v614
        %1871 = vmatprep.subr.mxu0 %v619
        %1872 = vmatpush1.msra.mxu0 %v618
        %1873 = vmatprep.subr.mxu0 %v623
        %1874 = vmatpush1.msra.mxu0 %v622
        %1875 = vmatprep.subr.mxu0 %v627
        %1876 = vmatpush1.msra.mxu0 %v626
        %1877 = vmatprep.subr.mxu0 %v631
        %1878 = vmatpush1.msra.mxu0 %v630
        %1879 = vmatprep.subr.mxu0 %v635
        %1880 = vmatpush1.msra.mxu0 %v634
        %1881 = vmatprep.subr.mxu0 %v639
        %1882 = vmatpush1.msra.mxu0 %v638
        %1883 = vmatprep.subr.mxu0 %v643
        %1884 = vmatpush1.msra.mxu0 %v642
        %1885 = vmatprep.subr.mxu0 %v647
        %1886 = vmatpush1.msra.mxu0 %v646
        %1887 = vmatprep.subr.mxu0 %v651
        %1888 = vmatpush1.msra.mxu0 %v650
        %1889 = vmatprep.subr.mxu0 %v655
        %1890 = vmatpush1.msra.mxu0 %v654
        %1891 = vmatprep.subr.mxu0 %v659
        %1892 = vmatpush1.msra.mxu0 %v658
        %1893 = vmatprep.subr.mxu0 %v663
        %1894 = vmatpush1.msra.mxu0 %v662
        %1895 = vmatprep.subr.mxu0 %v667
        %1896 = vmatpush1.msra.mxu0 %v666
        %1897 = vmatprep.subr.mxu0 %v671
        %1898 = vmatpush1.msra.mxu0 %v670
        %1899 = vmatprep.subr.mxu0 %v675
        %1900 = vmatpush1.msra.mxu0 %v674
        %1901 = vmatprep.subr.mxu0 %v679
        %1902 = vmatpush1.msra.mxu0 %v678
        %1903 = vmatprep.subr.mxu0 %v683
        %1904 = vmatpush1.msra.mxu0 %v682
        %1905 = vmatprep.subr.mxu0 %v687
        %1906 = vmatpush1.msra.mxu0 %v686
        %1907 = vmatprep.subr.mxu0 %v691
        %1908 = vmatpush1.msra.mxu0 %v690
        %1909 = vmatprep.subr.mxu0 %v695
        %1910 = vmatpush1.msra.mxu0 %v694
        %1911 = vmatprep.subr.mxu0 %v699
        %1912 = vmatpush1.msra.mxu0 %v698
        %1913 = vmatprep.subr.mxu0 %v703
        %1914 = vmatpush1.msra.mxu0 %v702
        %1915 = vmatprep.subr.mxu0 %v707
        %1916 = vmatpush1.msra.mxu0 %v706
        %1917 = vmatprep.subr.mxu0 %v711
        %1918 = vmatpush1.msra.mxu0 %v710
        %1919 = vmatprep.subr.mxu0 %v715
        %1920 = vmatpush1.msra.mxu0 %v714
        %1921 = vmatprep.subr.mxu0 %v719
        %1922 = vmatpush1.msra.mxu0 %v718
        %1923 = vmatprep.subr.mxu0 %v723
        %1924 = vmatpush1.msra.mxu0 %v722
        %1925 = vmatprep.mubr.f32.mxu0 %v1789
        %1926 = vmatmul.mubr.f32.gmra.mrb[0].mxu0 %v1788
        %v1927 = vpop.f32.mrb[0].mxu0
        %v1928 = vadd.f32 0.0, %v1927
        %v1929 = vpop.f32.mrb[0].mxu0
        %v1930 = vadd.f32 0.0, %v1929
        %1931 = vdwg.mxu0
        %v1934 = vrot.slane %v1928, 1
        %v1935 = vrot.slane %v1930, 1
        %v1938 = vsub.f32 %v1857, %v1934
        %v1939 = vsub.f32 %v1859, %v1935
        %v1942 = vrot.slane %v1857, 1
        %v1943 = vrot.slane %v1859, 1
        %v1946 = vadd.f32 %v1928, %v1942
        %v1947 = vadd.f32 %v1930, %v1943
        %v1948 = vmul.f32 %v917, %v917
        %v1950 = vrot.slane %v1948, 7
        %v1951 = vrot.slane %v1950, 2
        %v1953 = vadd.f32 %v1948, %v1951
        %v1954 = vstv %s589
        %v1955 = vmul.f32 %v1954, %v1953
        %v1956 = vstv %s591
        %v1957 = vmul.f32 %v1956, %v917
        %v1960 = vcombine.low %v1938, %v1939
        %v1962 = vunpack.c.l.s4 1983009808
        %v1963 = vunpack.c.0.s8 %v1962
        %v1964 = vlaneseq
        %v1965 = vshrl.u32 %v1964, 7
        %v1966 = vsub.s32 %v1963, %v1965
        %v1967 = vrot.slane %v1960, %v1966
        %v1969 = vmul.f32 %v917, %v1967
        %v1972 = vcombine.low %v1946, %v1947
        %v1974 = vunpack.c.l.s4 1983009808
        %v1975 = vunpack.c.0.s8 %v1974
        %v1976 = vlaneseq
        %v1977 = vshrl.u32 %v1976, 7
        %v1978 = vsub.s32 %v1975, %v1977
        %v1979 = vrot.slane %v1972, %v1978
        %v1980 = vrot.slane %v1979, 7
        %v1982 = vmul.f32 %v917, %v1980
        %v1984 = vrot.slane %v1982, 7
        %v1985 = vrot.slane %v1984, 2
        %v1987 = vadd.f32 %v1969, %v1985
        %v1988 = vmul.f32 %v1987, 2.0
        %v1989 = vadd.f32 %v1955, %v1988
        %v1990 = vmul.f32 %v1938, %v1938
        %v1991 = vmul.f32 %v1939, %v1939
        %v1992 = vmul.f32 %v1946, %v1946
        %v1993 = vmul.f32 %v1947, %v1947
        %v1994 = vadd.f32 %v1990, %v1992
        %v1995 = vadd.f32 %v1991, %v1993
        %v1997 = vlaneseq
        %v1998 = vshrl.u32 %v1997, 7
        %v1999 = vsub.s32 0, %v1998
        %v2000 = vrot.slane %v1955, %v1999
        %v2001 = vlaneseq
        %v2002 = vshrl.u32 %v2001, 7
        %v2003 = vsub.s32 2, %v2002
        %v2004 = vrot.slane %v1955, %v2003
        %v2007 = vadd.f32 %v1994, %v2000
        %v2008 = vadd.f32 %v1995, %v2004
        %v2010 = vlaneseq
        %v2011 = vshrl.u32 %v2010, 7
        %v2012 = vsub.s32 0, %v2011
        %v2013 = vrot.slane %v1989, %v2012
        %v2014 = vlaneseq
        %v2015 = vshrl.u32 %v2014, 7
        %v2016 = vsub.s32 2, %v2015
        %v2017 = vrot.slane %v1989, %v2016
        %v2022 = vrot.slane %v2007, 7
        %v2023 = vrot.slane %v2008, 7
        %v2026 = vsel %vm939, %v2013, %v2022
        %v2027 = vsel %vm939, %v2017, %v2023
        %2028 = vmatprep.subr.mxu0 %v854
        %2029 = vmatpush1.msra.mxu0 %v853
        %2030 = vmatprep.subr.mxu0 %v856
        %2031 = vmatpush1.msra.mxu0 %v855
        %2032 = vmatprep.subr.mxu0 %v858
        %2033 = vmatpush1.msra.mxu0 %v857
        %2034 = vmatprep.subr.mxu0 %v860
        %2035 = vmatpush1.msra.mxu0 %v859
        %2036 = vmatprep.subr.mxu0 %v862
        %2037 = vmatpush1.msra.mxu0 %v861
        %2038 = vmatprep.subr.mxu0 %v864
        %2039 = vmatpush1.msra.mxu0 %v863
        %2040 = vmatprep.subr.mxu0 %v866
        %2041 = vmatpush1.msra.mxu0 %v865
        %2042 = vmatprep.subr.mxu0 %v868
        %2043 = vmatpush1.msra.mxu0 %v867
        %2044 = vmatprep.subr.mxu0 %v870
        %2045 = vmatpush1.msra.mxu0 %v869
        %2046 = vmatprep.subr.mxu0 %v872
        %2047 = vmatpush1.msra.mxu0 %v871
        %2048 = vmatprep.subr.mxu0 %v874
        %2049 = vmatpush1.msra.mxu0 %v873
        %2050 = vmatprep.subr.mxu0 %v876
        %2051 = vmatpush1.msra.mxu0 %v875
        %2052 = vmatprep.subr.mxu0 %v878
        %2053 = vmatpush1.msra.mxu0 %v877
        %2054 = vmatprep.subr.mxu0 %v880
        %2055 = vmatpush1.msra.mxu0 %v879
        %2056 = vmatprep.subr.mxu0 %v882
        %2057 = vmatpush1.msra.mxu0 %v881
        %2058 = vmatprep.subr.mxu0 %v884
        %2059 = vmatpush1.msra.mxu0 %v883
        %2060 = vmatprep.subr.mxu0 %v886
        %2061 = vmatpush1.msra.mxu0 %v885
        %2062 = vmatprep.subr.mxu0 %v888
        %2063 = vmatpush1.msra.mxu0 %v887
        %2064 = vmatprep.subr.mxu0 %v890
        %2065 = vmatpush1.msra.mxu0 %v889
        %2066 = vmatprep.subr.mxu0 %v892
        %2067 = vmatpush1.msra.mxu0 %v891
        %2068 = vmatprep.subr.mxu0 %v894
        %2069 = vmatpush1.msra.mxu0 %v893
        %2070 = vmatprep.subr.mxu0 %v896
        %2071 = vmatpush1.msra.mxu0 %v895
        %2072 = vmatprep.subr.mxu0 %v898
        %2073 = vmatpush1.msra.mxu0 %v897
        %2074 = vmatprep.subr.mxu0 %v900
        %2075 = vmatpush1.msra.mxu0 %v899
        %2076 = vmatprep.subr.mxu0 %v902
        %2077 = vmatpush1.msra.mxu0 %v901
        %2078 = vmatprep.subr.mxu0 %v904
        %2079 = vmatpush1.msra.mxu0 %v903
        %2080 = vmatprep.subr.mxu0 %v906
        %2081 = vmatpush1.msra.mxu0 %v905
        %2082 = vmatprep.subr.mxu0 %v908
        %2083 = vmatpush1.msra.mxu0 %v907
        %2084 = vmatprep.subr.mxu0 %v910
        %2085 = vmatpush1.msra.mxu0 %v909
        %2086 = vmatprep.subr.mxu0 %v912
        %2087 = vmatpush1.msra.mxu0 %v911
        %2088 = vmatprep.subr.mxu0 %v914
        %2089 = vmatpush1.msra.mxu0 %v913
        %2090 = vmatprep.subr.mxu0 %v916
        %2091 = vmatpush1.msra.mxu0 %v915
        %2092 = vmatprep.mubr.f32.mxu0 %v2027
        %2093 = vmatmul.mubr.f32.gmra.mrb[0].mxu0 %v2026
        %v2094 = vpop.f32.mrb[0].mxu0
        %v2095 = vadd.f32 0.0, %v2094
        %v2096 = vpop.f32.mrb[0].mxu0
        %v2097 = vadd.f32 0.0, %v2096
        %2098 = vdwg.mxu0
        %v2099 = vstv %s590
        %v2100 = vadd.f32 %v2095, %v2099
        %v2101 = vadd.f32 %v2097, %v2099
        %v2104 = vrot.slane %v2100, 1
        %v2105 = vrot.slane %v2101, 1
        %v2108 = vrcp.pop %v2104
        %v2109 = vmul.f32 %v2100, %v2108
        %v2110 = vrcp.pop %v2105
        %v2111 = vmul.f32 %v2101, %v2110
        %v2112 = vld [vmem:[%s6] sm:$0xf]
        %2113 = vrot.lane.b32.xlu0 %v2109, 17
        %v2114 = vpop.permute.xlu0 %2113
        %2115 = vrot.lane.b32.xlu0 %v2111, 17
        %v2116 = vpop.permute.xlu0 %2115
        %v2117 = vsel %vm1115, %v2114, %v2116
        %v2118 = vsel %vm1115, %v2116, %v2114
        %v2119 = vmul.f32 %v2118, %v592
        %v2120 = vmul.f32 %v2117, %v593
        %2121 = vrot.lane.b32.xlu0 %v2109, 16
        %v2122 = vpop.permute.xlu0 %2121
        %2123 = vrot.lane.b32.xlu0 %v2111, 16
        %v2124 = vpop.permute.xlu0 %2123
        %v2125 = vsel %vm1132, %v2122, %v2124
        %v2126 = vsel %vm1132, %v2124, %v2122
        %v2129 = vrot.slane %v592, 1
        %v2130 = vrot.slane %v593, 1
        %v2133 = vmul.f32 %v2126, %v2129
        %v2134 = vmul.f32 %v2125, %v2130
        %2135 = vrot.lane.b32.xlu0 %v2109, 15
        %v2136 = vpop.permute.xlu0 %2135
        %2137 = vrot.lane.b32.xlu0 %v2111, 15
        %v2138 = vpop.permute.xlu0 %2137
        %v2139 = vsel %vm1149, %v2136, %v2138
        %v2140 = vsel %vm1149, %v2138, %v2136
        %v2141 = vrot.slane %v592, 2
        %v2142 = vrot.slane %v593, 2
        %v2145 = vmul.f32 %v2140, %v2141
        %v2146 = vmul.f32 %v2139, %v2142
        %2147 = vrot.lane.b32.xlu0 %v2109, 1
        %v2148 = vpop.permute.xlu0 %2147
        %2149 = vrot.lane.b32.xlu0 %v2111, 1
        %v2150 = vpop.permute.xlu0 %2149
        %v2151 = vsel %vm1166, %v2148, %v2150
        %v2152 = vsel %vm1166, %v2150, %v2148
        %v2153 = vrot.slane %v592, 3
        %v2154 = vrot.slane %v593, 3
        %v2157 = vmul.f32 %v2152, %v2153
        %v2158 = vmul.f32 %v2151, %v2154
        %2159 = vrot.lane.b32.xlu0 %v2109, 127
        %v2160 = vpop.permute.xlu0 %2159
        %2161 = vrot.lane.b32.xlu0 %v2111, 127
        %v2162 = vpop.permute.xlu0 %2161
        %v2163 = vsel %vm1183, %v2160, %v2162
        %v2164 = vsel %vm1183, %v2162, %v2160
        %v2165 = vrot.slane %v592, 5
        %v2166 = vrot.slane %v593, 5
        %v2169 = vmul.f32 %v2163, %v2165
        %v2170 = vmul.f32 %v2164, %v2166
        %2171 = vrot.lane.b32.xlu0 %v2109, 113
        %v2172 = vpop.permute.xlu0 %2171
        %2173 = vrot.lane.b32.xlu0 %v2111, 113
        %v2174 = vpop.permute.xlu0 %2173
        %v2175 = vsel %vm1200, %v2172, %v2174
        %v2176 = vsel %vm1200, %v2174, %v2172
        %v2177 = vrot.slane %v592, 6
        %v2178 = vrot.slane %v593, 6
        %v2181 = vmul.f32 %v2175, %v2177
        %v2182 = vmul.f32 %v2176, %v2178
        %2183 = vrot.lane.b32.xlu0 %v2109, 112
        %v2184 = vpop.permute.xlu0 %2183
        %2185 = vrot.lane.b32.xlu0 %v2111, 112
        %v2186 = vpop.permute.xlu0 %2185
        %v2187 = vsel %vm1217, %v2184, %v2186
        %v2188 = vsel %vm1217, %v2186, %v2184
        %v2189 = vrot.slane %v592, 7
        %v2190 = vrot.slane %v593, 7
        %v2193 = vmul.f32 %v2187, %v2189
        %v2194 = vmul.f32 %v2188, %v2190
        %2195 = vrot.lane.b32.xlu0 %v2109, 111
        %v2196 = vpop.permute.xlu0 %2195
        %2197 = vrot.lane.b32.xlu0 %v2111, 111
        %v2198 = vpop.permute.xlu0 %2197
        %v2199 = vsel %vm1234, %v2196, %v2198
        %v2200 = vsel %vm1234, %v2198, %v2196
        %v2201 = vmul.f32 %v2199, %v594
        %v2202 = vmul.f32 %v2200, %v595
        %v2205 = vrot.slane %v2133, 7
        %v2206 = vrot.slane %v2134, 7
        %v2211 = vrot.slane %v2145, 6
        %v2212 = vrot.slane %v2146, 6
        %v2217 = vrot.slane %v2157, 5
        %v2218 = vrot.slane %v2158, 5
        %v2223 = vrot.slane %v2109, 4
        %v2224 = vrot.slane %v2111, 4
        %v2229 = vrot.slane %v2169, 3
        %v2230 = vrot.slane %v2170, 3
        %v2235 = vrot.slane %v2181, 2
        %v2236 = vrot.slane %v2182, 2
        %v2241 = vrot.slane %v2193, 1
        %v2242 = vrot.slane %v2194, 1
        %v2245 = vsel %vm939, %v2119, %v2205
        %v2246 = vsel %vm939, %v2120, %v2206
        %v2247 = vsel %vm1283, %v2245, %v2211
        %v2248 = vsel %vm1283, %v2246, %v2212
        %vm2249 = vcmask 1042432
        %v2250 = vsel %vm2249, %v2247, %v2217
        %v2251 = vsel %vm2249, %v2248, %v2218
        %v2252 = vsel %vm1286, %v2250, %v2223
        %v2253 = vsel %vm1286, %v2251, %v2224
        %vm2254 = vcmask 1044480
        %v2255 = vsel %vm2254, %v2252, %v2229
        %v2256 = vsel %vm2254, %v2253, %v2230
        %v2257 = vsel %vm1289, %v2255, %v2235
        %v2258 = vsel %vm1289, %v2256, %v2236
        %vm2259 = vcmask 1046528
        %v2260 = vsel %vm2259, %v2257, %v2241
        %v2261 = vsel %vm2259, %v2258, %v2242
        %vm2262 = vcmask 72704
        %v2264 = vsel %vm2262, %v2112, 0
        %v2267 = vsel %vm939, %v2201, 0
        %v2270 = vsel %vm939, %v2202, 0
        %2272 = vmatprep.subr.mxu0 %v2261
        %2273 = vmatpush1.msra.mxu0 %v2260
        %2274 = vmatprep.subr.mxu0 %v2270
        %2275 = vmatpush1.msra.mxu0 %v2267
        %2276 = vmatprep.subr.mxu0 0.0
        %2277 = vmatpush1.msra.mxu0 0.0
        %2278 = vmatprep.subr.mxu0 0.0
        %2279 = vmatpush1.msra.mxu0 0.0
        %2280 = vmatprep.subr.mxu0 0.0
        %2281 = vmatpush1.msra.mxu0 0.0
        %2282 = vmatprep.subr.mxu0 0.0
        %2283 = vmatpush1.msra.mxu0 0.0
        %2284 = vmatprep.subr.mxu0 0.0
        %2285 = vmatpush1.msra.mxu0 0.0
        %2286 = vmatprep.subr.mxu0 0.0
        %2287 = vmatpush1.msra.mxu0 0.0
        %2288 = vmatprep.subr.mxu0 0.0
        %2289 = vmatpush1.msra.mxu0 0.0
        %2290 = vmatprep.subr.mxu0 0.0
        %2291 = vmatpush1.msra.mxu0 0.0
        %2292 = vmatprep.subr.mxu0 0.0
        %2293 = vmatpush1.msra.mxu0 0.0
        %2294 = vmatprep.subr.mxu0 0.0
        %2295 = vmatpush1.msra.mxu0 0.0
        %2296 = vmatprep.subr.mxu0 0.0
        %2297 = vmatpush1.msra.mxu0 0.0
        %2298 = vmatprep.subr.mxu0 0.0
        %2299 = vmatpush1.msra.mxu0 0.0
        %2300 = vmatprep.subr.mxu0 0.0
        %2301 = vmatpush1.msra.mxu0 0.0
        %2302 = vmatprep.subr.mxu0 0.0
        %2303 = vmatpush1.msra.mxu0 0.0
        %2304 = vmatprep.subr.mxu0 0.0
        %2305 = vmatpush1.msra.mxu0 0.0
        %2306 = vmatprep.subr.mxu0 0.0
        %2307 = vmatpush1.msra.mxu0 0.0
        %2308 = vmatprep.subr.mxu0 0.0
        %2309 = vmatpush1.msra.mxu0 0.0
        %2310 = vmatprep.subr.mxu0 0.0
        %2311 = vmatpush1.msra.mxu0 0.0
        %2312 = vmatprep.subr.mxu0 0.0
        %2313 = vmatpush1.msra.mxu0 0.0
        %2314 = vmatprep.subr.mxu0 0.0
        %2315 = vmatpush1.msra.mxu0 0.0
        %2316 = vmatprep.subr.mxu0 0.0
        %2317 = vmatpush1.msra.mxu0 0.0
        %2318 = vmatprep.subr.mxu0 0.0
        %2319 = vmatpush1.msra.mxu0 0.0
        %2320 = vmatprep.subr.mxu0 0.0
        %2321 = vmatpush1.msra.mxu0 0.0
        %2322 = vmatprep.subr.mxu0 0.0
        %2323 = vmatpush1.msra.mxu0 0.0
        %2324 = vmatprep.subr.mxu0 0.0
        %2325 = vmatpush1.msra.mxu0 0.0
        %2326 = vmatprep.subr.mxu0 0.0
        %2327 = vmatpush1.msra.mxu0 0.0
        %2328 = vmatprep.subr.mxu0 0.0
        %2329 = vmatpush1.msra.mxu0 0.0
        %2330 = vmatprep.subr.mxu0 0.0
        %2331 = vmatpush1.msra.mxu0 0.0
        %2332 = vmatprep.subr.mxu0 0.0
        %2333 = vmatpush1.msra.mxu0 0.0
        %2334 = vmatprep.subr.mxu0 0.0
        %2335 = vmatpush1.msra.mxu0 0.0
        %2336 = vmatprep.mubr.f32.mxu0 0.0
        %2337 = vmatmul.mubr.f32.gmra.mrb[0].mxu0 %v2264
        %v2338 = vpop.f32.mrb[0].mxu0
        %v2339 = vadd.f32 0.0, %v2338
        %v2340 = vpop.f32.mrb[0].mxu0
        %v2341 = vadd.f32 0.0, %v2340
        %2342 = vdwg.mxu0
        %v2345 = vrot.slane %v2339, 7
        %v2346 = vrot.slane %v2341, 7
        %v2349 = vsel %vm939, %v2109, %v2345
        %v2350 = vsel %vm939, %v2111, %v2346
        %v2351 = vld [vmem:[%s11] sm:$0x1f]
        %v2352 = vld [vmem:[%s12] sm:$0x1f]
        %2353 = vrot.lane.b32.xlu0 %v2349, 17
        %v2354 = vpop.permute.xlu0 %2353
        %2355 = vrot.lane.b32.xlu0 %v2350, 17
        %v2356 = vpop.permute.xlu0 %2355
        %v2357 = vsel %vm1115, %v2354, %v2356
        %v2358 = vsel %vm1115, %v2356, %v2354
        %v2359 = vmul.f32 %v2358, %v1121
        %v2360 = vmul.f32 %v2357, %v1125
        %2361 = vrot.lane.b32.xlu0 %v2349, 16
        %v2362 = vpop.permute.xlu0 %2361
        %2363 = vrot.lane.b32.xlu0 %v2350, 16
        %v2364 = vpop.permute.xlu0 %2363
        %v2365 = vsel %vm1132, %v2362, %v2364
        %v2366 = vsel %vm1132, %v2364, %v2362
        %v2367 = vmul.f32 %v2366, %v1138
        %v2368 = vmul.f32 %v2365, %v1142
        %2369 = vrot.lane.b32.xlu0 %v2349, 15
        %v2370 = vpop.permute.xlu0 %2369
        %2371 = vrot.lane.b32.xlu0 %v2350, 15
        %v2372 = vpop.permute.xlu0 %2371
        %v2373 = vsel %vm1149, %v2370, %v2372
        %v2374 = vsel %vm1149, %v2372, %v2370
        %v2375 = vmul.f32 %v2374, %v1155
        %v2376 = vmul.f32 %v2373, %v1159
        %2377 = vrot.lane.b32.xlu0 %v2349, 1
        %v2378 = vpop.permute.xlu0 %2377
        %2379 = vrot.lane.b32.xlu0 %v2350, 1
        %v2380 = vpop.permute.xlu0 %2379
        %v2381 = vsel %vm1166, %v2378, %v2380
        %v2382 = vsel %vm1166, %v2380, %v2378
        %v2383 = vmul.f32 %v2382, %v1172
        %v2384 = vmul.f32 %v2381, %v1176
        %2385 = vrot.lane.b32.xlu0 %v2349, 127
        %v2386 = vpop.permute.xlu0 %2385
        %2387 = vrot.lane.b32.xlu0 %v2350, 127
        %v2388 = vpop.permute.xlu0 %2387
        %v2389 = vsel %vm1183, %v2386, %v2388
        %v2390 = vsel %vm1183, %v2388, %v2386
        %v2391 = vmul.f32 %v2389, %v1189
        %v2392 = vmul.f32 %v2390, %v1193
        %2393 = vrot.lane.b32.xlu0 %v2349, 113
        %v2394 = vpop.permute.xlu0 %2393
        %2395 = vrot.lane.b32.xlu0 %v2350, 113
        %v2396 = vpop.permute.xlu0 %2395
        %v2397 = vsel %vm1200, %v2394, %v2396
        %v2398 = vsel %vm1200, %v2396, %v2394
        %v2399 = vmul.f32 %v2397, %v1206
        %v2400 = vmul.f32 %v2398, %v1210
        %2401 = vrot.lane.b32.xlu0 %v2349, 112
        %v2402 = vpop.permute.xlu0 %2401
        %2403 = vrot.lane.b32.xlu0 %v2350, 112
        %v2404 = vpop.permute.xlu0 %2403
        %v2405 = vsel %vm1217, %v2402, %v2404
        %v2406 = vsel %vm1217, %v2404, %v2402
        %v2407 = vmul.f32 %v2405, %v1223
        %v2408 = vmul.f32 %v2406, %v1227
        %2409 = vrot.lane.b32.xlu0 %v2349, 111
        %v2410 = vpop.permute.xlu0 %2409
        %2411 = vrot.lane.b32.xlu0 %v2350, 111
        %v2412 = vpop.permute.xlu0 %2411
        %v2413 = vsel %vm1234, %v2410, %v2412
        %v2414 = vsel %vm1234, %v2412, %v2410
        %v2415 = vmul.f32 %v2413, %v1240
        %v2416 = vmul.f32 %v2414, %v1244
        %v2419 = vrot.slane %v2367, 3
        %v2420 = vrot.slane %v2368, 3
        %v2425 = vrot.slane %v2375, 6
        %v2426 = vrot.slane %v2376, 6
        %v2431 = vrot.slane %v2383, 1
        %v2432 = vrot.slane %v2384, 1
        %v2437 = vrot.slane %v2349, 4
        %v2438 = vrot.slane %v2350, 4
        %v2443 = vrot.slane %v2391, 7
        %v2444 = vrot.slane %v2392, 7
        %v2449 = vrot.slane %v2399, 2
        %v2450 = vrot.slane %v2400, 2
        %v2455 = vrot.slane %v2407, 5
        %v2456 = vrot.slane %v2408, 5
        %v2459 = vsel %vm2254, %v2359, %v2419
        %v2460 = vsel %vm2254, %v2360, %v2420
        %v2461 = vsel %vm1283, %v2419, %v2425
        %v2462 = vsel %vm1283, %v2420, %v2426
        %v2463 = vsel %vm2259, %v2461, %v2431
        %v2464 = vsel %vm2259, %v2462, %v2432
        %v2465 = vsel %vm1286, %v2431, %v2437
        %v2466 = vsel %vm1286, %v2432, %v2438
        %v2467 = vsel %vm939, %v2437, %v2443
        %v2468 = vsel %vm939, %v2438, %v2444
        %v2469 = vsel %vm1289, %v2467, %v2449
        %v2470 = vsel %vm1289, %v2468, %v2450
        %v2471 = vsel %vm2249, %v2449, %v2455
        %v2472 = vsel %vm2249, %v2450, %v2456
        %2474 = vset.pattern.permute.xlu0 0
        %2475 = vperm.xlu0 %2474, %v2352
        %v2476 = vpop.permute.xlu0 %2475
        %vm2478 = vcmask 367616
        %v2480 = vsel %vm2478, %v2351, 0
        %v2483 = vsel %vm2254, %v2415, 0
        %v2486 = vsel %vm2254, %v2416, 0
        %2488 = vmatprep.subr.mxu0 %v2460
        %2489 = vmatpush1.msra.mxu0 %v2459
        %2490 = vmatprep.subr.mxu0 %v2464
        %2491 = vmatpush1.msra.mxu0 %v2463
        %2492 = vmatprep.subr.mxu0 %v2466
        %2493 = vmatpush1.msra.mxu0 %v2465
        %2494 = vmatprep.subr.mxu0 %v2470
        %2495 = vmatpush1.msra.mxu0 %v2469
        %2496 = vmatprep.subr.mxu0 %v2472
        %2497 = vmatpush1.msra.mxu0 %v2471
        %2498 = vmatprep.subr.mxu0 %v2486
        %2499 = vmatpush1.msra.mxu0 %v2483
        %2500 = vmatprep.subr.mxu0 0.0
        %2501 = vmatpush1.msra.mxu0 0.0
        %2502 = vmatprep.subr.mxu0 0.0
        %2503 = vmatpush1.msra.mxu0 0.0
        %2504 = vmatprep.subr.mxu0 0.0
        %2505 = vmatpush1.msra.mxu0 0.0
        %2506 = vmatprep.subr.mxu0 0.0
        %2507 = vmatpush1.msra.mxu0 0.0
        %2508 = vmatprep.subr.mxu0 0.0
        %2509 = vmatpush1.msra.mxu0 0.0
        %2510 = vmatprep.subr.mxu0 0.0
        %2511 = vmatpush1.msra.mxu0 0.0
        %2512 = vmatprep.subr.mxu0 0.0
        %2513 = vmatpush1.msra.mxu0 0.0
        %2514 = vmatprep.subr.mxu0 0.0
        %2515 = vmatpush1.msra.mxu0 0.0
        %2516 = vmatprep.subr.mxu0 0.0
        %2517 = vmatpush1.msra.mxu0 0.0
        %2518 = vmatprep.subr.mxu0 0.0
        %2519 = vmatpush1.msra.mxu0 0.0
        %2520 = vmatprep.subr.mxu0 0.0
        %2521 = vmatpush1.msra.mxu0 0.0
        %2522 = vmatprep.subr.mxu0 0.0
        %2523 = vmatpush1.msra.mxu0 0.0
        %2524 = vmatprep.subr.mxu0 0.0
        %2525 = vmatpush1.msra.mxu0 0.0
        %2526 = vmatprep.subr.mxu0 0.0
        %2527 = vmatpush1.msra.mxu0 0.0
        %2528 = vmatprep.subr.mxu0 0.0
        %2529 = vmatpush1.msra.mxu0 0.0
        %2530 = vmatprep.subr.mxu0 0.0
        %2531 = vmatpush1.msra.mxu0 0.0
        %2532 = vmatprep.subr.mxu0 0.0
        %2533 = vmatpush1.msra.mxu0 0.0
        %2534 = vmatprep.subr.mxu0 0.0
        %2535 = vmatpush1.msra.mxu0 0.0
        %2536 = vmatprep.subr.mxu0 0.0
        %2537 = vmatpush1.msra.mxu0 0.0
        %2538 = vmatprep.subr.mxu0 0.0
        %2539 = vmatpush1.msra.mxu0 0.0
        %2540 = vmatprep.subr.mxu0 0.0
        %2541 = vmatpush1.msra.mxu0 0.0
        %2542 = vmatprep.subr.mxu0 0.0
        %2543 = vmatpush1.msra.mxu0 0.0
        %2544 = vmatprep.subr.mxu0 0.0
        %2545 = vmatpush1.msra.mxu0 0.0
        %2546 = vmatprep.subr.mxu0 0.0
        %2547 = vmatpush1.msra.mxu0 0.0
        %2548 = vmatprep.subr.mxu0 0.0
        %2549 = vmatpush1.msra.mxu0 0.0
        %2550 = vmatprep.subr.mxu0 0.0
        %2551 = vmatpush1.msra.mxu0 0.0
        %2552 = vmatprep.mubr.f32.mxu0 0.0
        %2553 = vmatmul.mubr.f32.gmra.mrb[0].mxu0 %v2480
        %v2554 = vpop.f32.mrb[0].mxu0
        %v2555 = vadd.f32 %v2476, %v2554
        %v2556 = vpop.f32.mrb[0].mxu0
        %v2557 = vadd.f32 %v2476, %v2556
        %2558 = vdwg.mxu0
        %v2559 = vmax.f32 %v2555, 0.0
        %v2560 = vmax.f32 %v2557, 0.0
        %v2561 = vld [vmem:[%s13] sm:$0x1f]
        %v2562 = vld [vmem:[%s14] sm:$0x1f]
        %2563 = vrot.lane.b32.xlu0 %v2559, 17
        %v2564 = vpop.permute.xlu0 %2563
        %2565 = vrot.lane.b32.xlu0 %v2560, 17
        %v2566 = vpop.permute.xlu0 %2565
        %v2567 = vsel %vm1115, %v2564, %v2566
        %v2568 = vsel %vm1115, %v2566, %v2564
        %v2569 = vmul.f32 %v2568, %v1121
        %v2570 = vmul.f32 %v2567, %v1125
        %2571 = vrot.lane.b32.xlu0 %v2559, 16
        %v2572 = vpop.permute.xlu0 %2571
        %2573 = vrot.lane.b32.xlu0 %v2560, 16
        %v2574 = vpop.permute.xlu0 %2573
        %v2575 = vsel %vm1132, %v2572, %v2574
        %v2576 = vsel %vm1132, %v2574, %v2572
        %v2577 = vmul.f32 %v2576, %v1138
        %v2578 = vmul.f32 %v2575, %v1142
        %2579 = vrot.lane.b32.xlu0 %v2559, 15
        %v2580 = vpop.permute.xlu0 %2579
        %2581 = vrot.lane.b32.xlu0 %v2560, 15
        %v2582 = vpop.permute.xlu0 %2581
        %v2583 = vsel %vm1149, %v2580, %v2582
        %v2584 = vsel %vm1149, %v2582, %v2580
        %v2585 = vmul.f32 %v2584, %v1155
        %v2586 = vmul.f32 %v2583, %v1159
        %2587 = vrot.lane.b32.xlu0 %v2559, 1
        %v2588 = vpop.permute.xlu0 %2587
        %2589 = vrot.lane.b32.xlu0 %v2560, 1
        %v2590 = vpop.permute.xlu0 %2589
        %v2591 = vsel %vm1166, %v2588, %v2590
        %v2592 = vsel %vm1166, %v2590, %v2588
        %v2593 = vmul.f32 %v2592, %v1172
        %v2594 = vmul.f32 %v2591, %v1176
        %2595 = vrot.lane.b32.xlu0 %v2559, 127
        %v2596 = vpop.permute.xlu0 %2595
        %2597 = vrot.lane.b32.xlu0 %v2560, 127
        %v2598 = vpop.permute.xlu0 %2597
        %v2599 = vsel %vm1183, %v2596, %v2598
        %v2600 = vsel %vm1183, %v2598, %v2596
        %v2601 = vmul.f32 %v2599, %v1189
        %v2602 = vmul.f32 %v2600, %v1193
        %2603 = vrot.lane.b32.xlu0 %v2559, 113
        %v2604 = vpop.permute.xlu0 %2603
        %2605 = vrot.lane.b32.xlu0 %v2560, 113
        %v2606 = vpop.permute.xlu0 %2605
        %v2607 = vsel %vm1200, %v2604, %v2606
        %v2608 = vsel %vm1200, %v2606, %v2604
        %v2609 = vmul.f32 %v2607, %v1206
        %v2610 = vmul.f32 %v2608, %v1210
        %2611 = vrot.lane.b32.xlu0 %v2559, 112
        %v2612 = vpop.permute.xlu0 %2611
        %2613 = vrot.lane.b32.xlu0 %v2560, 112
        %v2614 = vpop.permute.xlu0 %2613
        %v2615 = vsel %vm1217, %v2612, %v2614
        %v2616 = vsel %vm1217, %v2614, %v2612
        %v2617 = vmul.f32 %v2615, %v1223
        %v2618 = vmul.f32 %v2616, %v1227
        %2619 = vrot.lane.b32.xlu0 %v2559, 111
        %v2620 = vpop.permute.xlu0 %2619
        %2621 = vrot.lane.b32.xlu0 %v2560, 111
        %v2622 = vpop.permute.xlu0 %2621
        %v2623 = vsel %vm1234, %v2620, %v2622
        %v2624 = vsel %vm1234, %v2622, %v2620
        %v2625 = vmul.f32 %v2623, %v1240
        %v2626 = vmul.f32 %v2624, %v1244
        %v2629 = vrot.slane %v2577, 3
        %v2630 = vrot.slane %v2578, 3
        %v2635 = vrot.slane %v2585, 6
        %v2636 = vrot.slane %v2586, 6
        %v2641 = vrot.slane %v2593, 1
        %v2642 = vrot.slane %v2594, 1
        %v2647 = vrot.slane %v2559, 4
        %v2648 = vrot.slane %v2560, 4
        %v2653 = vrot.slane %v2601, 7
        %v2654 = vrot.slane %v2602, 7
        %v2659 = vrot.slane %v2609, 2
        %v2660 = vrot.slane %v2610, 2
        %v2665 = vrot.slane %v2617, 5
        %v2666 = vrot.slane %v2618, 5
        %v2669 = vsel %vm2254, %v2569, %v2629
        %v2670 = vsel %vm2254, %v2570, %v2630
        %v2671 = vsel %vm1283, %v2629, %v2635
        %v2672 = vsel %vm1283, %v2630, %v2636
        %v2673 = vsel %vm2259, %v2671, %v2641
        %v2674 = vsel %vm2259, %v2672, %v2642
        %v2675 = vsel %vm1286, %v2641, %v2647
        %v2676 = vsel %vm1286, %v2642, %v2648
        %v2677 = vsel %vm939, %v2647, %v2653
        %v2678 = vsel %vm939, %v2648, %v2654
        %v2679 = vsel %vm1289, %v2677, %v2659
        %v2680 = vsel %vm1289, %v2678, %v2660
        %v2681 = vsel %vm2249, %v2659, %v2665
        %v2682 = vsel %vm2249, %v2660, %v2666
        %2684 = vset.pattern.permute.xlu0 0
        %2685 = vperm.xlu0 %2684, %v2562
        %v2686 = vpop.permute.xlu0 %2685
        %v2689 = vsel %vm2478, %v2561, 0
        %v2692 = vsel %vm2254, %v2625, 0
        %v2695 = vsel %vm2254, %v2626, 0
        %2697 = vmatprep.subr.mxu0 %v2670
        %2698 = vmatpush1.msra.mxu0 %v2669
        %2699 = vmatprep.subr.mxu0 %v2674
        %2700 = vmatpush1.msra.mxu0 %v2673
        %2701 = vmatprep.subr.mxu0 %v2676
        %2702 = vmatpush1.msra.mxu0 %v2675
        %2703 = vmatprep.subr.mxu0 %v2680
        %2704 = vmatpush1.msra.mxu0 %v2679
        %2705 = vmatprep.subr.mxu0 %v2682
        %2706 = vmatpush1.msra.mxu0 %v2681
        %2707 = vmatprep.subr.mxu0 %v2695
        %2708 = vmatpush1.msra.mxu0 %v2692
        %2709 = vmatprep.subr.mxu0 0.0
        %2710 = vmatpush1.msra.mxu0 0.0
        %2711 = vmatprep.subr.mxu0 0.0
        %2712 = vmatpush1.msra.mxu0 0.0
        %2713 = vmatprep.subr.mxu0 0.0
        %2714 = vmatpush1.msra.mxu0 0.0
        %2715 = vmatprep.subr.mxu0 0.0
        %2716 = vmatpush1.msra.mxu0 0.0
        %2717 = vmatprep.subr.mxu0 0.0
        %2718 = vmatpush1.msra.mxu0 0.0
        %2719 = vmatprep.subr.mxu0 0.0
        %2720 = vmatpush1.msra.mxu0 0.0
        %2721 = vmatprep.subr.mxu0 0.0
        %2722 = vmatpush1.msra.mxu0 0.0
        %2723 = vmatprep.subr.mxu0 0.0
        %2724 = vmatpush1.msra.mxu0 0.0
        %2725 = vmatprep.subr.mxu0 0.0
        %2726 = vmatpush1.msra.mxu0 0.0
        %2727 = vmatprep.subr.mxu0 0.0
        %2728 = vmatpush1.msra.mxu0 0.0
        %2729 = vmatprep.subr.mxu0 0.0
        %2730 = vmatpush1.msra.mxu0 0.0
        %2731 = vmatprep.subr.mxu0 0.0
        %2732 = vmatpush1.msra.mxu0 0.0
        %2733 = vmatprep.subr.mxu0 0.0
        %2734 = vmatpush1.msra.mxu0 0.0
        %2735 = vmatprep.subr.mxu0 0.0
        %2736 = vmatpush1.msra.mxu0 0.0
        %2737 = vmatprep.subr.mxu0 0.0
        %2738 = vmatpush1.msra.mxu0 0.0
        %2739 = vmatprep.subr.mxu0 0.0
        %2740 = vmatpush1.msra.mxu0 0.0
        %2741 = vmatprep.subr.mxu0 0.0
        %2742 = vmatpush1.msra.mxu0 0.0
        %2743 = vmatprep.subr.mxu0 0.0
        %2744 = vmatpush1.msra.mxu0 0.0
        %2745 = vmatprep.subr.mxu0 0.0
        %2746 = vmatpush1.msra.mxu0 0.0
        %2747 = vmatprep.subr.mxu0 0.0
        %2748 = vmatpush1.msra.mxu0 0.0
        %2749 = vmatprep.subr.mxu0 0.0
        %2750 = vmatpush1.msra.mxu0 0.0
        %2751 = vmatprep.subr.mxu0 0.0
        %2752 = vmatpush1.msra.mxu0 0.0
        %2753 = vmatprep.subr.mxu0 0.0
        %2754 = vmatpush1.msra.mxu0 0.0
        %2755 = vmatprep.subr.mxu0 0.0
        %2756 = vmatpush1.msra.mxu0 0.0
        %2757 = vmatprep.subr.mxu0 0.0
        %2758 = vmatpush1.msra.mxu0 0.0
        %2759 = vmatprep.subr.mxu0 0.0
        %2760 = vmatpush1.msra.mxu0 0.0
        %2761 = vmatprep.mubr.f32.mxu0 0.0
        %2762 = vmatmul.mubr.f32.gmra.mrb[0].mxu0 %v2689
        %v2763 = vpop.f32.mrb[0].mxu0
        %v2764 = vadd.f32 %v2686, %v2763
        %v2765 = vpop.f32.mrb[0].mxu0
        %v2766 = vadd.f32 %v2686, %v2765
        %2767 = vdwg.mxu0
        %v2768 = vadd.f32 %v2349, %v2764
        %v2769 = vadd.f32 %v2350, %v2766
        %v2770 = vrot.slane %v1946, 7
        %v2771 = vrot.slane %v1947, 7
        %v2774 = vsel %vm939, %v1938, %v2770
        %v2775 = vsel %vm939, %v1939, %v2771
        %2776 = vmatprep.subr.mxu0 %v726
        %2777 = vmatpush1.msra.mxu0 %v725
        %2778 = vmatprep.subr.mxu0 %v730
        %2779 = vmatpush1.msra.mxu0 %v729
        %2780 = vmatprep.subr.mxu0 %v734
        %2781 = vmatpush1.msra.mxu0 %v733
        %2782 = vmatprep.subr.mxu0 %v738
        %2783 = vmatpush1.msra.mxu0 %v737
        %2784 = vmatprep.subr.mxu0 %v742
        %2785 = vmatpush1.msra.mxu0 %v741
        %2786 = vmatprep.subr.mxu0 %v746
        %2787 = vmatpush1.msra.mxu0 %v745
        %2788 = vmatprep.subr.mxu0 %v750
        %2789 = vmatpush1.msra.mxu0 %v749
        %2790 = vmatprep.subr.mxu0 %v754
        %2791 = vmatpush1.msra.mxu0 %v753
        %2792 = vmatprep.subr.mxu0 %v758
        %2793 = vmatpush1.msra.mxu0 %v757
        %2794 = vmatprep.subr.mxu0 %v762
        %2795 = vmatpush1.msra.mxu0 %v761
        %2796 = vmatprep.subr.mxu0 %v766
        %2797 = vmatpush1.msra.mxu0 %v765
        %2798 = vmatprep.subr.mxu0 %v770
        %2799 = vmatpush1.msra.mxu0 %v769
        %2800 = vmatprep.subr.mxu0 %v774
        %2801 = vmatpush1.msra.mxu0 %v773
        %2802 = vmatprep.subr.mxu0 %v778
        %2803 = vmatpush1.msra.mxu0 %v777
        %2804 = vmatprep.subr.mxu0 %v782
        %2805 = vmatpush1.msra.mxu0 %v781
        %2806 = vmatprep.subr.mxu0 %v786
        %2807 = vmatpush1.msra.mxu0 %v785
        %2808 = vmatprep.subr.mxu0 %v790
        %2809 = vmatpush1.msra.mxu0 %v789
        %2810 = vmatprep.subr.mxu0 %v794
        %2811 = vmatpush1.msra.mxu0 %v793
        %2812 = vmatprep.subr.mxu0 %v798
        %2813 = vmatpush1.msra.mxu0 %v797
        %2814 = vmatprep.subr.mxu0 %v802
        %2815 = vmatpush1.msra.mxu0 %v801
        %2816 = vmatprep.subr.mxu0 %v806
        %2817 = vmatpush1.msra.mxu0 %v805
        %2818 = vmatprep.subr.mxu0 %v810
        %2819 = vmatpush1.msra.mxu0 %v809
        %2820 = vmatprep.subr.mxu0 %v814
        %2821 = vmatpush1.msra.mxu0 %v813
        %2822 = vmatprep.subr.mxu0 %v818
        %2823 = vmatpush1.msra.mxu0 %v817
        %2824 = vmatprep.subr.mxu0 %v822
        %2825 = vmatpush1.msra.mxu0 %v821
        %2826 = vmatprep.subr.mxu0 %v826
        %2827 = vmatpush1.msra.mxu0 %v825
        %2828 = vmatprep.subr.mxu0 %v830
        %2829 = vmatpush1.msra.mxu0 %v829
        %2830 = vmatprep.subr.mxu0 %v834
        %2831 = vmatpush1.msra.mxu0 %v833
        %2832 = vmatprep.subr.mxu0 %v838
        %2833 = vmatpush1.msra.mxu0 %v837
        %2834 = vmatprep.subr.mxu0 %v842
        %2835 = vmatpush1.msra.mxu0 %v841
        %2836 = vmatprep.subr.mxu0 %v846
        %2837 = vmatpush1.msra.mxu0 %v845
        %2838 = vmatprep.subr.mxu0 %v850
        %2839 = vmatpush1.msra.mxu0 %v849
        %2840 = vmatprep.mubr.f32.mxu0 %v2775
        %2841 = vmatmul.mubr.f32.gmra.mrb[0].mxu0 %v2774
        %v2842 = vpop.f32.mrb[0].mxu0
        %v2843 = vadd.f32 0.0, %v2842
        %v2844 = vpop.f32.mrb[0].mxu0
        %v2845 = vadd.f32 0.0, %v2844
        %2846 = vdwg.mxu0
        %2847 = vmatprep.subr.mxu0 %v728
        %2848 = vmatpush1.msra.mxu0 %v727
        %2849 = vmatprep.subr.mxu0 %v732
        %2850 = vmatpush1.msra.mxu0 %v731
        %2851 = vmatprep.subr.mxu0 %v736
        %2852 = vmatpush1.msra.mxu0 %v735
        %2853 = vmatprep.subr.mxu0 %v740
        %2854 = vmatpush1.msra.mxu0 %v739
        %2855 = vmatprep.subr.mxu0 %v744
        %2856 = vmatpush1.msra.mxu0 %v743
        %2857 = vmatprep.subr.mxu0 %v748
        %2858 = vmatpush1.msra.mxu0 %v747
        %2859 = vmatprep.subr.mxu0 %v752
        %2860 = vmatpush1.msra.mxu0 %v751
        %2861 = vmatprep.subr.mxu0 %v756
        %2862 = vmatpush1.msra.mxu0 %v755
        %2863 = vmatprep.subr.mxu0 %v760
        %2864 = vmatpush1.msra.mxu0 %v759
        %2865 = vmatprep.subr.mxu0 %v764
        %2866 = vmatpush1.msra.mxu0 %v763
        %2867 = vmatprep.subr.mxu0 %v768
        %2868 = vmatpush1.msra.mxu0 %v767
        %2869 = vmatprep.subr.mxu0 %v772
        %2870 = vmatpush1.msra.mxu0 %v771
        %2871 = vmatprep.subr.mxu0 %v776
        %2872 = vmatpush1.msra.mxu0 %v775
        %2873 = vmatprep.subr.mxu0 %v780
        %2874 = vmatpush1.msra.mxu0 %v779
        %2875 = vmatprep.subr.mxu0 %v784
        %2876 = vmatpush1.msra.mxu0 %v783
        %2877 = vmatprep.subr.mxu0 %v788
        %2878 = vmatpush1.msra.mxu0 %v787
        %2879 = vmatprep.subr.mxu0 %v792
        %2880 = vmatpush1.msra.mxu0 %v791
        %2881 = vmatprep.subr.mxu0 %v796
        %2882 = vmatpush1.msra.mxu0 %v795
        %2883 = vmatprep.subr.mxu0 %v800
        %2884 = vmatpush1.msra.mxu0 %v799
        %2885 = vmatprep.subr.mxu0 %v804
        %2886 = vmatpush1.msra.mxu0 %v803
        %2887 = vmatprep.subr.mxu0 %v808
        %2888 = vmatpush1.msra.mxu0 %v807
        %2889 = vmatprep.subr.mxu0 %v812
        %2890 = vmatpush1.msra.mxu0 %v811
        %2891 = vmatprep.subr.mxu0 %v816
        %2892 = vmatpush1.msra.mxu0 %v815
        %2893 = vmatprep.subr.mxu0 %v820
        %2894 = vmatpush1.msra.mxu0 %v819
        %2895 = vmatprep.subr.mxu0 %v824
        %2896 = vmatpush1.msra.mxu0 %v823
        %2897 = vmatprep.subr.mxu0 %v828
        %2898 = vmatpush1.msra.mxu0 %v827
        %2899 = vmatprep.subr.mxu0 %v832
        %2900 = vmatpush1.msra.mxu0 %v831
        %2901 = vmatprep.subr.mxu0 %v836
        %2902 = vmatpush1.msra.mxu0 %v835
        %2903 = vmatprep.subr.mxu0 %v840
        %2904 = vmatpush1.msra.mxu0 %v839
        %2905 = vmatprep.subr.mxu0 %v844
        %2906 = vmatpush1.msra.mxu0 %v843
        %2907 = vmatprep.subr.mxu0 %v848
        %2908 = vmatpush1.msra.mxu0 %v847
        %2909 = vmatprep.subr.mxu0 %v852
        %2910 = vmatpush1.msra.mxu0 %v851
        %2911 = vmatprep.mubr.f32.mxu0 %v2775
        %2912 = vmatmul.mubr.f32.gmra.mrb[0].mxu0 %v2774
        %v2913 = vpop.f32.mrb[0].mxu0
        %v2914 = vadd.f32 0.0, %v2913
        %v2915 = vpop.f32.mrb[0].mxu0
        %v2916 = vadd.f32 0.0, %v2915
        %2917 = vdwg.mxu0
        %v2920 = vrot.slane %v2914, 1
        %v2921 = vrot.slane %v2916, 1
        %v2924 = vsub.f32 %v2843, %v2920
        %v2925 = vsub.f32 %v2845, %v2921
        %v2928 = vrot.slane %v2843, 1
        %v2929 = vrot.slane %v2845, 1
        %v2932 = vadd.f32 %v2914, %v2928
        %v2933 = vadd.f32 %v2916, %v2929
        %v2936 = vrot.slane %v2932, 7
        %v2937 = vrot.slane %v2933, 7
        %v2940 = vsel %vm939, %v2924, %v2936
        %v2941 = vsel %vm939, %v2925, %v2937
        %v2942 = vsel %vm1283, %v2940, %v1788
        %v2943 = vsel %vm1283, %v2941, %v1789
        %2944 = vrot.lane.b32.xlu0 %v2942, 17
        %v2945 = vpop.permute.xlu0 %2944
        %2946 = vrot.lane.b32.xlu0 %v2943, 17
        %v2947 = vpop.permute.xlu0 %2946
        %v2948 = vsel %vm1115, %v2945, %v2947
        %v2949 = vsel %vm1115, %v2947, %v2945
        %v2950 = vmul.f32 %v2949, %v1121
        %v2951 = vmul.f32 %v2948, %v1125
        %2952 = vrot.lane.b32.xlu0 %v2942, 16
        %v2953 = vpop.permute.xlu0 %2952
        %2954 = vrot.lane.b32.xlu0 %v2943, 16
        %v2955 = vpop.permute.xlu0 %2954
        %v2956 = vsel %vm1132, %v2953, %v2955
        %v2957 = vsel %vm1132, %v2955, %v2953
        %v2958 = vmul.f32 %v2957, %v1138
        %v2959 = vmul.f32 %v2956, %v1142
        %2960 = vrot.lane.b32.xlu0 %v2942, 15
        %v2961 = vpop.permute.xlu0 %2960
        %2962 = vrot.lane.b32.xlu0 %v2943, 15
        %v2963 = vpop.permute.xlu0 %2962
        %v2964 = vsel %vm1149, %v2961, %v2963
        %v2965 = vsel %vm1149, %v2963, %v2961
        %v2966 = vmul.f32 %v2965, %v1155
        %v2967 = vmul.f32 %v2964, %v1159
        %2968 = vrot.lane.b32.xlu0 %v2942, 1
        %v2969 = vpop.permute.xlu0 %2968
        %2970 = vrot.lane.b32.xlu0 %v2943, 1
        %v2971 = vpop.permute.xlu0 %2970
        %v2972 = vsel %vm1166, %v2969, %v2971
        %v2973 = vsel %vm1166, %v2971, %v2969
        %v2974 = vmul.f32 %v2973, %v1172
        %v2975 = vmul.f32 %v2972, %v1176
        %2976 = vrot.lane.b32.xlu0 %v2942, 127
        %v2977 = vpop.permute.xlu0 %2976
        %2978 = vrot.lane.b32.xlu0 %v2943, 127
        %v2979 = vpop.permute.xlu0 %2978
        %v2980 = vsel %vm1183, %v2977, %v2979
        %v2981 = vsel %vm1183, %v2979, %v2977
        %v2982 = vmul.f32 %v2980, %v1189
        %v2983 = vmul.f32 %v2981, %v1193
        %2984 = vrot.lane.b32.xlu0 %v2942, 113
        %v2985 = vpop.permute.xlu0 %2984
        %2986 = vrot.lane.b32.xlu0 %v2943, 113
        %v2987 = vpop.permute.xlu0 %2986
        %v2988 = vsel %vm1200, %v2985, %v2987
        %v2989 = vsel %vm1200, %v2987, %v2985
        %v2990 = vmul.f32 %v2988, %v1206
        %v2991 = vmul.f32 %v2989, %v1210
        %2992 = vrot.lane.b32.xlu0 %v2942, 112
        %v2993 = vpop.permute.xlu0 %2992
        %2994 = vrot.lane.b32.xlu0 %v2943, 112
        %v2995 = vpop.permute.xlu0 %2994
        %v2996 = vsel %vm1217, %v2993, %v2995
        %v2997 = vsel %vm1217, %v2995, %v2993
        %v2998 = vmul.f32 %v2996, %v1223
        %v2999 = vmul.f32 %v2997, %v1227
        %3000 = vrot.lane.b32.xlu0 %v2942, 111
        %v3001 = vpop.permute.xlu0 %3000
        %3002 = vrot.lane.b32.xlu0 %v2943, 111
        %v3003 = vpop.permute.xlu0 %3002
        %v3004 = vsel %vm1234, %v3001, %v3003
        %v3005 = vsel %vm1234, %v3003, %v3001
        %v3006 = vmul.f32 %v3004, %v1240
        %v3007 = vmul.f32 %v3005, %v1244
        %v3010 = vrot.slane %v2958, 2
        %v3011 = vrot.slane %v2959, 2
        %v3016 = vrot.slane %v2966, 4
        %v3017 = vrot.slane %v2967, 4
        %v3022 = vrot.slane %v2974, 6
        %v3023 = vrot.slane %v2975, 6
        %v3028 = vrot.slane %v2982, 2
        %v3029 = vrot.slane %v2983, 2
        %v3034 = vrot.slane %v2990, 4
        %v3035 = vrot.slane %v2991, 4
        %v3040 = vrot.slane %v2998, 6
        %v3041 = vrot.slane %v2999, 6
        %v3044 = vsel %vm1289, %v2950, %v3010
        %v3045 = vsel %vm1289, %v2951, %v3011
        %v3046 = vsel %vm1286, %v3010, %v3016
        %v3047 = vsel %vm1286, %v3011, %v3017
        %v3048 = vsel %vm1283, %v3016, %v3022
        %v3049 = vsel %vm1283, %v3017, %v3023
        %v3050 = vsel %vm1289, %v2942, %v3028
        %v3051 = vsel %vm1289, %v2943, %v3029
        %v3052 = vsel %vm1286, %v3028, %v3034
        %v3053 = vsel %vm1286, %v3029, %v3035
        %v3054 = vsel %vm1283, %v3034, %v3040
        %v3055 = vsel %vm1283, %v3035, %v3041
        %v3057 = vsel %vm1289, %v3006, 0
        %v3060 = vsel %vm1289, %v3007, 0
        %3062 = vmatprep.subr.mxu0 %v3045
        %3063 = vmatpush1.msra.mxu0 %v3044
        %3064 = vmatprep.subr.mxu0 %v3047
        %3065 = vmatpush1.msra.mxu0 %v3046
        %3066 = vmatprep.subr.mxu0 %v3049
        %3067 = vmatpush1.msra.mxu0 %v3048
        %3068 = vmatprep.subr.mxu0 %v3051
        %3069 = vmatpush1.msra.mxu0 %v3050
        %3070 = vmatprep.subr.mxu0 %v3053
        %3071 = vmatpush1.msra.mxu0 %v3052
        %3072 = vmatprep.subr.mxu0 %v3055
        %3073 = vmatpush1.msra.mxu0 %v3054
        %3074 = vmatprep.subr.mxu0 %v3060
        %3075 = vmatpush1.msra.mxu0 %v3057
        %3076 = vmatprep.subr.mxu0 0.0
        %3077 = vmatpush1.msra.mxu0 0.0
        %3078 = vmatprep.subr.mxu0 0.0
        %3079 = vmatpush1.msra.mxu0 0.0
        %3080 = vmatprep.subr.mxu0 0.0
        %3081 = vmatpush1.msra.mxu0 0.0
        %3082 = vmatprep.subr.mxu0 0.0
        %3083 = vmatpush1.msra.mxu0 0.0
        %3084 = vmatprep.subr.mxu0 0.0
        %3085 = vmatpush1.msra.mxu0 0.0
        %3086 = vmatprep.subr.mxu0 0.0
        %3087 = vmatpush1.msra.mxu0 0.0
        %3088 = vmatprep.subr.mxu0 0.0
        %3089 = vmatpush1.msra.mxu0 0.0
        %3090 = vmatprep.subr.mxu0 0.0
        %3091 = vmatpush1.msra.mxu0 0.0
        %3092 = vmatprep.subr.mxu0 0.0
        %3093 = vmatpush1.msra.mxu0 0.0
        %3094 = vmatprep.subr.mxu0 0.0
        %3095 = vmatpush1.msra.mxu0 0.0
        %3096 = vmatprep.subr.mxu0 0.0
        %3097 = vmatpush1.msra.mxu0 0.0
        %3098 = vmatprep.subr.mxu0 0.0
        %3099 = vmatpush1.msra.mxu0 0.0
        %3100 = vmatprep.subr.mxu0 0.0
        %3101 = vmatpush1.msra.mxu0 0.0
        %3102 = vmatprep.subr.mxu0 0.0
        %3103 = vmatpush1.msra.mxu0 0.0
        %3104 = vmatprep.subr.mxu0 0.0
        %3105 = vmatpush1.msra.mxu0 0.0
        %3106 = vmatprep.subr.mxu0 0.0
        %3107 = vmatpush1.msra.mxu0 0.0
        %3108 = vmatprep.subr.mxu0 0.0
        %3109 = vmatpush1.msra.mxu0 0.0
        %3110 = vmatprep.subr.mxu0 0.0
        %3111 = vmatpush1.msra.mxu0 0.0
        %3112 = vmatprep.subr.mxu0 0.0
        %3113 = vmatpush1.msra.mxu0 0.0
        %3114 = vmatprep.subr.mxu0 0.0
        %3115 = vmatpush1.msra.mxu0 0.0
        %3116 = vmatprep.subr.mxu0 0.0
        %3117 = vmatpush1.msra.mxu0 0.0
        %3118 = vmatprep.subr.mxu0 0.0
        %3119 = vmatpush1.msra.mxu0 0.0
        %3120 = vmatprep.subr.mxu0 0.0
        %3121 = vmatpush1.msra.mxu0 0.0
        %3122 = vmatprep.subr.mxu0 0.0
        %3123 = vmatpush1.msra.mxu0 0.0
        %3124 = vmatprep.subr.mxu0 0.0
        %3125 = vmatpush1.msra.mxu0 0.0
        %3126 = vmatprep.mubr.f32.mxu0 0.0
        %3127 = vmatmul.mubr.f32.gmra.mrb[0].mxu0 %v1508
        %v3128 = vpop.f32.mrb[0].mxu0
        %v3129 = vadd.f32 %v1504, %v3128
        %v3130 = vpop.f32.mrb[0].mxu0
        %v3131 = vadd.f32 %v1504, %v3130
        %3132 = vdwg.mxu0
        %v3133 = vmax.f32 %v3129, 0.0
        %v3134 = vmax.f32 %v3131, 0.0
        %3135 = vrot.lane.b32.xlu0 %v3133, 17
        %v3136 = vpop.permute.xlu0 %3135
        %3137 = vrot.lane.b32.xlu0 %v3134, 17
        %v3138 = vpop.permute.xlu0 %3137
        %v3139 = vsel %vm1115, %v3136, %v3138
        %v3140 = vsel %vm1115, %v3138, %v3136
        %v3141 = vmul.f32 %v3140, %v1121
        %v3142 = vmul.f32 %v3139, %v1125
        %3143 = vrot.lane.b32.xlu0 %v3133, 16
        %v3144 = vpop.permute.xlu0 %3143
        %3145 = vrot.lane.b32.xlu0 %v3134, 16
        %v3146 = vpop.permute.xlu0 %3145
        %v3147 = vsel %vm1132, %v3144, %v3146
        %v3148 = vsel %vm1132, %v3146, %v3144
        %v3149 = vmul.f32 %v3148, %v1138
        %v3150 = vmul.f32 %v3147, %v1142
        %3151 = vrot.lane.b32.xlu0 %v3133, 15
        %v3152 = vpop.permute.xlu0 %3151
        %3153 = vrot.lane.b32.xlu0 %v3134, 15
        %v3154 = vpop.permute.xlu0 %3153
        %v3155 = vsel %vm1149, %v3152, %v3154
        %v3156 = vsel %vm1149, %v3154, %v3152
        %v3157 = vmul.f32 %v3156, %v1155
        %v3158 = vmul.f32 %v3155, %v1159
        %3159 = vrot.lane.b32.xlu0 %v3133, 1
        %v3160 = vpop.permute.xlu0 %3159
        %3161 = vrot.lane.b32.xlu0 %v3134, 1
        %v3162 = vpop.permute.xlu0 %3161
        %v3163 = vsel %vm1166, %v3160, %v3162
        %v3164 = vsel %vm1166, %v3162, %v3160
        %v3165 = vmul.f32 %v3164, %v1172
        %v3166 = vmul.f32 %v3163, %v1176
        %3167 = vrot.lane.b32.xlu0 %v3133, 127
        %v3168 = vpop.permute.xlu0 %3167
        %3169 = vrot.lane.b32.xlu0 %v3134, 127
        %v3170 = vpop.permute.xlu0 %3169
        %v3171 = vsel %vm1183, %v3168, %v3170
        %v3172 = vsel %vm1183, %v3170, %v3168
        %v3173 = vmul.f32 %v3171, %v1189
        %v3174 = vmul.f32 %v3172, %v1193
        %3175 = vrot.lane.b32.xlu0 %v3133, 113
        %v3176 = vpop.permute.xlu0 %3175
        %3177 = vrot.lane.b32.xlu0 %v3134, 113
        %v3178 = vpop.permute.xlu0 %3177
        %v3179 = vsel %vm1200, %v3176, %v3178
        %v3180 = vsel %vm1200, %v3178, %v3176
        %v3181 = vmul.f32 %v3179, %v1206
        %v3182 = vmul.f32 %v3180, %v1210
        %3183 = vrot.lane.b32.xlu0 %v3133, 112
        %v3184 = vpop.permute.xlu0 %3183
        %3185 = vrot.lane.b32.xlu0 %v3134, 112
        %v3186 = vpop.permute.xlu0 %3185
        %v3187 = vsel %vm1217, %v3184, %v3186
        %v3188 = vsel %vm1217, %v3186, %v3184
        %v3189 = vmul.f32 %v3187, %v1223
        %v3190 = vmul.f32 %v3188, %v1227
        %3191 = vrot.lane.b32.xlu0 %v3133, 111
        %v3192 = vpop.permute.xlu0 %3191
        %3193 = vrot.lane.b32.xlu0 %v3134, 111
        %v3194 = vpop.permute.xlu0 %3193
        %v3195 = vsel %vm1234, %v3192, %v3194
        %v3196 = vsel %vm1234, %v3194, %v3192
        %v3197 = vmul.f32 %v3195, %v1240
        %v3198 = vmul.f32 %v3196, %v1244
        %v3201 = vrot.slane %v3149, 2
        %v3202 = vrot.slane %v3150, 2
        %v3207 = vrot.slane %v3157, 4
        %v3208 = vrot.slane %v3158, 4
        %v3213 = vrot.slane %v3165, 6
        %v3214 = vrot.slane %v3166, 6
        %v3219 = vrot.slane %v3173, 2
        %v3220 = vrot.slane %v3174, 2
        %v3225 = vrot.slane %v3181, 4
        %v3226 = vrot.slane %v3182, 4
        %v3231 = vrot.slane %v3189, 6
        %v3232 = vrot.slane %v3190, 6
        %v3235 = vsel %vm1289, %v3141, %v3201
        %v3236 = vsel %vm1289, %v3142, %v3202
        %v3237 = vsel %vm1286, %v3201, %v3207
        %v3238 = vsel %vm1286, %v3202, %v3208
        %v3239 = vsel %vm1283, %v3207, %v3213
        %v3240 = vsel %vm1283, %v3208, %v3214
        %v3241 = vsel %vm1289, %v3133, %v3219
        %v3242 = vsel %vm1289, %v3134, %v3220
        %v3243 = vsel %vm1286, %v3219, %v3225
        %v3244 = vsel %vm1286, %v3220, %v3226
        %v3245 = vsel %vm1283, %v3225, %v3231
        %v3246 = vsel %vm1283, %v3226, %v3232
        %v3248 = vsel %vm1289, %v3197, 0
        %v3251 = vsel %vm1289, %v3198, 0
        %3253 = vmatprep.subr.mxu0 %v3236
        %3254 = vmatpush1.msra.mxu0 %v3235
        %3255 = vmatprep.subr.mxu0 %v3238
        %3256 = vmatpush1.msra.mxu0 %v3237
        %3257 = vmatprep.subr.mxu0 %v3240
        %3258 = vmatpush1.msra.mxu0 %v3239
        %3259 = vmatprep.subr.mxu0 %v3242
        %3260 = vmatpush1.msra.mxu0 %v3241
        %3261 = vmatprep.subr.mxu0 %v3244
        %3262 = vmatpush1.msra.mxu0 %v3243
        %3263 = vmatprep.subr.mxu0 %v3246
        %3264 = vmatpush1.msra.mxu0 %v3245
        %3265 = vmatprep.subr.mxu0 %v3251
        %3266 = vmatpush1.msra.mxu0 %v3248
        %3267 = vmatprep.subr.mxu0 0.0
        %3268 = vmatpush1.msra.mxu0 0.0
        %3269 = vmatprep.subr.mxu0 0.0
        %3270 = vmatpush1.msra.mxu0 0.0
        %3271 = vmatprep.subr.mxu0 0.0
        %3272 = vmatpush1.msra.mxu0 0.0
        %3273 = vmatprep.subr.mxu0 0.0
        %3274 = vmatpush1.msra.mxu0 0.0
        %3275 = vmatprep.subr.mxu0 0.0
        %3276 = vmatpush1.msra.mxu0 0.0
        %3277 = vmatprep.subr.mxu0 0.0
        %3278 = vmatpush1.msra.mxu0 0.0
        %3279 = vmatprep.subr.mxu0 0.0
        %3280 = vmatpush1.msra.mxu0 0.0
        %3281 = vmatprep.subr.mxu0 0.0
        %3282 = vmatpush1.msra.mxu0 0.0
        %3283 = vmatprep.subr.mxu0 0.0
        %3284 = vmatpush1.msra.mxu0 0.0
        %3285 = vmatprep.subr.mxu0 0.0
        %3286 = vmatpush1.msra.mxu0 0.0
        %3287 = vmatprep.subr.mxu0 0.0
        %3288 = vmatpush1.msra.mxu0 0.0
        %3289 = vmatprep.subr.mxu0 0.0
        %3290 = vmatpush1.msra.mxu0 0.0
        %3291 = vmatprep.subr.mxu0 0.0
        %3292 = vmatpush1.msra.mxu0 0.0
        %3293 = vmatprep.subr.mxu0 0.0
        %3294 = vmatpush1.msra.mxu0 0.0
        %3295 = vmatprep.subr.mxu0 0.0
        %3296 = vmatpush1.msra.mxu0 0.0
        %3297 = vmatprep.subr.mxu0 0.0
        %3298 = vmatpush1.msra.mxu0 0.0
        %3299 = vmatprep.subr.mxu0 0.0
        %3300 = vmatpush1.msra.mxu0 0.0
        %3301 = vmatprep.subr.mxu0 0.0
        %3302 = vmatpush1.msra.mxu0 0.0
        %3303 = vmatprep.subr.mxu0 0.0
        %3304 = vmatpush1.msra.mxu0 0.0
        %3305 = vmatprep.subr.mxu0 0.0
        %3306 = vmatpush1.msra.mxu0 0.0
        %3307 = vmatprep.subr.mxu0 0.0
        %3308 = vmatpush1.msra.mxu0 0.0
        %3309 = vmatprep.subr.mxu0 0.0
        %3310 = vmatpush1.msra.mxu0 0.0
        %3311 = vmatprep.subr.mxu0 0.0
        %3312 = vmatpush1.msra.mxu0 0.0
        %3313 = vmatprep.subr.mxu0 0.0
        %3314 = vmatpush1.msra.mxu0 0.0
        %3315 = vmatprep.subr.mxu0 0.0
        %3316 = vmatpush1.msra.mxu0 0.0
        %3317 = vmatprep.mubr.f32.mxu0 0.0
        %3318 = vmatmul.mubr.f32.gmra.mrb[0].mxu0 %v1709
        %v3319 = vpop.f32.mrb[0].mxu0
        %v3320 = vadd.f32 %v1706, %v3319
        %v3321 = vpop.f32.mrb[0].mxu0
        %v3322 = vadd.f32 %v1706, %v3321
        %3323 = vdwg.mxu0
        %v3324 = vadd.f32 %v2942, %v3320
        %v3325 = vadd.f32 %v2943, %v3322
        %3326 = vmatprep.subr.mxu0 %v597
        %3327 = vmatpush1.msra.mxu0 %v596
        %3328 = vmatprep.subr.mxu0 %v601
        %3329 = vmatpush1.msra.mxu0 %v600
        %3330 = vmatprep.subr.mxu0 %v605
        %3331 = vmatpush1.msra.mxu0 %v604
        %3332 = vmatprep.subr.mxu0 %v609
        %3333 = vmatpush1.msra.mxu0 %v608
        %3334 = vmatprep.subr.mxu0 %v613
        %3335 = vmatpush1.msra.mxu0 %v612
        %3336 = vmatprep.subr.mxu0 %v617
        %3337 = vmatpush1.msra.mxu0 %v616
        %3338 = vmatprep.subr.mxu0 %v621
        %3339 = vmatpush1.msra.mxu0 %v620
        %3340 = vmatprep.subr.mxu0 %v625
        %3341 = vmatpush1.msra.mxu0 %v624
        %3342 = vmatprep.subr.mxu0 %v629
        %3343 = vmatpush1.msra.mxu0 %v628
        %3344 = vmatprep.subr.mxu0 %v633
        %3345 = vmatpush1.msra.mxu0 %v632
        %3346 = vmatprep.subr.mxu0 %v637
        %3347 = vmatpush1.msra.mxu0 %v636
        %3348 = vmatprep.subr.mxu0 %v641
        %3349 = vmatpush1.msra.mxu0 %v640
        %3350 = vmatprep.subr.mxu0 %v645
        %3351 = vmatpush1.msra.mxu0 %v644
        %3352 = vmatprep.subr.mxu0 %v649
        %3353 = vmatpush1.msra.mxu0 %v648
        %3354 = vmatprep.subr.mxu0 %v653
        %3355 = vmatpush1.msra.mxu0 %v652
        %3356 = vmatprep.subr.mxu0 %v657
        %3357 = vmatpush1.msra.mxu0 %v656
        %3358 = vmatprep.subr.mxu0 %v661
        %3359 = vmatpush1.msra.mxu0 %v660
        %3360 = vmatprep.subr.mxu0 %v665
        %3361 = vmatpush1.msra.mxu0 %v664
        %3362 = vmatprep.subr.mxu0 %v669
        %3363 = vmatpush1.msra.mxu0 %v668
        %3364 = vmatprep.subr.mxu0 %v673
        %3365 = vmatpush1.msra.mxu0 %v672
        %3366 = vmatprep.subr.mxu0 %v677
        %3367 = vmatpush1.msra.mxu0 %v676
        %3368 = vmatprep.subr.mxu0 %v681
        %3369 = vmatpush1.msra.mxu0 %v680
        %3370 = vmatprep.subr.mxu0 %v685
        %3371 = vmatpush1.msra.mxu0 %v684
        %3372 = vmatprep.subr.mxu0 %v689
        %3373 = vmatpush1.msra.mxu0 %v688
        %3374 = vmatprep.subr.mxu0 %v693
        %3375 = vmatpush1.msra.mxu0 %v692
        %3376 = vmatprep.subr.mxu0 %v697
        %3377 = vmatpush1.msra.mxu0 %v696
        %3378 = vmatprep.subr.mxu0 %v701
        %3379 = vmatpush1.msra.mxu0 %v700
        %3380 = vmatprep.subr.mxu0 %v705
        %3381 = vmatpush1.msra.mxu0 %v704
        %3382 = vmatprep.subr.mxu0 %v709
        %3383 = vmatpush1.msra.mxu0 %v708
        %3384 = vmatprep.subr.mxu0 %v713
        %3385 = vmatpush1.msra.mxu0 %v712
        %3386 = vmatprep.subr.mxu0 %v717
        %3387 = vmatpush1.msra.mxu0 %v716
        %3388 = vmatprep.subr.mxu0 %v721
        %3389 = vmatpush1.msra.mxu0 %v720
        %3390 = vmatprep.mubr.f32.mxu0 %v3325
        %3391 = vmatmul.mubr.f32.gmra.mrb[0].mxu0 %v3324
        %v3392 = vpop.f32.mrb[0].mxu0
        %v3393 = vadd.f32 0.0, %v3392
        %v3394 = vpop.f32.mrb[0].mxu0
        %v3395 = vadd.f32 0.0, %v3394
        %3396 = vdwg.mxu0
        %3397 = vmatprep.subr.mxu0 %v599
        %3398 = vmatpush1.msra.mxu0 %v598
        %3399 = vmatprep.subr.mxu0 %v603
        %3400 = vmatpush1.msra.mxu0 %v602
        %3401 = vmatprep.subr.mxu0 %v607
        %3402 = vmatpush1.msra.mxu0 %v606
        %3403 = vmatprep.subr.mxu0 %v611
        %3404 = vmatpush1.msra.mxu0 %v610
        %3405 = vmatprep.subr.mxu0 %v615
        %3406 = vmatpush1.msra.mxu0 %v614
        %3407 = vmatprep.subr.mxu0 %v619
        %3408 = vmatpush1.msra.mxu0 %v618
        %3409 = vmatprep.subr.mxu0 %v623
        %3410 = vmatpush1.msra.mxu0 %v622
        %3411 = vmatprep.subr.mxu0 %v627
        %3412 = vmatpush1.msra.mxu0 %v626
        %3413 = vmatprep.subr.mxu0 %v631
        %3414 = vmatpush1.msra.mxu0 %v630
        %3415 = vmatprep.subr.mxu0 %v635
        %3416 = vmatpush1.msra.mxu0 %v634
        %3417 = vmatprep.subr.mxu0 %v639
        %3418 = vmatpush1.msra.mxu0 %v638
        %3419 = vmatprep.subr.mxu0 %v643
        %3420 = vmatpush1.msra.mxu0 %v642
        %3421 = vmatprep.subr.mxu0 %v647
        %3422 = vmatpush1.msra.mxu0 %v646
        %3423 = vmatprep.subr.mxu0 %v651
        %3424 = vmatpush1.msra.mxu0 %v650
        %3425 = vmatprep.subr.mxu0 %v655
        %3426 = vmatpush1.msra.mxu0 %v654
        %3427 = vmatprep.subr.mxu0 %v659
        %3428 = vmatpush1.msra.mxu0 %v658
        %3429 = vmatprep.subr.mxu0 %v663
        %3430 = vmatpush1.msra.mxu0 %v662
        %3431 = vmatprep.subr.mxu0 %v667
        %3432 = vmatpush1.msra.mxu0 %v666
        %3433 = vmatprep.subr.mxu0 %v671
        %3434 = vmatpush1.msra.mxu0 %v670
        %3435 = vmatprep.subr.mxu0 %v675
        %3436 = vmatpush1.msra.mxu0 %v674
        %3437 = vmatprep.subr.mxu0 %v679
        %3438 = vmatpush1.msra.mxu0 %v678
        %3439 = vmatprep.subr.mxu0 %v683
        %3440 = vmatpush1.msra.mxu0 %v682
        %3441 = vmatprep.subr.mxu0 %v687
        %3442 = vmatpush1.msra.mxu0 %v686
        %3443 = vmatprep.subr.mxu0 %v691
        %3444 = vmatpush1.msra.mxu0 %v690
        %3445 = vmatprep.subr.mxu0 %v695
        %3446 = vmatpush1.msra.mxu0 %v694
        %3447 = vmatprep.subr.mxu0 %v699
        %3448 = vmatpush1.msra.mxu0 %v698
        %3449 = vmatprep.subr.mxu0 %v703
        %3450 = vmatpush1.msra.mxu0 %v702
        %3451 = vmatprep.subr.mxu0 %v707
        %3452 = vmatpush1.msra.mxu0 %v706
        %3453 = vmatprep.subr.mxu0 %v711
        %3454 = vmatpush1.msra.mxu0 %v710
        %3455 = vmatprep.subr.mxu0 %v715
        %3456 = vmatpush1.msra.mxu0 %v714
        %3457 = vmatprep.subr.mxu0 %v719
        %3458 = vmatpush1.msra.mxu0 %v718
        %3459 = vmatprep.subr.mxu0 %v723
        %3460 = vmatpush1.msra.mxu0 %v722
        %3461 = vmatprep.mubr.f32.mxu0 %v3325
        %3462 = vmatmul.mubr.f32.gmra.mrb[0].mxu0 %v3324
        %v3463 = vpop.f32.mrb[0].mxu0
        %v3464 = vadd.f32 0.0, %v3463
        %v3465 = vpop.f32.mrb[0].mxu0
        %v3466 = vadd.f32 0.0, %v3465
        %3467 = vdwg.mxu0
        %v3470 = vrot.slane %v3464, 1
        %v3471 = vrot.slane %v3466, 1
        %v3474 = vsub.f32 %v3393, %v3470
        %v3475 = vsub.f32 %v3395, %v3471
        %v3478 = vrot.slane %v3393, 1
        %v3479 = vrot.slane %v3395, 1
        %v3482 = vadd.f32 %v3464, %v3478
        %v3483 = vadd.f32 %v3466, %v3479
        %v3484 = vmul.f32 %v2768, 2.0
        %v3485 = vmul.f32 %v2769, 2.0
        %v3486 = vmul.f32 %v3484, %v2768
        %v3487 = vmul.f32 %v3485, %v2769
        %v3488 = vadd.f32 %v3486, 1.0
        %v3489 = vadd.f32 %v3487, 1.0
        %v3491 = vlaneseq
        %v3492 = vshrl.u32 %v3491, 7
        %v3493 = vsub.s32 0, %v3492
        %v3494 = vrot.slane %v1957, %v3493
        %v3495 = vlaneseq
        %v3496 = vshrl.u32 %v3495, 7
        %v3497 = vsub.s32 2, %v3496
        %v3498 = vrot.slane %v1957, %v3497
        %v3501 = vmul.f32 %v2768, %v3494
        %v3502 = vmul.f32 %v2769, %v3498
        %v3503 = vadd.f32 %v3474, %v3501
        %v3504 = vadd.f32 %v3475, %v3502
        %v3505 = vrcp.pop %v3488
        %v3506 = vmul.f32 %v3503, %v3505
        %v3507 = vrcp.pop %v3489
        %v3508 = vmul.f32 %v3504, %v3507
        %v3509 = vlaneseq
        %v3510 = vshrl.u32 %v3509, 7
        %v3511 = vsub.s32 1, %v3510
        %v3512 = vrot.slane %v1957, %v3511
        %v3513 = vlaneseq
        %v3514 = vshrl.u32 %v3513, 7
        %v3515 = vsub.s32 3, %v3514
        %v3516 = vrot.slane %v1957, %v3515
        %v3519 = vmul.f32 %v2768, %v3512
        %v3520 = vmul.f32 %v2769, %v3516
        %v3521 = vadd.f32 %v3482, %v3519
        %v3522 = vadd.f32 %v3483, %v3520
        %v3523 = vmul.f32 %v3521, %v3505
        %v3524 = vmul.f32 %v3522, %v3507
        %v3527 = vcombine.low %v3324, %v3325
        %v3529 = vunpack.c.l.s4 1983009808
        %v3530 = vunpack.c.0.s8 %v3529
        %v3531 = vlaneseq
        %v3532 = vshrl.u32 %v3531, 7
        %v3533 = vsub.s32 %v3530, %v3532
        %v3534 = vrot.slane %v3527, %v3533
        %3536 = vst [vmem:[%s567] sm:$0xf] %v3534
        %v3539 = vrot.slane %v3523, 7
        %v3540 = vrot.slane %v3524, 7
        %v3543 = vsel %vm939, %v3506, %v3539
        %v3544 = vsel %vm939, %v3508, %v3540
        %v3547 = vcombine.low %v3543, %v3544
        %v3549 = vunpack.c.l.s4 1983009808
        %v3550 = vunpack.c.0.s8 %v3549
        %v3551 = vlaneseq
        %v3552 = vshrl.u32 %v3551, 7
        %v3553 = vsub.s32 %v3550, %v3552
        %v3554 = vrot.slane %v3547, %v3553
        %3556 = vst [vmem:[%s573] sm:$0xf] %v3554
        %v3559 = vcombine.low %v3506, %v3508
        %v3561 = vunpack.c.l.s4 1983009808
        %v3562 = vunpack.c.0.s8 %v3561
        %v3563 = vlaneseq
        %v3564 = vshrl.u32 %v3563, 7
        %v3565 = vsub.s32 %v3562, %v3564
        %v3566 = vrot.slane %v3559, %v3565
        %v3568 = vmul.f32 %v917, %v3566
        %v3569 = vcombine.low %v3523, %v3524
        %v3571 = vunpack.c.l.s4 1983009808
        %v3572 = vunpack.c.0.s8 %v3571
        %v3573 = vlaneseq
        %v3574 = vshrl.u32 %v3573, 7
        %v3575 = vsub.s32 %v3572, %v3574
        %v3576 = vrot.slane %v3569, %v3575
        %v3577 = vrot.slane %v3576, 7
        %v3579 = vmul.f32 %v917, %v3577
        %v3581 = vrot.slane %v3579, 7
        %v3582 = vrot.slane %v3581, 2
        %v3584 = vadd.f32 %v3568, %v3582
        %v3585 = vmul.f32 %v3584, 2.0
        %v3586 = vadd.f32 %v1955, %v3585
        %v3587 = vmul.f32 %v3506, %v3506
        %v3588 = vmul.f32 %v3508, %v3508
        %v3589 = vmul.f32 %v3523, %v3523
        %v3590 = vmul.f32 %v3524, %v3524
        %v3591 = vadd.f32 %v3587, %v3589
        %v3592 = vadd.f32 %v3588, %v3590
        %v3593 = vadd.f32 %v3591, %v2000
        %v3594 = vadd.f32 %v3592, %v2004
        %v3596 = vlaneseq
        %v3597 = vshrl.u32 %v3596, 7
        %v3598 = vsub.s32 0, %v3597
        %v3599 = vrot.slane %v3586, %v3598
        %v3600 = vlaneseq
        %v3601 = vshrl.u32 %v3600, 7
        %v3602 = vsub.s32 2, %v3601
        %v3603 = vrot.slane %v3586, %v3602
        %v3608 = vrot.slane %v3593, 7
        %v3609 = vrot.slane %v3594, 7
        %v3612 = vsel %vm939, %v3599, %v3608
        %v3613 = vsel %vm939, %v3603, %v3609
        %3614 = vmatprep.subr.mxu0 %v854
        %3615 = vmatpush1.msra.mxu0 %v853
        %3616 = vmatprep.subr.mxu0 %v856
        %3617 = vmatpush1.msra.mxu0 %v855
        %3618 = vmatprep.subr.mxu0 %v858
        %3619 = vmatpush1.msra.mxu0 %v857
        %3620 = vmatprep.subr.mxu0 %v860
        %3621 = vmatpush1.msra.mxu0 %v859
        %3622 = vmatprep.subr.mxu0 %v862
        %3623 = vmatpush1.msra.mxu0 %v861
        %3624 = vmatprep.subr.mxu0 %v864
        %3625 = vmatpush1.msra.mxu0 %v863
        %3626 = vmatprep.subr.mxu0 %v866
        %3627 = vmatpush1.msra.mxu0 %v865
        %3628 = vmatprep.subr.mxu0 %v868
        %3629 = vmatpush1.msra.mxu0 %v867
        %3630 = vmatprep.subr.mxu0 %v870
        %3631 = vmatpush1.msra.mxu0 %v869
        %3632 = vmatprep.subr.mxu0 %v872
        %3633 = vmatpush1.msra.mxu0 %v871
        %3634 = vmatprep.subr.mxu0 %v874
        %3635 = vmatpush1.msra.mxu0 %v873
        %3636 = vmatprep.subr.mxu0 %v876
        %3637 = vmatpush1.msra.mxu0 %v875
        %3638 = vmatprep.subr.mxu0 %v878
        %3639 = vmatpush1.msra.mxu0 %v877
        %3640 = vmatprep.subr.mxu0 %v880
        %3641 = vmatpush1.msra.mxu0 %v879
        %3642 = vmatprep.subr.mxu0 %v882
        %3643 = vmatpush1.msra.mxu0 %v881
        %3644 = vmatprep.subr.mxu0 %v884
        %3645 = vmatpush1.msra.mxu0 %v883
        %3646 = vmatprep.subr.mxu0 %v886
        %3647 = vmatpush1.msra.mxu0 %v885
        %3648 = vmatprep.subr.mxu0 %v888
        %3649 = vmatpush1.msra.mxu0 %v887
        %3650 = vmatprep.subr.mxu0 %v890
        %3651 = vmatpush1.msra.mxu0 %v889
        %3652 = vmatprep.subr.mxu0 %v892
        %3653 = vmatpush1.msra.mxu0 %v891
        %3654 = vmatprep.subr.mxu0 %v894
        %3655 = vmatpush1.msra.mxu0 %v893
        %3656 = vmatprep.subr.mxu0 %v896
        %3657 = vmatpush1.msra.mxu0 %v895
        %3658 = vmatprep.subr.mxu0 %v898
        %3659 = vmatpush1.msra.mxu0 %v897
        %3660 = vmatprep.subr.mxu0 %v900
        %3661 = vmatpush1.msra.mxu0 %v899
        %3662 = vmatprep.subr.mxu0 %v902
        %3663 = vmatpush1.msra.mxu0 %v901
        %3664 = vmatprep.subr.mxu0 %v904
        %3665 = vmatpush1.msra.mxu0 %v903
        %3666 = vmatprep.subr.mxu0 %v906
        %3667 = vmatpush1.msra.mxu0 %v905
        %3668 = vmatprep.subr.mxu0 %v908
        %3669 = vmatpush1.msra.mxu0 %v907
        %3670 = vmatprep.subr.mxu0 %v910
        %3671 = vmatpush1.msra.mxu0 %v909
        %3672 = vmatprep.subr.mxu0 %v912
        %3673 = vmatpush1.msra.mxu0 %v911
        %3674 = vmatprep.subr.mxu0 %v914
        %3675 = vmatpush1.msra.mxu0 %v913
        %3676 = vmatprep.subr.mxu0 %v916
        %3677 = vmatpush1.msra.mxu0 %v915
        %3678 = vmatprep.mubr.f32.mxu0 %v3613
        %3679 = vmatmul.mubr.f32.gmra.mrb[0].mxu0 %v3612
        %v3680 = vpop.f32.mrb[0].mxu0
        %v3681 = vadd.f32 0.0, %v3680
        %v3682 = vpop.f32.mrb[0].mxu0
        %v3683 = vadd.f32 0.0, %v3682
        %3684 = vdwg.mxu0
        %v3685 = vadd.f32 %v3681, %v2099
        %v3686 = vadd.f32 %v3683, %v2099
        %v3689 = vrot.slane %v3685, 1
        %v3690 = vrot.slane %v3686, 1
        %v3693 = vrcp.pop %v3689
        %v3694 = vmul.f32 %v3685, %v3693
        %v3695 = vrcp.pop %v3690
        %v3696 = vmul.f32 %v3686, %v3695
        %v3697 = vld [vmem:[%s6] sm:$0xf]
        %3698 = vrot.lane.b32.xlu0 %v3694, 17
        %v3699 = vpop.permute.xlu0 %3698
        %3700 = vrot.lane.b32.xlu0 %v3696, 17
        %v3701 = vpop.permute.xlu0 %3700
        %v3702 = vsel %vm1115, %v3699, %v3701
        %v3703 = vsel %vm1115, %v3701, %v3699
        %v3704 = vmul.f32 %v3703, %v592
        %v3705 = vmul.f32 %v3702, %v593
        %3706 = vrot.lane.b32.xlu0 %v3694, 16
        %v3707 = vpop.permute.xlu0 %3706
        %3708 = vrot.lane.b32.xlu0 %v3696, 16
        %v3709 = vpop.permute.xlu0 %3708
        %v3710 = vsel %vm1132, %v3707, %v3709
        %v3711 = vsel %vm1132, %v3709, %v3707
        %v3712 = vmul.f32 %v3711, %v2129
        %v3713 = vmul.f32 %v3710, %v2130
        %3714 = vrot.lane.b32.xlu0 %v3694, 15
        %v3715 = vpop.permute.xlu0 %3714
        %3716 = vrot.lane.b32.xlu0 %v3696, 15
        %v3717 = vpop.permute.xlu0 %3716
        %v3718 = vsel %vm1149, %v3715, %v3717
        %v3719 = vsel %vm1149, %v3717, %v3715
        %v3720 = vmul.f32 %v3719, %v2141
        %v3721 = vmul.f32 %v3718, %v2142
        %3722 = vrot.lane.b32.xlu0 %v3694, 1
        %v3723 = vpop.permute.xlu0 %3722
        %3724 = vrot.lane.b32.xlu0 %v3696, 1
        %v3725 = vpop.permute.xlu0 %3724
        %v3726 = vsel %vm1166, %v3723, %v3725
        %v3727 = vsel %vm1166, %v3725, %v3723
        %v3728 = vmul.f32 %v3727, %v2153
        %v3729 = vmul.f32 %v3726, %v2154
        %3730 = vrot.lane.b32.xlu0 %v3694, 127
        %v3731 = vpop.permute.xlu0 %3730
        %3732 = vrot.lane.b32.xlu0 %v3696, 127
        %v3733 = vpop.permute.xlu0 %3732
        %v3734 = vsel %vm1183, %v3731, %v3733
        %v3735 = vsel %vm1183, %v3733, %v3731
        %v3736 = vmul.f32 %v3734, %v2165
        %v3737 = vmul.f32 %v3735, %v2166
        %3738 = vrot.lane.b32.xlu0 %v3694, 113
        %v3739 = vpop.permute.xlu0 %3738
        %3740 = vrot.lane.b32.xlu0 %v3696, 113
        %v3741 = vpop.permute.xlu0 %3740
        %v3742 = vsel %vm1200, %v3739, %v3741
        %v3743 = vsel %vm1200, %v3741, %v3739
        %v3744 = vmul.f32 %v3742, %v2177
        %v3745 = vmul.f32 %v3743, %v2178
        %3746 = vrot.lane.b32.xlu0 %v3694, 112
        %v3747 = vpop.permute.xlu0 %3746
        %3748 = vrot.lane.b32.xlu0 %v3696, 112
        %v3749 = vpop.permute.xlu0 %3748
        %v3750 = vsel %vm1217, %v3747, %v3749
        %v3751 = vsel %vm1217, %v3749, %v3747
        %v3752 = vmul.f32 %v3750, %v2189
        %v3753 = vmul.f32 %v3751, %v2190
        %3754 = vrot.lane.b32.xlu0 %v3694, 111
        %v3755 = vpop.permute.xlu0 %3754
        %3756 = vrot.lane.b32.xlu0 %v3696, 111
        %v3757 = vpop.permute.xlu0 %3756
        %v3758 = vsel %vm1234, %v3755, %v3757
        %v3759 = vsel %vm1234, %v3757, %v3755
        %v3760 = vmul.f32 %v3758, %v594
        %v3761 = vmul.f32 %v3759, %v595
        %v3764 = vrot.slane %v3712, 7
        %v3765 = vrot.slane %v3713, 7
        %v3770 = vrot.slane %v3720, 6
        %v3771 = vrot.slane %v3721, 6
        %v3776 = vrot.slane %v3728, 5
        %v3777 = vrot.slane %v3729, 5
        %v3782 = vrot.slane %v3694, 4
        %v3783 = vrot.slane %v3696, 4
        %v3788 = vrot.slane %v3736, 3
        %v3789 = vrot.slane %v3737, 3
        %v3794 = vrot.slane %v3744, 2
        %v3795 = vrot.slane %v3745, 2
        %v3800 = vrot.slane %v3752, 1
        %v3801 = vrot.slane %v3753, 1
        %v3804 = vsel %vm939, %v3704, %v3764
        %v3805 = vsel %vm939, %v3705, %v3765
        %v3806 = vsel %vm1283, %v3804, %v3770
        %v3807 = vsel %vm1283, %v3805, %v3771
        %v3808 = vsel %vm2249, %v3806, %v3776
        %v3809 = vsel %vm2249, %v3807, %v3777
        %v3810 = vsel %vm1286, %v3808, %v3782
        %v3811 = vsel %vm1286, %v3809, %v3783
        %v3812 = vsel %vm2254, %v3810, %v3788
        %v3813 = vsel %vm2254, %v3811, %v3789
        %v3814 = vsel %vm1289, %v3812, %v3794
        %v3815 = vsel %vm1289, %v3813, %v3795
        %v3816 = vsel %vm2259, %v3814, %v3800
        %v3817 = vsel %vm2259, %v3815, %v3801
        %v3819 = vsel %vm2262, %v3697, 0
        %v3822 = vsel %vm939, %v3760, 0
        %v3825 = vsel %vm939, %v3761, 0
        %3827 = vmatprep.subr.mxu0 %v3817
        %3828 = vmatpush1.msra.mxu0 %v3816
        %3829 = vmatprep.subr.mxu0 %v3825
        %3830 = vmatpush1.msra.mxu0 %v3822
        %3831 = vmatprep.subr.mxu0 0.0
        %3832 = vmatpush1.msra.mxu0 0.0
        %3833 = vmatprep.subr.mxu0 0.0
        %3834 = vmatpush1.msra.mxu0 0.0
        %3835 = vmatprep.subr.mxu0 0.0
        %3836 = vmatpush1.msra.mxu0 0.0
        %3837 = vmatprep.subr.mxu0 0.0
        %3838 = vmatpush1.msra.mxu0 0.0
        %3839 = vmatprep.subr.mxu0 0.0
        %3840 = vmatpush1.msra.mxu0 0.0
        %3841 = vmatprep.subr.mxu0 0.0
        %3842 = vmatpush1.msra.mxu0 0.0
        %3843 = vmatprep.subr.mxu0 0.0
        %3844 = vmatpush1.msra.mxu0 0.0
        %3845 = vmatprep.subr.mxu0 0.0
        %3846 = vmatpush1.msra.mxu0 0.0
        %3847 = vmatprep.subr.mxu0 0.0
        %3848 = vmatpush1.msra.mxu0 0.0
        %3849 = vmatprep.subr.mxu0 0.0
        %3850 = vmatpush1.msra.mxu0 0.0
        %3851 = vmatprep.subr.mxu0 0.0
        %3852 = vmatpush1.msra.mxu0 0.0
        %3853 = vmatprep.subr.mxu0 0.0
        %3854 = vmatpush1.msra.mxu0 0.0
        %3855 = vmatprep.subr.mxu0 0.0
        %3856 = vmatpush1.msra.mxu0 0.0
        %3857 = vmatprep.subr.mxu0 0.0
        %3858 = vmatpush1.msra.mxu0 0.0
        %3859 = vmatprep.subr.mxu0 0.0
        %3860 = vmatpush1.msra.mxu0 0.0
        %3861 = vmatprep.subr.mxu0 0.0
        %3862 = vmatpush1.msra.mxu0 0.0
        %3863 = vmatprep.subr.mxu0 0.0
        %3864 = vmatpush1.msra.mxu0 0.0
        %3865 = vmatprep.subr.mxu0 0.0
        %3866 = vmatpush1.msra.mxu0 0.0
        %3867 = vmatprep.subr.mxu0 0.0
        %3868 = vmatpush1.msra.mxu0 0.0
        %3869 = vmatprep.subr.mxu0 0.0
        %3870 = vmatpush1.msra.mxu0 0.0
        %3871 = vmatprep.subr.mxu0 0.0
        %3872 = vmatpush1.msra.mxu0 0.0
        %3873 = vmatprep.subr.mxu0 0.0
        %3874 = vmatpush1.msra.mxu0 0.0
        %3875 = vmatprep.subr.mxu0 0.0
        %3876 = vmatpush1.msra.mxu0 0.0
        %3877 = vmatprep.subr.mxu0 0.0
        %3878 = vmatpush1.msra.mxu0 0.0
        %3879 = vmatprep.subr.mxu0 0.0
        %3880 = vmatpush1.msra.mxu0 0.0
        %3881 = vmatprep.subr.mxu0 0.0
        %3882 = vmatpush1.msra.mxu0 0.0
        %3883 = vmatprep.subr.mxu0 0.0
        %3884 = vmatpush1.msra.mxu0 0.0
        %3885 = vmatprep.subr.mxu0 0.0
        %3886 = vmatpush1.msra.mxu0 0.0
        %3887 = vmatprep.subr.mxu0 0.0
        %3888 = vmatpush1.msra.mxu0 0.0
        %3889 = vmatprep.subr.mxu0 0.0
        %3890 = vmatpush1.msra.mxu0 0.0
        %3891 = vmatprep.mubr.f32.mxu0 0.0
        %3892 = vmatmul.mubr.f32.gmra.mrb[0].mxu0 %v3819
        %v3893 = vpop.f32.mrb[0].mxu0
        %v3894 = vadd.f32 0.0, %v3893
        %v3895 = vpop.f32.mrb[0].mxu0
        %v3896 = vadd.f32 0.0, %v3895
        %3897 = vdwg.mxu0
        %v3900 = vrot.slane %v3894, 7
        %v3901 = vrot.slane %v3896, 7
        %v3904 = vsel %vm939, %v3694, %v3900
        %v3905 = vsel %vm939, %v3696, %v3901
        %v3906 = vld [vmem:[%s11] sm:$0x1f]
        %v3907 = vld [vmem:[%s12] sm:$0x1f]
        %3908 = vrot.lane.b32.xlu0 %v3904, 17
        %v3909 = vpop.permute.xlu0 %3908
        %3910 = vrot.lane.b32.xlu0 %v3905, 17
        %v3911 = vpop.permute.xlu0 %3910
        %v3912 = vsel %vm1115, %v3909, %v3911
        %v3913 = vsel %vm1115, %v3911, %v3909
        %v3914 = vmul.f32 %v3913, %v1121
        %v3915 = vmul.f32 %v3912, %v1125
        %3916 = vrot.lane.b32.xlu0 %v3904, 16
        %v3917 = vpop.permute.xlu0 %3916
        %3918 = vrot.lane.b32.xlu0 %v3905, 16
        %v3919 = vpop.permute.xlu0 %3918
        %v3920 = vsel %vm1132, %v3917, %v3919
        %v3921 = vsel %vm1132, %v3919, %v3917
        %v3922 = vmul.f32 %v3921, %v1138
        %v3923 = vmul.f32 %v3920, %v1142
        %3924 = vrot.lane.b32.xlu0 %v3904, 15
        %v3925 = vpop.permute.xlu0 %3924
        %3926 = vrot.lane.b32.xlu0 %v3905, 15
        %v3927 = vpop.permute.xlu0 %3926
        %v3928 = vsel %vm1149, %v3925, %v3927
        %v3929 = vsel %vm1149, %v3927, %v3925
        %v3930 = vmul.f32 %v3929, %v1155
        %v3931 = vmul.f32 %v3928, %v1159
        %3932 = vrot.lane.b32.xlu0 %v3904, 1
        %v3933 = vpop.permute.xlu0 %3932
        %3934 = vrot.lane.b32.xlu0 %v3905, 1
        %v3935 = vpop.permute.xlu0 %3934
        %v3936 = vsel %vm1166, %v3933, %v3935
        %v3937 = vsel %vm1166, %v3935, %v3933
        %v3938 = vmul.f32 %v3937, %v1172
        %v3939 = vmul.f32 %v3936, %v1176
        %3940 = vrot.lane.b32.xlu0 %v3904, 127
        %v3941 = vpop.permute.xlu0 %3940
        %3942 = vrot.lane.b32.xlu0 %v3905, 127
        %v3943 = vpop.permute.xlu0 %3942
        %v3944 = vsel %vm1183, %v3941, %v3943
        %v3945 = vsel %vm1183, %v3943, %v3941
        %v3946 = vmul.f32 %v3944, %v1189
        %v3947 = vmul.f32 %v3945, %v1193
        %3948 = vrot.lane.b32.xlu0 %v3904, 113
        %v3949 = vpop.permute.xlu0 %3948
        %3950 = vrot.lane.b32.xlu0 %v3905, 113
        %v3951 = vpop.permute.xlu0 %3950
        %v3952 = vsel %vm1200, %v3949, %v3951
        %v3953 = vsel %vm1200, %v3951, %v3949
        %v3954 = vmul.f32 %v3952, %v1206
        %v3955 = vmul.f32 %v3953, %v1210
        %3956 = vrot.lane.b32.xlu0 %v3904, 112
        %v3957 = vpop.permute.xlu0 %3956
        %3958 = vrot.lane.b32.xlu0 %v3905, 112
        %v3959 = vpop.permute.xlu0 %3958
        %v3960 = vsel %vm1217, %v3957, %v3959
        %v3961 = vsel %vm1217, %v3959, %v3957
        %v3962 = vmul.f32 %v3960, %v1223
        %v3963 = vmul.f32 %v3961, %v1227
        %3964 = vrot.lane.b32.xlu0 %v3904, 111
        %v3965 = vpop.permute.xlu0 %3964
        %3966 = vrot.lane.b32.xlu0 %v3905, 111
        %v3967 = vpop.permute.xlu0 %3966
        %v3968 = vsel %vm1234, %v3965, %v3967
        %v3969 = vsel %vm1234, %v3967, %v3965
        %v3970 = vmul.f32 %v3968, %v1240
        %v3971 = vmul.f32 %v3969, %v1244
        %v3974 = vrot.slane %v3922, 3
        %v3975 = vrot.slane %v3923, 3
        %v3980 = vrot.slane %v3930, 6
        %v3981 = vrot.slane %v3931, 6
        %v3986 = vrot.slane %v3938, 1
        %v3987 = vrot.slane %v3939, 1
        %v3992 = vrot.slane %v3904, 4
        %v3993 = vrot.slane %v3905, 4
        %v3998 = vrot.slane %v3946, 7
        %v3999 = vrot.slane %v3947, 7
        %v4004 = vrot.slane %v3954, 2
        %v4005 = vrot.slane %v3955, 2
        %v4010 = vrot.slane %v3962, 5
        %v4011 = vrot.slane %v3963, 5
        %v4014 = vsel %vm2254, %v3914, %v3974
        %v4015 = vsel %vm2254, %v3915, %v3975
        %v4016 = vsel %vm1283, %v3974, %v3980
        %v4017 = vsel %vm1283, %v3975, %v3981
        %v4018 = vsel %vm2259, %v4016, %v3986
        %v4019 = vsel %vm2259, %v4017, %v3987
        %v4020 = vsel %vm1286, %v3986, %v3992
        %v4021 = vsel %vm1286, %v3987, %v3993
        %v4022 = vsel %vm939, %v3992, %v3998
        %v4023 = vsel %vm939, %v3993, %v3999
        %v4024 = vsel %vm1289, %v4022, %v4004
        %v4025 = vsel %vm1289, %v4023, %v4005
        %v4026 = vsel %vm2249, %v4004, %v4010
        %v4027 = vsel %vm2249, %v4005, %v4011
        %4029 = vset.pattern.permute.xlu0 0
        %4030 = vperm.xlu0 %4029, %v3907
        %v4031 = vpop.permute.xlu0 %4030
        %v4034 = vsel %vm2478, %v3906, 0
        %v4037 = vsel %vm2254, %v3970, 0
        %v4040 = vsel %vm2254, %v3971, 0
        %4042 = vmatprep.subr.mxu0 %v4015
        %4043 = vmatpush1.msra.mxu0 %v4014
        %4044 = vmatprep.subr.mxu0 %v4019
        %4045 = vmatpush1.msra.mxu0 %v4018
        %4046 = vmatprep.subr.mxu0 %v4021
        %4047 = vmatpush1.msra.mxu0 %v4020
        %4048 = vmatprep.subr.mxu0 %v4025
        %4049 = vmatpush1.msra.mxu0 %v4024
        %4050 = vmatprep.subr.mxu0 %v4027
        %4051 = vmatpush1.msra.mxu0 %v4026
        %4052 = vmatprep.subr.mxu0 %v4040
        %4053 = vmatpush1.msra.mxu0 %v4037
        %4054 = vmatprep.subr.mxu0 0.0
        %4055 = vmatpush1.msra.mxu0 0.0
        %4056 = vmatprep.subr.mxu0 0.0
        %4057 = vmatpush1.msra.mxu0 0.0
        %4058 = vmatprep.subr.mxu0 0.0
        %4059 = vmatpush1.msra.mxu0 0.0
        %4060 = vmatprep.subr.mxu0 0.0
        %4061 = vmatpush1.msra.mxu0 0.0
        %4062 = vmatprep.subr.mxu0 0.0
        %4063 = vmatpush1.msra.mxu0 0.0
        %4064 = vmatprep.subr.mxu0 0.0
        %4065 = vmatpush1.msra.mxu0 0.0
        %4066 = vmatprep.subr.mxu0 0.0
        %4067 = vmatpush1.msra.mxu0 0.0
        %4068 = vmatprep.subr.mxu0 0.0
        %4069 = vmatpush1.msra.mxu0 0.0
        %4070 = vmatprep.subr.mxu0 0.0
        %4071 = vmatpush1.msra.mxu0 0.0
        %4072 = vmatprep.subr.mxu0 0.0
        %4073 = vmatpush1.msra.mxu0 0.0
        %4074 = vmatprep.subr.mxu0 0.0
        %4075 = vmatpush1.msra.mxu0 0.0
        %4076 = vmatprep.subr.mxu0 0.0
        %4077 = vmatpush1.msra.mxu0 0.0
        %4078 = vmatprep.subr.mxu0 0.0
        %4079 = vmatpush1.msra.mxu0 0.0
        %4080 = vmatprep.subr.mxu0 0.0
        %4081 = vmatpush1.msra.mxu0 0.0
        %4082 = vmatprep.subr.mxu0 0.0
        %4083 = vmatpush1.msra.mxu0 0.0
        %4084 = vmatprep.subr.mxu0 0.0
        %4085 = vmatpush1.msra.mxu0 0.0
        %4086 = vmatprep.subr.mxu0 0.0
        %4087 = vmatpush1.msra.mxu0 0.0
        %4088 = vmatprep.subr.mxu0 0.0
        %4089 = vmatpush1.msra.mxu0 0.0
        %4090 = vmatprep.subr.mxu0 0.0
        %4091 = vmatpush1.msra.mxu0 0.0
        %4092 = vmatprep.subr.mxu0 0.0
        %4093 = vmatpush1.msra.mxu0 0.0
        %4094 = vmatprep.subr.mxu0 0.0
        %4095 = vmatpush1.msra.mxu0 0.0
        %4096 = vmatprep.subr.mxu0 0.0
        %4097 = vmatpush1.msra.mxu0 0.0
        %4098 = vmatprep.subr.mxu0 0.0
        %4099 = vmatpush1.msra.mxu0 0.0
        %4100 = vmatprep.subr.mxu0 0.0
        %4101 = vmatpush1.msra.mxu0 0.0
        %4102 = vmatprep.subr.mxu0 0.0
        %4103 = vmatpush1.msra.mxu0 0.0
        %4104 = vmatprep.subr.mxu0 0.0
        %4105 = vmatpush1.msra.mxu0 0.0
        %4106 = vmatprep.mubr.f32.mxu0 0.0
        %4107 = vmatmul.mubr.f32.gmra.mrb[0].mxu0 %v4034
        %v4108 = vpop.f32.mrb[0].mxu0
        %v4109 = vadd.f32 %v4031, %v4108
        %v4110 = vpop.f32.mrb[0].mxu0
        %v4111 = vadd.f32 %v4031, %v4110
        %4112 = vdwg.mxu0
        %v4113 = vmax.f32 %v4109, 0.0
        %v4114 = vmax.f32 %v4111, 0.0
        %v4115 = vld [vmem:[%s13] sm:$0x1f]
        %v4116 = vld [vmem:[%s14] sm:$0x1f]
        %4117 = vrot.lane.b32.xlu0 %v4113, 17
        %v4118 = vpop.permute.xlu0 %4117
        %4119 = vrot.lane.b32.xlu0 %v4114, 17
        %v4120 = vpop.permute.xlu0 %4119
        %v4121 = vsel %vm1115, %v4118, %v4120
        %v4122 = vsel %vm1115, %v4120, %v4118
        %v4123 = vmul.f32 %v4122, %v1121
        %v4124 = vmul.f32 %v4121, %v1125
        %4125 = vrot.lane.b32.xlu0 %v4113, 16
        %v4126 = vpop.permute.xlu0 %4125
        %4127 = vrot.lane.b32.xlu0 %v4114, 16
        %v4128 = vpop.permute.xlu0 %4127
        %v4129 = vsel %vm1132, %v4126, %v4128
        %v4130 = vsel %vm1132, %v4128, %v4126
        %v4131 = vmul.f32 %v4130, %v1138
        %v4132 = vmul.f32 %v4129, %v1142
        %4133 = vrot.lane.b32.xlu0 %v4113, 15
        %v4134 = vpop.permute.xlu0 %4133
        %4135 = vrot.lane.b32.xlu0 %v4114, 15
        %v4136 = vpop.permute.xlu0 %4135
        %v4137 = vsel %vm1149, %v4134, %v4136
        %v4138 = vsel %vm1149, %v4136, %v4134
        %v4139 = vmul.f32 %v4138, %v1155
        %v4140 = vmul.f32 %v4137, %v1159
        %4141 = vrot.lane.b32.xlu0 %v4113, 1
        %v4142 = vpop.permute.xlu0 %4141
        %4143 = vrot.lane.b32.xlu0 %v4114, 1
        %v4144 = vpop.permute.xlu0 %4143
        %v4145 = vsel %vm1166, %v4142, %v4144
        %v4146 = vsel %vm1166, %v4144, %v4142
        %v4147 = vmul.f32 %v4146, %v1172
        %v4148 = vmul.f32 %v4145, %v1176
        %4149 = vrot.lane.b32.xlu0 %v4113, 127
        %v4150 = vpop.permute.xlu0 %4149
        %4151 = vrot.lane.b32.xlu0 %v4114, 127
        %v4152 = vpop.permute.xlu0 %4151
        %v4153 = vsel %vm1183, %v4150, %v4152
        %v4154 = vsel %vm1183, %v4152, %v4150
        %v4155 = vmul.f32 %v4153, %v1189
        %v4156 = vmul.f32 %v4154, %v1193
        %4157 = vrot.lane.b32.xlu0 %v4113, 113
        %v4158 = vpop.permute.xlu0 %4157
        %4159 = vrot.lane.b32.xlu0 %v4114, 113
        %v4160 = vpop.permute.xlu0 %4159
        %v4161 = vsel %vm1200, %v4158, %v4160
        %v4162 = vsel %vm1200, %v4160, %v4158
        %v4163 = vmul.f32 %v4161, %v1206
        %v4164 = vmul.f32 %v4162, %v1210
        %4165 = vrot.lane.b32.xlu0 %v4113, 112
        %v4166 = vpop.permute.xlu0 %4165
        %4167 = vrot.lane.b32.xlu0 %v4114, 112
        %v4168 = vpop.permute.xlu0 %4167
        %v4169 = vsel %vm1217, %v4166, %v4168
        %v4170 = vsel %vm1217, %v4168, %v4166
        %v4171 = vmul.f32 %v4169, %v1223
        %v4172 = vmul.f32 %v4170, %v1227
        %4173 = vrot.lane.b32.xlu0 %v4113, 111
        %v4174 = vpop.permute.xlu0 %4173
        %4175 = vrot.lane.b32.xlu0 %v4114, 111
        %v4176 = vpop.permute.xlu0 %4175
        %v4177 = vsel %vm1234, %v4174, %v4176
        %v4178 = vsel %vm1234, %v4176, %v4174
        %v4179 = vmul.f32 %v4177, %v1240
        %v4180 = vmul.f32 %v4178, %v1244
        %v4183 = vrot.slane %v4131, 3
        %v4184 = vrot.slane %v4132, 3
        %v4189 = vrot.slane %v4139, 6
        %v4190 = vrot.slane %v4140, 6
        %v4195 = vrot.slane %v4147, 1
        %v4196 = vrot.slane %v4148, 1
        %v4201 = vrot.slane %v4113, 4
        %v4202 = vrot.slane %v4114, 4
        %v4207 = vrot.slane %v4155, 7
        %v4208 = vrot.slane %v4156, 7
        %v4213 = vrot.slane %v4163, 2
        %v4214 = vrot.slane %v4164, 2
        %v4219 = vrot.slane %v4171, 5
        %v4220 = vrot.slane %v4172, 5
        %v4223 = vsel %vm2254, %v4123, %v4183
        %v4224 = vsel %vm2254, %v4124, %v4184
        %v4225 = vsel %vm1283, %v4183, %v4189
        %v4226 = vsel %vm1283, %v4184, %v4190
        %v4227 = vsel %vm2259, %v4225, %v4195
        %v4228 = vsel %vm2259, %v4226, %v4196
        %v4229 = vsel %vm1286, %v4195, %v4201
        %v4230 = vsel %vm1286, %v4196, %v4202
        %v4231 = vsel %vm939, %v4201, %v4207
        %v4232 = vsel %vm939, %v4202, %v4208
        %v4233 = vsel %vm1289, %v4231, %v4213
        %v4234 = vsel %vm1289, %v4232, %v4214
        %v4235 = vsel %vm2249, %v4213, %v4219
        %v4236 = vsel %vm2249, %v4214, %v4220
        %4238 = vset.pattern.permute.xlu0 0
        %4239 = vperm.xlu0 %4238, %v4116
        %v4240 = vpop.permute.xlu0 %4239
        %v4243 = vsel %vm2478, %v4115, 0
        %v4246 = vsel %vm2254, %v4179, 0
        %v4249 = vsel %vm2254, %v4180, 0
        %4251 = vmatprep.subr.mxu0 %v4224
        %4252 = vmatpush1.msra.mxu0 %v4223
        %4253 = vmatprep.subr.mxu0 %v4228
        %4254 = vmatpush1.msra.mxu0 %v4227
        %4255 = vmatprep.subr.mxu0 %v4230
        %4256 = vmatpush1.msra.mxu0 %v4229
        %4257 = vmatprep.subr.mxu0 %v4234
        %4258 = vmatpush1.msra.mxu0 %v4233
        %4259 = vmatprep.subr.mxu0 %v4236
        %4260 = vmatpush1.msra.mxu0 %v4235
        %4261 = vmatprep.subr.mxu0 %v4249
        %4262 = vmatpush1.msra.mxu0 %v4246
        %4263 = vmatprep.subr.mxu0 0.0
        %4264 = vmatpush1.msra.mxu0 0.0
        %4265 = vmatprep.subr.mxu0 0.0
        %4266 = vmatpush1.msra.mxu0 0.0
        %4267 = vmatprep.subr.mxu0 0.0
        %4268 = vmatpush1.msra.mxu0 0.0
        %4269 = vmatprep.subr.mxu0 0.0
        %4270 = vmatpush1.msra.mxu0 0.0
        %4271 = vmatprep.subr.mxu0 0.0
        %4272 = vmatpush1.msra.mxu0 0.0
        %4273 = vmatprep.subr.mxu0 0.0
        %4274 = vmatpush1.msra.mxu0 0.0
        %4275 = vmatprep.subr.mxu0 0.0
        %4276 = vmatpush1.msra.mxu0 0.0
        %4277 = vmatprep.subr.mxu0 0.0
        %4278 = vmatpush1.msra.mxu0 0.0
        %4279 = vmatprep.subr.mxu0 0.0
        %4280 = vmatpush1.msra.mxu0 0.0
        %4281 = vmatprep.subr.mxu0 0.0
        %4282 = vmatpush1.msra.mxu0 0.0
        %4283 = vmatprep.subr.mxu0 0.0
        %4284 = vmatpush1.msra.mxu0 0.0
        %4285 = vmatprep.subr.mxu0 0.0
        %4286 = vmatpush1.msra.mxu0 0.0
        %4287 = vmatprep.subr.mxu0 0.0
        %4288 = vmatpush1.msra.mxu0 0.0
        %4289 = vmatprep.subr.mxu0 0.0
        %4290 = vmatpush1.msra.mxu0 0.0
        %4291 = vmatprep.subr.mxu0 0.0
        %4292 = vmatpush1.msra.mxu0 0.0
        %4293 = vmatprep.subr.mxu0 0.0
        %4294 = vmatpush1.msra.mxu0 0.0
        %4295 = vmatprep.subr.mxu0 0.0
        %4296 = vmatpush1.msra.mxu0 0.0
        %4297 = vmatprep.subr.mxu0 0.0
        %4298 = vmatpush1.msra.mxu0 0.0
        %4299 = vmatprep.subr.mxu0 0.0
        %4300 = vmatpush1.msra.mxu0 0.0
        %4301 = vmatprep.subr.mxu0 0.0
        %4302 = vmatpush1.msra.mxu0 0.0
        %4303 = vmatprep.subr.mxu0 0.0
        %4304 = vmatpush1.msra.mxu0 0.0
        %4305 = vmatprep.subr.mxu0 0.0
        %4306 = vmatpush1.msra.mxu0 0.0
        %4307 = vmatprep.subr.mxu0 0.0
        %4308 = vmatpush1.msra.mxu0 0.0
        %4309 = vmatprep.subr.mxu0 0.0
        %4310 = vmatpush1.msra.mxu0 0.0
        %4311 = vmatprep.subr.mxu0 0.0
        %4312 = vmatpush1.msra.mxu0 0.0
        %4313 = vmatprep.subr.mxu0 0.0
        %4314 = vmatpush1.msra.mxu0 0.0
        %4315 = vmatprep.mubr.f32.mxu0 0.0
        %4316 = vmatmul.mubr.f32.gmra.mrb[0].mxu0 %v4243
        %v4317 = vpop.f32.mrb[0].mxu0
        %v4318 = vadd.f32 %v4240, %v4317
        %v4319 = vpop.f32.mrb[0].mxu0
        %v4320 = vadd.f32 %v4240, %v4319
        %4321 = vdwg.mxu0
        %v4322 = vadd.f32 %v3904, %v4318
        %v4323 = vadd.f32 %v3905, %v4320
        %4324 = vmatprep.subr.mxu0 %v726
        %4325 = vmatpush1.msra.mxu0 %v725
        %4326 = vmatprep.subr.mxu0 %v730
        %4327 = vmatpush1.msra.mxu0 %v729
        %4328 = vmatprep.subr.mxu0 %v734
        %4329 = vmatpush1.msra.mxu0 %v733
        %4330 = vmatprep.subr.mxu0 %v738
        %4331 = vmatpush1.msra.mxu0 %v737
        %4332 = vmatprep.subr.mxu0 %v742
        %4333 = vmatpush1.msra.mxu0 %v741
        %4334 = vmatprep.subr.mxu0 %v746
        %4335 = vmatpush1.msra.mxu0 %v745
        %4336 = vmatprep.subr.mxu0 %v750
        %4337 = vmatpush1.msra.mxu0 %v749
        %4338 = vmatprep.subr.mxu0 %v754
        %4339 = vmatpush1.msra.mxu0 %v753
        %4340 = vmatprep.subr.mxu0 %v758
        %4341 = vmatpush1.msra.mxu0 %v757
        %4342 = vmatprep.subr.mxu0 %v762
        %4343 = vmatpush1.msra.mxu0 %v761
        %4344 = vmatprep.subr.mxu0 %v766
        %4345 = vmatpush1.msra.mxu0 %v765
        %4346 = vmatprep.subr.mxu0 %v770
        %4347 = vmatpush1.msra.mxu0 %v769
        %4348 = vmatprep.subr.mxu0 %v774
        %4349 = vmatpush1.msra.mxu0 %v773
        %4350 = vmatprep.subr.mxu0 %v778
        %4351 = vmatpush1.msra.mxu0 %v777
        %4352 = vmatprep.subr.mxu0 %v782
        %4353 = vmatpush1.msra.mxu0 %v781
        %4354 = vmatprep.subr.mxu0 %v786
        %4355 = vmatpush1.msra.mxu0 %v785
        %4356 = vmatprep.subr.mxu0 %v790
        %4357 = vmatpush1.msra.mxu0 %v789
        %4358 = vmatprep.subr.mxu0 %v794
        %4359 = vmatpush1.msra.mxu0 %v793
        %4360 = vmatprep.subr.mxu0 %v798
        %4361 = vmatpush1.msra.mxu0 %v797
        %4362 = vmatprep.subr.mxu0 %v802
        %4363 = vmatpush1.msra.mxu0 %v801
        %4364 = vmatprep.subr.mxu0 %v806
        %4365 = vmatpush1.msra.mxu0 %v805
        %4366 = vmatprep.subr.mxu0 %v810
        %4367 = vmatpush1.msra.mxu0 %v809
        %4368 = vmatprep.subr.mxu0 %v814
        %4369 = vmatpush1.msra.mxu0 %v813
        %4370 = vmatprep.subr.mxu0 %v818
        %4371 = vmatpush1.msra.mxu0 %v817
        %4372 = vmatprep.subr.mxu0 %v822
        %4373 = vmatpush1.msra.mxu0 %v821
        %4374 = vmatprep.subr.mxu0 %v826
        %4375 = vmatpush1.msra.mxu0 %v825
        %4376 = vmatprep.subr.mxu0 %v830
        %4377 = vmatpush1.msra.mxu0 %v829
        %4378 = vmatprep.subr.mxu0 %v834
        %4379 = vmatpush1.msra.mxu0 %v833
        %4380 = vmatprep.subr.mxu0 %v838
        %4381 = vmatpush1.msra.mxu0 %v837
        %4382 = vmatprep.subr.mxu0 %v842
        %4383 = vmatpush1.msra.mxu0 %v841
        %4384 = vmatprep.subr.mxu0 %v846
        %4385 = vmatpush1.msra.mxu0 %v845
        %4386 = vmatprep.subr.mxu0 %v850
        %4387 = vmatpush1.msra.mxu0 %v849
        %4388 = vmatprep.mubr.f32.mxu0 %v3544
        %4389 = vmatmul.mubr.f32.gmra.mrb[0].mxu0 %v3543
        %v4390 = vpop.f32.mrb[0].mxu0
        %v4391 = vadd.f32 0.0, %v4390
        %v4392 = vpop.f32.mrb[0].mxu0
        %v4393 = vadd.f32 0.0, %v4392
        %4394 = vdwg.mxu0
        %4395 = vmatprep.subr.mxu0 %v728
        %4396 = vmatpush1.msra.mxu0 %v727
        %4397 = vmatprep.subr.mxu0 %v732
        %4398 = vmatpush1.msra.mxu0 %v731
        %4399 = vmatprep.subr.mxu0 %v736
        %4400 = vmatpush1.msra.mxu0 %v735
        %4401 = vmatprep.subr.mxu0 %v740
        %4402 = vmatpush1.msra.mxu0 %v739
        %4403 = vmatprep.subr.mxu0 %v744
        %4404 = vmatpush1.msra.mxu0 %v743
        %4405 = vmatprep.subr.mxu0 %v748
        %4406 = vmatpush1.msra.mxu0 %v747
        %4407 = vmatprep.subr.mxu0 %v752
        %4408 = vmatpush1.msra.mxu0 %v751
        %4409 = vmatprep.subr.mxu0 %v756
        %4410 = vmatpush1.msra.mxu0 %v755
        %4411 = vmatprep.subr.mxu0 %v760
        %4412 = vmatpush1.msra.mxu0 %v759
        %4413 = vmatprep.subr.mxu0 %v764
        %4414 = vmatpush1.msra.mxu0 %v763
        %4415 = vmatprep.subr.mxu0 %v768
        %4416 = vmatpush1.msra.mxu0 %v767
        %4417 = vmatprep.subr.mxu0 %v772
        %4418 = vmatpush1.msra.mxu0 %v771
        %4419 = vmatprep.subr.mxu0 %v776
        %4420 = vmatpush1.msra.mxu0 %v775
        %4421 = vmatprep.subr.mxu0 %v780
        %4422 = vmatpush1.msra.mxu0 %v779
        %4423 = vmatprep.subr.mxu0 %v784
        %4424 = vmatpush1.msra.mxu0 %v783
        %4425 = vmatprep.subr.mxu0 %v788
        %4426 = vmatpush1.msra.mxu0 %v787
        %4427 = vmatprep.subr.mxu0 %v792
        %4428 = vmatpush1.msra.mxu0 %v791
        %4429 = vmatprep.subr.mxu0 %v796
        %4430 = vmatpush1.msra.mxu0 %v795
        %4431 = vmatprep.subr.mxu0 %v800
        %4432 = vmatpush1.msra.mxu0 %v799
        %4433 = vmatprep.subr.mxu0 %v804
        %4434 = vmatpush1.msra.mxu0 %v803
        %4435 = vmatprep.subr.mxu0 %v808
        %4436 = vmatpush1.msra.mxu0 %v807
        %4437 = vmatprep.subr.mxu0 %v812
        %4438 = vmatpush1.msra.mxu0 %v811
        %4439 = vmatprep.subr.mxu0 %v816
        %4440 = vmatpush1.msra.mxu0 %v815
        %4441 = vmatprep.subr.mxu0 %v820
        %4442 = vmatpush1.msra.mxu0 %v819
        %4443 = vmatprep.subr.mxu0 %v824
        %4444 = vmatpush1.msra.mxu0 %v823
        %4445 = vmatprep.subr.mxu0 %v828
        %4446 = vmatpush1.msra.mxu0 %v827
        %4447 = vmatprep.subr.mxu0 %v832
        %4448 = vmatpush1.msra.mxu0 %v831
        %4449 = vmatprep.subr.mxu0 %v836
        %4450 = vmatpush1.msra.mxu0 %v835
        %4451 = vmatprep.subr.mxu0 %v840
        %4452 = vmatpush1.msra.mxu0 %v839
        %4453 = vmatprep.subr.mxu0 %v844
        %4454 = vmatpush1.msra.mxu0 %v843
        %4455 = vmatprep.subr.mxu0 %v848
        %4456 = vmatpush1.msra.mxu0 %v847
        %4457 = vmatprep.subr.mxu0 %v852
        %4458 = vmatpush1.msra.mxu0 %v851
        %4459 = vmatprep.mubr.f32.mxu0 %v3544
        %4460 = vmatmul.mubr.f32.gmra.mrb[0].mxu0 %v3543
        %v4461 = vpop.f32.mrb[0].mxu0
        %v4462 = vadd.f32 0.0, %v4461
        %v4463 = vpop.f32.mrb[0].mxu0
        %v4464 = vadd.f32 0.0, %v4463
        %4465 = vdwg.mxu0
        %v4468 = vrot.slane %v4462, 1
        %v4469 = vrot.slane %v4464, 1
        %v4472 = vsub.f32 %v4391, %v4468
        %v4473 = vsub.f32 %v4393, %v4469
        %v4476 = vrot.slane %v4391, 1
        %v4477 = vrot.slane %v4393, 1
        %v4480 = vadd.f32 %v4462, %v4476
        %v4481 = vadd.f32 %v4464, %v4477
        %v4484 = vrot.slane %v4480, 7
        %v4485 = vrot.slane %v4481, 7
        %v4488 = vsel %vm939, %v4472, %v4484
        %v4489 = vsel %vm939, %v4473, %v4485
        %v4490 = vsel %vm1283, %v4488, %v3324
        %v4491 = vsel %vm1283, %v4489, %v3325
        %v4492 = vld [vmem:[%s7] sm:$0x3f]
        %v4493 = vld [vmem:[%s8] sm:$0x3f]
        %4494 = vrot.lane.b32.xlu0 %v4490, 17
        %v4495 = vpop.permute.xlu0 %4494
        %4496 = vrot.lane.b32.xlu0 %v4491, 17
        %v4497 = vpop.permute.xlu0 %4496
        %v4498 = vsel %vm1115, %v4495, %v4497
        %v4499 = vsel %vm1115, %v4497, %v4495
        %v4500 = vmul.f32 %v4499, %v1121
        %v4501 = vmul.f32 %v4498, %v1125
        %4502 = vrot.lane.b32.xlu0 %v4490, 16
        %v4503 = vpop.permute.xlu0 %4502
        %4504 = vrot.lane.b32.xlu0 %v4491, 16
        %v4505 = vpop.permute.xlu0 %4504
        %v4506 = vsel %vm1132, %v4503, %v4505
        %v4507 = vsel %vm1132, %v4505, %v4503
        %v4508 = vmul.f32 %v4507, %v1138
        %v4509 = vmul.f32 %v4506, %v1142
        %4510 = vrot.lane.b32.xlu0 %v4490, 15
        %v4511 = vpop.permute.xlu0 %4510
        %4512 = vrot.lane.b32.xlu0 %v4491, 15
        %v4513 = vpop.permute.xlu0 %4512
        %v4514 = vsel %vm1149, %v4511, %v4513
        %v4515 = vsel %vm1149, %v4513, %v4511
        %v4516 = vmul.f32 %v4515, %v1155
        %v4517 = vmul.f32 %v4514, %v1159
        %4518 = vrot.lane.b32.xlu0 %v4490, 1
        %v4519 = vpop.permute.xlu0 %4518
        %4520 = vrot.lane.b32.xlu0 %v4491, 1
        %v4521 = vpop.permute.xlu0 %4520
        %v4522 = vsel %vm1166, %v4519, %v4521
        %v4523 = vsel %vm1166, %v4521, %v4519
        %v4524 = vmul.f32 %v4523, %v1172
        %v4525 = vmul.f32 %v4522, %v1176
        %4526 = vrot.lane.b32.xlu0 %v4490, 127
        %v4527 = vpop.permute.xlu0 %4526
        %4528 = vrot.lane.b32.xlu0 %v4491, 127
        %v4529 = vpop.permute.xlu0 %4528
        %v4530 = vsel %vm1183, %v4527, %v4529
        %v4531 = vsel %vm1183, %v4529, %v4527
        %v4532 = vmul.f32 %v4530, %v1189
        %v4533 = vmul.f32 %v4531, %v1193
        %4534 = vrot.lane.b32.xlu0 %v4490, 113
        %v4535 = vpop.permute.xlu0 %4534
        %4536 = vrot.lane.b32.xlu0 %v4491, 113
        %v4537 = vpop.permute.xlu0 %4536
        %v4538 = vsel %vm1200, %v4535, %v4537
        %v4539 = vsel %vm1200, %v4537, %v4535
        %v4540 = vmul.f32 %v4538, %v1206
        %v4541 = vmul.f32 %v4539, %v1210
        %4542 = vrot.lane.b32.xlu0 %v4490, 112
        %v4543 = vpop.permute.xlu0 %4542
        %4544 = vrot.lane.b32.xlu0 %v4491, 112
        %v4545 = vpop.permute.xlu0 %4544
        %v4546 = vsel %vm1217, %v4543, %v4545
        %v4547 = vsel %vm1217, %v4545, %v4543
        %v4548 = vmul.f32 %v4546, %v1223
        %v4549 = vmul.f32 %v4547, %v1227
        %4550 = vrot.lane.b32.xlu0 %v4490, 111
        %v4551 = vpop.permute.xlu0 %4550
        %4552 = vrot.lane.b32.xlu0 %v4491, 111
        %v4553 = vpop.permute.xlu0 %4552
        %v4554 = vsel %vm1234, %v4551, %v4553
        %v4555 = vsel %vm1234, %v4553, %v4551
        %v4556 = vmul.f32 %v4554, %v1240
        %v4557 = vmul.f32 %v4555, %v1244
        %v4560 = vrot.slane %v4508, 2
        %v4561 = vrot.slane %v4509, 2
        %v4566 = vrot.slane %v4516, 4
        %v4567 = vrot.slane %v4517, 4
        %v4572 = vrot.slane %v4524, 6
        %v4573 = vrot.slane %v4525, 6
        %v4578 = vrot.slane %v4532, 2
        %v4579 = vrot.slane %v4533, 2
        %v4584 = vrot.slane %v4540, 4
        %v4585 = vrot.slane %v4541, 4
        %v4590 = vrot.slane %v4548, 6
        %v4591 = vrot.slane %v4549, 6
        %v4594 = vsel %vm1289, %v4500, %v4560
        %v4595 = vsel %vm1289, %v4501, %v4561
        %v4596 = vsel %vm1286, %v4560, %v4566
        %v4597 = vsel %vm1286, %v4561, %v4567
        %v4598 = vsel %vm1283, %v4566, %v4572
        %v4599 = vsel %vm1283, %v4567, %v4573
        %v4600 = vsel %vm1289, %v4490, %v4578
        %v4601 = vsel %vm1289, %v4491, %v4579
        %v4602 = vsel %vm1286, %v4578, %v4584
        %v4603 = vsel %vm1286, %v4579, %v4585
        %v4604 = vsel %vm1283, %v4584, %v4590
        %v4605 = vsel %vm1283, %v4585, %v4591
        %4607 = vset.pattern.permute.xlu0 0
        %4608 = vperm.xlu0 %4607, %v4493
        %v4609 = vpop.permute.xlu0 %4608
        %v4612 = vsel %vm1506, %v4492, 0
        %v4615 = vsel %vm1289, %v4556, 0
        %v4618 = vsel %vm1289, %v4557, 0
        %4620 = vmatprep.subr.mxu0 %v4595
        %4621 = vmatpush1.msra.mxu0 %v4594
        %4622 = vmatprep.subr.mxu0 %v4597
        %4623 = vmatpush1.msra.mxu0 %v4596
        %4624 = vmatprep.subr.mxu0 %v4599
        %4625 = vmatpush1.msra.mxu0 %v4598
        %4626 = vmatprep.subr.mxu0 %v4601
        %4627 = vmatpush1.msra.mxu0 %v4600
        %4628 = vmatprep.subr.mxu0 %v4603
        %4629 = vmatpush1.msra.mxu0 %v4602
        %4630 = vmatprep.subr.mxu0 %v4605
        %4631 = vmatpush1.msra.mxu0 %v4604
        %4632 = vmatprep.subr.mxu0 %v4618
        %4633 = vmatpush1.msra.mxu0 %v4615
        %4634 = vmatprep.subr.mxu0 0.0
        %4635 = vmatpush1.msra.mxu0 0.0
        %4636 = vmatprep.subr.mxu0 0.0
        %4637 = vmatpush1.msra.mxu0 0.0
        %4638 = vmatprep.subr.mxu0 0.0
        %4639 = vmatpush1.msra.mxu0 0.0
        %4640 = vmatprep.subr.mxu0 0.0
        %4641 = vmatpush1.msra.mxu0 0.0
        %4642 = vmatprep.subr.mxu0 0.0
        %4643 = vmatpush1.msra.mxu0 0.0
        %4644 = vmatprep.subr.mxu0 0.0
        %4645 = vmatpush1.msra.mxu0 0.0
        %4646 = vmatprep.subr.mxu0 0.0
        %4647 = vmatpush1.msra.mxu0 0.0
        %4648 = vmatprep.subr.mxu0 0.0
        %4649 = vmatpush1.msra.mxu0 0.0
        %4650 = vmatprep.subr.mxu0 0.0
        %4651 = vmatpush1.msra.mxu0 0.0
        %4652 = vmatprep.subr.mxu0 0.0
        %4653 = vmatpush1.msra.mxu0 0.0
        %4654 = vmatprep.subr.mxu0 0.0
        %4655 = vmatpush1.msra.mxu0 0.0
        %4656 = vmatprep.subr.mxu0 0.0
        %4657 = vmatpush1.msra.mxu0 0.0
        %4658 = vmatprep.subr.mxu0 0.0
        %4659 = vmatpush1.msra.mxu0 0.0
        %4660 = vmatprep.subr.mxu0 0.0
        %4661 = vmatpush1.msra.mxu0 0.0
        %4662 = vmatprep.subr.mxu0 0.0
        %4663 = vmatpush1.msra.mxu0 0.0
        %4664 = vmatprep.subr.mxu0 0.0
        %4665 = vmatpush1.msra.mxu0 0.0
        %4666 = vmatprep.subr.mxu0 0.0
        %4667 = vmatpush1.msra.mxu0 0.0
        %4668 = vmatprep.subr.mxu0 0.0
        %4669 = vmatpush1.msra.mxu0 0.0
        %4670 = vmatprep.subr.mxu0 0.0
        %4671 = vmatpush1.msra.mxu0 0.0
        %4672 = vmatprep.subr.mxu0 0.0
        %4673 = vmatpush1.msra.mxu0 0.0
        %4674 = vmatprep.subr.mxu0 0.0
        %4675 = vmatpush1.msra.mxu0 0.0
        %4676 = vmatprep.subr.mxu0 0.0
        %4677 = vmatpush1.msra.mxu0 0.0
        %4678 = vmatprep.subr.mxu0 0.0
        %4679 = vmatpush1.msra.mxu0 0.0
        %4680 = vmatprep.subr.mxu0 0.0
        %4681 = vmatpush1.msra.mxu0 0.0
        %4682 = vmatprep.subr.mxu0 0.0
        %4683 = vmatpush1.msra.mxu0 0.0
        %4684 = vmatprep.mubr.f32.mxu0 0.0
        %4685 = vmatmul.mubr.f32.gmra.mrb[0].mxu0 %v4612
        %v4686 = vpop.f32.mrb[0].mxu0
        %v4687 = vadd.f32 %v4609, %v4686
        %v4688 = vpop.f32.mrb[0].mxu0
        %v4689 = vadd.f32 %v4609, %v4688
        %4690 = vdwg.mxu0
        %v4691 = vmax.f32 %v4687, 0.0
        %v4692 = vmax.f32 %v4689, 0.0
        %v4693 = vld [vmem:[%s9] sm:$0x3f]
        %v4694 = vld [vmem:[%s10] sm:$0x3f]
        %4695 = vrot.lane.b32.xlu0 %v4691, 17
        %v4696 = vpop.permute.xlu0 %4695
        %4697 = vrot.lane.b32.xlu0 %v4692, 17
        %v4698 = vpop.permute.xlu0 %4697
        %v4699 = vsel %vm1115, %v4696, %v4698
        %v4700 = vsel %vm1115, %v4698, %v4696
        %v4701 = vmul.f32 %v4700, %v1121
        %v4702 = vmul.f32 %v4699, %v1125
        %4703 = vrot.lane.b32.xlu0 %v4691, 16
        %v4704 = vpop.permute.xlu0 %4703
        %4705 = vrot.lane.b32.xlu0 %v4692, 16
        %v4706 = vpop.permute.xlu0 %4705
        %v4707 = vsel %vm1132, %v4704, %v4706
        %v4708 = vsel %vm1132, %v4706, %v4704
        %v4709 = vmul.f32 %v4708, %v1138
        %v4710 = vmul.f32 %v4707, %v1142
        %4711 = vrot.lane.b32.xlu0 %v4691, 15
        %v4712 = vpop.permute.xlu0 %4711
        %4713 = vrot.lane.b32.xlu0 %v4692, 15
        %v4714 = vpop.permute.xlu0 %4713
        %v4715 = vsel %vm1149, %v4712, %v4714
        %v4716 = vsel %vm1149, %v4714, %v4712
        %v4717 = vmul.f32 %v4716, %v1155
        %v4718 = vmul.f32 %v4715, %v1159
        %4719 = vrot.lane.b32.xlu0 %v4691, 1
        %v4720 = vpop.permute.xlu0 %4719
        %4721 = vrot.lane.b32.xlu0 %v4692, 1
        %v4722 = vpop.permute.xlu0 %4721
        %v4723 = vsel %vm1166, %v4720, %v4722
        %v4724 = vsel %vm1166, %v4722, %v4720
        %v4725 = vmul.f32 %v4724, %v1172
        %v4726 = vmul.f32 %v4723, %v1176
        %4727 = vrot.lane.b32.xlu0 %v4691, 127
        %v4728 = vpop.permute.xlu0 %4727
        %4729 = vrot.lane.b32.xlu0 %v4692, 127
        %v4730 = vpop.permute.xlu0 %4729
        %v4731 = vsel %vm1183, %v4728, %v4730
        %v4732 = vsel %vm1183, %v4730, %v4728
        %v4733 = vmul.f32 %v4731, %v1189
        %v4734 = vmul.f32 %v4732, %v1193
        %4735 = vrot.lane.b32.xlu0 %v4691, 113
        %v4736 = vpop.permute.xlu0 %4735
        %4737 = vrot.lane.b32.xlu0 %v4692, 113
        %v4738 = vpop.permute.xlu0 %4737
        %v4739 = vsel %vm1200, %v4736, %v4738
        %v4740 = vsel %vm1200, %v4738, %v4736
        %v4741 = vmul.f32 %v4739, %v1206
        %v4742 = vmul.f32 %v4740, %v1210
        %4743 = vrot.lane.b32.xlu0 %v4691, 112
        %v4744 = vpop.permute.xlu0 %4743
        %4745 = vrot.lane.b32.xlu0 %v4692, 112
        %v4746 = vpop.permute.xlu0 %4745
        %v4747 = vsel %vm1217, %v4744, %v4746
        %v4748 = vsel %vm1217, %v4746, %v4744
        %v4749 = vmul.f32 %v4747, %v1223
        %v4750 = vmul.f32 %v4748, %v1227
        %4751 = vrot.lane.b32.xlu0 %v4691, 111
        %v4752 = vpop.permute.xlu0 %4751
        %4753 = vrot.lane.b32.xlu0 %v4692, 111
        %v4754 = vpop.permute.xlu0 %4753
        %v4755 = vsel %vm1234, %v4752, %v4754
        %v4756 = vsel %vm1234, %v4754, %v4752
        %v4757 = vmul.f32 %v4755, %v1240
        %v4758 = vmul.f32 %v4756, %v1244
        %v4761 = vrot.slane %v4709, 2
        %v4762 = vrot.slane %v4710, 2
        %v4767 = vrot.slane %v4717, 4
        %v4768 = vrot.slane %v4718, 4
        %v4773 = vrot.slane %v4725, 6
        %v4774 = vrot.slane %v4726, 6
        %v4779 = vrot.slane %v4733, 2
        %v4780 = vrot.slane %v4734, 2
        %v4785 = vrot.slane %v4741, 4
        %v4786 = vrot.slane %v4742, 4
        %v4791 = vrot.slane %v4749, 6
        %v4792 = vrot.slane %v4750, 6
        %v4795 = vsel %vm1289, %v4701, %v4761
        %v4796 = vsel %vm1289, %v4702, %v4762
        %v4797 = vsel %vm1286, %v4761, %v4767
        %v4798 = vsel %vm1286, %v4762, %v4768
        %v4799 = vsel %vm1283, %v4767, %v4773
        %v4800 = vsel %vm1283, %v4768, %v4774
        %v4801 = vsel %vm1289, %v4691, %v4779
        %v4802 = vsel %vm1289, %v4692, %v4780
        %v4803 = vsel %vm1286, %v4779, %v4785
        %v4804 = vsel %vm1286, %v4780, %v4786
        %v4805 = vsel %vm1283, %v4785, %v4791
        %v4806 = vsel %vm1283, %v4786, %v4792
        %4808 = vset.pattern.permute.xlu0 0
        %4809 = vperm.xlu0 %4808, %v4694
        %v4810 = vpop.permute.xlu0 %4809
        %v4813 = vsel %vm1506, %v4693, 0
        %v4816 = vsel %vm1289, %v4757, 0
        %v4819 = vsel %vm1289, %v4758, 0
        %4821 = vmatprep.subr.mxu0 %v4796
        %4822 = vmatpush1.msra.mxu0 %v4795
        %4823 = vmatprep.subr.mxu0 %v4798
        %4824 = vmatpush1.msra.mxu0 %v4797
        %4825 = vmatprep.subr.mxu0 %v4800
        %4826 = vmatpush1.msra.mxu0 %v4799
        %4827 = vmatprep.subr.mxu0 %v4802
        %4828 = vmatpush1.msra.mxu0 %v4801
        %4829 = vmatprep.subr.mxu0 %v4804
        %4830 = vmatpush1.msra.mxu0 %v4803
        %4831 = vmatprep.subr.mxu0 %v4806
        %4832 = vmatpush1.msra.mxu0 %v4805
        %4833 = vmatprep.subr.mxu0 %v4819
        %4834 = vmatpush1.msra.mxu0 %v4816
        %4835 = vmatprep.subr.mxu0 0.0
        %4836 = vmatpush1.msra.mxu0 0.0
        %4837 = vmatprep.subr.mxu0 0.0
        %4838 = vmatpush1.msra.mxu0 0.0
        %4839 = vmatprep.subr.mxu0 0.0
        %4840 = vmatpush1.msra.mxu0 0.0
        %4841 = vmatprep.subr.mxu0 0.0
        %4842 = vmatpush1.msra.mxu0 0.0
        %4843 = vmatprep.subr.mxu0 0.0
        %4844 = vmatpush1.msra.mxu0 0.0
        %4845 = vmatprep.subr.mxu0 0.0
        %4846 = vmatpush1.msra.mxu0 0.0
        %4847 = vmatprep.subr.mxu0 0.0
        %4848 = vmatpush1.msra.mxu0 0.0
        %4849 = vmatprep.subr.mxu0 0.0
        %4850 = vmatpush1.msra.mxu0 0.0
        %4851 = vmatprep.subr.mxu0 0.0
        %4852 = vmatpush1.msra.mxu0 0.0
        %4853 = vmatprep.subr.mxu0 0.0
        %4854 = vmatpush1.msra.mxu0 0.0
        %4855 = vmatprep.subr.mxu0 0.0
        %4856 = vmatpush1.msra.mxu0 0.0
        %4857 = vmatprep.subr.mxu0 0.0
        %4858 = vmatpush1.msra.mxu0 0.0
        %4859 = vmatprep.subr.mxu0 0.0
        %4860 = vmatpush1.msra.mxu0 0.0
        %4861 = vmatprep.subr.mxu0 0.0
        %4862 = vmatpush1.msra.mxu0 0.0
        %4863 = vmatprep.subr.mxu0 0.0
        %4864 = vmatpush1.msra.mxu0 0.0
        %4865 = vmatprep.subr.mxu0 0.0
        %4866 = vmatpush1.msra.mxu0 0.0
        %4867 = vmatprep.subr.mxu0 0.0
        %4868 = vmatpush1.msra.mxu0 0.0
        %4869 = vmatprep.subr.mxu0 0.0
        %4870 = vmatpush1.msra.mxu0 0.0
        %4871 = vmatprep.subr.mxu0 0.0
        %4872 = vmatpush1.msra.mxu0 0.0
        %4873 = vmatprep.subr.mxu0 0.0
        %4874 = vmatpush1.msra.mxu0 0.0
        %4875 = vmatprep.subr.mxu0 0.0
        %4876 = vmatpush1.msra.mxu0 0.0
        %4877 = vmatprep.subr.mxu0 0.0
        %4878 = vmatpush1.msra.mxu0 0.0
        %4879 = vmatprep.subr.mxu0 0.0
        %4880 = vmatpush1.msra.mxu0 0.0
        %4881 = vmatprep.subr.mxu0 0.0
        %4882 = vmatpush1.msra.mxu0 0.0
        %4883 = vmatprep.subr.mxu0 0.0
        %4884 = vmatpush1.msra.mxu0 0.0
        %4885 = vmatprep.mubr.f32.mxu0 0.0
        %4886 = vmatmul.mubr.f32.gmra.mrb[0].mxu0 %v4813
        %v4887 = vpop.f32.mrb[0].mxu0
        %v4888 = vadd.f32 %v4810, %v4887
        %v4889 = vpop.f32.mrb[0].mxu0
        %v4890 = vadd.f32 %v4810, %v4889
        %4891 = vdwg.mxu0
        %v4892 = vadd.f32 %v4490, %v4888
        %v4893 = vadd.f32 %v4491, %v4890
        %4894 = vmatprep.subr.mxu0 %v597
        %4895 = vmatpush1.msra.mxu0 %v596
        %4896 = vmatprep.subr.mxu0 %v601
        %4897 = vmatpush1.msra.mxu0 %v600
        %4898 = vmatprep.subr.mxu0 %v605
        %4899 = vmatpush1.msra.mxu0 %v604
        %4900 = vmatprep.subr.mxu0 %v609
        %4901 = vmatpush1.msra.mxu0 %v608
        %4902 = vmatprep.subr.mxu0 %v613
        %4903 = vmatpush1.msra.mxu0 %v612
        %4904 = vmatprep.subr.mxu0 %v617
        %4905 = vmatpush1.msra.mxu0 %v616
        %4906 = vmatprep.subr.mxu0 %v621
        %4907 = vmatpush1.msra.mxu0 %v620
        %4908 = vmatprep.subr.mxu0 %v625
        %4909 = vmatpush1.msra.mxu0 %v624
        %4910 = vmatprep.subr.mxu0 %v629
        %4911 = vmatpush1.msra.mxu0 %v628
        %4912 = vmatprep.subr.mxu0 %v633
        %4913 = vmatpush1.msra.mxu0 %v632
        %4914 = vmatprep.subr.mxu0 %v637
        %4915 = vmatpush1.msra.mxu0 %v636
        %4916 = vmatprep.subr.mxu0 %v641
        %4917 = vmatpush1.msra.mxu0 %v640
        %4918 = vmatprep.subr.mxu0 %v645
        %4919 = vmatpush1.msra.mxu0 %v644
        %4920 = vmatprep.subr.mxu0 %v649
        %4921 = vmatpush1.msra.mxu0 %v648
        %4922 = vmatprep.subr.mxu0 %v653
        %4923 = vmatpush1.msra.mxu0 %v652
        %4924 = vmatprep.subr.mxu0 %v657
        %4925 = vmatpush1.msra.mxu0 %v656
        %4926 = vmatprep.subr.mxu0 %v661
        %4927 = vmatpush1.msra.mxu0 %v660
        %4928 = vmatprep.subr.mxu0 %v665
        %4929 = vmatpush1.msra.mxu0 %v664
        %4930 = vmatprep.subr.mxu0 %v669
        %4931 = vmatpush1.msra.mxu0 %v668
        %4932 = vmatprep.subr.mxu0 %v673
        %4933 = vmatpush1.msra.mxu0 %v672
        %4934 = vmatprep.subr.mxu0 %v677
        %4935 = vmatpush1.msra.mxu0 %v676
        %4936 = vmatprep.subr.mxu0 %v681
        %4937 = vmatpush1.msra.mxu0 %v680
        %4938 = vmatprep.subr.mxu0 %v685
        %4939 = vmatpush1.msra.mxu0 %v684
        %4940 = vmatprep.subr.mxu0 %v689
        %4941 = vmatpush1.msra.mxu0 %v688
        %4942 = vmatprep.subr.mxu0 %v693
        %4943 = vmatpush1.msra.mxu0 %v692
        %4944 = vmatprep.subr.mxu0 %v697
        %4945 = vmatpush1.msra.mxu0 %v696
        %4946 = vmatprep.subr.mxu0 %v701
        %4947 = vmatpush1.msra.mxu0 %v700
        %4948 = vmatprep.subr.mxu0 %v705
        %4949 = vmatpush1.msra.mxu0 %v704
        %4950 = vmatprep.subr.mxu0 %v709
        %4951 = vmatpush1.msra.mxu0 %v708
        %4952 = vmatprep.subr.mxu0 %v713
        %4953 = vmatpush1.msra.mxu0 %v712
        %4954 = vmatprep.subr.mxu0 %v717
        %4955 = vmatpush1.msra.mxu0 %v716
        %4956 = vmatprep.subr.mxu0 %v721
        %4957 = vmatpush1.msra.mxu0 %v720
        %4958 = vmatprep.mubr.f32.mxu0 %v4893
        %4959 = vmatmul.mubr.f32.gmra.mrb[0].mxu0 %v4892
        %v4960 = vpop.f32.mrb[0].mxu0
        %v4961 = vadd.f32 0.0, %v4960
        %v4962 = vpop.f32.mrb[0].mxu0
        %v4963 = vadd.f32 0.0, %v4962
        %4964 = vdwg.mxu0
        %4965 = vmatprep.subr.mxu0 %v599
        %4966 = vmatpush1.msra.mxu0 %v598
        %4967 = vmatprep.subr.mxu0 %v603
        %4968 = vmatpush1.msra.mxu0 %v602
        %4969 = vmatprep.subr.mxu0 %v607
        %4970 = vmatpush1.msra.mxu0 %v606
        %4971 = vmatprep.subr.mxu0 %v611
        %4972 = vmatpush1.msra.mxu0 %v610
        %4973 = vmatprep.subr.mxu0 %v615
        %4974 = vmatpush1.msra.mxu0 %v614
        %4975 = vmatprep.subr.mxu0 %v619
        %4976 = vmatpush1.msra.mxu0 %v618
        %4977 = vmatprep.subr.mxu0 %v623
        %4978 = vmatpush1.msra.mxu0 %v622
        %4979 = vmatprep.subr.mxu0 %v627
        %4980 = vmatpush1.msra.mxu0 %v626
        %4981 = vmatprep.subr.mxu0 %v631
        %4982 = vmatpush1.msra.mxu0 %v630
        %4983 = vmatprep.subr.mxu0 %v635
        %4984 = vmatpush1.msra.mxu0 %v634
        %4985 = vmatprep.subr.mxu0 %v639
        %4986 = vmatpush1.msra.mxu0 %v638
        %4987 = vmatprep.subr.mxu0 %v643
        %4988 = vmatpush1.msra.mxu0 %v642
        %4989 = vmatprep.subr.mxu0 %v647
        %4990 = vmatpush1.msra.mxu0 %v646
        %4991 = vmatprep.subr.mxu0 %v651
        %4992 = vmatpush1.msra.mxu0 %v650
        %4993 = vmatprep.subr.mxu0 %v655
        %4994 = vmatpush1.msra.mxu0 %v654
        %4995 = vmatprep.subr.mxu0 %v659
        %4996 = vmatpush1.msra.mxu0 %v658
        %4997 = vmatprep.subr.mxu0 %v663
        %4998 = vmatpush1.msra.mxu0 %v662
        %4999 = vmatprep.subr.mxu0 %v667
        %5000 = vmatpush1.msra.mxu0 %v666
        %5001 = vmatprep.subr.mxu0 %v671
        %5002 = vmatpush1.msra.mxu0 %v670
        %5003 = vmatprep.subr.mxu0 %v675
        %5004 = vmatpush1.msra.mxu0 %v674
        %5005 = vmatprep.subr.mxu0 %v679
        %5006 = vmatpush1.msra.mxu0 %v678
        %5007 = vmatprep.subr.mxu0 %v683
        %5008 = vmatpush1.msra.mxu0 %v682
        %5009 = vmatprep.subr.mxu0 %v687
        %5010 = vmatpush1.msra.mxu0 %v686
        %5011 = vmatprep.subr.mxu0 %v691
        %5012 = vmatpush1.msra.mxu0 %v690
        %5013 = vmatprep.subr.mxu0 %v695
        %5014 = vmatpush1.msra.mxu0 %v694
        %5015 = vmatprep.subr.mxu0 %v699
        %5016 = vmatpush1.msra.mxu0 %v698
        %5017 = vmatprep.subr.mxu0 %v703
        %5018 = vmatpush1.msra.mxu0 %v702
        %5019 = vmatprep.subr.mxu0 %v707
        %5020 = vmatpush1.msra.mxu0 %v706
        %5021 = vmatprep.subr.mxu0 %v711
        %5022 = vmatpush1.msra.mxu0 %v710
        %5023 = vmatprep.subr.mxu0 %v715
        %5024 = vmatpush1.msra.mxu0 %v714
        %5025 = vmatprep.subr.mxu0 %v719
        %5026 = vmatpush1.msra.mxu0 %v718
        %5027 = vmatprep.subr.mxu0 %v723
        %5028 = vmatpush1.msra.mxu0 %v722
        %5029 = vmatprep.mubr.f32.mxu0 %v4893
        %5030 = vmatmul.mubr.f32.gmra.mrb[0].mxu0 %v4892
        %v5031 = vpop.f32.mrb[0].mxu0
        %v5032 = vadd.f32 0.0, %v5031
        %v5033 = vpop.f32.mrb[0].mxu0
        %v5034 = vadd.f32 0.0, %v5033
        %5035 = vdwg.mxu0
        %v5038 = vrot.slane %v5032, 1
        %v5039 = vrot.slane %v5034, 1
        %v5042 = vsub.f32 %v4961, %v5038
        %v5043 = vsub.f32 %v4963, %v5039
        %v5046 = vrot.slane %v4961, 1
        %v5047 = vrot.slane %v4963, 1
        %v5050 = vadd.f32 %v5032, %v5046
        %v5051 = vadd.f32 %v5034, %v5047
        %v5052 = vmul.f32 %v4322, 2.0
        %v5053 = vmul.f32 %v4323, 2.0
        %v5054 = vmul.f32 %v5052, %v4322
        %v5055 = vmul.f32 %v5053, %v4323
        %v5056 = vadd.f32 %v5054, 1.0
        %v5057 = vadd.f32 %v5055, 1.0
        %v5058 = vmul.f32 %v4322, %v3494
        %v5059 = vmul.f32 %v4323, %v3498
        %v5060 = vadd.f32 %v5042, %v5058
        %v5061 = vadd.f32 %v5043, %v5059
        %v5062 = vrcp.pop %v5056
        %v5063 = vmul.f32 %v5060, %v5062
        %v5064 = vrcp.pop %v5057
        %v5065 = vmul.f32 %v5061, %v5064
        %v5066 = vmul.f32 %v4322, %v3512
        %v5067 = vmul.f32 %v4323, %v3516
        %v5068 = vadd.f32 %v5050, %v5066
        %v5069 = vadd.f32 %v5051, %v5067
        %v5070 = vmul.f32 %v5068, %v5062
        %v5071 = vmul.f32 %v5069, %v5064
        %v5074 = vcombine.low %v4892, %v4893
        %v5076 = vunpack.c.l.s4 1983009808
        %v5077 = vunpack.c.0.s8 %v5076
        %v5078 = vlaneseq
        %v5079 = vshrl.u32 %v5078, 7
        %v5080 = vsub.s32 %v5077, %v5079
        %v5081 = vrot.slane %v5074, %v5080
        %s5083 = scalar_lea.vmem %s567, 4 [#allocation6]
        %5084 = vst [vmem:[%s5083] sm:$0xf] %v5081
        %v5087 = vrot.slane %v5070, 7
        %v5088 = vrot.slane %v5071, 7
        %v5091 = vsel %vm939, %v5063, %v5087
        %v5092 = vsel %vm939, %v5065, %v5088
        %v5095 = vcombine.low %v5091, %v5092
        %v5097 = vunpack.c.l.s4 1983009808
        %v5098 = vunpack.c.0.s8 %v5097
        %v5099 = vlaneseq
        %v5100 = vshrl.u32 %v5099, 7
        %v5101 = vsub.s32 %v5098, %v5100
        %v5102 = vrot.slane %v5095, %v5101
        %s5104 = scalar_lea.vmem %s573, 4 [#allocation7]
        %5105 = vst [vmem:[%s5104] sm:$0xf] %v5102
        %v5108 = vcombine.low %v4322, %v4323
        %v5110 = vunpack.c.l.s4 1966171168
        %v5111 = vunpack.c.0.s8 %v5110
        %v5112 = vlaneseq
        %v5113 = vshrl.u32 %v5112, 7
        %v5114 = vsub.s32 %v5111, %v5113
        %v5115 = vrot.slane %v5108, %v5114
        %v5117 = vunpack.c.l.s4 1966171168
        %v5118 = vunpack.c.0.s8 %v5117
        %v5119 = vlaneseq
        %v5120 = vshrl.u32 %v5119, 7
        %v5121 = vsub.s32 %v5118, %v5120
        %v5122 = vrot.slane %v5115, %v5121
        %v5124 = vlaneseq
        %vm5125 = vcmp.ge.s32.totalorder %v5124, 0
        %vm5126 = vcmp.lt.s32.totalorder %v5124, 256
        %vm5127 = vmand %vm5125, %vm5126
        %5128 = vst.msk [vmem:[%s588] sm:$0x3] %vm5127, %v5122
        %s5129 = sand.u32 %s359, 1
        %s5130 = sand.u32 %s359, 1
        %s5131 = smul.addr %s5130, 8
        %s5132 = scalar_lea.vmem [#allocation6], %s5131
        %s5133 = sand.u32 %s385, 1
        %s5134 = sand.u32 %s385, 1
        %s5135 = smul.addr %s5134, 8
        %s5136 = scalar_lea.vmem [#allocation7], %s5135
        %p5137 = scmp.lt.s32.totalorder %s31, 1
        %s5138 = scalar_select %p5137, %s31, 1
        %s5139 = smul.addr %s5138, 2
        %s5140 = scalar_lea.vmem %s17, %s5139
        // Predicated region
        $region89: #{mxnet_forward.1} parent=79 // pred_check
          %p5141 = pneg %p369
        $region90: #{mxnet_forward.1} parent=79 // pred_check_branch
          %5143 = sbr.rel (%p5141) target = $region92
        $region91: #{mxnet_forward.1} parent=79 // pred_region
          %s5144 = smul.addr %s31, 2
          %s5145 = smul.addr %s5144, 2
          %s5146 = scalar_lea.vmem %s15, %s5145
          // Predicated region
          $region93: #{mxnet_forward.1} parent=91 // pred_check
            _
          $region94: #{mxnet_forward.1} parent=91 // pred_check_branch
            %5148 = sbr.rel (0) target = $region96
          $region95: #{mxnet_forward.1} parent=91 // pred_region
            // Predicated region
            $region97: #{mxnet_forward.1} parent=95 // pred_check
              _
            $region98: #{mxnet_forward.1} parent=95 // pred_check_branch
              %5150 = sbr.rel target = $region100
            $region99: #{mxnet_forward.1} parent=95 // pred_region
              // Predicated region
              $region112: #{mxnet_forward.1} parent=99 // pred_check
                _
              $region113: #{mxnet_forward.1} parent=99 // pred_check_branch
                %5167 = sbr.rel (0) target = $region115
              $region114: #{mxnet_forward.1} parent=99 // pred_region
                loop: start=0, step=1, limit=1
                $region116: #{mxnet_forward.1} parent=114 // loop_pre_header
                  _
                $region117: #{mxnet_forward.1} parent=114 // loop_header
                  %s5169 = sphi 0, %s5173
                  %p5170 = scmp.ge.s32.totalorder %s5169, 1
                  %s5174 = sphi %s5132, %s5132
                  %s5175 = sphi %s5146, %s5146
                $region118: #{mxnet_forward.1} parent=114 // loop_header_branch
                  %5172 = sbr.rel (%p5170) target = $region122
                $region119: #{mxnet_forward.1} parent=114 // loop_body
                  _
                $region120: #{mxnet_forward.1} parent=114 // loop_footer
                  %s5173 = sadd.s32 1, %s5169
                $region121: #{mxnet_forward.1} parent=114 // loop_footer_branch
                  %5168 = sbr.rel target = $region117
                $region122: #{mxnet_forward.1} parent=114 // loop_exit
                  _
                loop: start=0, step=1, limit=1
                $region123: #{mxnet_forward.1} parent=114 // loop_pre_header
                  _
                $region124: #{mxnet_forward.1} parent=114 // loop_header
                  %s5178 = sphi 0, %s5182
                  %p5179 = scmp.ge.s32.totalorder %s5178, 1
                  %s5183 = sphi %s5132, %s5132
                  %s5184 = sphi %s5146, %s5146
                $region125: #{mxnet_forward.1} parent=114 // loop_header_branch
                  %5181 = sbr.rel (%p5179) target = $region129
                $region126: #{mxnet_forward.1} parent=114 // loop_body
                  %v5185 = vld [vmem:[%s5183] sm:$0xf]
                  %5186 = vst [vmem:[%s5184] sm:$0xf] %v5185
                  %v5187 = vld [vmem:[%s5183 + $0x4] sm:$0xf]
                  %5188 = vst [vmem:[%s5184 + $0x8] sm:$0xf] %v5187
                $region127: #{mxnet_forward.1} parent=114 // loop_footer
                  %s5182 = sadd.s32 1, %s5178
                $region128: #{mxnet_forward.1} parent=114 // loop_footer_branch
                  %5177 = sbr.rel target = $region124
                $region129: #{mxnet_forward.1} parent=114 // loop_exit
                  _
              $region115: #{mxnet_forward.1} parent=99 // pred_fallthru
                _
            $region100: #{mxnet_forward.1} parent=95 // pred_fallthru
              _
            // Predicated region
            $region101: #{mxnet_forward.1} parent=95 // pred_check
              _
            $region102: #{mxnet_forward.1} parent=95 // pred_check_branch
              %5152 = sbr.rel (0) target = $region104
            $region103: #{mxnet_forward.1} parent=95 // pred_region
              loop: start=0, step=1, limit=1
              $region105: #{mxnet_forward.1} parent=103 // loop_pre_header
                _
              $region106: #{mxnet_forward.1} parent=103 // loop_header
                %s5155 = sphi 0, %s5159
                %p5156 = scmp.ge.s32.totalorder %s5155, 1
                %s5160 = sphi %s5132, %s5132
                %s5161 = sphi %s5146, %s5146
              $region107: #{mxnet_forward.1} parent=103 // loop_header_branch
                %5158 = sbr.rel (%p5156) target = $region111
              $region108: #{mxnet_forward.1} parent=103 // loop_body
                %v5162 = vld [vmem:[%s5160] sm:$0xf]
                %5163 = vst [vmem:[%s5161] sm:$0xf] %v5162
                %v5164 = vld [vmem:[%s5160 + $0x4] sm:$0xf]
                %5165 = vst [vmem:[%s5161 + $0x8] sm:$0xf] %v5164
              $region109: #{mxnet_forward.1} parent=103 // loop_footer
                %s5159 = sadd.s32 1, %s5155
              $region110: #{mxnet_forward.1} parent=103 // loop_footer_branch
                %5154 = sbr.rel target = $region106
              $region111: #{mxnet_forward.1} parent=103 // loop_exit
                _
            $region104: #{mxnet_forward.1} parent=95 // pred_fallthru
              _
          $region96: #{mxnet_forward.1} parent=91 // pred_fallthru
            _
          %5189 = vnop
        $region92: #{mxnet_forward.1} parent=79 // pred_fallthru
          _
        // Predicated region
        $region130: #{mxnet_forward.1} parent=79 // pred_check
          %p5190 = pneg %p395
        $region131: #{mxnet_forward.1} parent=79 // pred_check_branch
          %5192 = sbr.rel (%p5190) target = $region133
        $region132: #{mxnet_forward.1} parent=79 // pred_region
          %s5193 = smul.addr %s31, 2
          %s5194 = smul.addr %s5193, 2
          %s5195 = scalar_lea.vmem %s16, %s5194
          // Predicated region
          $region134: #{mxnet_forward.1} parent=132 // pred_check
            _
          $region135: #{mxnet_forward.1} parent=132 // pred_check_branch
            %5197 = sbr.rel (0) target = $region137
          $region136: #{mxnet_forward.1} parent=132 // pred_region
            // Predicated region
            $region138: #{mxnet_forward.1} parent=136 // pred_check
              _
            $region139: #{mxnet_forward.1} parent=136 // pred_check_branch
              %5199 = sbr.rel target = $region141
            $region140: #{mxnet_forward.1} parent=136 // pred_region
              // Predicated region
              $region153: #{mxnet_forward.1} parent=140 // pred_check
                _
              $region154: #{mxnet_forward.1} parent=140 // pred_check_branch
                %5216 = sbr.rel (0) target = $region156
              $region155: #{mxnet_forward.1} parent=140 // pred_region
                loop: start=0, step=1, limit=1
                $region157: #{mxnet_forward.1} parent=155 // loop_pre_header
                  _
                $region158: #{mxnet_forward.1} parent=155 // loop_header
                  %s5218 = sphi 0, %s5222
                  %p5219 = scmp.ge.s32.totalorder %s5218, 1
                  %s5223 = sphi %s5136, %s5136
                  %s5224 = sphi %s5195, %s5195
                $region159: #{mxnet_forward.1} parent=155 // loop_header_branch
                  %5221 = sbr.rel (%p5219) target = $region163
                $region160: #{mxnet_forward.1} parent=155 // loop_body
                  _
                $region161: #{mxnet_forward.1} parent=155 // loop_footer
                  %s5222 = sadd.s32 1, %s5218
                $region162: #{mxnet_forward.1} parent=155 // loop_footer_branch
                  %5217 = sbr.rel target = $region158
                $region163: #{mxnet_forward.1} parent=155 // loop_exit
                  _
                loop: start=0, step=1, limit=1
                $region164: #{mxnet_forward.1} parent=155 // loop_pre_header
                  _
                $region165: #{mxnet_forward.1} parent=155 // loop_header
                  %s5227 = sphi 0, %s5231
                  %p5228 = scmp.ge.s32.totalorder %s5227, 1
                  %s5232 = sphi %s5136, %s5136
                  %s5233 = sphi %s5195, %s5195
                $region166: #{mxnet_forward.1} parent=155 // loop_header_branch
                  %5230 = sbr.rel (%p5228) target = $region170
                $region167: #{mxnet_forward.1} parent=155 // loop_body
                  %v5234 = vld [vmem:[%s5232] sm:$0xf]
                  %5235 = vst [vmem:[%s5233] sm:$0xf] %v5234
                  %v5236 = vld [vmem:[%s5232 + $0x4] sm:$0xf]
                  %5237 = vst [vmem:[%s5233 + $0x8] sm:$0xf] %v5236
                $region168: #{mxnet_forward.1} parent=155 // loop_footer
                  %s5231 = sadd.s32 1, %s5227
                $region169: #{mxnet_forward.1} parent=155 // loop_footer_branch
                  %5226 = sbr.rel target = $region165
                $region170: #{mxnet_forward.1} parent=155 // loop_exit
                  _
              $region156: #{mxnet_forward.1} parent=140 // pred_fallthru
                _
            $region141: #{mxnet_forward.1} parent=136 // pred_fallthru
              _
            // Predicated region
            $region142: #{mxnet_forward.1} parent=136 // pred_check
              _
            $region143: #{mxnet_forward.1} parent=136 // pred_check_branch
              %5201 = sbr.rel (0) target = $region145
            $region144: #{mxnet_forward.1} parent=136 // pred_region
              loop: start=0, step=1, limit=1
              $region146: #{mxnet_forward.1} parent=144 // loop_pre_header
                _
              $region147: #{mxnet_forward.1} parent=144 // loop_header
                %s5204 = sphi 0, %s5208
                %p5205 = scmp.ge.s32.totalorder %s5204, 1
                %s5209 = sphi %s5136, %s5136
                %s5210 = sphi %s5195, %s5195
              $region148: #{mxnet_forward.1} parent=144 // loop_header_branch
                %5207 = sbr.rel (%p5205) target = $region152
              $region149: #{mxnet_forward.1} parent=144 // loop_body
                %v5211 = vld [vmem:[%s5209] sm:$0xf]
                %5212 = vst [vmem:[%s5210] sm:$0xf] %v5211
                %v5213 = vld [vmem:[%s5209 + $0x4] sm:$0xf]
                %5214 = vst [vmem:[%s5210 + $0x8] sm:$0xf] %v5213
              $region150: #{mxnet_forward.1} parent=144 // loop_footer
                %s5208 = sadd.s32 1, %s5204
              $region151: #{mxnet_forward.1} parent=144 // loop_footer_branch
                %5203 = sbr.rel target = $region147
              $region152: #{mxnet_forward.1} parent=144 // loop_exit
                _
            $region145: #{mxnet_forward.1} parent=136 // pred_fallthru
              _
          $region137: #{mxnet_forward.1} parent=132 // pred_fallthru
            _
          %5238 = vnop
        $region133: #{mxnet_forward.1} parent=79 // pred_fallthru
          _
        // Predicated region
        $region171: #{mxnet_forward.1} parent=79 // pred_check
          %p5239 = pneg %p421
        $region172: #{mxnet_forward.1} parent=79 // pred_check_branch
          %5241 = sbr.rel (%p5239) target = $region174
        $region173: #{mxnet_forward.1} parent=79 // pred_region
          _
        $region174: #{mxnet_forward.1} parent=79 // pred_fallthru
          _
      $region80: #{mxnet_forward.1} parent=5 // pred_fallthru
        _
      %p5242 = scmp.le.s32.totalorder 2, %s26
      // Predicated region
      $region175: #{mxnet_forward.1} parent=5 // pred_check
        %p5243 = pneg %p5242
      $region176: #{mxnet_forward.1} parent=5 // pred_check_branch
        %5245 = sbr.rel (%p5243) target = $region178
      $region177: #{mxnet_forward.1} parent=5 // pred_region
        %s5246 = ssub.s32 %s26, 2
        // Predicated region
        $region179: #{mxnet_forward.1} parent=177 // pred_check
          %p5247 = pneg %p375
        $region180: #{mxnet_forward.1} parent=177 // pred_check_branch
          %5249 = sbr.rel (%p5247) target = $region182
        $region181: #{mxnet_forward.1} parent=177 // pred_region
          %s5250 = sand.u32 %s360, 1
          %s5251 = sand.u32 %s360, 1
          %s5252 = smul.addr %s5251, 8
          %s5253 = scalar_lea.vmem [#allocation6], %s5252
        $region182: #{mxnet_forward.1} parent=177 // pred_fallthru
          _
        // Predicated region
        $region183: #{mxnet_forward.1} parent=177 // pred_check
          %p5254 = pneg %p401
        $region184: #{mxnet_forward.1} parent=177 // pred_check_branch
          %5256 = sbr.rel (%p5254) target = $region186
        $region185: #{mxnet_forward.1} parent=177 // pred_region
          %s5257 = sand.u32 %s386, 1
          %s5258 = sand.u32 %s386, 1
          %s5259 = smul.addr %s5258, 8
          %s5260 = scalar_lea.vmem [#allocation7], %s5259
        $region186: #{mxnet_forward.1} parent=177 // pred_fallthru
          _
        // Predicated region
        $region187: #{mxnet_forward.1} parent=177 // pred_check
          %p5261 = pneg %p427
        $region188: #{mxnet_forward.1} parent=177 // pred_check_branch
          %5263 = sbr.rel (%p5261) target = $region190
        $region189: #{mxnet_forward.1} parent=177 // pred_region
          %p5264 = scmp.lt.s32.totalorder %s32, 1
          %s5265 = scalar_select %p5264, %s32, 1
          %s5266 = smul.addr %s5265, 2
          %s5267 = scalar_lea.vmem %s17, %s5266
        $region190: #{mxnet_forward.1} parent=177 // pred_fallthru
          _
      $region178: #{mxnet_forward.1} parent=5 // pred_fallthru
        _
    $region6: #{mxnet_forward.1} parent=1 // loop_footer
      %s30 = sadd.s32 1, %s26
    $region7: #{mxnet_forward.1} parent=1 // loop_footer_branch
      %25 = sbr.rel target = $region3
    $region8: #{mxnet_forward.1} parent=1 // loop_exit
      _
    %5268 = vsyncpa [#allocation3], 1
    %s5269 = scalar_lea.sflag [#allocation3], 1
    %5270 = vsyncpa %s5269, 1
    %5271 = vsyncpa [#allocation4], 1
    %s5272 = scalar_lea.sflag [#allocation4], 1
    %5273 = vsyncpa %s5272, 1

</llo_original>
